<compile_context>
chip_gen: v7x
topology: tpu7x:2x2x1
jax: 0.10.0
libtpu: 0.0.40
codegen_flags: <defaults>
</compile_context>

<pallas_src>
import functools

import jax
import jax.numpy as jnp
from jax import lax
from jax.experimental import pallas as pl
from jax.experimental.pallas import tpu as pltpu

F32 = jnp.float32


# ---------------------------------------------------------------------------
# BlockSpec helpers: shared inputs (constant index map, loaded once) vs.
# per-agent inputs (leading agent axis squeezed, indexed by the grid).
# ---------------------------------------------------------------------------
def _shared_spec(arr):
    zeros = (0,) * arr.ndim
    return pl.BlockSpec(tuple(arr.shape), lambda a: zeros)


def _agent_spec(arr):
    trailing = (0,) * (arr.ndim - 1)
    return pl.BlockSpec((None,) + tuple(arr.shape[1:]), lambda a: (a,) + trailing)


# ---------------------------------------------------------------------------
# In-kernel building blocks (operate on values, traced inside the kernel)
# ---------------------------------------------------------------------------
def _layer_norm(x, g, b, eps=1e-5):
    mu = jnp.mean(x, axis=-1, keepdims=True)
    var = jnp.mean((x - mu) ** 2, axis=-1, keepdims=True)
    return (x - mu) * lax.rsqrt(var + eps) * g + b


def _lstm_final_hidden(x2, lengths, wih, whh, b, *, hidden, n_steps, dvtw, n_rows):
    """Length-masked single-layer LSTM over (n_rows, n_steps*dvtw) rows; returns final h.

    Gate packing is [i | f | o | g]: one wide sigmoid over 3H lanes + one tanh.
    PyTorch b_ih + b_hh are assumed pre-summed (and gate-permuted) into `b`.
    """
    H = hidden
    h = jnp.zeros((n_rows, H), jnp.float32)
    c = jnp.zeros((n_rows, H), jnp.float32)
    for t in range(n_steps):  # static unroll (small T)
        xt = x2[:, t * dvtw:(t + 1) * dvtw]
        g = (jnp.dot(xt, wih, preferred_element_type=jnp.float32)
             + jnp.dot(h, whh, preferred_element_type=jnp.float32) + b)
        s = jax.nn.sigmoid(g[:, :3 * H])
        i, f, o = s[:, 0 * H:1 * H], s[:, 1 * H:2 * H], s[:, 2 * H:3 * H]
        gg = jnp.tanh(g[:, 3 * H:4 * H])
        c_new = f * c + i * gg
        h_new = o * jnp.tanh(c_new)
        valid = lengths > t                       # (n_rows, 1): freeze finished rows
        h = jnp.where(valid, h_new, h)
        c = jnp.where(valid, c_new, c)
    return h


def _mha_self_attention(x, in_w, in_b, out_w, out_b, *, num_heads):
    """nn.MultiheadAttention(q=k=v=x) core in (bs, sl, d) layout (eval mode)."""
    bs, sl, d = x.shape
    hd = d // num_heads
    scale = 1.0 / (hd ** 0.5)
    qkv = jnp.dot(x.reshape(bs * sl, d), in_w,
                  preferred_element_type=jnp.float32) + in_b           # (bs*sl, 3d)
    qkv = qkv.reshape(bs, sl, 3 * d)
    o = jnp.zeros((bs * sl, d), jnp.float32)
    for h in range(num_heads):
        qh = qkv[:, :, h * hd:(h + 1) * hd] * scale
        kh = qkv[:, :, d + h * hd:d + (h + 1) * hd]
        vh = qkv[:, :, 2 * d + h * hd:2 * d + (h + 1) * hd]
        s = jnp.einsum("bqd,bkd->bqk", qh, kh, preferred_element_type=jnp.float32)
        s = s - jnp.max(s, axis=-1, keepdims=True)
        e = jnp.exp(s)
        p = e / jnp.sum(e, axis=-1, keepdims=True)
        head = jnp.einsum("bqk,bkd->bqd", p, vh, preferred_element_type=jnp.float32)
        # cat(heads) @ out_w  ==  sum_h head_h @ out_w[h*hd:(h+1)*hd, :]
        o = o + jnp.dot(head.reshape(bs * sl, hd), out_w[h * hd:(h + 1) * hd, :],
                        preferred_element_type=jnp.float32)
    return (o + out_b).reshape(bs, sl, d)


# ---------------------------------------------------------------------------
# Single fused kernel: Embedding + Encoder + Decoder step, grid over agents
# ---------------------------------------------------------------------------
def _fused_agent_kernel(
        # shared inputs / weights
        nr_ref, ngw_ref, glen_ref, state_ref, mask_ref,
        req_w_ref, req_b_ref, gw_wih_ref, gw_whh_ref, gw_b_ref,
        # per-agent inputs
        nlw_ref, llen_ref, xe_ref, h0_ref, c0_ref,
        # per-agent AgentEmbedding weights
        e_wih_ref, e_whh_ref, e_b_ref, e_cw_ref, e_cb_ref, e_lg_ref, e_lb_ref,
        # per-agent AgentEncoder weights
        in_w_ref, in_b_ref, out_w_ref, out_b_ref,
        c1_w_ref, c1_b_ref, c2_w_ref, c2_b_ref, ln_g_ref, ln_b_ref,
        # per-agent AgentDecoder weights
        w1_ref, b1_ref, w2_ref, b2_ref, dwih_ref, dwhh_ref, db_ref,
        winp_ref, binp_ref, wctx_ref, bctx_ref, v_ref,
        # outputs
        enc_ref, alpha_ref, ht_ref, ct_ref,
        # scratch (persists across the sequential agent grid)
        er_sc, egw_sc,
        *, bs, sl, half, num_heads, n_steps, dvtw):
    d = 2 * half
    N = bs * sl

    # --- agent-invariant pieces: computed once (agent 0), reused by every agent ---
    @pl.when(pl.program_id(0) == 0)
    def _():
        # RequireEmbedding: 1x1 conv (feature-last matmul) + relu
        er_sc[...] = jnp.maximum(
            jnp.dot(nr_ref[...], req_w_ref[...],
                    preferred_element_type=jnp.float32) + req_b_ref[...], 0.0)
        # FullEmbedding: length-masked LSTM over the global windows (shared weights)
        egw_sc[...] = _lstm_final_hidden(
            ngw_ref[...], glen_ref[...], gw_wih_ref[...], gw_whh_ref[...],
            gw_b_ref[...], hidden=half, n_steps=n_steps, dvtw=dvtw, n_rows=N)

    er = er_sc[...]
    egw = egw_sc[...]

    # --- AgentEmbedding: per-satellite local-window LSTM + fused 1x1 conv + LN -----
    bw = _lstm_final_hidden(nlw_ref[...], llen_ref[...], e_wih_ref[...],
                            e_whh_ref[...], e_b_ref[...],
                            hidden=half, n_steps=n_steps, dvtw=dvtw, n_rows=N)
    # conv1d(cat(er, egw + bw)) as ONE (N, d) @ (d, d) dot
    x = jnp.dot(jnp.concatenate([er, egw + bw], axis=-1), e_cw_ref[...],
                preferred_element_type=jnp.float32) + e_cb_ref[...]
    x = _layer_norm(x, e_lg_ref[...], e_lb_ref[...])                     # (N, d)
    x3 = x.reshape(bs, sl, d)

    # --- AgentEncoder: MHA + residual LN + 1x1 convs + residual LN -----------------
    attn = _mha_self_attention(x3, in_w_ref[...], in_b_ref[...],
                               out_w_ref[...], out_b_ref[...], num_heads=num_heads)
    x1 = _layer_norm(x3 + attn, ln_g_ref[...], ln_b_ref[...])
    x1f = x1.reshape(N, d)
    h1 = jnp.maximum(jnp.dot(x1f, c1_w_ref[...],
                             preferred_element_type=jnp.float32) + c1_b_ref[...], 0.0)
    h2 = jnp.dot(h1, c2_w_ref[...], preferred_element_type=jnp.float32) + c2_b_ref[...]
    # NOTE: the reference AgentEncoder reuses the SAME layer_norm for both norm sites.
    enc = _layer_norm(x1f + h2, ln_g_ref[...], ln_b_ref[...])            # (N, d)
    enc_ref[...] = enc.reshape(bs, sl, d)

    # --- AgentDecoder (one scheduling step; enc consumed in-register, no HBM trip) --
    H = d
    xs1 = jnp.dot(state_ref[...], w1_ref[...],
                  preferred_element_type=jnp.float32) + b1_ref[...]       # (bs, d)
    # linear2(cat(xs1, xe)) as ONE (bs, 2d) @ (2d, d) dot + relu
    xse = jnp.maximum(
        jnp.dot(jnp.concatenate([xs1, xe_ref[...]], axis=-1), w2_ref[...],
                preferred_element_type=jnp.float32) + b2_ref[...], 0.0)
    # LSTMCell, gates packed [i | f | o | g]; b_ih + b_hh pre-summed into db
    g = (jnp.dot(xse, dwih_ref[...], preferred_element_type=jnp.float32)
         + jnp.dot(h0_ref[...], dwhh_ref[...], preferred_element_type=jnp.float32)
         + db_ref[...])                                                   # (bs, 4d)
    s = jax.nn.sigmoid(g[:, :3 * H])
    i, f, o = s[:, 0 * H:1 * H], s[:, 1 * H:2 * H], s[:, 2 * H:3 * H]
    gg = jnp.tanh(g[:, 3 * H:4 * H])
    ct = f * c0_ref[...] + i * gg
    ht = o * jnp.tanh(ct)
    ht_ref[...] = ht
    ct_ref[...] = ct

    # additive attention over the REAL task axis (no 128-lane padding / wasted work)
    # TODO(synk): for the real multi-step scheduler, ctx = context_linear(enc) is
    # step-invariant per agent and should be cached instead of recomputed per step.
    inp = jnp.dot(ht, winp_ref[...], preferred_element_type=jnp.float32) + binp_ref[...]
    ctx = (jnp.dot(enc, wctx_ref[...], preferred_element_type=jnp.float32)
           + bctx_ref[...]).reshape(bs, sl, d)
    t = jnp.tanh(inp[:, None, :] + ctx)                                   # (bs, sl, d)
    att = jnp.sum(t * v_ref[...], axis=-1)                                # (bs, sl)
    # masked softmax over tasks (att[mask] = -inf in the reference; a finite sentinel
    # keeps an all-masked row NaN-free, numerically identical otherwise)
    att = jnp.where(mask_ref[...] != 0, -1e30, att)
    att = att - jnp.max(att, axis=-1, keepdims=True)
    e = jnp.exp(att)
    alpha_ref[...] = e / jnp.sum(e, axis=-1, keepdims=True)


# ---------------------------------------------------------------------------
# Top-level forward (JAX glue: layout prep + ONE pallas_call)
# ---------------------------------------------------------------------------
@functools.partial(jax.jit, static_argnames=("dim_hidden", "num_heads", "num_agent"))
def multi_agent_forward(nr, ngw, nlw, dn, norm_state, mask, params,
                        dim_hidden, num_heads, num_agent):
    bs, sl = nr.shape[0], nr.shape[1]
    N = bs * sl
    T = ngw.shape[2]
    dvtw = ngw.shape[-1]
    half = dim_hidden // 2

    # Layout prep: layout-preserving reshapes + one tiny agent-major transpose only.
    nr2 = nr.reshape(N, nr.shape[-1]).astype(F32)
    ngw2 = ngw.reshape(N, T * dvtw).astype(F32)
    glen = dn[:, :, -1].reshape(N, 1).astype(jnp.int32)
    nlw2 = nlw.transpose(2, 0, 1, 3, 4).reshape(num_agent, N, T * dvtw).astype(F32)
    llen = dn[:, :, :num_agent].transpose(2, 0, 1).reshape(num_agent, N, 1).astype(jnp.int32)

    # TODO(synk): the greedy while-loop scheduler over `mo` (SingleAgent_StepScheduler,
    # sat_state / results bookkeeping, batch_prob gather, result_evaluation) is
    # host-side data-dependent control flow; one decoder step per agent is run here
    # with zero recurrent state / seq_input, as in the first scheduling step.
    xe = jnp.zeros((num_agent, bs, dim_hidden), F32)
    h0 = jnp.zeros((num_agent, bs, dim_hidden), F32)
    c0 = jnp.zeros((num_agent, bs, dim_hidden), F32)

    pe, pn, pd = params["emb"], params["enc"], params["dec"]
    inputs = [
        # shared
        nr2, ngw2, glen, norm_state.astype(F32), mask.astype(jnp.int32),
        params["req_w"], params["req_b"],
        params["gw_wih"], params["gw_whh"], params["gw_b"],
        # per-agent
        nlw2, llen, xe, h0, c0,
        pe["wih"], pe["whh"], pe["b"], pe["conv_w"], pe["conv_b"], pe["ln_g"], pe["ln_b"],
        pn["in_w"], pn["in_b"], pn["out_w"], pn["out_b"],
        pn["c1_w"], pn["c1_b"], pn["c2_w"], pn["c2_b"], pn["ln_g"], pn["ln_b"],
        pd["w1"], pd["b1"], pd["w2"], pd["b2"], pd["wih"], pd["whh"], pd["blstm"],
        pd["winp"], pd["binp"], pd["wctx"], pd["bctx"], pd["V"],
    ]
    per_agent = [False] * 10 + [True] * (len(inputs) - 10)
    in_specs = [_agent_spec(x) if f else _shared_spec(x) for x, f in zip(inputs, per_agent)]

    enc, alpha, ht, ct = pl.pallas_call(
        functools.partial(_fused_agent_kernel, bs=bs, sl=sl, half=half,
                          num_heads=num_heads, n_steps=T, dvtw=dvtw),
        grid=(num_agent,),
        out_shape=(
            jax.ShapeDtypeStruct((num_agent, bs, sl, dim_hidden), F32),
            jax.ShapeDtypeStruct((num_agent, bs, sl), F32),
            jax.ShapeDtypeStruct((num_agent, bs, dim_hidden), F32),
            jax.ShapeDtypeStruct((num_agent, bs, dim_hidden), F32),
        ),
        in_specs=in_specs,
        out_specs=(
            pl.BlockSpec((None, bs, sl, dim_hidden), lambda a: (a, 0, 0, 0)),
            pl.BlockSpec((None, bs, sl), lambda a: (a, 0, 0)),
            pl.BlockSpec((None, bs, dim_hidden), lambda a: (a, 0, 0)),
            pl.BlockSpec((None, bs, dim_hidden), lambda a: (a, 0, 0)),
        ),
        scratch_shapes=[pltpu.VMEM((N, half), F32), pltpu.VMEM((N, half), F32)],
        # Agent axis must be sequential ("arbitrary") so the er/egw scratch written at
        # grid step 0 is visible to later agents; the whole problem fits one TensorCore
        # at these sizes.  Lane-packing agents (block-diagonal weights) is the next step
        # if num_agent grows.
        compiler_params=pltpu.CompilerParams(dimension_semantics=("arbitrary",)),
    )(*inputs)
    return enc, alpha, ht, ct


# ---------------------------------------------------------------------------
# Deterministic parameter construction (synthetic — shapes from __init__).
# NOTE: real PyTorch weights would need transposing to feature-last (W^T), the
# LSTM/LSTMCell gates permuted from [i|f|g|o] to [i|f|o|g], and b_ih + b_hh
# pre-summed into the single bias rows used here.
# ---------------------------------------------------------------------------
def init_params(key, dim_require, dim_vtw, dim_hidden, num_heads, num_agent, dim_state=6):
    half = dim_hidden // 2
    d = dim_hidden
    A = num_agent
    keys = iter(jax.random.split(key, 64))

    def w(*shape, scale=0.1):
        return (scale * jax.random.normal(next(keys), shape)).astype(F32)

    return dict(
        # shared RequireEmbedding / FullEmbedding
        req_w=w(dim_require, half), req_b=w(1, half),
        gw_wih=w(dim_vtw, 4 * half), gw_whh=w(half, 4 * half), gw_b=w(1, 4 * half),
        # per-agent AgentEmbedding
        emb=dict(wih=w(A, dim_vtw, 4 * half), whh=w(A, half, 4 * half), b=w(A, 1, 4 * half),
                 conv_w=w(A, d, d), conv_b=w(A, 1, d),
                 ln_g=jnp.ones((A, 1, d), F32), ln_b=jnp.zeros((A, 1, d), F32)),
        # per-agent AgentEncoder
        enc=dict(in_w=w(A, d, 3 * d), in_b=w(A, 1, 3 * d),
                 out_w=w(A, d, d), out_b=w(A, 1, d),
                 c1_w=w(A, d, d), c1_b=w(A, 1, d),
                 c2_w=w(A, d, d), c2_b=w(A, 1, d),
                 ln_g=jnp.ones((A, 1, d), F32), ln_b=jnp.zeros((A, 1, d), F32)),
        # per-agent AgentDecoder
        dec=dict(w1=w(A, dim_state, d), b1=w(A, 1, d),
                 w2=w(A, 2 * d, d), b2=w(A, 1, d),
                 wih=w(A, d, 4 * d), whh=w(A, d, 4 * d), blstm=w(A, 1, 4 * d),
                 winp=w(A, d, d), binp=w(A, 1, d),
                 wctx=w(A, d, d), bctx=w(A, 1, d),
                 V=jax.random.uniform(next(keys), (A, 1, d),
                                      minval=-1.0, maxval=1.0).astype(F32)),
    )


# ---------------------------------------------------------------------------
if __name__ == "__main__":
    bs, sl = 2, 8                        # batch, task_num
    dim_require, dim_vtw, max_nw = 4, 3, 4
    dim_hidden, num_heads, num_agent = 32, 4, 2

    key = jax.random.PRNGKey(0)
    k1, k2, k3, k4, k5, k6, kp = jax.random.split(key, 7)
    nr = jax.random.normal(k1, (bs, sl, dim_require), F32)                 # normalized requirements
    ngw = jax.random.normal(k2, (bs, sl, max_nw, dim_vtw), F32)            # normalized global windows
    nlw = jax.random.normal(k3, (bs, sl, num_agent, max_nw, dim_vtw), F32) # per-satellite windows
    counts_local = jax.random.randint(k4, (bs, sl, num_agent), 0, max_nw + 1)
    counts_global = jax.random.randint(k5, (bs, sl, 1), 1, max_nw + 1)
    dn = jnp.concatenate([counts_local, counts_global], axis=-1).astype(jnp.int32)  # (bs, sl, ns+1)
    norm_state = jax.random.uniform(k6, (bs, 6), dtype=F32)                # normalized satellite state
    mask = jnp.zeros((bs, sl), jnp.int32).at[:, :2].set(1)                 # masked (non-candidate) tasks

    params = init_params(kp, dim_require, dim_vtw, dim_hidden, num_heads, num_agent)

    enc, batch_prob, ht, ct = multi_agent_forward(
        nr, ngw, nlw, dn, norm_state, mask, params,
        dim_hidden=dim_hidden, num_heads=num_heads, num_agent=num_agent)
    jax.block_until_ready(batch_prob)

    assert enc.shape == (num_agent, bs, sl, dim_hidden)
    assert batch_prob.shape == (num_agent, bs, sl)
    assert ht.shape == (num_agent, bs, dim_hidden) and ct.shape == (num_agent, bs, dim_hidden)
    assert bool(jnp.all(jnp.isfinite(batch_prob)))
    assert bool(jnp.allclose(jnp.sum(batch_prob, axis=-1), 1.0, atol=1e-4))
    print("KERNEL_OK")
</pallas_src>

<mosaic_0001>
module attributes {stable_mosaic.version = 11 : i64} {
  func.func @_fused_agent_kernel(%arg0: i32, %arg1: memref<16x4xf32, #tpu.memory_space<vmem>>, %arg2: memref<16x12xf32, #tpu.memory_space<vmem>>, %arg3: memref<16x1xi32, #tpu.memory_space<vmem>>, %arg4: memref<2x6xf32, #tpu.memory_space<vmem>>, %arg5: memref<2x8xi32, #tpu.memory_space<vmem>>, %arg6: memref<4x16xf32, #tpu.memory_space<vmem>>, %arg7: memref<1x16xf32, #tpu.memory_space<vmem>>, %arg8: memref<3x64xf32, #tpu.memory_space<vmem>>, %arg9: memref<16x64xf32, #tpu.memory_space<vmem>>, %arg10: memref<1x64xf32, #tpu.memory_space<vmem>>, %arg11: memref<1x16x12xf32, #tpu.memory_space<vmem>>, %arg12: memref<1x16x1xi32, #tpu.memory_space<vmem>>, %arg13: memref<1x2x32xf32, #tpu.memory_space<vmem>>, %arg14: memref<1x2x32xf32, #tpu.memory_space<vmem>>, %arg15: memref<1x2x32xf32, #tpu.memory_space<vmem>>, %arg16: memref<1x3x64xf32, #tpu.memory_space<vmem>>, %arg17: memref<1x16x64xf32, #tpu.memory_space<vmem>>, %arg18: memref<1x1x64xf32, #tpu.memory_space<vmem>>, %arg19: memref<1x32x32xf32, #tpu.memory_space<vmem>>, %arg20: memref<1x1x32xf32, #tpu.memory_space<vmem>>, %arg21: memref<1x1x32xf32, #tpu.memory_space<vmem>>, %arg22: memref<1x1x32xf32, #tpu.memory_space<vmem>>, %arg23: memref<1x32x96xf32, #tpu.memory_space<vmem>>, %arg24: memref<1x1x96xf32, #tpu.memory_space<vmem>>, %arg25: memref<1x32x32xf32, #tpu.memory_space<vmem>>, %arg26: memref<1x1x32xf32, #tpu.memory_space<vmem>>, %arg27: memref<1x32x32xf32, #tpu.memory_space<vmem>>, %arg28: memref<1x1x32xf32, #tpu.memory_space<vmem>>, %arg29: memref<1x32x32xf32, #tpu.memory_space<vmem>>, %arg30: memref<1x1x32xf32, #tpu.memory_space<vmem>>, %arg31: memref<1x1x32xf32, #tpu.memory_space<vmem>>, %arg32: memref<1x1x32xf32, #tpu.memory_space<vmem>>, %arg33: memref<1x6x32xf32, #tpu.memory_space<vmem>>, %arg34: memref<1x1x32xf32, #tpu.memory_space<vmem>>, %arg35: memref<1x64x32xf32, #tpu.memory_space<vmem>>, %arg36: memref<1x1x32xf32, #tpu.memory_space<vmem>>, %arg37: memref<1x32x128xf32, #tpu.memory_space<vmem>>, %arg38: memref<1x32x128xf32, #tpu.memory_space<vmem>>, %arg39: memref<1x1x128xf32, #tpu.memory_space<vmem>>, %arg40: memref<1x32x32xf32, #tpu.memory_space<vmem>>, %arg41: memref<1x1x32xf32, #tpu.memory_space<vmem>>, %arg42: memref<1x32x32xf32, #tpu.memory_space<vmem>>, %arg43: memref<1x1x32xf32, #tpu.memory_space<vmem>>, %arg44: memref<1x1x32xf32, #tpu.memory_space<vmem>>, %arg45: memref<1x2x8x32xf32, #tpu.memory_space<vmem>>, %arg46: memref<1x2x8xf32, #tpu.memory_space<vmem>>, %arg47: memref<1x2x32xf32, #tpu.memory_space<vmem>>, %arg48: memref<1x2x32xf32, #tpu.memory_space<vmem>>, %arg49: memref<16x16xf32, #tpu.memory_space<vmem>>, %arg50: memref<16x16xf32, #tpu.memory_space<vmem>>) attributes {dimension_semantics = [#tpu.dimension_semantics<arbitrary>], iteration_bounds = array<i64: 2>, scalar_prefetch = 0 : i64, scratch_operands = 2 : i64, tpu.core_type = #tpu.core_type<tc>, window_params = [{pipeline_mode = #tpu.pipeline_mode<synchronous>, transform_indices = @transform_0, window_bounds = array<i64: 16, 4>}, {pipeline_mode = #tpu.pipeline_mode<synchronous>, transform_indices = @transform_1, window_bounds = array<i64: 16, 12>}, {pipeline_mode = #tpu.pipeline_mode<synchronous>, transform_indices = @transform_2, window_bounds = array<i64: 16, 1>}, {pipeline_mode = #tpu.pipeline_mode<synchronous>, transform_indices = @transform_3, window_bounds = array<i64: 2, 6>}, {pipeline_mode = #tpu.pipeline_mode<synchronous>, transform_indices = @transform_4, window_bounds = array<i64: 2, 8>}, {pipeline_mode = #tpu.pipeline_mode<synchronous>, transform_indices = @transform_5, window_bounds = array<i64: 4, 16>}, {pipeline_mode = #tpu.pipeline_mode<synchronous>, transform_indices = @transform_6, window_bounds = array<i64: 1, 16>}, {pipeline_mode = #tpu.pipeline_mode<synchronous>, transform_indices = @transform_7, window_bounds = array<i64: 3, 64>}, {pipeline_mode = #tpu.pipeline_mode<synchronous>, transform_indices = @transform_8, window_bounds = array<i64: 16, 64>}, {pipeline_mode = #tpu.pipeline_mode<synchronous>, transform_indices = @transform_9, window_bounds = array<i64: 1, 64>}, {transform_indices = @transform_10, window_bounds = array<i64: 1, 16, 12>}, {transform_indices = @transform_11, window_bounds = array<i64: 1, 16, 1>}, {transform_indices = @transform_12, window_bounds = array<i64: 1, 2, 32>}, {transform_indices = @transform_13, window_bounds = array<i64: 1, 2, 32>}, {transform_indices = @transform_14, window_bounds = array<i64: 1, 2, 32>}, {transform_indices = @transform_15, window_bounds = array<i64: 1, 3, 64>}, {transform_indices = @transform_16, window_bounds = array<i64: 1, 16, 64>}, {transform_indices = @transform_17, window_bounds = array<i64: 1, 1, 64>}, {transform_indices = @transform_18, window_bounds = array<i64: 1, 32, 32>}, {transform_indices = @transform_19, window_bounds = array<i64: 1, 1, 32>}, {transform_indices = @transform_20, window_bounds = array<i64: 1, 1, 32>}, {transform_indices = @transform_21, window_bounds = array<i64: 1, 1, 32>}, {transform_indices = @transform_22, window_bounds = array<i64: 1, 32, 96>}, {transform_indices = @transform_23, window_bounds = array<i64: 1, 1, 96>}, {transform_indices = @transform_24, window_bounds = array<i64: 1, 32, 32>}, {transform_indices = @transform_25, window_bounds = array<i64: 1, 1, 32>}, {transform_indices = @transform_26, window_bounds = array<i64: 1, 32, 32>}, {transform_indices = @transform_27, window_bounds = array<i64: 1, 1, 32>}, {transform_indices = @transform_28, window_bounds = array<i64: 1, 32, 32>}, {transform_indices = @transform_29, window_bounds = array<i64: 1, 1, 32>}, {transform_indices = @transform_30, window_bounds = array<i64: 1, 1, 32>}, {transform_indices = @transform_31, window_bounds = array<i64: 1, 1, 32>}, {transform_indices = @transform_32, window_bounds = array<i64: 1, 6, 32>}, {transform_indices = @transform_33, window_bounds = array<i64: 1, 1, 32>}, {transform_indices = @transform_34, window_bounds = array<i64: 1, 64, 32>}, {transform_indices = @transform_35, window_bounds = array<i64: 1, 1, 32>}, {transform_indices = @transform_36, window_bounds = array<i64: 1, 32, 128>}, {transform_indices = @transform_37, window_bounds = array<i64: 1, 32, 128>}, {transform_indices = @transform_38, window_bounds = array<i64: 1, 1, 128>}, {transform_indices = @transform_39, window_bounds = array<i64: 1, 32, 32>}, {transform_indices = @transform_40, window_bounds = array<i64: 1, 1, 32>}, {transform_indices = @transform_41, window_bounds = array<i64: 1, 32, 32>}, {transform_indices = @transform_42, window_bounds = array<i64: 1, 1, 32>}, {transform_indices = @transform_43, window_bounds = array<i64: 1, 1, 32>}, {transform_indices = @transform_44, window_bounds = array<i64: 1, 2, 8, 32>}, {transform_indices = @transform_45, window_bounds = array<i64: 1, 2, 8>}, {transform_indices = @transform_46, window_bounds = array<i64: 1, 2, 32>}, {transform_indices = @transform_47, window_bounds = array<i64: 1, 2, 32>}]} {
    %c0_i32 = arith.constant 0 : i32
    %0 = arith.cmpi eq, %arg0, %c0_i32 : i32
    %1 = arith.extui %0 : i1 to i32
    %c0_i32_0 = arith.constant 0 : i32
    %2 = arith.cmpi ne, %1, %c0_i32_0 : i32
    scf.if %2 {
      %c0_201 = arith.constant 0 : index
      %c0_202 = arith.constant 0 : index
      %443 = vector.load %arg1[%c0_201, %c0_202] : memref<16x4xf32, #tpu.memory_space<vmem>>, vector<16x4xf32>
      %c0_203 = arith.constant 0 : index
      %c0_204 = arith.constant 0 : index
      %444 = vector.load %arg6[%c0_203, %c0_204] : memref<4x16xf32, #tpu.memory_space<vmem>>, vector<4x16xf32>
      %cst_205 = arith.constant dense<0.000000e+00> : vector<16x16xf32>
      %445 = tpu.matmul %443, %444, %cst_205 {dimension_numbers = #tpu.dot_dimension_numbers<[1], [0], [0], [1], [0, 0, 1, 1], [], []>} : vector<16x4xf32>, vector<4x16xf32>, vector<16x16xf32> -> vector<16x16xf32>
      %c0_206 = arith.constant 0 : index
      %c0_207 = arith.constant 0 : index
      %446 = vector.load %arg7[%c0_206, %c0_207] : memref<1x16xf32, #tpu.memory_space<vmem>>, vector<1x16xf32>
      %447 = vector.broadcast %446 : vector<1x16xf32> to vector<16x16xf32>
      %448 = arith.addf %445, %447 : vector<16x16xf32>
      %cst_208 = arith.constant 0.000000e+00 : f32
      %449 = vector.broadcast %cst_208 : f32 to vector<16x16xf32>
      %450 = arith.maximumf %448, %449 : vector<16x16xf32>
      %c0_209 = arith.constant 0 : index
      %c0_210 = arith.constant 0 : index
      %451 = vector.load %arg49[%c0_209, %c0_210] : memref<16x16xf32, #tpu.memory_space<vmem>>, vector<16x16xf32>
      tpu.vector_store %arg49[%c0_209, %c0_210], %450 {strides = array<i32>} : memref<16x16xf32, #tpu.memory_space<vmem>>, vector<16x16xf32>,
      %c0_211 = arith.constant 0 : index
      %c0_212 = arith.constant 0 : index
      %452 = vector.load %arg2[%c0_211, %c0_212] : memref<16x12xf32, #tpu.memory_space<vmem>>, vector<16x12xf32>
      %c0_213 = arith.constant 0 : index
      %c0_214 = arith.constant 0 : index
      %453 = vector.load %arg3[%c0_213, %c0_214] : memref<16x1xi32, #tpu.memory_space<vmem>>, vector<16x1xi32>
      %c0_215 = arith.constant 0 : index
      %c0_216 = arith.constant 0 : index
      %454 = vector.load %arg8[%c0_215, %c0_216] : memref<3x64xf32, #tpu.memory_space<vmem>>, vector<3x64xf32>
      %c0_217 = arith.constant 0 : index
      %c0_218 = arith.constant 0 : index
      %455 = vector.load %arg9[%c0_217, %c0_218] : memref<16x64xf32, #tpu.memory_space<vmem>>, vector<16x64xf32>
      %c0_219 = arith.constant 0 : index
      %c0_220 = arith.constant 0 : index
      %456 = vector.load %arg10[%c0_219, %c0_220] : memref<1x64xf32, #tpu.memory_space<vmem>>, vector<1x64xf32>
      %cst_221 = arith.constant 0.000000e+00 : f32
      %457 = vector.broadcast %cst_221 : f32 to vector<16x16xf32>
      %cst_222 = arith.constant 0.000000e+00 : f32
      %458 = vector.broadcast %cst_222 : f32 to vector<16x16xf32>
      %459 = vector.extract_strided_slice %452 {offsets = [0, 0], sizes = [16, 3], strides = [1, 1]} : vector<16x12xf32> to vector<16x3xf32>
      %cst_223 = arith.constant dense<0.000000e+00> : vector<16x64xf32>
      %460 = tpu.matmul %459, %454, %cst_223 {dimension_numbers = #tpu.dot_dimension_numbers<[1], [0], [0], [1], [0, 0, 1, 1], [], []>} : vector<16x3xf32>, vector<3x64xf32>, vector<16x64xf32> -> vector<16x64xf32>
      %cst_224 = arith.constant dense<0.000000e+00> : vector<16x64xf32>
      %461 = tpu.matmul %457, %455, %cst_224 {dimension_numbers = #tpu.dot_dimension_numbers<[1], [0], [0], [1], [0, 0, 1, 1], [], []>} : vector<16x16xf32>, vector<16x64xf32>, vector<16x64xf32> -> vector<16x64xf32>
      %462 = arith.addf %460, %461 : vector<16x64xf32>
      %463 = vector.broadcast %456 : vector<1x64xf32> to vector<16x64xf32>
      %464 = arith.addf %462, %463 : vector<16x64xf32>
      %465 = vector.extract_strided_slice %464 {offsets = [0, 0], sizes = [16, 48], strides = [1, 1]} : vector<16x64xf32> to vector<16x48xf32>
      %466 = arith.negf %465 : vector<16x48xf32>
      %467 = math.exp %466 : vector<16x48xf32>
      %cst_225 = arith.constant 1.000000e+00 : f32
      %468 = vector.broadcast %cst_225 : f32 to vector<16x48xf32>
      %469 = arith.addf %468, %467 : vector<16x48xf32>
      %470 = arith.divf %468, %469 : vector<16x48xf32>
      %471 = vector.extract_strided_slice %470 {offsets = [0, 0], sizes = [16, 16], strides = [1, 1]} : vector<16x48xf32> to vector<16x16xf32>
      %472 = vector.extract_strided_slice %470 {offsets = [0, 16], sizes = [16, 16], strides = [1, 1]} : vector<16x48xf32> to vector<16x16xf32>
      %473 = vector.extract_strided_slice %470 {offsets = [0, 32], sizes = [16, 16], strides = [1, 1]} : vector<16x48xf32> to vector<16x16xf32>
      %474 = vector.extract_strided_slice %464 {offsets = [0, 48], sizes = [16, 16], strides = [1, 1]} : vector<16x64xf32> to vector<16x16xf32>
      %475 = math.tanh %474 : vector<16x16xf32>
      %476 = arith.mulf %472, %458 : vector<16x16xf32>
      %477 = arith.mulf %471, %475 : vector<16x16xf32>
      %478 = arith.addf %476, %477 : vector<16x16xf32>
      %479 = math.tanh %478 : vector<16x16xf32>
      %480 = arith.mulf %473, %479 : vector<16x16xf32>
      %c0_i32_226 = arith.constant 0 : i32
      %481 = vector.broadcast %c0_i32_226 : i32 to vector<16x1xi32>
      %482 = arith.cmpi sgt, %453, %481 : vector<16x1xi32>
      %483 = vector.shape_cast %482 : vector<16x1xi1> to vector<16x1xi1>
      %484 = vector.broadcast %483 : vector<16x1xi1> to vector<16x16xi1>
      %485 = arith.select %484, %480, %457 : vector<16x16xi1>, vector<16x16xf32>
      %486 = vector.shape_cast %482 : vector<16x1xi1> to vector<16x1xi1>
      %487 = vector.broadcast %486 : vector<16x1xi1> to vector<16x16xi1>
      %488 = arith.select %487, %478, %458 : vector<16x16xi1>, vector<16x16xf32>
      %489 = vector.extract_strided_slice %452 {offsets = [0, 3], sizes = [16, 3], strides = [1, 1]} : vector<16x12xf32> to vector<16x3xf32>
      %cst_227 = arith.constant dense<0.000000e+00> : vector<16x64xf32>
      %490 = tpu.matmul %489, %454, %cst_227 {dimension_numbers = #tpu.dot_dimension_numbers<[1], [0], [0], [1], [0, 0, 1, 1], [], []>} : vector<16x3xf32>, vector<3x64xf32>, vector<16x64xf32> -> vector<16x64xf32>
      %cst_228 = arith.constant dense<0.000000e+00> : vector<16x64xf32>
      %491 = tpu.matmul %485, %455, %cst_228 {dimension_numbers = #tpu.dot_dimension_numbers<[1], [0], [0], [1], [0, 0, 1, 1], [], []>} : vector<16x16xf32>, vector<16x64xf32>, vector<16x64xf32> -> vector<16x64xf32>
      %492 = arith.addf %490, %491 : vector<16x64xf32>
      %493 = vector.broadcast %456 : vector<1x64xf32> to vector<16x64xf32>
      %494 = arith.addf %492, %493 : vector<16x64xf32>
      %495 = vector.extract_strided_slice %494 {offsets = [0, 0], sizes = [16, 48], strides = [1, 1]} : vector<16x64xf32> to vector<16x48xf32>
      %496 = arith.negf %495 : vector<16x48xf32>
      %497 = math.exp %496 : vector<16x48xf32>
      %cst_229 = arith.constant 1.000000e+00 : f32
      %498 = vector.broadcast %cst_229 : f32 to vector<16x48xf32>
      %499 = arith.addf %498, %497 : vector<16x48xf32>
      %500 = arith.divf %498, %499 : vector<16x48xf32>
      %501 = vector.extract_strided_slice %500 {offsets = [0, 0], sizes = [16, 16], strides = [1, 1]} : vector<16x48xf32> to vector<16x16xf32>
      %502 = vector.extract_strided_slice %500 {offsets = [0, 16], sizes = [16, 16], strides = [1, 1]} : vector<16x48xf32> to vector<16x16xf32>
      %503 = vector.extract_strided_slice %500 {offsets = [0, 32], sizes = [16, 16], strides = [1, 1]} : vector<16x48xf32> to vector<16x16xf32>
      %504 = vector.extract_strided_slice %494 {offsets = [0, 48], sizes = [16, 16], strides = [1, 1]} : vector<16x64xf32> to vector<16x16xf32>
      %505 = math.tanh %504 : vector<16x16xf32>
      %506 = arith.mulf %502, %488 : vector<16x16xf32>
      %507 = arith.mulf %501, %505 : vector<16x16xf32>
      %508 = arith.addf %506, %507 : vector<16x16xf32>
      %509 = math.tanh %508 : vector<16x16xf32>
      %510 = arith.mulf %503, %509 : vector<16x16xf32>
      %c1_i32_230 = arith.constant 1 : i32
      %511 = vector.broadcast %c1_i32_230 : i32 to vector<16x1xi32>
      %512 = arith.cmpi sgt, %453, %511 : vector<16x1xi32>
      %513 = vector.shape_cast %512 : vector<16x1xi1> to vector<16x1xi1>
      %514 = vector.broadcast %513 : vector<16x1xi1> to vector<16x16xi1>
      %515 = arith.select %514, %510, %485 : vector<16x16xi1>, vector<16x16xf32>
      %516 = vector.shape_cast %512 : vector<16x1xi1> to vector<16x1xi1>
      %517 = vector.broadcast %516 : vector<16x1xi1> to vector<16x16xi1>
      %518 = arith.select %517, %508, %488 : vector<16x16xi1>, vector<16x16xf32>
      %519 = vector.extract_strided_slice %452 {offsets = [0, 6], sizes = [16, 3], strides = [1, 1]} : vector<16x12xf32> to vector<16x3xf32>
      %cst_231 = arith.constant dense<0.000000e+00> : vector<16x64xf32>
      %520 = tpu.matmul %519, %454, %cst_231 {dimension_numbers = #tpu.dot_dimension_numbers<[1], [0], [0], [1], [0, 0, 1, 1], [], []>} : vector<16x3xf32>, vector<3x64xf32>, vector<16x64xf32> -> vector<16x64xf32>
      %cst_232 = arith.constant dense<0.000000e+00> : vector<16x64xf32>
      %521 = tpu.matmul %515, %455, %cst_232 {dimension_numbers = #tpu.dot_dimension_numbers<[1], [0], [0], [1], [0, 0, 1, 1], [], []>} : vector<16x16xf32>, vector<16x64xf32>, vector<16x64xf32> -> vector<16x64xf32>
      %522 = arith.addf %520, %521 : vector<16x64xf32>
      %523 = vector.broadcast %456 : vector<1x64xf32> to vector<16x64xf32>
      %524 = arith.addf %522, %523 : vector<16x64xf32>
      %525 = vector.extract_strided_slice %524 {offsets = [0, 0], sizes = [16, 48], strides = [1, 1]} : vector<16x64xf32> to vector<16x48xf32>
      %526 = arith.negf %525 : vector<16x48xf32>
      %527 = math.exp %526 : vector<16x48xf32>
      %cst_233 = arith.constant 1.000000e+00 : f32
      %528 = vector.broadcast %cst_233 : f32 to vector<16x48xf32>
      %529 = arith.addf %528, %527 : vector<16x48xf32>
      %530 = arith.divf %528, %529 : vector<16x48xf32>
      %531 = vector.extract_strided_slice %530 {offsets = [0, 0], sizes = [16, 16], strides = [1, 1]} : vector<16x48xf32> to vector<16x16xf32>
      %532 = vector.extract_strided_slice %530 {offsets = [0, 16], sizes = [16, 16], strides = [1, 1]} : vector<16x48xf32> to vector<16x16xf32>
      %533 = vector.extract_strided_slice %530 {offsets = [0, 32], sizes = [16, 16], strides = [1, 1]} : vector<16x48xf32> to vector<16x16xf32>
      %534 = vector.extract_strided_slice %524 {offsets = [0, 48], sizes = [16, 16], strides = [1, 1]} : vector<16x64xf32> to vector<16x16xf32>
      %535 = math.tanh %534 : vector<16x16xf32>
      %536 = arith.mulf %532, %518 : vector<16x16xf32>
      %537 = arith.mulf %531, %535 : vector<16x16xf32>
      %538 = arith.addf %536, %537 : vector<16x16xf32>
      %539 = math.tanh %538 : vector<16x16xf32>
      %540 = arith.mulf %533, %539 : vector<16x16xf32>
      %c2_i32_234 = arith.constant 2 : i32
      %541 = vector.broadcast %c2_i32_234 : i32 to vector<16x1xi32>
      %542 = arith.cmpi sgt, %453, %541 : vector<16x1xi32>
      %543 = vector.shape_cast %542 : vector<16x1xi1> to vector<16x1xi1>
      %544 = vector.broadcast %543 : vector<16x1xi1> to vector<16x16xi1>
      %545 = arith.select %544, %540, %515 : vector<16x16xi1>, vector<16x16xf32>
      %546 = vector.shape_cast %542 : vector<16x1xi1> to vector<16x1xi1>
      %547 = vector.broadcast %546 : vector<16x1xi1> to vector<16x16xi1>
      %548 = arith.select %547, %538, %518 : vector<16x16xi1>, vector<16x16xf32>
      %549 = vector.extract_strided_slice %452 {offsets = [0, 9], sizes = [16, 3], strides = [1, 1]} : vector<16x12xf32> to vector<16x3xf32>
      %cst_235 = arith.constant dense<0.000000e+00> : vector<16x64xf32>
      %550 = tpu.matmul %549, %454, %cst_235 {dimension_numbers = #tpu.dot_dimension_numbers<[1], [0], [0], [1], [0, 0, 1, 1], [], []>} : vector<16x3xf32>, vector<3x64xf32>, vector<16x64xf32> -> vector<16x64xf32>
      %cst_236 = arith.constant dense<0.000000e+00> : vector<16x64xf32>
      %551 = tpu.matmul %545, %455, %cst_236 {dimension_numbers = #tpu.dot_dimension_numbers<[1], [0], [0], [1], [0, 0, 1, 1], [], []>} : vector<16x16xf32>, vector<16x64xf32>, vector<16x64xf32> -> vector<16x64xf32>
      %552 = arith.addf %550, %551 : vector<16x64xf32>
      %553 = vector.broadcast %456 : vector<1x64xf32> to vector<16x64xf32>
      %554 = arith.addf %552, %553 : vector<16x64xf32>
      %555 = vector.extract_strided_slice %554 {offsets = [0, 0], sizes = [16, 48], strides = [1, 1]} : vector<16x64xf32> to vector<16x48xf32>
      %556 = arith.negf %555 : vector<16x48xf32>
      %557 = math.exp %556 : vector<16x48xf32>
      %cst_237 = arith.constant 1.000000e+00 : f32
      %558 = vector.broadcast %cst_237 : f32 to vector<16x48xf32>
      %559 = arith.addf %558, %557 : vector<16x48xf32>
      %560 = arith.divf %558, %559 : vector<16x48xf32>
      %561 = vector.extract_strided_slice %560 {offsets = [0, 0], sizes = [16, 16], strides = [1, 1]} : vector<16x48xf32> to vector<16x16xf32>
      %562 = vector.extract_strided_slice %560 {offsets = [0, 16], sizes = [16, 16], strides = [1, 1]} : vector<16x48xf32> to vector<16x16xf32>
      %563 = vector.extract_strided_slice %560 {offsets = [0, 32], sizes = [16, 16], strides = [1, 1]} : vector<16x48xf32> to vector<16x16xf32>
      %564 = vector.extract_strided_slice %554 {offsets = [0, 48], sizes = [16, 16], strides = [1, 1]} : vector<16x64xf32> to vector<16x16xf32>
      %565 = math.tanh %564 : vector<16x16xf32>
      %566 = arith.mulf %562, %548 : vector<16x16xf32>
      %567 = arith.mulf %561, %565 : vector<16x16xf32>
      %568 = arith.addf %566, %567 : vector<16x16xf32>
      %569 = math.tanh %568 : vector<16x16xf32>
      %570 = arith.mulf %563, %569 : vector<16x16xf32>
      %c3_i32_238 = arith.constant 3 : i32
      %571 = vector.broadcast %c3_i32_238 : i32 to vector<16x1xi32>
      %572 = arith.cmpi sgt, %453, %571 : vector<16x1xi32>
      %573 = vector.shape_cast %572 : vector<16x1xi1> to vector<16x1xi1>
      %574 = vector.broadcast %573 : vector<16x1xi1> to vector<16x16xi1>
      %575 = arith.select %574, %570, %545 : vector<16x16xi1>, vector<16x16xf32>
      %c0_239 = arith.constant 0 : index
      %c0_240 = arith.constant 0 : index
      %576 = vector.load %arg50[%c0_239, %c0_240] : memref<16x16xf32, #tpu.memory_space<vmem>>, vector<16x16xf32>
      tpu.vector_store %arg50[%c0_239, %c0_240], %575 {strides = array<i32>} : memref<16x16xf32, #tpu.memory_space<vmem>>, vector<16x16xf32>,
    } else {
    }
    %c0 = arith.constant 0 : index
    %c0_1 = arith.constant 0 : index
    %3 = vector.load %arg49[%c0, %c0_1] : memref<16x16xf32, #tpu.memory_space<vmem>>, vector<16x16xf32>
    %c0_2 = arith.constant 0 : index
    %c0_3 = arith.constant 0 : index
    %4 = vector.load %arg50[%c0_2, %c0_3] : memref<16x16xf32, #tpu.memory_space<vmem>>, vector<16x16xf32>
    %c0_4 = arith.constant 0 : index
    %c0_5 = arith.constant 0 : index
    %c0_6 = arith.constant 0 : index
    %5 = vector.load %arg11[%c0_4, %c0_5, %c0_6] : memref<1x16x12xf32, #tpu.memory_space<vmem>>, vector<1x16x12xf32>
    %6 = vector.shape_cast %5 : vector<1x16x12xf32> to vector<16x12xf32>
    %c0_7 = arith.constant 0 : index
    %c0_8 = arith.constant 0 : index
    %c0_9 = arith.constant 0 : index
    %7 = vector.load %arg12[%c0_7, %c0_8, %c0_9] : memref<1x16x1xi32, #tpu.memory_space<vmem>>, vector<1x16x1xi32>
    %8 = vector.shape_cast %7 : vector<1x16x1xi32> to vector<16x1xi32>
    %c0_10 = arith.constant 0 : index
    %c0_11 = arith.constant 0 : index
    %c0_12 = arith.constant 0 : index
    %9 = vector.load %arg16[%c0_10, %c0_11, %c0_12] : memref<1x3x64xf32, #tpu.memory_space<vmem>>, vector<1x3x64xf32>
    %10 = vector.shape_cast %9 : vector<1x3x64xf32> to vector<3x64xf32>
    %c0_13 = arith.constant 0 : index
    %c0_14 = arith.constant 0 : index
    %c0_15 = arith.constant 0 : index
    %11 = vector.load %arg17[%c0_13, %c0_14, %c0_15] : memref<1x16x64xf32, #tpu.memory_space<vmem>>, vector<1x16x64xf32>
    %12 = vector.shape_cast %11 : vector<1x16x64xf32> to vector<16x64xf32>
    %c0_16 = arith.constant 0 : index
    %c0_17 = arith.constant 0 : index
    %c0_18 = arith.constant 0 : index
    %13 = vector.load %arg18[%c0_16, %c0_17, %c0_18] : memref<1x1x64xf32, #tpu.memory_space<vmem>>, vector<1x1x64xf32>
    %14 = vector.shape_cast %13 : vector<1x1x64xf32> to vector<1x64xf32>
    %cst = arith.constant 0.000000e+00 : f32
    %15 = vector.broadcast %cst : f32 to vector<16x16xf32>
    %cst_19 = arith.constant 0.000000e+00 : f32
    %16 = vector.broadcast %cst_19 : f32 to vector<16x16xf32>
    %17 = vector.extract_strided_slice %6 {offsets = [0, 0], sizes = [16, 3], strides = [1, 1]} : vector<16x12xf32> to vector<16x3xf32>
    %cst_20 = arith.constant dense<0.000000e+00> : vector<16x64xf32>
    %18 = tpu.matmul %17, %10, %cst_20 {dimension_numbers = #tpu.dot_dimension_numbers<[1], [0], [0], [1], [0, 0, 1, 1], [], []>} : vector<16x3xf32>, vector<3x64xf32>, vector<16x64xf32> -> vector<16x64xf32>
    %cst_21 = arith.constant dense<0.000000e+00> : vector<16x64xf32>
    %19 = tpu.matmul %15, %12, %cst_21 {dimension_numbers = #tpu.dot_dimension_numbers<[1], [0], [0], [1], [0, 0, 1, 1], [], []>} : vector<16x16xf32>, vector<16x64xf32>, vector<16x64xf32> -> vector<16x64xf32>
    %20 = arith.addf %18, %19 : vector<16x64xf32>
    %21 = vector.broadcast %14 : vector<1x64xf32> to vector<16x64xf32>
    %22 = arith.addf %20, %21 : vector<16x64xf32>
    %23 = vector.extract_strided_slice %22 {offsets = [0, 0], sizes = [16, 48], strides = [1, 1]} : vector<16x64xf32> to vector<16x48xf32>
    %24 = arith.negf %23 : vector<16x48xf32>
    %25 = math.exp %24 : vector<16x48xf32>
    %cst_22 = arith.constant 1.000000e+00 : f32
    %26 = vector.broadcast %cst_22 : f32 to vector<16x48xf32>
    %27 = arith.addf %26, %25 : vector<16x48xf32>
    %28 = arith.divf %26, %27 : vector<16x48xf32>
    %29 = vector.extract_strided_slice %28 {offsets = [0, 0], sizes = [16, 16], strides = [1, 1]} : vector<16x48xf32> to vector<16x16xf32>
    %30 = vector.extract_strided_slice %28 {offsets = [0, 16], sizes = [16, 16], strides = [1, 1]} : vector<16x48xf32> to vector<16x16xf32>
    %31 = vector.extract_strided_slice %28 {offsets = [0, 32], sizes = [16, 16], strides = [1, 1]} : vector<16x48xf32> to vector<16x16xf32>
    %32 = vector.extract_strided_slice %22 {offsets = [0, 48], sizes = [16, 16], strides = [1, 1]} : vector<16x64xf32> to vector<16x16xf32>
    %33 = math.tanh %32 : vector<16x16xf32>
    %34 = arith.mulf %30, %16 : vector<16x16xf32>
    %35 = arith.mulf %29, %33 : vector<16x16xf32>
    %36 = arith.addf %34, %35 : vector<16x16xf32>
    %37 = math.tanh %36 : vector<16x16xf32>
    %38 = arith.mulf %31, %37 : vector<16x16xf32>
    %c0_i32_23 = arith.constant 0 : i32
    %39 = vector.broadcast %c0_i32_23 : i32 to vector<16x1xi32>
    %40 = arith.cmpi sgt, %8, %39 : vector<16x1xi32>
    %41 = vector.shape_cast %40 : vector<16x1xi1> to vector<16x1xi1>
    %42 = vector.broadcast %41 : vector<16x1xi1> to vector<16x16xi1>
    %43 = arith.select %42, %38, %15 : vector<16x16xi1>, vector<16x16xf32>
    %44 = vector.shape_cast %40 : vector<16x1xi1> to vector<16x1xi1>
    %45 = vector.broadcast %44 : vector<16x1xi1> to vector<16x16xi1>
    %46 = arith.select %45, %36, %16 : vector<16x16xi1>, vector<16x16xf32>
    %47 = vector.extract_strided_slice %6 {offsets = [0, 3], sizes = [16, 3], strides = [1, 1]} : vector<16x12xf32> to vector<16x3xf32>
    %cst_24 = arith.constant dense<0.000000e+00> : vector<16x64xf32>
    %48 = tpu.matmul %47, %10, %cst_24 {dimension_numbers = #tpu.dot_dimension_numbers<[1], [0], [0], [1], [0, 0, 1, 1], [], []>} : vector<16x3xf32>, vector<3x64xf32>, vector<16x64xf32> -> vector<16x64xf32>
    %cst_25 = arith.constant dense<0.000000e+00> : vector<16x64xf32>
    %49 = tpu.matmul %43, %12, %cst_25 {dimension_numbers = #tpu.dot_dimension_numbers<[1], [0], [0], [1], [0, 0, 1, 1], [], []>} : vector<16x16xf32>, vector<16x64xf32>, vector<16x64xf32> -> vector<16x64xf32>
    %50 = arith.addf %48, %49 : vector<16x64xf32>
    %51 = vector.broadcast %14 : vector<1x64xf32> to vector<16x64xf32>
    %52 = arith.addf %50, %51 : vector<16x64xf32>
    %53 = vector.extract_strided_slice %52 {offsets = [0, 0], sizes = [16, 48], strides = [1, 1]} : vector<16x64xf32> to vector<16x48xf32>
    %54 = arith.negf %53 : vector<16x48xf32>
    %55 = math.exp %54 : vector<16x48xf32>
    %cst_26 = arith.constant 1.000000e+00 : f32
    %56 = vector.broadcast %cst_26 : f32 to vector<16x48xf32>
    %57 = arith.addf %56, %55 : vector<16x48xf32>
    %58 = arith.divf %56, %57 : vector<16x48xf32>
    %59 = vector.extract_strided_slice %58 {offsets = [0, 0], sizes = [16, 16], strides = [1, 1]} : vector<16x48xf32> to vector<16x16xf32>
    %60 = vector.extract_strided_slice %58 {offsets = [0, 16], sizes = [16, 16], strides = [1, 1]} : vector<16x48xf32> to vector<16x16xf32>
    %61 = vector.extract_strided_slice %58 {offsets = [0, 32], sizes = [16, 16], strides = [1, 1]} : vector<16x48xf32> to vector<16x16xf32>
    %62 = vector.extract_strided_slice %52 {offsets = [0, 48], sizes = [16, 16], strides = [1, 1]} : vector<16x64xf32> to vector<16x16xf32>
    %63 = math.tanh %62 : vector<16x16xf32>
    %64 = arith.mulf %60, %46 : vector<16x16xf32>
    %65 = arith.mulf %59, %63 : vector<16x16xf32>
    %66 = arith.addf %64, %65 : vector<16x16xf32>
    %67 = math.tanh %66 : vector<16x16xf32>
    %68 = arith.mulf %61, %67 : vector<16x16xf32>
    %c1_i32 = arith.constant 1 : i32
    %69 = vector.broadcast %c1_i32 : i32 to vector<16x1xi32>
    %70 = arith.cmpi sgt, %8, %69 : vector<16x1xi32>
    %71 = vector.shape_cast %70 : vector<16x1xi1> to vector<16x1xi1>
    %72 = vector.broadcast %71 : vector<16x1xi1> to vector<16x16xi1>
    %73 = arith.select %72, %68, %43 : vector<16x16xi1>, vector<16x16xf32>
    %74 = vector.shape_cast %70 : vector<16x1xi1> to vector<16x1xi1>
    %75 = vector.broadcast %74 : vector<16x1xi1> to vector<16x16xi1>
    %76 = arith.select %75, %66, %46 : vector<16x16xi1>, vector<16x16xf32>
    %77 = vector.extract_strided_slice %6 {offsets = [0, 6], sizes = [16, 3], strides = [1, 1]} : vector<16x12xf32> to vector<16x3xf32>
    %cst_27 = arith.constant dense<0.000000e+00> : vector<16x64xf32>
    %78 = tpu.matmul %77, %10, %cst_27 {dimension_numbers = #tpu.dot_dimension_numbers<[1], [0], [0], [1], [0, 0, 1, 1], [], []>} : vector<16x3xf32>, vector<3x64xf32>, vector<16x64xf32> -> vector<16x64xf32>
    %cst_28 = arith.constant dense<0.000000e+00> : vector<16x64xf32>
    %79 = tpu.matmul %73, %12, %cst_28 {dimension_numbers = #tpu.dot_dimension_numbers<[1], [0], [0], [1], [0, 0, 1, 1], [], []>} : vector<16x16xf32>, vector<16x64xf32>, vector<16x64xf32> -> vector<16x64xf32>
    %80 = arith.addf %78, %79 : vector<16x64xf32>
    %81 = vector.broadcast %14 : vector<1x64xf32> to vector<16x64xf32>
    %82 = arith.addf %80, %81 : vector<16x64xf32>
    %83 = vector.extract_strided_slice %82 {offsets = [0, 0], sizes = [16, 48], strides = [1, 1]} : vector<16x64xf32> to vector<16x48xf32>
    %84 = arith.negf %83 : vector<16x48xf32>
    %85 = math.exp %84 : vector<16x48xf32>
    %cst_29 = arith.constant 1.000000e+00 : f32
    %86 = vector.broadcast %cst_29 : f32 to vector<16x48xf32>
    %87 = arith.addf %86, %85 : vector<16x48xf32>
    %88 = arith.divf %86, %87 : vector<16x48xf32>
    %89 = vector.extract_strided_slice %88 {offsets = [0, 0], sizes = [16, 16], strides = [1, 1]} : vector<16x48xf32> to vector<16x16xf32>
    %90 = vector.extract_strided_slice %88 {offsets = [0, 16], sizes = [16, 16], strides = [1, 1]} : vector<16x48xf32> to vector<16x16xf32>
    %91 = vector.extract_strided_slice %88 {offsets = [0, 32], sizes = [16, 16], strides = [1, 1]} : vector<16x48xf32> to vector<16x16xf32>
    %92 = vector.extract_strided_slice %82 {offsets = [0, 48], sizes = [16, 16], strides = [1, 1]} : vector<16x64xf32> to vector<16x16xf32>
    %93 = math.tanh %92 : vector<16x16xf32>
    %94 = arith.mulf %90, %76 : vector<16x16xf32>
    %95 = arith.mulf %89, %93 : vector<16x16xf32>
    %96 = arith.addf %94, %95 : vector<16x16xf32>
    %97 = math.tanh %96 : vector<16x16xf32>
    %98 = arith.mulf %91, %97 : vector<16x16xf32>
    %c2_i32 = arith.constant 2 : i32
    %99 = vector.broadcast %c2_i32 : i32 to vector<16x1xi32>
    %100 = arith.cmpi sgt, %8, %99 : vector<16x1xi32>
    %101 = vector.shape_cast %100 : vector<16x1xi1> to vector<16x1xi1>
    %102 = vector.broadcast %101 : vector<16x1xi1> to vector<16x16xi1>
    %103 = arith.select %102, %98, %73 : vector<16x16xi1>, vector<16x16xf32>
    %104 = vector.shape_cast %100 : vector<16x1xi1> to vector<16x1xi1>
    %105 = vector.broadcast %104 : vector<16x1xi1> to vector<16x16xi1>
    %106 = arith.select %105, %96, %76 : vector<16x16xi1>, vector<16x16xf32>
    %107 = vector.extract_strided_slice %6 {offsets = [0, 9], sizes = [16, 3], strides = [1, 1]} : vector<16x12xf32> to vector<16x3xf32>
    %cst_30 = arith.constant dense<0.000000e+00> : vector<16x64xf32>
    %108 = tpu.matmul %107, %10, %cst_30 {dimension_numbers = #tpu.dot_dimension_numbers<[1], [0], [0], [1], [0, 0, 1, 1], [], []>} : vector<16x3xf32>, vector<3x64xf32>, vector<16x64xf32> -> vector<16x64xf32>
    %cst_31 = arith.constant dense<0.000000e+00> : vector<16x64xf32>
    %109 = tpu.matmul %103, %12, %cst_31 {dimension_numbers = #tpu.dot_dimension_numbers<[1], [0], [0], [1], [0, 0, 1, 1], [], []>} : vector<16x16xf32>, vector<16x64xf32>, vector<16x64xf32> -> vector<16x64xf32>
    %110 = arith.addf %108, %109 : vector<16x64xf32>
    %111 = vector.broadcast %14 : vector<1x64xf32> to vector<16x64xf32>
    %112 = arith.addf %110, %111 : vector<16x64xf32>
    %113 = vector.extract_strided_slice %112 {offsets = [0, 0], sizes = [16, 48], strides = [1, 1]} : vector<16x64xf32> to vector<16x48xf32>
    %114 = arith.negf %113 : vector<16x48xf32>
    %115 = math.exp %114 : vector<16x48xf32>
    %cst_32 = arith.constant 1.000000e+00 : f32
    %116 = vector.broadcast %cst_32 : f32 to vector<16x48xf32>
    %117 = arith.addf %116, %115 : vector<16x48xf32>
    %118 = arith.divf %116, %117 : vector<16x48xf32>
    %119 = vector.extract_strided_slice %118 {offsets = [0, 0], sizes = [16, 16], strides = [1, 1]} : vector<16x48xf32> to vector<16x16xf32>
    %120 = vector.extract_strided_slice %118 {offsets = [0, 16], sizes = [16, 16], strides = [1, 1]} : vector<16x48xf32> to vector<16x16xf32>
    %121 = vector.extract_strided_slice %118 {offsets = [0, 32], sizes = [16, 16], strides = [1, 1]} : vector<16x48xf32> to vector<16x16xf32>
    %122 = vector.extract_strided_slice %112 {offsets = [0, 48], sizes = [16, 16], strides = [1, 1]} : vector<16x64xf32> to vector<16x16xf32>
    %123 = math.tanh %122 : vector<16x16xf32>
    %124 = arith.mulf %120, %106 : vector<16x16xf32>
    %125 = arith.mulf %119, %123 : vector<16x16xf32>
    %126 = arith.addf %124, %125 : vector<16x16xf32>
    %127 = math.tanh %126 : vector<16x16xf32>
    %128 = arith.mulf %121, %127 : vector<16x16xf32>
    %c3_i32 = arith.constant 3 : i32
    %129 = vector.broadcast %c3_i32 : i32 to vector<16x1xi32>
    %130 = arith.cmpi sgt, %8, %129 : vector<16x1xi32>
    %131 = vector.shape_cast %130 : vector<16x1xi1> to vector<16x1xi1>
    %132 = vector.broadcast %131 : vector<16x1xi1> to vector<16x16xi1>
    %133 = arith.select %132, %128, %103 : vector<16x16xi1>, vector<16x16xf32>
    %134 = arith.addf %4, %133 : vector<16x16xf32>
    %135 = tpu.concatenate %3, %134 in 1 : vector<16x16xf32>, vector<16x16xf32> -> vector<16x32xf32>
    %c0_33 = arith.constant 0 : index
    %c0_34 = arith.constant 0 : index
    %c0_35 = arith.constant 0 : index
    %136 = vector.load %arg19[%c0_33, %c0_34, %c0_35] : memref<1x32x32xf32, #tpu.memory_space<vmem>>, vector<1x32x32xf32>
    %137 = vector.shape_cast %136 : vector<1x32x32xf32> to vector<32x32xf32>
    %cst_36 = arith.constant dense<0.000000e+00> : vector<16x32xf32>
    %138 = tpu.matmul %135, %137, %cst_36 {dimension_numbers = #tpu.dot_dimension_numbers<[1], [0], [0], [1], [0, 0, 1, 1], [], []>} : vector<16x32xf32>, vector<32x32xf32>, vector<16x32xf32> -> vector<16x32xf32>
    %c0_37 = arith.constant 0 : index
    %c0_38 = arith.constant 0 : index
    %c0_39 = arith.constant 0 : index
    %139 = vector.load %arg20[%c0_37, %c0_38, %c0_39] : memref<1x1x32xf32, #tpu.memory_space<vmem>>, vector<1x1x32xf32>
    %140 = vector.shape_cast %139 : vector<1x1x32xf32> to vector<1x32xf32>
    %141 = vector.broadcast %140 : vector<1x32xf32> to vector<16x32xf32>
    %142 = arith.addf %138, %141 : vector<16x32xf32>
    %c0_40 = arith.constant 0 : index
    %c0_41 = arith.constant 0 : index
    %c0_42 = arith.constant 0 : index
    %143 = vector.load %arg21[%c0_40, %c0_41, %c0_42] : memref<1x1x32xf32, #tpu.memory_space<vmem>>, vector<1x1x32xf32>
    %144 = vector.shape_cast %143 : vector<1x1x32xf32> to vector<1x32xf32>
    %c0_43 = arith.constant 0 : index
    %c0_44 = arith.constant 0 : index
    %c0_45 = arith.constant 0 : index
    %145 = vector.load %arg22[%c0_43, %c0_44, %c0_45] : memref<1x1x32xf32, #tpu.memory_space<vmem>>, vector<1x1x32xf32>
    %146 = vector.shape_cast %145 : vector<1x1x32xf32> to vector<1x32xf32>
    %cst_46 = arith.constant dense<0.000000e+00> : vector<16xf32>
    %147 = vector.multi_reduction <add>, %142, %cst_46 [1] : vector<16x32xf32> to vector<16xf32>
    %148 = vector.shape_cast %147 : vector<16xf32> to vector<16x1xf32>
    %cst_47 = arith.constant 3.200000e+01 : f32
    %149 = vector.broadcast %cst_47 : f32 to vector<16x1xf32>
    %150 = arith.divf %148, %149 : vector<16x1xf32>
    %151 = vector.broadcast %150 : vector<16x1xf32> to vector<16x32xf32>
    %152 = arith.subf %142, %151 : vector<16x32xf32>
    %153 = arith.mulf %152, %152 : vector<16x32xf32>
    %cst_48 = arith.constant dense<0.000000e+00> : vector<16xf32>
    %154 = vector.multi_reduction <add>, %153, %cst_48 [1] : vector<16x32xf32> to vector<16xf32>
    %155 = vector.shape_cast %154 : vector<16xf32> to vector<16x1xf32>
    %cst_49 = arith.constant 3.200000e+01 : f32
    %156 = vector.broadcast %cst_49 : f32 to vector<16x1xf32>
    %157 = arith.divf %155, %156 : vector<16x1xf32>
    %158 = vector.broadcast %150 : vector<16x1xf32> to vector<16x32xf32>
    %159 = arith.subf %142, %158 : vector<16x32xf32>
    %cst_50 = arith.constant 9.99999974E-6 : f32
    %160 = vector.broadcast %cst_50 : f32 to vector<16x1xf32>
    %161 = arith.addf %157, %160 : vector<16x1xf32>
    %162 = math.rsqrt %161 : vector<16x1xf32>
    %163 = vector.broadcast %162 : vector<16x1xf32> to vector<16x32xf32>
    %164 = arith.mulf %159, %163 : vector<16x32xf32>
    %165 = vector.broadcast %144 : vector<1x32xf32> to vector<16x32xf32>
    %166 = arith.mulf %164, %165 : vector<16x32xf32>
    %167 = vector.broadcast %146 : vector<1x32xf32> to vector<16x32xf32>
    %168 = arith.addf %166, %167 : vector<16x32xf32>
    %169 = vector.shape_cast %168 : vector<16x32xf32> to vector<2x8x32xf32>
    %c0_51 = arith.constant 0 : index
    %c0_52 = arith.constant 0 : index
    %c0_53 = arith.constant 0 : index
    %170 = vector.load %arg23[%c0_51, %c0_52, %c0_53] : memref<1x32x96xf32, #tpu.memory_space<vmem>>, vector<1x32x96xf32>
    %171 = vector.shape_cast %170 : vector<1x32x96xf32> to vector<32x96xf32>
    %c0_54 = arith.constant 0 : index
    %c0_55 = arith.constant 0 : index
    %c0_56 = arith.constant 0 : index
    %172 = vector.load %arg24[%c0_54, %c0_55, %c0_56] : memref<1x1x96xf32, #tpu.memory_space<vmem>>, vector<1x1x96xf32>
    %173 = vector.shape_cast %172 : vector<1x1x96xf32> to vector<1x96xf32>
    %c0_57 = arith.constant 0 : index
    %c0_58 = arith.constant 0 : index
    %c0_59 = arith.constant 0 : index
    %174 = vector.load %arg25[%c0_57, %c0_58, %c0_59] : memref<1x32x32xf32, #tpu.memory_space<vmem>>, vector<1x32x32xf32>
    %175 = vector.shape_cast %174 : vector<1x32x32xf32> to vector<32x32xf32>
    %c0_60 = arith.constant 0 : index
    %c0_61 = arith.constant 0 : index
    %c0_62 = arith.constant 0 : index
    %176 = vector.load %arg26[%c0_60, %c0_61, %c0_62] : memref<1x1x32xf32, #tpu.memory_space<vmem>>, vector<1x1x32xf32>
    %177 = vector.shape_cast %176 : vector<1x1x32xf32> to vector<1x32xf32>
    %178 = vector.shape_cast %169 : vector<2x8x32xf32> to vector<16x32xf32>
    %cst_63 = arith.constant dense<0.000000e+00> : vector<16x96xf32>
    %179 = tpu.matmul %178, %171, %cst_63 {dimension_numbers = #tpu.dot_dimension_numbers<[1], [0], [0], [1], [0, 0, 1, 1], [], []>} : vector<16x32xf32>, vector<32x96xf32>, vector<16x96xf32> -> vector<16x96xf32>
    %180 = vector.broadcast %173 : vector<1x96xf32> to vector<16x96xf32>
    %181 = arith.addf %179, %180 : vector<16x96xf32>
    %182 = vector.shape_cast %181 : vector<16x96xf32> to vector<2x8x96xf32>
    %cst_64 = arith.constant 0.000000e+00 : f32
    %183 = vector.broadcast %cst_64 : f32 to vector<16x32xf32>
    %184 = vector.extract_strided_slice %182 {offsets = [0, 0, 0], sizes = [2, 8, 8], strides = [1, 1, 1]} : vector<2x8x96xf32> to vector<2x8x8xf32>
    %cst_65 = arith.constant 0.353553385 : f32
    %185 = vector.broadcast %cst_65 : f32 to vector<2x8x8xf32>
    %186 = arith.mulf %184, %185 : vector<2x8x8xf32>
    %187 = vector.extract_strided_slice %182 {offsets = [0, 0, 32], sizes = [2, 8, 8], strides = [1, 1, 1]} : vector<2x8x96xf32> to vector<2x8x8xf32>
    %188 = vector.extract_strided_slice %182 {offsets = [0, 0, 64], sizes = [2, 8, 8], strides = [1, 1, 1]} : vector<2x8x96xf32> to vector<2x8x8xf32>
    "tpu.trace_start"() <{level = 10 : i32, message = "bqd,bkd->bqk"}> : () -> ()
    %cst_66 = arith.constant dense<0.000000e+00> : vector<2x8x8xf32>
    %189 = tpu.matmul %186, %187, %cst_66 {dimension_numbers = #tpu.dot_dimension_numbers<[2], [2], [1], [1], [0, 0, 0, 1, 1, 1], [0], [0]>} : vector<2x8x8xf32>, vector<2x8x8xf32>, vector<2x8x8xf32> -> vector<2x8x8xf32>
    "tpu.trace_stop"() : () -> ()
    %cst_67 = arith.constant dense<0xFF800000> : vector<2x8xf32>
    %190 = vector.multi_reduction <maximumf>, %189, %cst_67 [2] : vector<2x8x8xf32> to vector<2x8xf32>
    %191 = vector.shape_cast %190 : vector<2x8xf32> to vector<2x8x1xf32>
    %192 = vector.broadcast %191 : vector<2x8x1xf32> to vector<2x8x8xf32>
    %193 = arith.subf %189, %192 : vector<2x8x8xf32>
    %194 = math.exp %193 : vector<2x8x8xf32>
    %cst_68 = arith.constant dense<0.000000e+00> : vector<2x8xf32>
    %195 = vector.multi_reduction <add>, %194, %cst_68 [2] : vector<2x8x8xf32> to vector<2x8xf32>
    %196 = vector.shape_cast %195 : vector<2x8xf32> to vector<2x8x1xf32>
    %197 = vector.broadcast %196 : vector<2x8x1xf32> to vector<2x8x8xf32>
    %198 = arith.divf %194, %197 : vector<2x8x8xf32>
    "tpu.trace_start"() <{level = 10 : i32, message = "bqk,bkd->bqd"}> : () -> ()
    %cst_69 = arith.constant dense<0.000000e+00> : vector<2x8x8xf32>
    %199 = tpu.matmul %198, %188, %cst_69 {dimension_numbers = #tpu.dot_dimension_numbers<[2], [1], [1], [2], [0, 0, 0, 1, 1, 2], [0], [0]>} : vector<2x8x8xf32>, vector<2x8x8xf32>, vector<2x8x8xf32> -> vector<2x8x8xf32>
    "tpu.trace_stop"() : () -> ()
    %200 = vector.shape_cast %199 : vector<2x8x8xf32> to vector<16x8xf32>
    %201 = vector.extract_strided_slice %175 {offsets = [0, 0], sizes = [8, 32], strides = [1, 1]} : vector<32x32xf32> to vector<8x32xf32>
    %cst_70 = arith.constant dense<0.000000e+00> : vector<16x32xf32>
    %202 = tpu.matmul %200, %201, %cst_70 {dimension_numbers = #tpu.dot_dimension_numbers<[1], [0], [0], [1], [0, 0, 1, 1], [], []>} : vector<16x8xf32>, vector<8x32xf32>, vector<16x32xf32> -> vector<16x32xf32>
    %203 = arith.addf %183, %202 : vector<16x32xf32>
    %204 = vector.extract_strided_slice %182 {offsets = [0, 0, 8], sizes = [2, 8, 8], strides = [1, 1, 1]} : vector<2x8x96xf32> to vector<2x8x8xf32>
    %cst_71 = arith.constant 0.353553385 : f32
    %205 = vector.broadcast %cst_71 : f32 to vector<2x8x8xf32>
    %206 = arith.mulf %204, %205 : vector<2x8x8xf32>
    %207 = vector.extract_strided_slice %182 {offsets = [0, 0, 40], sizes = [2, 8, 8], strides = [1, 1, 1]} : vector<2x8x96xf32> to vector<2x8x8xf32>
    %208 = vector.extract_strided_slice %182 {offsets = [0, 0, 72], sizes = [2, 8, 8], strides = [1, 1, 1]} : vector<2x8x96xf32> to vector<2x8x8xf32>
    "tpu.trace_start"() <{level = 10 : i32, message = "bqd,bkd->bqk"}> : () -> ()
    %cst_72 = arith.constant dense<0.000000e+00> : vector<2x8x8xf32>
    %209 = tpu.matmul %206, %207, %cst_72 {dimension_numbers = #tpu.dot_dimension_numbers<[2], [2], [1], [1], [0, 0, 0, 1, 1, 1], [0], [0]>} : vector<2x8x8xf32>, vector<2x8x8xf32>, vector<2x8x8xf32> -> vector<2x8x8xf32>
    "tpu.trace_stop"() : () -> ()
    %cst_73 = arith.constant dense<0xFF800000> : vector<2x8xf32>
    %210 = vector.multi_reduction <maximumf>, %209, %cst_73 [2] : vector<2x8x8xf32> to vector<2x8xf32>
    %211 = vector.shape_cast %210 : vector<2x8xf32> to vector<2x8x1xf32>
    %212 = vector.broadcast %211 : vector<2x8x1xf32> to vector<2x8x8xf32>
    %213 = arith.subf %209, %212 : vector<2x8x8xf32>
    %214 = math.exp %213 : vector<2x8x8xf32>
    %cst_74 = arith.constant dense<0.000000e+00> : vector<2x8xf32>
    %215 = vector.multi_reduction <add>, %214, %cst_74 [2] : vector<2x8x8xf32> to vector<2x8xf32>
    %216 = vector.shape_cast %215 : vector<2x8xf32> to vector<2x8x1xf32>
    %217 = vector.broadcast %216 : vector<2x8x1xf32> to vector<2x8x8xf32>
    %218 = arith.divf %214, %217 : vector<2x8x8xf32>
    "tpu.trace_start"() <{level = 10 : i32, message = "bqk,bkd->bqd"}> : () -> ()
    %cst_75 = arith.constant dense<0.000000e+00> : vector<2x8x8xf32>
    %219 = tpu.matmul %218, %208, %cst_75 {dimension_numbers = #tpu.dot_dimension_numbers<[2], [1], [1], [2], [0, 0, 0, 1, 1, 2], [0], [0]>} : vector<2x8x8xf32>, vector<2x8x8xf32>, vector<2x8x8xf32> -> vector<2x8x8xf32>
    "tpu.trace_stop"() : () -> ()
    %220 = vector.shape_cast %219 : vector<2x8x8xf32> to vector<16x8xf32>
    %221 = vector.extract_strided_slice %175 {offsets = [8, 0], sizes = [8, 32], strides = [1, 1]} : vector<32x32xf32> to vector<8x32xf32>
    %cst_76 = arith.constant dense<0.000000e+00> : vector<16x32xf32>
    %222 = tpu.matmul %220, %221, %cst_76 {dimension_numbers = #tpu.dot_dimension_numbers<[1], [0], [0], [1], [0, 0, 1, 1], [], []>} : vector<16x8xf32>, vector<8x32xf32>, vector<16x32xf32> -> vector<16x32xf32>
    %223 = arith.addf %203, %222 : vector<16x32xf32>
    %224 = vector.extract_strided_slice %182 {offsets = [0, 0, 16], sizes = [2, 8, 8], strides = [1, 1, 1]} : vector<2x8x96xf32> to vector<2x8x8xf32>
    %cst_77 = arith.constant 0.353553385 : f32
    %225 = vector.broadcast %cst_77 : f32 to vector<2x8x8xf32>
    %226 = arith.mulf %224, %225 : vector<2x8x8xf32>
    %227 = vector.extract_strided_slice %182 {offsets = [0, 0, 48], sizes = [2, 8, 8], strides = [1, 1, 1]} : vector<2x8x96xf32> to vector<2x8x8xf32>
    %228 = vector.extract_strided_slice %182 {offsets = [0, 0, 80], sizes = [2, 8, 8], strides = [1, 1, 1]} : vector<2x8x96xf32> to vector<2x8x8xf32>
    "tpu.trace_start"() <{level = 10 : i32, message = "bqd,bkd->bqk"}> : () -> ()
    %cst_78 = arith.constant dense<0.000000e+00> : vector<2x8x8xf32>
    %229 = tpu.matmul %226, %227, %cst_78 {dimension_numbers = #tpu.dot_dimension_numbers<[2], [2], [1], [1], [0, 0, 0, 1, 1, 1], [0], [0]>} : vector<2x8x8xf32>, vector<2x8x8xf32>, vector<2x8x8xf32> -> vector<2x8x8xf32>
    "tpu.trace_stop"() : () -> ()
    %cst_79 = arith.constant dense<0xFF800000> : vector<2x8xf32>
    %230 = vector.multi_reduction <maximumf>, %229, %cst_79 [2] : vector<2x8x8xf32> to vector<2x8xf32>
    %231 = vector.shape_cast %230 : vector<2x8xf32> to vector<2x8x1xf32>
    %232 = vector.broadcast %231 : vector<2x8x1xf32> to vector<2x8x8xf32>
    %233 = arith.subf %229, %232 : vector<2x8x8xf32>
    %234 = math.exp %233 : vector<2x8x8xf32>
    %cst_80 = arith.constant dense<0.000000e+00> : vector<2x8xf32>
    %235 = vector.multi_reduction <add>, %234, %cst_80 [2] : vector<2x8x8xf32> to vector<2x8xf32>
    %236 = vector.shape_cast %235 : vector<2x8xf32> to vector<2x8x1xf32>
    %237 = vector.broadcast %236 : vector<2x8x1xf32> to vector<2x8x8xf32>
    %238 = arith.divf %234, %237 : vector<2x8x8xf32>
    "tpu.trace_start"() <{level = 10 : i32, message = "bqk,bkd->bqd"}> : () -> ()
    %cst_81 = arith.constant dense<0.000000e+00> : vector<2x8x8xf32>
    %239 = tpu.matmul %238, %228, %cst_81 {dimension_numbers = #tpu.dot_dimension_numbers<[2], [1], [1], [2], [0, 0, 0, 1, 1, 2], [0], [0]>} : vector<2x8x8xf32>, vector<2x8x8xf32>, vector<2x8x8xf32> -> vector<2x8x8xf32>
    "tpu.trace_stop"() : () -> ()
    %240 = vector.shape_cast %239 : vector<2x8x8xf32> to vector<16x8xf32>
    %241 = vector.extract_strided_slice %175 {offsets = [16, 0], sizes = [8, 32], strides = [1, 1]} : vector<32x32xf32> to vector<8x32xf32>
    %cst_82 = arith.constant dense<0.000000e+00> : vector<16x32xf32>
    %242 = tpu.matmul %240, %241, %cst_82 {dimension_numbers = #tpu.dot_dimension_numbers<[1], [0], [0], [1], [0, 0, 1, 1], [], []>} : vector<16x8xf32>, vector<8x32xf32>, vector<16x32xf32> -> vector<16x32xf32>
    %243 = arith.addf %223, %242 : vector<16x32xf32>
    %244 = vector.extract_strided_slice %182 {offsets = [0, 0, 24], sizes = [2, 8, 8], strides = [1, 1, 1]} : vector<2x8x96xf32> to vector<2x8x8xf32>
    %cst_83 = arith.constant 0.353553385 : f32
    %245 = vector.broadcast %cst_83 : f32 to vector<2x8x8xf32>
    %246 = arith.mulf %244, %245 : vector<2x8x8xf32>
    %247 = vector.extract_strided_slice %182 {offsets = [0, 0, 56], sizes = [2, 8, 8], strides = [1, 1, 1]} : vector<2x8x96xf32> to vector<2x8x8xf32>
    %248 = vector.extract_strided_slice %182 {offsets = [0, 0, 88], sizes = [2, 8, 8], strides = [1, 1, 1]} : vector<2x8x96xf32> to vector<2x8x8xf32>
    "tpu.trace_start"() <{level = 10 : i32, message = "bqd,bkd->bqk"}> : () -> ()
    %cst_84 = arith.constant dense<0.000000e+00> : vector<2x8x8xf32>
    %249 = tpu.matmul %246, %247, %cst_84 {dimension_numbers = #tpu.dot_dimension_numbers<[2], [2], [1], [1], [0, 0, 0, 1, 1, 1], [0], [0]>} : vector<2x8x8xf32>, vector<2x8x8xf32>, vector<2x8x8xf32> -> vector<2x8x8xf32>
    "tpu.trace_stop"() : () -> ()
    %cst_85 = arith.constant dense<0xFF800000> : vector<2x8xf32>
    %250 = vector.multi_reduction <maximumf>, %249, %cst_85 [2] : vector<2x8x8xf32> to vector<2x8xf32>
    %251 = vector.shape_cast %250 : vector<2x8xf32> to vector<2x8x1xf32>
    %252 = vector.broadcast %251 : vector<2x8x1xf32> to vector<2x8x8xf32>
    %253 = arith.subf %249, %252 : vector<2x8x8xf32>
    %254 = math.exp %253 : vector<2x8x8xf32>
    %cst_86 = arith.constant dense<0.000000e+00> : vector<2x8xf32>
    %255 = vector.multi_reduction <add>, %254, %cst_86 [2] : vector<2x8x8xf32> to vector<2x8xf32>
    %256 = vector.shape_cast %255 : vector<2x8xf32> to vector<2x8x1xf32>
    %257 = vector.broadcast %256 : vector<2x8x1xf32> to vector<2x8x8xf32>
    %258 = arith.divf %254, %257 : vector<2x8x8xf32>
    "tpu.trace_start"() <{level = 10 : i32, message = "bqk,bkd->bqd"}> : () -> ()
    %cst_87 = arith.constant dense<0.000000e+00> : vector<2x8x8xf32>
    %259 = tpu.matmul %258, %248, %cst_87 {dimension_numbers = #tpu.dot_dimension_numbers<[2], [1], [1], [2], [0, 0, 0, 1, 1, 2], [0], [0]>} : vector<2x8x8xf32>, vector<2x8x8xf32>, vector<2x8x8xf32> -> vector<2x8x8xf32>
    "tpu.trace_stop"() : () -> ()
    %260 = vector.shape_cast %259 : vector<2x8x8xf32> to vector<16x8xf32>
    %261 = vector.extract_strided_slice %175 {offsets = [24, 0], sizes = [8, 32], strides = [1, 1]} : vector<32x32xf32> to vector<8x32xf32>
    %cst_88 = arith.constant dense<0.000000e+00> : vector<16x32xf32>
    %262 = tpu.matmul %260, %261, %cst_88 {dimension_numbers = #tpu.dot_dimension_numbers<[1], [0], [0], [1], [0, 0, 1, 1], [], []>} : vector<16x8xf32>, vector<8x32xf32>, vector<16x32xf32> -> vector<16x32xf32>
    %263 = arith.addf %243, %262 : vector<16x32xf32>
    %264 = vector.broadcast %177 : vector<1x32xf32> to vector<16x32xf32>
    %265 = arith.addf %263, %264 : vector<16x32xf32>
    %266 = vector.shape_cast %265 : vector<16x32xf32> to vector<2x8x32xf32>
    %267 = arith.addf %169, %266 : vector<2x8x32xf32>
    %c0_89 = arith.constant 0 : index
    %c0_90 = arith.constant 0 : index
    %c0_91 = arith.constant 0 : index
    %268 = vector.load %arg31[%c0_89, %c0_90, %c0_91] : memref<1x1x32xf32, #tpu.memory_space<vmem>>, vector<1x1x32xf32>
    %269 = vector.shape_cast %268 : vector<1x1x32xf32> to vector<1x32xf32>
    %c0_92 = arith.constant 0 : index
    %c0_93 = arith.constant 0 : index
    %c0_94 = arith.constant 0 : index
    %270 = vector.load %arg32[%c0_92, %c0_93, %c0_94] : memref<1x1x32xf32, #tpu.memory_space<vmem>>, vector<1x1x32xf32>
    %271 = vector.shape_cast %270 : vector<1x1x32xf32> to vector<1x32xf32>
    %cst_95 = arith.constant dense<0.000000e+00> : vector<2x8xf32>
    %272 = vector.multi_reduction <add>, %267, %cst_95 [2] : vector<2x8x32xf32> to vector<2x8xf32>
    %273 = vector.shape_cast %272 : vector<2x8xf32> to vector<2x8x1xf32>
    %cst_96 = arith.constant 3.200000e+01 : f32
    %274 = vector.broadcast %cst_96 : f32 to vector<2x8x1xf32>
    %275 = arith.divf %273, %274 : vector<2x8x1xf32>
    %276 = vector.broadcast %275 : vector<2x8x1xf32> to vector<2x8x32xf32>
    %277 = arith.subf %267, %276 : vector<2x8x32xf32>
    %278 = arith.mulf %277, %277 : vector<2x8x32xf32>
    %cst_97 = arith.constant dense<0.000000e+00> : vector<2x8xf32>
    %279 = vector.multi_reduction <add>, %278, %cst_97 [2] : vector<2x8x32xf32> to vector<2x8xf32>
    %280 = vector.shape_cast %279 : vector<2x8xf32> to vector<2x8x1xf32>
    %cst_98 = arith.constant 3.200000e+01 : f32
    %281 = vector.broadcast %cst_98 : f32 to vector<2x8x1xf32>
    %282 = arith.divf %280, %281 : vector<2x8x1xf32>
    %283 = vector.broadcast %275 : vector<2x8x1xf32> to vector<2x8x32xf32>
    %284 = arith.subf %267, %283 : vector<2x8x32xf32>
    %cst_99 = arith.constant 9.99999974E-6 : f32
    %285 = vector.broadcast %cst_99 : f32 to vector<2x8x1xf32>
    %286 = arith.addf %282, %285 : vector<2x8x1xf32>
    %287 = math.rsqrt %286 : vector<2x8x1xf32>
    %288 = vector.broadcast %287 : vector<2x8x1xf32> to vector<2x8x32xf32>
    %289 = arith.mulf %284, %288 : vector<2x8x32xf32>
    %290 = vector.shape_cast %269 : vector<1x32xf32> to vector<1x1x32xf32>
    %291 = vector.broadcast %290 : vector<1x1x32xf32> to vector<2x8x32xf32>
    %292 = arith.mulf %289, %291 : vector<2x8x32xf32>
    %293 = vector.shape_cast %271 : vector<1x32xf32> to vector<1x1x32xf32>
    %294 = vector.broadcast %293 : vector<1x1x32xf32> to vector<2x8x32xf32>
    %295 = arith.addf %292, %294 : vector<2x8x32xf32>
    %296 = vector.shape_cast %295 : vector<2x8x32xf32> to vector<16x32xf32>
    %c0_100 = arith.constant 0 : index
    %c0_101 = arith.constant 0 : index
    %c0_102 = arith.constant 0 : index
    %297 = vector.load %arg27[%c0_100, %c0_101, %c0_102] : memref<1x32x32xf32, #tpu.memory_space<vmem>>, vector<1x32x32xf32>
    %298 = vector.shape_cast %297 : vector<1x32x32xf32> to vector<32x32xf32>
    %cst_103 = arith.constant dense<0.000000e+00> : vector<16x32xf32>
    %299 = tpu.matmul %296, %298, %cst_103 {dimension_numbers = #tpu.dot_dimension_numbers<[1], [0], [0], [1], [0, 0, 1, 1], [], []>} : vector<16x32xf32>, vector<32x32xf32>, vector<16x32xf32> -> vector<16x32xf32>
    %c0_104 = arith.constant 0 : index
    %c0_105 = arith.constant 0 : index
    %c0_106 = arith.constant 0 : index
    %300 = vector.load %arg28[%c0_104, %c0_105, %c0_106] : memref<1x1x32xf32, #tpu.memory_space<vmem>>, vector<1x1x32xf32>
    %301 = vector.shape_cast %300 : vector<1x1x32xf32> to vector<1x32xf32>
    %302 = vector.broadcast %301 : vector<1x32xf32> to vector<16x32xf32>
    %303 = arith.addf %299, %302 : vector<16x32xf32>
    %cst_107 = arith.constant 0.000000e+00 : f32
    %304 = vector.broadcast %cst_107 : f32 to vector<16x32xf32>
    %305 = arith.maximumf %303, %304 : vector<16x32xf32>
    %c0_108 = arith.constant 0 : index
    %c0_109 = arith.constant 0 : index
    %c0_110 = arith.constant 0 : index
    %306 = vector.load %arg29[%c0_108, %c0_109, %c0_110] : memref<1x32x32xf32, #tpu.memory_space<vmem>>, vector<1x32x32xf32>
    %307 = vector.shape_cast %306 : vector<1x32x32xf32> to vector<32x32xf32>
    %cst_111 = arith.constant dense<0.000000e+00> : vector<16x32xf32>
    %308 = tpu.matmul %305, %307, %cst_111 {dimension_numbers = #tpu.dot_dimension_numbers<[1], [0], [0], [1], [0, 0, 1, 1], [], []>} : vector<16x32xf32>, vector<32x32xf32>, vector<16x32xf32> -> vector<16x32xf32>
    %c0_112 = arith.constant 0 : index
    %c0_113 = arith.constant 0 : index
    %c0_114 = arith.constant 0 : index
    %309 = vector.load %arg30[%c0_112, %c0_113, %c0_114] : memref<1x1x32xf32, #tpu.memory_space<vmem>>, vector<1x1x32xf32>
    %310 = vector.shape_cast %309 : vector<1x1x32xf32> to vector<1x32xf32>
    %311 = vector.broadcast %310 : vector<1x32xf32> to vector<16x32xf32>
    %312 = arith.addf %308, %311 : vector<16x32xf32>
    %313 = arith.addf %296, %312 : vector<16x32xf32>
    %c0_115 = arith.constant 0 : index
    %c0_116 = arith.constant 0 : index
    %c0_117 = arith.constant 0 : index
    %314 = vector.load %arg31[%c0_115, %c0_116, %c0_117] : memref<1x1x32xf32, #tpu.memory_space<vmem>>, vector<1x1x32xf32>
    %315 = vector.shape_cast %314 : vector<1x1x32xf32> to vector<1x32xf32>
    %c0_118 = arith.constant 0 : index
    %c0_119 = arith.constant 0 : index
    %c0_120 = arith.constant 0 : index
    %316 = vector.load %arg32[%c0_118, %c0_119, %c0_120] : memref<1x1x32xf32, #tpu.memory_space<vmem>>, vector<1x1x32xf32>
    %317 = vector.shape_cast %316 : vector<1x1x32xf32> to vector<1x32xf32>
    %cst_121 = arith.constant dense<0.000000e+00> : vector<16xf32>
    %318 = vector.multi_reduction <add>, %313, %cst_121 [1] : vector<16x32xf32> to vector<16xf32>
    %319 = vector.shape_cast %318 : vector<16xf32> to vector<16x1xf32>
    %cst_122 = arith.constant 3.200000e+01 : f32
    %320 = vector.broadcast %cst_122 : f32 to vector<16x1xf32>
    %321 = arith.divf %319, %320 : vector<16x1xf32>
    %322 = vector.broadcast %321 : vector<16x1xf32> to vector<16x32xf32>
    %323 = arith.subf %313, %322 : vector<16x32xf32>
    %324 = arith.mulf %323, %323 : vector<16x32xf32>
    %cst_123 = arith.constant dense<0.000000e+00> : vector<16xf32>
    %325 = vector.multi_reduction <add>, %324, %cst_123 [1] : vector<16x32xf32> to vector<16xf32>
    %326 = vector.shape_cast %325 : vector<16xf32> to vector<16x1xf32>
    %cst_124 = arith.constant 3.200000e+01 : f32
    %327 = vector.broadcast %cst_124 : f32 to vector<16x1xf32>
    %328 = arith.divf %326, %327 : vector<16x1xf32>
    %329 = vector.broadcast %321 : vector<16x1xf32> to vector<16x32xf32>
    %330 = arith.subf %313, %329 : vector<16x32xf32>
    %cst_125 = arith.constant 9.99999974E-6 : f32
    %331 = vector.broadcast %cst_125 : f32 to vector<16x1xf32>
    %332 = arith.addf %328, %331 : vector<16x1xf32>
    %333 = math.rsqrt %332 : vector<16x1xf32>
    %334 = vector.broadcast %333 : vector<16x1xf32> to vector<16x32xf32>
    %335 = arith.mulf %330, %334 : vector<16x32xf32>
    %336 = vector.broadcast %315 : vector<1x32xf32> to vector<16x32xf32>
    %337 = arith.mulf %335, %336 : vector<16x32xf32>
    %338 = vector.broadcast %317 : vector<1x32xf32> to vector<16x32xf32>
    %339 = arith.addf %337, %338 : vector<16x32xf32>
    %340 = vector.shape_cast %339 : vector<16x32xf32> to vector<2x8x32xf32>
    %c0_126 = arith.constant 0 : index
    %c0_127 = arith.constant 0 : index
    %c0_128 = arith.constant 0 : index
    %c0_129 = arith.constant 0 : index
    %341 = vector.load %arg45[%c0_126, %c0_127, %c0_128, %c0_129] : memref<1x2x8x32xf32, #tpu.memory_space<vmem>>, vector<1x2x8x32xf32>
    %342 = vector.shape_cast %341 : vector<1x2x8x32xf32> to vector<2x8x32xf32>
    %343 = vector.shape_cast %340 : vector<2x8x32xf32> to vector<1x2x8x32xf32>
    tpu.vector_store %arg45[%c0_126, %c0_127, %c0_128, %c0_129], %343 {strides = array<i32>} : memref<1x2x8x32xf32, #tpu.memory_space<vmem>>, vector<1x2x8x32xf32>,
    %c0_130 = arith.constant 0 : index
    %c0_131 = arith.constant 0 : index
    %344 = vector.load %arg4[%c0_130, %c0_131] : memref<2x6xf32, #tpu.memory_space<vmem>>, vector<2x6xf32>
    %c0_132 = arith.constant 0 : index
    %c0_133 = arith.constant 0 : index
    %c0_134 = arith.constant 0 : index
    %345 = vector.load %arg33[%c0_132, %c0_133, %c0_134] : memref<1x6x32xf32, #tpu.memory_space<vmem>>, vector<1x6x32xf32>
    %346 = vector.shape_cast %345 : vector<1x6x32xf32> to vector<6x32xf32>
    %cst_135 = arith.constant dense<0.000000e+00> : vector<2x32xf32>
    %347 = tpu.matmul %344, %346, %cst_135 {dimension_numbers = #tpu.dot_dimension_numbers<[1], [0], [0], [1], [0, 0, 1, 1], [], []>} : vector<2x6xf32>, vector<6x32xf32>, vector<2x32xf32> -> vector<2x32xf32>
    %c0_136 = arith.constant 0 : index
    %c0_137 = arith.constant 0 : index
    %c0_138 = arith.constant 0 : index
    %348 = vector.load %arg34[%c0_136, %c0_137, %c0_138] : memref<1x1x32xf32, #tpu.memory_space<vmem>>, vector<1x1x32xf32>
    %349 = vector.shape_cast %348 : vector<1x1x32xf32> to vector<1x32xf32>
    %350 = vector.broadcast %349 : vector<1x32xf32> to vector<2x32xf32>
    %351 = arith.addf %347, %350 : vector<2x32xf32>
    %c0_139 = arith.constant 0 : index
    %c0_140 = arith.constant 0 : index
    %c0_141 = arith.constant 0 : index
    %352 = vector.load %arg13[%c0_139, %c0_140, %c0_141] : memref<1x2x32xf32, #tpu.memory_space<vmem>>, vector<1x2x32xf32>
    %353 = vector.shape_cast %352 : vector<1x2x32xf32> to vector<2x32xf32>
    %354 = tpu.concatenate %351, %353 in 1 : vector<2x32xf32>, vector<2x32xf32> -> vector<2x64xf32>
    %c0_142 = arith.constant 0 : index
    %c0_143 = arith.constant 0 : index
    %c0_144 = arith.constant 0 : index
    %355 = vector.load %arg35[%c0_142, %c0_143, %c0_144] : memref<1x64x32xf32, #tpu.memory_space<vmem>>, vector<1x64x32xf32>
    %356 = vector.shape_cast %355 : vector<1x64x32xf32> to vector<64x32xf32>
    %cst_145 = arith.constant dense<0.000000e+00> : vector<2x32xf32>
    %357 = tpu.matmul %354, %356, %cst_145 {dimension_numbers = #tpu.dot_dimension_numbers<[1], [0], [0], [1], [0, 0, 1, 1], [], []>} : vector<2x64xf32>, vector<64x32xf32>, vector<2x32xf32> -> vector<2x32xf32>
    %c0_146 = arith.constant 0 : index
    %c0_147 = arith.constant 0 : index
    %c0_148 = arith.constant 0 : index
    %358 = vector.load %arg36[%c0_146, %c0_147, %c0_148] : memref<1x1x32xf32, #tpu.memory_space<vmem>>, vector<1x1x32xf32>
    %359 = vector.shape_cast %358 : vector<1x1x32xf32> to vector<1x32xf32>
    %360 = vector.broadcast %359 : vector<1x32xf32> to vector<2x32xf32>
    %361 = arith.addf %357, %360 : vector<2x32xf32>
    %cst_149 = arith.constant 0.000000e+00 : f32
    %362 = vector.broadcast %cst_149 : f32 to vector<2x32xf32>
    %363 = arith.maximumf %361, %362 : vector<2x32xf32>
    %c0_150 = arith.constant 0 : index
    %c0_151 = arith.constant 0 : index
    %c0_152 = arith.constant 0 : index
    %364 = vector.load %arg37[%c0_150, %c0_151, %c0_152] : memref<1x32x128xf32, #tpu.memory_space<vmem>>, vector<1x32x128xf32>
    %365 = vector.shape_cast %364 : vector<1x32x128xf32> to vector<32x128xf32>
    %cst_153 = arith.constant dense<0.000000e+00> : vector<2x128xf32>
    %366 = tpu.matmul %363, %365, %cst_153 {dimension_numbers = #tpu.dot_dimension_numbers<[1], [0], [0], [1], [0, 0, 1, 1], [], []>} : vector<2x32xf32>, vector<32x128xf32>, vector<2x128xf32> -> vector<2x128xf32>
    %c0_154 = arith.constant 0 : index
    %c0_155 = arith.constant 0 : index
    %c0_156 = arith.constant 0 : index
    %367 = vector.load %arg14[%c0_154, %c0_155, %c0_156] : memref<1x2x32xf32, #tpu.memory_space<vmem>>, vector<1x2x32xf32>
    %368 = vector.shape_cast %367 : vector<1x2x32xf32> to vector<2x32xf32>
    %c0_157 = arith.constant 0 : index
    %c0_158 = arith.constant 0 : index
    %c0_159 = arith.constant 0 : index
    %369 = vector.load %arg38[%c0_157, %c0_158, %c0_159] : memref<1x32x128xf32, #tpu.memory_space<vmem>>, vector<1x32x128xf32>
    %370 = vector.shape_cast %369 : vector<1x32x128xf32> to vector<32x128xf32>
    %cst_160 = arith.constant dense<0.000000e+00> : vector<2x128xf32>
    %371 = tpu.matmul %368, %370, %cst_160 {dimension_numbers = #tpu.dot_dimension_numbers<[1], [0], [0], [1], [0, 0, 1, 1], [], []>} : vector<2x32xf32>, vector<32x128xf32>, vector<2x128xf32> -> vector<2x128xf32>
    %372 = arith.addf %366, %371 : vector<2x128xf32>
    %c0_161 = arith.constant 0 : index
    %c0_162 = arith.constant 0 : index
    %c0_163 = arith.constant 0 : index
    %373 = vector.load %arg39[%c0_161, %c0_162, %c0_163] : memref<1x1x128xf32, #tpu.memory_space<vmem>>, vector<1x1x128xf32>
    %374 = vector.shape_cast %373 : vector<1x1x128xf32> to vector<1x128xf32>
    %375 = vector.broadcast %374 : vector<1x128xf32> to vector<2x128xf32>
    %376 = arith.addf %372, %375 : vector<2x128xf32>
    %377 = vector.extract_strided_slice %376 {offsets = [0, 0], sizes = [2, 96], strides = [1, 1]} : vector<2x128xf32> to vector<2x96xf32>
    %378 = arith.negf %377 : vector<2x96xf32>
    %379 = math.exp %378 : vector<2x96xf32>
    %cst_164 = arith.constant 1.000000e+00 : f32
    %380 = vector.broadcast %cst_164 : f32 to vector<2x96xf32>
    %381 = arith.addf %380, %379 : vector<2x96xf32>
    %382 = arith.divf %380, %381 : vector<2x96xf32>
    %383 = vector.extract_strided_slice %382 {offsets = [0, 0], sizes = [2, 32], strides = [1, 1]} : vector<2x96xf32> to vector<2x32xf32>
    %384 = vector.extract_strided_slice %382 {offsets = [0, 32], sizes = [2, 32], strides = [1, 1]} : vector<2x96xf32> to vector<2x32xf32>
    %385 = vector.extract_strided_slice %382 {offsets = [0, 64], sizes = [2, 32], strides = [1, 1]} : vector<2x96xf32> to vector<2x32xf32>
    %386 = vector.extract_strided_slice %376 {offsets = [0, 96], sizes = [2, 32], strides = [1, 1]} : vector<2x128xf32> to vector<2x32xf32>
    %387 = math.tanh %386 : vector<2x32xf32>
    %c0_165 = arith.constant 0 : index
    %c0_166 = arith.constant 0 : index
    %c0_167 = arith.constant 0 : index
    %388 = vector.load %arg15[%c0_165, %c0_166, %c0_167] : memref<1x2x32xf32, #tpu.memory_space<vmem>>, vector<1x2x32xf32>
    %389 = vector.shape_cast %388 : vector<1x2x32xf32> to vector<2x32xf32>
    %390 = arith.mulf %384, %389 : vector<2x32xf32>
    %391 = arith.mulf %383, %387 : vector<2x32xf32>
    %392 = arith.addf %390, %391 : vector<2x32xf32>
    %393 = math.tanh %392 : vector<2x32xf32>
    %394 = arith.mulf %385, %393 : vector<2x32xf32>
    %c0_168 = arith.constant 0 : index
    %c0_169 = arith.constant 0 : index
    %c0_170 = arith.constant 0 : index
    %395 = vector.load %arg47[%c0_168, %c0_169, %c0_170] : memref<1x2x32xf32, #tpu.memory_space<vmem>>, vector<1x2x32xf32>
    %396 = vector.shape_cast %395 : vector<1x2x32xf32> to vector<2x32xf32>
    %397 = vector.shape_cast %394 : vector<2x32xf32> to vector<1x2x32xf32>
    tpu.vector_store %arg47[%c0_168, %c0_169, %c0_170], %397 {strides = array<i32>} : memref<1x2x32xf32, #tpu.memory_space<vmem>>, vector<1x2x32xf32>,
    %c0_171 = arith.constant 0 : index
    %c0_172 = arith.constant 0 : index
    %c0_173 = arith.constant 0 : index
    %398 = vector.load %arg48[%c0_171, %c0_172, %c0_173] : memref<1x2x32xf32, #tpu.memory_space<vmem>>, vector<1x2x32xf32>
    %399 = vector.shape_cast %398 : vector<1x2x32xf32> to vector<2x32xf32>
    %400 = vector.shape_cast %392 : vector<2x32xf32> to vector<1x2x32xf32>
    tpu.vector_store %arg48[%c0_171, %c0_172, %c0_173], %400 {strides = array<i32>} : memref<1x2x32xf32, #tpu.memory_space<vmem>>, vector<1x2x32xf32>,
    %c0_174 = arith.constant 0 : index
    %c0_175 = arith.constant 0 : index
    %c0_176 = arith.constant 0 : index
    %401 = vector.load %arg40[%c0_174, %c0_175, %c0_176] : memref<1x32x32xf32, #tpu.memory_space<vmem>>, vector<1x32x32xf32>
    %402 = vector.shape_cast %401 : vector<1x32x32xf32> to vector<32x32xf32>
    %cst_177 = arith.constant dense<0.000000e+00> : vector<2x32xf32>
    %403 = tpu.matmul %394, %402, %cst_177 {dimension_numbers = #tpu.dot_dimension_numbers<[1], [0], [0], [1], [0, 0, 1, 1], [], []>} : vector<2x32xf32>, vector<32x32xf32>, vector<2x32xf32> -> vector<2x32xf32>
    %c0_178 = arith.constant 0 : index
    %c0_179 = arith.constant 0 : index
    %c0_180 = arith.constant 0 : index
    %404 = vector.load %arg41[%c0_178, %c0_179, %c0_180] : memref<1x1x32xf32, #tpu.memory_space<vmem>>, vector<1x1x32xf32>
    %405 = vector.shape_cast %404 : vector<1x1x32xf32> to vector<1x32xf32>
    %406 = vector.broadcast %405 : vector<1x32xf32> to vector<2x32xf32>
    %407 = arith.addf %403, %406 : vector<2x32xf32>
    %c0_181 = arith.constant 0 : index
    %c0_182 = arith.constant 0 : index
    %c0_183 = arith.constant 0 : index
    %408 = vector.load %arg42[%c0_181, %c0_182, %c0_183] : memref<1x32x32xf32, #tpu.memory_space<vmem>>, vector<1x32x32xf32>
    %409 = vector.shape_cast %408 : vector<1x32x32xf32> to vector<32x32xf32>
    %cst_184 = arith.constant dense<0.000000e+00> : vector<16x32xf32>
    %410 = tpu.matmul %339, %409, %cst_184 {dimension_numbers = #tpu.dot_dimension_numbers<[1], [0], [0], [1], [0, 0, 1, 1], [], []>} : vector<16x32xf32>, vector<32x32xf32>, vector<16x32xf32> -> vector<16x32xf32>
    %c0_185 = arith.constant 0 : index
    %c0_186 = arith.constant 0 : index
    %c0_187 = arith.constant 0 : index
    %411 = vector.load %arg43[%c0_185, %c0_186, %c0_187] : memref<1x1x32xf32, #tpu.memory_space<vmem>>, vector<1x1x32xf32>
    %412 = vector.shape_cast %411 : vector<1x1x32xf32> to vector<1x32xf32>
    %413 = vector.broadcast %412 : vector<1x32xf32> to vector<16x32xf32>
    %414 = arith.addf %410, %413 : vector<16x32xf32>
    %415 = vector.shape_cast %414 : vector<16x32xf32> to vector<2x8x32xf32>
    %416 = vector.shape_cast %407 : vector<2x32xf32> to vector<2x1x32xf32>
    %417 = vector.broadcast %416 : vector<2x1x32xf32> to vector<2x8x32xf32>
    %418 = arith.addf %417, %415 : vector<2x8x32xf32>
    %419 = math.tanh %418 : vector<2x8x32xf32>
    %c0_188 = arith.constant 0 : index
    %c0_189 = arith.constant 0 : index
    %c0_190 = arith.constant 0 : index
    %420 = vector.load %arg44[%c0_188, %c0_189, %c0_190] : memref<1x1x32xf32, #tpu.memory_space<vmem>>, vector<1x1x32xf32>
    %421 = vector.shape_cast %420 : vector<1x1x32xf32> to vector<1x32xf32>
    %422 = vector.shape_cast %421 : vector<1x32xf32> to vector<1x1x32xf32>
    %423 = vector.broadcast %422 : vector<1x1x32xf32> to vector<2x8x32xf32>
    %424 = arith.mulf %419, %423 : vector<2x8x32xf32>
    %cst_191 = arith.constant dense<0.000000e+00> : vector<2x8xf32>
    %425 = vector.multi_reduction <add>, %424, %cst_191 [2] : vector<2x8x32xf32> to vector<2x8xf32>
    %c0_192 = arith.constant 0 : index
    %c0_193 = arith.constant 0 : index
    %426 = vector.load %arg5[%c0_192, %c0_193] : memref<2x8xi32, #tpu.memory_space<vmem>>, vector<2x8xi32>
    %c0_i32_194 = arith.constant 0 : i32
    %427 = vector.broadcast %c0_i32_194 : i32 to vector<2x8xi32>
    %428 = arith.cmpi ne, %426, %427 : vector<2x8xi32>
    %cst_195 = arith.constant -1.000000e+30 : f32
    %429 = vector.broadcast %cst_195 : f32 to vector<2x8xf32>
    %430 = arith.select %428, %429, %425 : vector<2x8xi1>, vector<2x8xf32>
    %cst_196 = arith.constant dense<0xFF800000> : vector<2xf32>
    %431 = vector.multi_reduction <maximumf>, %430, %cst_196 [1] : vector<2x8xf32> to vector<2xf32>
    %432 = vector.shape_cast %431 : vector<2xf32> to vector<2x1xf32>
    %433 = vector.broadcast %432 : vector<2x1xf32> to vector<2x8xf32>
    %434 = arith.subf %430, %433 : vector<2x8xf32>
    %435 = math.exp %434 : vector<2x8xf32>
    %cst_197 = arith.constant dense<0.000000e+00> : vector<2xf32>
    %436 = vector.multi_reduction <add>, %435, %cst_197 [1] : vector<2x8xf32> to vector<2xf32>
    %437 = vector.shape_cast %436 : vector<2xf32> to vector<2x1xf32>
    %438 = vector.broadcast %437 : vector<2x1xf32> to vector<2x8xf32>
    %439 = arith.divf %435, %438 : vector<2x8xf32>
    %c0_198 = arith.constant 0 : index
    %c0_199 = arith.constant 0 : index
    %c0_200 = arith.constant 0 : index
    %440 = vector.load %arg46[%c0_198, %c0_199, %c0_200] : memref<1x2x8xf32, #tpu.memory_space<vmem>>, vector<1x2x8xf32>
    %441 = vector.shape_cast %440 : vector<1x2x8xf32> to vector<2x8xf32>
    %442 = vector.shape_cast %439 : vector<2x8xf32> to vector<1x2x8xf32>
    tpu.vector_store %arg46[%c0_198, %c0_199, %c0_200], %442 {strides = array<i32>} : memref<1x2x8xf32, #tpu.memory_space<vmem>>, vector<1x2x8xf32>,
    return
  }
  func.func @transform_0(%arg0: i32) -> (i32, i32) {
    %c0_i32 = arith.constant 0 : i32
    %c0_i32_0 = arith.constant 0 : i32
    %c0_i32_1 = arith.constant 0 : i32
    return %c0_i32, %c0_i32_0 : i32, i32
  }
  func.func @transform_1(%arg0: i32) -> (i32, i32) {
    %c0_i32 = arith.constant 0 : i32
    %c0_i32_0 = arith.constant 0 : i32
    %c0_i32_1 = arith.constant 0 : i32
    return %c0_i32, %c0_i32_0 : i32, i32
  }
  func.func @transform_2(%arg0: i32) -> (i32, i32) {
    %c0_i32 = arith.constant 0 : i32
    %c0_i32_0 = arith.constant 0 : i32
    %c0_i32_1 = arith.constant 0 : i32
    return %c0_i32, %c0_i32_0 : i32, i32
  }
  func.func @transform_3(%arg0: i32) -> (i32, i32) {
    %c0_i32 = arith.constant 0 : i32
    %c0_i32_0 = arith.constant 0 : i32
    %c0_i32_1 = arith.constant 0 : i32
    return %c0_i32, %c0_i32_0 : i32, i32
  }
  func.func @transform_4(%arg0: i32) -> (i32, i32) {
    %c0_i32 = arith.constant 0 : i32
    %c0_i32_0 = arith.constant 0 : i32
    %c0_i32_1 = arith.constant 0 : i32
    return %c0_i32, %c0_i32_0 : i32, i32
  }
  func.func @transform_5(%arg0: i32) -> (i32, i32) {
    %c0_i32 = arith.constant 0 : i32
    %c0_i32_0 = arith.constant 0 : i32
    %c0_i32_1 = arith.constant 0 : i32
    return %c0_i32, %c0_i32_0 : i32, i32
  }
  func.func @transform_6(%arg0: i32) -> (i32, i32) {
    %c0_i32 = arith.constant 0 : i32
    %c0_i32_0 = arith.constant 0 : i32
    %c0_i32_1 = arith.constant 0 : i32
    return %c0_i32, %c0_i32_0 : i32, i32
  }
  func.func @transform_7(%arg0: i32) -> (i32, i32) {
    %c0_i32 = arith.constant 0 : i32
    %c0_i32_0 = arith.constant 0 : i32
    %c0_i32_1 = arith.constant 0 : i32
    return %c0_i32, %c0_i32_0 : i32, i32
  }
  func.func @transform_8(%arg0: i32) -> (i32, i32) {
    %c0_i32 = arith.constant 0 : i32
    %c0_i32_0 = arith.constant 0 : i32
    %c0_i32_1 = arith.constant 0 : i32
    return %c0_i32, %c0_i32_0 : i32, i32
  }
  func.func @transform_9(%arg0: i32) -> (i32, i32) {
    %c0_i32 = arith.constant 0 : i32
    %c0_i32_0 = arith.constant 0 : i32
    %c0_i32_1 = arith.constant 0 : i32
    return %c0_i32, %c0_i32_0 : i32, i32
  }
  func.func @transform_10(%arg0: i32) -> (i32, i32, i32) {
    %c0_i32 = arith.constant 0 : i32
    %c0_i32_0 = arith.constant 0 : i32
    %c0_i32_1 = arith.constant 0 : i32
    return %arg0, %c0_i32, %c0_i32_0 : i32, i32, i32
  }
  func.func @transform_11(%arg0: i32) -> (i32, i32, i32) {
    %c0_i32 = arith.constant 0 : i32
    %c0_i32_0 = arith.constant 0 : i32
    %c0_i32_1 = arith.constant 0 : i32
    return %arg0, %c0_i32, %c0_i32_0 : i32, i32, i32
  }
  func.func @transform_12(%arg0: i32) -> (i32, i32, i32) {
    %c0_i32 = arith.constant 0 : i32
    %c0_i32_0 = arith.constant 0 : i32
    %c0_i32_1 = arith.constant 0 : i32
    return %arg0, %c0_i32, %c0_i32_0 : i32, i32, i32
  }
  func.func @transform_13(%arg0: i32) -> (i32, i32, i32) {
    %c0_i32 = arith.constant 0 : i32
    %c0_i32_0 = arith.constant 0 : i32
    %c0_i32_1 = arith.constant 0 : i32
    return %arg0, %c0_i32, %c0_i32_0 : i32, i32, i32
  }
  func.func @transform_14(%arg0: i32) -> (i32, i32, i32) {
    %c0_i32 = arith.constant 0 : i32
    %c0_i32_0 = arith.constant 0 : i32
    %c0_i32_1 = arith.constant 0 : i32
    return %arg0, %c0_i32, %c0_i32_0 : i32, i32, i32
  }
  func.func @transform_15(%arg0: i32) -> (i32, i32, i32) {
    %c0_i32 = arith.constant 0 : i32
    %c0_i32_0 = arith.constant 0 : i32
    %c0_i32_1 = arith.constant 0 : i32
    return %arg0, %c0_i32, %c0_i32_0 : i32, i32, i32
  }
  func.func @transform_16(%arg0: i32) -> (i32, i32, i32) {
    %c0_i32 = arith.constant 0 : i32
    %c0_i32_0 = arith.constant 0 : i32
    %c0_i32_1 = arith.constant 0 : i32
    return %arg0, %c0_i32, %c0_i32_0 : i32, i32, i32
  }
  func.func @transform_17(%arg0: i32) -> (i32, i32, i32) {
    %c0_i32 = arith.constant 0 : i32
    %c0_i32_0 = arith.constant 0 : i32
    %c0_i32_1 = arith.constant 0 : i32
    return %arg0, %c0_i32, %c0_i32_0 : i32, i32, i32
  }
  func.func @transform_18(%arg0: i32) -> (i32, i32, i32) {
    %c0_i32 = arith.constant 0 : i32
    %c0_i32_0 = arith.constant 0 : i32
    %c0_i32_1 = arith.constant 0 : i32
    return %arg0, %c0_i32, %c0_i32_0 : i32, i32, i32
  }
  func.func @transform_19(%arg0: i32) -> (i32, i32, i32) {
    %c0_i32 = arith.constant 0 : i32
    %c0_i32_0 = arith.constant 0 : i32
    %c0_i32_1 = arith.constant 0 : i32
    return %arg0, %c0_i32, %c0_i32_0 : i32, i32, i32
  }
  func.func @transform_20(%arg0: i32) -> (i32, i32, i32) {
    %c0_i32 = arith.constant 0 : i32
    %c0_i32_0 = arith.constant 0 : i32
    %c0_i32_1 = arith.constant 0 : i32
    return %arg0, %c0_i32, %c0_i32_0 : i32, i32, i32
  }
  func.func @transform_21(%arg0: i32) -> (i32, i32, i32) {
    %c0_i32 = arith.constant 0 : i32
    %c0_i32_0 = arith.constant 0 : i32
    %c0_i32_1 = arith.constant 0 : i32
    return %arg0, %c0_i32, %c0_i32_0 : i32, i32, i32
  }
  func.func @transform_22(%arg0: i32) -> (i32, i32, i32) {
    %c0_i32 = arith.constant 0 : i32
    %c0_i32_0 = arith.constant 0 : i32
    %c0_i32_1 = arith.constant 0 : i32
    return %arg0, %c0_i32, %c0_i32_0 : i32, i32, i32
  }
  func.func @transform_23(%arg0: i32) -> (i32, i32, i32) {
    %c0_i32 = arith.constant 0 : i32
    %c0_i32_0 = arith.constant 0 : i32
    %c0_i32_1 = arith.constant 0 : i32
    return %arg0, %c0_i32, %c0_i32_0 : i32, i32, i32
  }
  func.func @transform_24(%arg0: i32) -> (i32, i32, i32) {
    %c0_i32 = arith.constant 0 : i32
    %c0_i32_0 = arith.constant 0 : i32
    %c0_i32_1 = arith.constant 0 : i32
    return %arg0, %c0_i32, %c0_i32_0 : i32, i32, i32
  }
  func.func @transform_25(%arg0: i32) -> (i32, i32, i32) {
    %c0_i32 = arith.constant 0 : i32
    %c0_i32_0 = arith.constant 0 : i32
    %c0_i32_1 = arith.constant 0 : i32
    return %arg0, %c0_i32, %c0_i32_0 : i32, i32, i32
  }
  func.func @transform_26(%arg0: i32) -> (i32, i32, i32) {
    %c0_i32 = arith.constant 0 : i32
    %c0_i32_0 = arith.constant 0 : i32
    %c0_i32_1 = arith.constant 0 : i32
    return %arg0, %c0_i32, %c0_i32_0 : i32, i32, i32
  }
  func.func @transform_27(%arg0: i32) -> (i32, i32, i32) {
    %c0_i32 = arith.constant 0 : i32
    %c0_i32_0 = arith.constant 0 : i32
    %c0_i32_1 = arith.constant 0 : i32
    return %arg0, %c0_i32, %c0_i32_0 : i32, i32, i32
  }
  func.func @transform_28(%arg0: i32) -> (i32, i32, i32) {
    %c0_i32 = arith.constant 0 : i32
    %c0_i32_0 = arith.constant 0 : i32
    %c0_i32_1 = arith.constant 0 : i32
    return %arg0, %c0_i32, %c0_i32_0 : i32, i32, i32
  }
  func.func @transform_29(%arg0: i32) -> (i32, i32, i32) {
    %c0_i32 = arith.constant 0 : i32
    %c0_i32_0 = arith.constant 0 : i32
    %c0_i32_1 = arith.constant 0 : i32
    return %arg0, %c0_i32, %c0_i32_0 : i32, i32, i32
  }
  func.func @transform_30(%arg0: i32) -> (i32, i32, i32) {
    %c0_i32 = arith.constant 0 : i32
    %c0_i32_0 = arith.constant 0 : i32
    %c0_i32_1 = arith.constant 0 : i32
    return %arg0, %c0_i32, %c0_i32_0 : i32, i32, i32
  }
  func.func @transform_31(%arg0: i32) -> (i32, i32, i32) {
    %c0_i32 = arith.constant 0 : i32
    %c0_i32_0 = arith.constant 0 : i32
    %c0_i32_1 = arith.constant 0 : i32
    return %arg0, %c0_i32, %c0_i32_0 : i32, i32, i32
  }
  func.func @transform_32(%arg0: i32) -> (i32, i32, i32) {
    %c0_i32 = arith.constant 0 : i32
    %c0_i32_0 = arith.constant 0 : i32
    %c0_i32_1 = arith.constant 0 : i32
    return %arg0, %c0_i32, %c0_i32_0 : i32, i32, i32
  }
  func.func @transform_33(%arg0: i32) -> (i32, i32, i32) {
    %c0_i32 = arith.constant 0 : i32
    %c0_i32_0 = arith.constant 0 : i32
    %c0_i32_1 = arith.constant 0 : i32
    return %arg0, %c0_i32, %c0_i32_0 : i32, i32, i32
  }
  func.func @transform_34(%arg0: i32) -> (i32, i32, i32) {
    %c0_i32 = arith.constant 0 : i32
    %c0_i32_0 = arith.constant 0 : i32
    %c0_i32_1 = arith.constant 0 : i32
    return %arg0, %c0_i32, %c0_i32_0 : i32, i32, i32
  }
  func.func @transform_35(%arg0: i32) -> (i32, i32, i32) {
    %c0_i32 = arith.constant 0 : i32
    %c0_i32_0 = arith.constant 0 : i32
    %c0_i32_1 = arith.constant 0 : i32
    return %arg0, %c0_i32, %c0_i32_0 : i32, i32, i32
  }
  func.func @transform_36(%arg0: i32) -> (i32, i32, i32) {
    %c0_i32 = arith.constant 0 : i32
    %c0_i32_0 = arith.constant 0 : i32
    %c0_i32_1 = arith.constant 0 : i32
    return %arg0, %c0_i32, %c0_i32_0 : i32, i32, i32
  }
  func.func @transform_37(%arg0: i32) -> (i32, i32, i32) {
    %c0_i32 = arith.constant 0 : i32
    %c0_i32_0 = arith.constant 0 : i32
    %c0_i32_1 = arith.constant 0 : i32
    return %arg0, %c0_i32, %c0_i32_0 : i32, i32, i32
  }
  func.func @transform_38(%arg0: i32) -> (i32, i32, i32) {
    %c0_i32 = arith.constant 0 : i32
    %c0_i32_0 = arith.constant 0 : i32
    %c0_i32_1 = arith.constant 0 : i32
    return %arg0, %c0_i32, %c0_i32_0 : i32, i32, i32
  }
  func.func @transform_39(%arg0: i32) -> (i32, i32, i32) {
    %c0_i32 = arith.constant 0 : i32
    %c0_i32_0 = arith.constant 0 : i32
    %c0_i32_1 = arith.constant 0 : i32
    return %arg0, %c0_i32, %c0_i32_0 : i32, i32, i32
  }
  func.func @transform_40(%arg0: i32) -> (i32, i32, i32) {
    %c0_i32 = arith.constant 0 : i32
    %c0_i32_0 = arith.constant 0 : i32
    %c0_i32_1 = arith.constant 0 : i32
    return %arg0, %c0_i32, %c0_i32_0 : i32, i32, i32
  }
  func.func @transform_41(%arg0: i32) -> (i32, i32, i32) {
    %c0_i32 = arith.constant 0 : i32
    %c0_i32_0 = arith.constant 0 : i32
    %c0_i32_1 = arith.constant 0 : i32
    return %arg0, %c0_i32, %c0_i32_0 : i32, i32, i32
  }
  func.func @transform_42(%arg0: i32) -> (i32, i32, i32) {
    %c0_i32 = arith.constant 0 : i32
    %c0_i32_0 = arith.constant 0 : i32
    %c0_i32_1 = arith.constant 0 : i32
    return %arg0, %c0_i32, %c0_i32_0 : i32, i32, i32
  }
  func.func @transform_43(%arg0: i32) -> (i32, i32, i32) {
    %c0_i32 = arith.constant 0 : i32
    %c0_i32_0 = arith.constant 0 : i32
    %c0_i32_1 = arith.constant 0 : i32
    return %arg0, %c0_i32, %c0_i32_0 : i32, i32, i32
  }
  func.func @transform_44(%arg0: i32) -> (i32, i32, i32, i32) {
    %c0_i32 = arith.constant 0 : i32
    %c0_i32_0 = arith.constant 0 : i32
    %c0_i32_1 = arith.constant 0 : i32
    %c0_i32_2 = arith.constant 0 : i32
    return %arg0, %c0_i32, %c0_i32_0, %c0_i32_1 : i32, i32, i32, i32
  }
  func.func @transform_45(%arg0: i32) -> (i32, i32, i32) {
    %c0_i32 = arith.constant 0 : i32
    %c0_i32_0 = arith.constant 0 : i32
    %c0_i32_1 = arith.constant 0 : i32
    return %arg0, %c0_i32, %c0_i32_0 : i32, i32, i32
  }
  func.func @transform_46(%arg0: i32) -> (i32, i32, i32) {
    %c0_i32 = arith.constant 0 : i32
    %c0_i32_0 = arith.constant 0 : i32
    %c0_i32_1 = arith.constant 0 : i32
    return %arg0, %c0_i32, %c0_i32_0 : i32, i32, i32
  }
  func.func @transform_47(%arg0: i32) -> (i32, i32, i32) {
    %c0_i32 = arith.constant 0 : i32
    %c0_i32_0 = arith.constant 0 : i32
    %c0_i32_1 = arith.constant 0 : i32
    return %arg0, %c0_i32, %c0_i32_0 : i32, i32, i32
  }
}

</mosaic_0001>

<llo_original>
// kernel: squeeze.0
$region0: #{squeeze.0}
  %s0 = inlined_call_operand.vmem [shape: s32[2,8,1], index: 0, kind: input, shape index: {}]
  %s1 = inlined_call_operand.vmem [shape: s32[16,1], index: 1, kind: output, shape index: {}]
  $region1: #{squeeze.0} parent=0
    #allocation0 [shape = 'u8[4096]{0}', space=vmem, size = 0x1000, scoped, tag = 'scoped mem for input reshape']
    %s3 = sshllo.u32 0, 2
    %v4 = vld [vmem:[%s0] sm:%s3]
    %5 = vst [vmem:[#allocation0] sm:%s3] %v4
    %v6 = vld [vmem:[#allocation0] sm:$0x3]
    %vm7 = vcmask 7168
    %8 = vst.msk [vmem:[%s1] ss:$8 sm:$0x3] %vm7, %v6
    %v9 = vld [vmem:[#allocation0] sm:$0x3]
    %10 = vrot.lane.b32.xlu0 %v9, 127
    %v11 = vpop.permute.xlu0 %10
    %vm12 = vcmask 7168
    %s13 = scalar_lea.vmem %s1, 1
    %14 = vst.msk [vmem:[%s13] ss:$8 sm:$0x3] %vm12, %v11
    %v15 = vld [vmem:[#allocation0] sm:$0x3]
    %16 = vrot.lane.b32.xlu0 %v15, 126
    %v17 = vpop.permute.xlu0 %16
    %vm18 = vcmask 7168
    %s19 = scalar_lea.vmem %s1, 2
    %20 = vst.msk [vmem:[%s19] ss:$8 sm:$0x3] %vm18, %v17
    %v21 = vld [vmem:[#allocation0] sm:$0x3]
    %22 = vrot.lane.b32.xlu0 %v21, 125
    %v23 = vpop.permute.xlu0 %22
    %vm24 = vcmask 7168
    %s25 = scalar_lea.vmem %s1, 3
    %26 = vst.msk [vmem:[%s25] ss:$8 sm:$0x3] %vm24, %v23
    %v27 = vld [vmem:[#allocation0] sm:$0x3]
    %28 = vrot.lane.b32.xlu0 %v27, 124
    %v29 = vpop.permute.xlu0 %28
    %vm30 = vcmask 7168
    %s31 = scalar_lea.vmem %s1, 4
    %32 = vst.msk [vmem:[%s31] ss:$8 sm:$0x3] %vm30, %v29
    %v33 = vld [vmem:[#allocation0] sm:$0x3]
    %34 = vrot.lane.b32.xlu0 %v33, 123
    %v35 = vpop.permute.xlu0 %34
    %vm36 = vcmask 7168
    %s37 = scalar_lea.vmem %s1, 5
    %38 = vst.msk [vmem:[%s37] ss:$8 sm:$0x3] %vm36, %v35
    %v39 = vld [vmem:[#allocation0] sm:$0x3]
    %40 = vrot.lane.b32.xlu0 %v39, 122
    %v41 = vpop.permute.xlu0 %40
    %vm42 = vcmask 7168
    %s43 = scalar_lea.vmem %s1, 6
    %44 = vst.msk [vmem:[%s43] ss:$8 sm:$0x3] %vm42, %v41
    %v45 = vld [vmem:[#allocation0] sm:$0x3]
    %46 = vrot.lane.b32.xlu0 %v45, 121
    %v47 = vpop.permute.xlu0 %46
    %vm48 = vcmask 7168
    %s49 = scalar_lea.vmem %s1, 7
    %50 = vst.msk [vmem:[%s49] ss:$8 sm:$0x3] %vm48, %v47

// kernel: multi_agent_forward.1
$region0: #{multi_agent_forward.1}
  #allocation0 [shape = 'u32[]', space=smem, size = 0x4, offset = 0x4, fixed_abs, tag = 'smem constant byte address 0x4 - core index']
  #allocation1 [shape = 'u32[144,128]{1,0:T(1,128)}', space=vmem, size = 0x12000, scoped, tag = 'internal scratch']
  #allocation2 [shape = 'f32[16,16]{1,0:T(8,128)}', space=vmem, size = 0x2000, scoped, tag = 'scratch operand']
  #allocation3 [shape = 'f32[16,16]{1,0:T(8,128)}', space=vmem, size = 0x2000, scoped, tag = 'scratch operand']
  %s0 = inlined_call_operand.smem [shape: u32[48], index: -1, kind: input, shape index: {}]
  %s1 = sld [smem:[%s0]]
  %s2 = scalar_lea.smem %s0, 1
  %s3 = sld [smem:[%s2]]
  %s4 = scalar_lea.smem %s0, 2
  %s5 = sld [smem:[%s4]]
  %s6 = scalar_lea.smem %s0, 3
  %s7 = sld [smem:[%s6]]
  %s8 = scalar_lea.smem %s0, 4
  %s9 = sld [smem:[%s8]]
  %s10 = scalar_lea.smem %s0, 5
  %s11 = sld [smem:[%s10]]
  %s12 = scalar_lea.smem %s0, 6
  %s13 = sld [smem:[%s12]]
  %s14 = scalar_lea.smem %s0, 7
  %s15 = sld [smem:[%s14]]
  %s16 = scalar_lea.smem %s0, 8
  %s17 = sld [smem:[%s16]]
  %s18 = scalar_lea.smem %s0, 9
  %s19 = sld [smem:[%s18]]
  %s20 = scalar_lea.smem %s0, 10
  %s21 = sld [smem:[%s20]]
  %s22 = scalar_lea.smem %s0, 11
  %s23 = sld [smem:[%s22]]
  %s24 = scalar_lea.smem %s0, 12
  %s25 = sld [smem:[%s24]]
  %s26 = scalar_lea.smem %s0, 13
  %s27 = sld [smem:[%s26]]
  %s28 = scalar_lea.smem %s0, 14
  %s29 = sld [smem:[%s28]]
  %s30 = scalar_lea.smem %s0, 15
  %s31 = sld [smem:[%s30]]
  %s32 = scalar_lea.smem %s0, 16
  %s33 = sld [smem:[%s32]]
  %s34 = scalar_lea.smem %s0, 17
  %s35 = sld [smem:[%s34]]
  %s36 = scalar_lea.smem %s0, 18
  %s37 = sld [smem:[%s36]]
  %s38 = scalar_lea.smem %s0, 19
  %s39 = sld [smem:[%s38]]
  %s40 = scalar_lea.smem %s0, 20
  %s41 = sld [smem:[%s40]]
  %s42 = scalar_lea.smem %s0, 21
  %s43 = sld [smem:[%s42]]
  %s44 = scalar_lea.smem %s0, 22
  %s45 = sld [smem:[%s44]]
  %s46 = scalar_lea.smem %s0, 23
  %s47 = sld [smem:[%s46]]
  %s48 = scalar_lea.smem %s0, 24
  %s49 = sld [smem:[%s48]]
  %s50 = scalar_lea.smem %s0, 25
  %s51 = sld [smem:[%s50]]
  %s52 = scalar_lea.smem %s0, 26
  %s53 = sld [smem:[%s52]]
  %s54 = scalar_lea.smem %s0, 27
  %s55 = sld [smem:[%s54]]
  %s56 = scalar_lea.smem %s0, 28
  %s57 = sld [smem:[%s56]]
  %s58 = scalar_lea.smem %s0, 29
  %s59 = sld [smem:[%s58]]
  %s60 = scalar_lea.smem %s0, 30
  %s61 = sld [smem:[%s60]]
  %s62 = scalar_lea.smem %s0, 31
  %s63 = sld [smem:[%s62]]
  %s64 = scalar_lea.smem %s0, 32
  %s65 = sld [smem:[%s64]]
  %s66 = scalar_lea.smem %s0, 33
  %s67 = sld [smem:[%s66]]
  %s68 = scalar_lea.smem %s0, 34
  %s69 = sld [smem:[%s68]]
  %s70 = scalar_lea.smem %s0, 35
  %s71 = sld [smem:[%s70]]
  %s72 = scalar_lea.smem %s0, 36
  %s73 = sld [smem:[%s72]]
  %s74 = scalar_lea.smem %s0, 37
  %s75 = sld [smem:[%s74]]
  %s76 = scalar_lea.smem %s0, 38
  %s77 = sld [smem:[%s76]]
  %s78 = scalar_lea.smem %s0, 39
  %s79 = sld [smem:[%s78]]
  %s80 = scalar_lea.smem %s0, 40
  %s81 = sld [smem:[%s80]]
  %s82 = scalar_lea.smem %s0, 41
  %s83 = sld [smem:[%s82]]
  %s84 = scalar_lea.smem %s0, 42
  %s85 = sld [smem:[%s84]]
  %s86 = scalar_lea.smem %s0, 43
  %s87 = sld [smem:[%s86]]
  %s88 = scalar_lea.smem %s0, 44
  %s89 = sld [smem:[%s88]]
  %s90 = scalar_lea.smem %s0, 45
  %s91 = sld [smem:[%s90]]
  %s92 = scalar_lea.smem %s0, 46
  %s93 = sld [smem:[%s92]]
  %s94 = scalar_lea.smem %s0, 47
  %s95 = sld [smem:[%s94]]
  %96 = xla_tuple %s89, %s91, %s93, %s95
  %s97 = sld [smem:[#allocation0]]
  $region277: #{multi_agent_forward.1} parent=0
    _
  %s99 = ssub.s32 1, %s97
  %s100 = scalar_select 0, %s99, %s97
  $region1: #{multi_agent_forward.1} parent=0
    #allocation4 [shape = 'u8[1024]{0}', space=vmem, size = 0x400, scoped, tag = 'input window, operand 3, single buffered']
    #allocation5 [shape = 's32[2]{0}', space=sflag, size = 0x8, scoped, tag = 'scoped memory for multi_agent_forward.1']
    #allocation6 [shape = 's32[2]{0}', space=sflag, size = 0x8, scoped, tag = 'scoped memory for multi_agent_forward.1']
    #allocation7 [shape = 'u8[1024]{0}', space=vmem, size = 0x400, scoped, tag = 'input window, operand 4, single buffered']
    #allocation8 [shape = 's32[1]{0}', space=sflag, size = 0x4, scoped, tag = 'scoped memory for multi_agent_forward.1']
    #allocation9 [shape = 'u8[1024]{0}', space=vmem, size = 0x400, scoped, tag = 'input window, operand 17']
    #allocation10 [shape = 'u8[1024]{0}', space=vmem, size = 0x400, scoped, tag = 'input window, operand 21']
    #allocation11 [shape = 'u8[1024]{0}', space=vmem, size = 0x400, scoped, tag = 'input window, operand 33']
    #allocation12 [shape = 'u8[1024]{0}', space=vmem, size = 0x400, scoped, tag = 'input window, operand 35']
    #allocation13 [shape = 'u8[1024]{0}', space=vmem, size = 0x400, scoped, tag = 'input window, operand 38']
    #allocation14 [shape = 'u8[1024]{0}', space=vmem, size = 0x400, scoped, tag = 'input window, operand 40']
    #allocation15 [shape = 'u8[1024]{0}', space=vmem, size = 0x400, scoped, tag = 'input window, operand 42']
    #allocation16 [shape = 'u8[1024]{0}', space=vmem, size = 0x400, scoped, tag = 'input window, operand 43']
    #allocation17 [shape = 'u8[16384]{0}', space=vmem, size = 0x4000, scoped, tag = 'output window, operand 0']
    #allocation18 [shape = 'u8[2048]{0}', space=vmem, size = 0x800, scoped, tag = 'output window, operand 1']
    #allocation19 [shape = 's32[2]{0}', space=sflag, size = 0x8, scoped, tag = 'scoped memory for multi_agent_forward.1']
    #allocation20 [shape = 'u8[2048]{0}', space=vmem, size = 0x800, scoped, tag = 'output window, operand 2']
    #allocation21 [shape = 'u8[2048]{0}', space=vmem, size = 0x800, scoped, tag = 'output window, operand 3']
    #allocation22 [shape = 's32[2]{0}', space=sflag, size = 0x8, scoped, tag = 'scoped memory for multi_agent_forward.1']
    %101 = vsyncpa [#allocation5], 0
    %102 = vsyncpa [#allocation8], 0
    %103 = vsyncpa [#allocation6], 0
    %s104 = scalar_lea.sflag [#allocation6], 1
    %105 = vsyncpa %s104, 0
    %106 = vsyncpa [#allocation19], 0
    %s107 = scalar_lea.sflag [#allocation19], 1
    %108 = vsyncpa %s107, 0
    %109 = vsyncpa [#allocation22], 0
    %s110 = scalar_lea.sflag [#allocation22], 1
    %111 = vsyncpa %s110, 0
    loop: start=0, step=1, limit=4
    $region2: #{multi_agent_forward.1} parent=1 // loop_pre_header
      _
    $region3: #{multi_agent_forward.1} parent=1 // loop_header
      %s113 = sphi 0, %s117
      %p114 = scmp.ge.s32.totalorder %s113, 4
      %s121 = sphi 0, %s121
      %s123 = sphi 0, %s121
      %s124 = sphi 0, %s123
      %s138 = sphi 0, %s124
      %s142 = sphi 0, %s142
      %s144 = sphi 0, %s142
      %s145 = sphi 0, %s144
      %s159 = sphi 0, %s145
      %s163 = sphi 0, %s163
      %s165 = sphi 0, %s163
      %s166 = sphi 0, %s165
      %s180 = sphi 0, %s166
      %s184 = sphi 0, %s184
      %s186 = sphi 0, %s184
      %s187 = sphi 0, %s186
      %s201 = sphi 0, %s187
      %s205 = sphi 0, %s205
      %s207 = sphi 0, %s205
      %s208 = sphi 0, %s207
      %s222 = sphi 0, %s208
      %s226 = sphi 0, %s226
      %s228 = sphi 0, %s226
      %s229 = sphi 0, %s228
      %s243 = sphi 0, %s229
      %s247 = sphi 0, %s247
      %s249 = sphi 0, %s247
      %s250 = sphi 0, %s249
      %s264 = sphi 0, %s250
      %s268 = sphi 0, %s268
      %s270 = sphi 0, %s268
      %s271 = sphi 0, %s270
      %s285 = sphi 0, %s271
      %s289 = sphi 0, %s289
      %s291 = sphi 0, %s289
      %s292 = sphi 0, %s291
      %s306 = sphi 0, %s292
      %s310 = sphi 0, %s310
      %s312 = sphi 0, %s310
      %s313 = sphi 0, %s312
      %s327 = sphi 0, %s313
      %s333 = sphi 0, %s335
      %s336 = sphi 0, %s333
      %s337 = sphi 0, %s336
      %s353 = sphi 0, %s337
      %s359 = sphi 0, %s361
      %s362 = sphi 0, %s359
      %s363 = sphi 0, %s362
      %s379 = sphi 0, %s363
      %s385 = sphi 0, %s387
      %s388 = sphi 0, %s385
      %s389 = sphi 0, %s388
      %s405 = sphi 0, %s389
      %s411 = sphi 0, %s413
      %s414 = sphi 0, %s411
      %s415 = sphi 0, %s414
      %s431 = sphi 0, %s415
      %s437 = sphi 0, %s439
      %s440 = sphi 0, %s437
      %s441 = sphi 0, %s440
      %s457 = sphi 0, %s441
      %s463 = sphi 0, %s465
      %s466 = sphi 0, %s463
      %s467 = sphi 0, %s466
      %s483 = sphi 0, %s467
      %s489 = sphi 0, %s491
      %s492 = sphi 0, %s489
      %s493 = sphi 0, %s492
      %s509 = sphi 0, %s493
      %s515 = sphi 0, %s517
      %s518 = sphi 0, %s515
      %s519 = sphi 0, %s518
      %s535 = sphi 0, %s519
      %s541 = sphi 0, %s543
      %s544 = sphi 0, %s541
      %s545 = sphi 0, %s544
      %s561 = sphi 0, %s545
      %s567 = sphi 0, %s569
      %s570 = sphi 0, %s567
      %s571 = sphi 0, %s570
      %s587 = sphi 0, %s571
      %s593 = sphi 0, %s595
      %s596 = sphi 0, %s593
      %s597 = sphi 0, %s596
      %s613 = sphi 0, %s597
      %s619 = sphi 0, %s621
      %s622 = sphi 0, %s619
      %s623 = sphi 0, %s622
      %s639 = sphi 0, %s623
      %s645 = sphi 0, %s647
      %s648 = sphi 0, %s645
      %s649 = sphi 0, %s648
      %s665 = sphi 0, %s649
      %s671 = sphi 0, %s673
      %s674 = sphi 0, %s671
      %s675 = sphi 0, %s674
      %s691 = sphi 0, %s675
      %s697 = sphi 0, %s699
      %s700 = sphi 0, %s697
      %s701 = sphi 0, %s700
      %s717 = sphi 0, %s701
      %s723 = sphi 0, %s725
      %s726 = sphi 0, %s723
      %s727 = sphi 0, %s726
      %s743 = sphi 0, %s727
      %s749 = sphi 0, %s751
      %s752 = sphi 0, %s749
      %s753 = sphi 0, %s752
      %s769 = sphi 0, %s753
      %s775 = sphi 0, %s777
      %s778 = sphi 0, %s775
      %s779 = sphi 0, %s778
      %s795 = sphi 0, %s779
      %s801 = sphi 0, %s803
      %s804 = sphi 0, %s801
      %s805 = sphi 0, %s804
      %s821 = sphi 0, %s805
      %s827 = sphi 0, %s829
      %s830 = sphi 0, %s827
      %s831 = sphi 0, %s830
      %s847 = sphi 0, %s831
      %s853 = sphi 0, %s855
      %s856 = sphi 0, %s853
      %s857 = sphi 0, %s856
      %s873 = sphi 0, %s857
      %s879 = sphi 0, %s881
      %s882 = sphi 0, %s879
      %s883 = sphi 0, %s882
      %s899 = sphi 0, %s883
      %s905 = sphi 0, %s907
      %s908 = sphi 0, %s905
      %s909 = sphi 0, %s908
      %s925 = sphi 0, %s909
      %s931 = sphi 0, %s933
      %s934 = sphi 0, %s931
      %s935 = sphi 0, %s934
      %s951 = sphi 0, %s935
      %s957 = sphi 0, %s959
      %s960 = sphi 0, %s957
      %s961 = sphi 0, %s960
      %s977 = sphi 0, %s961
      %s983 = sphi 0, %s985
      %s986 = sphi 0, %s983
      %s987 = sphi 0, %s986
      %s1003 = sphi 0, %s987
      %s1009 = sphi 0, %s1011
      %s1012 = sphi 0, %s1009
      %s1013 = sphi 0, %s1012
      %s1029 = sphi 0, %s1013
      %s1035 = sphi 0, %s1037
      %s1038 = sphi 0, %s1035
      %s1039 = sphi 0, %s1038
      %s1055 = sphi 0, %s1039
      %s1061 = sphi 0, %s1063
      %s1064 = sphi 0, %s1061
      %s1065 = sphi 0, %s1064
      %s1081 = sphi 0, %s1065
      %s1087 = sphi 0, %s1089
      %s1090 = sphi 0, %s1087
      %s1091 = sphi 0, %s1090
      %s1107 = sphi 0, %s1091
      %s1113 = sphi 0, %s1115
      %s1116 = sphi 0, %s1113
      %s1117 = sphi 0, %s1116
      %s1133 = sphi 0, %s1117
      %s1139 = sphi 0, %s1141
      %s1142 = sphi 0, %s1139
      %s1143 = sphi 0, %s1142
      %s1159 = sphi 0, %s1143
      %s1165 = sphi 0, %s1167
      %s1168 = sphi 0, %s1165
      %s1169 = sphi 0, %s1168
      %s1185 = sphi 0, %s1169
      %s1191 = sphi 0, %s1193
      %s1194 = sphi 0, %s1191
      %s1195 = sphi 0, %s1194
      %s1211 = sphi 0, %s1195
      %s1217 = sphi 0, %s1219
      %s1220 = sphi 0, %s1217
      %s1221 = sphi 0, %s1220
      %s1237 = sphi 0, %s1221
      %s1243 = sphi 0, %s1245
      %s1246 = sphi 0, %s1243
      %s1247 = sphi 0, %s1246
      %s1263 = sphi 0, %s1247
      %s1269 = sphi 0, %s1271
      %s1272 = sphi 0, %s1269
      %s1273 = sphi 0, %s1272
      %s1289 = sphi 0, %s1273
      %s1295 = sphi 0, %s1297
      %s1298 = sphi 0, %s1295
      %s1299 = sphi 0, %s1298
      %s1315 = sphi 0, %s1299
    $region4: #{multi_agent_forward.1} parent=1 // loop_header_branch
      %116 = sbr.rel (%p114) target = $region8
    $region5: #{multi_agent_forward.1} parent=1 // loop_body
      %s118 = ssub.s32 %s113, 1
      %s119 = ssub.s32 %s113, 2
      %s120 = sadd.s32 %s113, 1
      %s122 = sadd.s32 %s121, 1
      %p125 = scmp.eq.s32.totalorder %s113, 1
      %p126 = scmp.ne.s32.totalorder %s121, %s123
      %p127 = scmp.eq.s32.totalorder %s113, 0
      %p128 = por %p126, %p127
      %p129 = scmp.ne.s32.totalorder %s121, %s123
      %p130 = scmp.eq.s32.totalorder %s118, 1
      %p131 = por %p129, %p130
      %p132 = scmp.ne.s32.totalorder %s123, %s124
      %p133 = scmp.eq.s32.totalorder %s118, 0
      %p134 = por %p132, %p133
      %p135 = scmp.ne.s32.totalorder %s123, %s124
      %p136 = scmp.eq.s32.totalorder %s119, 1
      %p137 = por %p135, %p136
      %p139 = scmp.ne.s32.totalorder %s124, %s138
      %p140 = scmp.eq.s32.totalorder %s119, 0
      %p141 = por %p139, %p140
      %s143 = sadd.s32 %s142, 1
      %p146 = scmp.eq.s32.totalorder %s113, 1
      %p147 = scmp.ne.s32.totalorder %s142, %s144
      %p148 = scmp.eq.s32.totalorder %s113, 0
      %p149 = por %p147, %p148
      %p150 = scmp.ne.s32.totalorder %s142, %s144
      %p151 = scmp.eq.s32.totalorder %s118, 1
      %p152 = por %p150, %p151
      %p153 = scmp.ne.s32.totalorder %s144, %s145
      %p154 = scmp.eq.s32.totalorder %s118, 0
      %p155 = por %p153, %p154
      %p156 = scmp.ne.s32.totalorder %s144, %s145
      %p157 = scmp.eq.s32.totalorder %s119, 1
      %p158 = por %p156, %p157
      %p160 = scmp.ne.s32.totalorder %s145, %s159
      %p161 = scmp.eq.s32.totalorder %s119, 0
      %p162 = por %p160, %p161
      %s164 = sadd.s32 %s163, 1
      %p167 = scmp.eq.s32.totalorder %s113, 1
      %p168 = scmp.ne.s32.totalorder %s163, %s165
      %p169 = scmp.eq.s32.totalorder %s113, 0
      %p170 = por %p168, %p169
      %p171 = scmp.ne.s32.totalorder %s163, %s165
      %p172 = scmp.eq.s32.totalorder %s118, 1
      %p173 = por %p171, %p172
      %p174 = scmp.ne.s32.totalorder %s165, %s166
      %p175 = scmp.eq.s32.totalorder %s118, 0
      %p176 = por %p174, %p175
      %p177 = scmp.ne.s32.totalorder %s165, %s166
      %p178 = scmp.eq.s32.totalorder %s119, 1
      %p179 = por %p177, %p178
      %p181 = scmp.ne.s32.totalorder %s166, %s180
      %p182 = scmp.eq.s32.totalorder %s119, 0
      %p183 = por %p181, %p182
      %s185 = sadd.s32 %s184, 1
      %p188 = scmp.eq.s32.totalorder %s113, 1
      %p189 = scmp.ne.s32.totalorder %s184, %s186
      %p190 = scmp.eq.s32.totalorder %s113, 0
      %p191 = por %p189, %p190
      %p192 = scmp.ne.s32.totalorder %s184, %s186
      %p193 = scmp.eq.s32.totalorder %s118, 1
      %p194 = por %p192, %p193
      %p195 = scmp.ne.s32.totalorder %s186, %s187
      %p196 = scmp.eq.s32.totalorder %s118, 0
      %p197 = por %p195, %p196
      %p198 = scmp.ne.s32.totalorder %s186, %s187
      %p199 = scmp.eq.s32.totalorder %s119, 1
      %p200 = por %p198, %p199
      %p202 = scmp.ne.s32.totalorder %s187, %s201
      %p203 = scmp.eq.s32.totalorder %s119, 0
      %p204 = por %p202, %p203
      %s206 = sadd.s32 %s205, 1
      %p209 = scmp.eq.s32.totalorder %s113, 1
      %p210 = scmp.ne.s32.totalorder %s205, %s207
      %p211 = scmp.eq.s32.totalorder %s113, 0
      %p212 = por %p210, %p211
      %p213 = scmp.ne.s32.totalorder %s205, %s207
      %p214 = scmp.eq.s32.totalorder %s118, 1
      %p215 = por %p213, %p214
      %p216 = scmp.ne.s32.totalorder %s207, %s208
      %p217 = scmp.eq.s32.totalorder %s118, 0
      %p218 = por %p216, %p217
      %p219 = scmp.ne.s32.totalorder %s207, %s208
      %p220 = scmp.eq.s32.totalorder %s119, 1
      %p221 = por %p219, %p220
      %p223 = scmp.ne.s32.totalorder %s208, %s222
      %p224 = scmp.eq.s32.totalorder %s119, 0
      %p225 = por %p223, %p224
      %s227 = sadd.s32 %s226, 1
      %p230 = scmp.eq.s32.totalorder %s113, 1
      %p231 = scmp.ne.s32.totalorder %s226, %s228
      %p232 = scmp.eq.s32.totalorder %s113, 0
      %p233 = por %p231, %p232
      %p234 = scmp.ne.s32.totalorder %s226, %s228
      %p235 = scmp.eq.s32.totalorder %s118, 1
      %p236 = por %p234, %p235
      %p237 = scmp.ne.s32.totalorder %s228, %s229
      %p238 = scmp.eq.s32.totalorder %s118, 0
      %p239 = por %p237, %p238
      %p240 = scmp.ne.s32.totalorder %s228, %s229
      %p241 = scmp.eq.s32.totalorder %s119, 1
      %p242 = por %p240, %p241
      %p244 = scmp.ne.s32.totalorder %s229, %s243
      %p245 = scmp.eq.s32.totalorder %s119, 0
      %p246 = por %p244, %p245
      %s248 = sadd.s32 %s247, 1
      %p251 = scmp.eq.s32.totalorder %s113, 1
      %p252 = scmp.ne.s32.totalorder %s247, %s249
      %p253 = scmp.eq.s32.totalorder %s113, 0
      %p254 = por %p252, %p253
      %p255 = scmp.ne.s32.totalorder %s247, %s249
      %p256 = scmp.eq.s32.totalorder %s118, 1
      %p257 = por %p255, %p256
      %p258 = scmp.ne.s32.totalorder %s249, %s250
      %p259 = scmp.eq.s32.totalorder %s118, 0
      %p260 = por %p258, %p259
      %p261 = scmp.ne.s32.totalorder %s249, %s250
      %p262 = scmp.eq.s32.totalorder %s119, 1
      %p263 = por %p261, %p262
      %p265 = scmp.ne.s32.totalorder %s250, %s264
      %p266 = scmp.eq.s32.totalorder %s119, 0
      %p267 = por %p265, %p266
      %s269 = sadd.s32 %s268, 1
      %p272 = scmp.eq.s32.totalorder %s113, 1
      %p273 = scmp.ne.s32.totalorder %s268, %s270
      %p274 = scmp.eq.s32.totalorder %s113, 0
      %p275 = por %p273, %p274
      %p276 = scmp.ne.s32.totalorder %s268, %s270
      %p277 = scmp.eq.s32.totalorder %s118, 1
      %p278 = por %p276, %p277
      %p279 = scmp.ne.s32.totalorder %s270, %s271
      %p280 = scmp.eq.s32.totalorder %s118, 0
      %p281 = por %p279, %p280
      %p282 = scmp.ne.s32.totalorder %s270, %s271
      %p283 = scmp.eq.s32.totalorder %s119, 1
      %p284 = por %p282, %p283
      %p286 = scmp.ne.s32.totalorder %s271, %s285
      %p287 = scmp.eq.s32.totalorder %s119, 0
      %p288 = por %p286, %p287
      %s290 = sadd.s32 %s289, 1
      %p293 = scmp.eq.s32.totalorder %s113, 1
      %p294 = scmp.ne.s32.totalorder %s289, %s291
      %p295 = scmp.eq.s32.totalorder %s113, 0
      %p296 = por %p294, %p295
      %p297 = scmp.ne.s32.totalorder %s289, %s291
      %p298 = scmp.eq.s32.totalorder %s118, 1
      %p299 = por %p297, %p298
      %p300 = scmp.ne.s32.totalorder %s291, %s292
      %p301 = scmp.eq.s32.totalorder %s118, 0
      %p302 = por %p300, %p301
      %p303 = scmp.ne.s32.totalorder %s291, %s292
      %p304 = scmp.eq.s32.totalorder %s119, 1
      %p305 = por %p303, %p304
      %p307 = scmp.ne.s32.totalorder %s292, %s306
      %p308 = scmp.eq.s32.totalorder %s119, 0
      %p309 = por %p307, %p308
      %s311 = sadd.s32 %s310, 1
      %p314 = scmp.eq.s32.totalorder %s113, 1
      %p315 = scmp.ne.s32.totalorder %s310, %s312
      %p316 = scmp.eq.s32.totalorder %s113, 0
      %p317 = por %p315, %p316
      %p318 = scmp.ne.s32.totalorder %s310, %s312
      %p319 = scmp.eq.s32.totalorder %s118, 1
      %p320 = por %p318, %p319
      %p321 = scmp.ne.s32.totalorder %s312, %s313
      %p322 = scmp.eq.s32.totalorder %s118, 0
      %p323 = por %p321, %p322
      %p324 = scmp.ne.s32.totalorder %s312, %s313
      %p325 = scmp.eq.s32.totalorder %s119, 1
      %p326 = por %p324, %p325
      %p328 = scmp.ne.s32.totalorder %s313, %s327
      %p329 = scmp.eq.s32.totalorder %s119, 0
      %p330 = por %p328, %p329
      %s331 = ssub.s32 %s113, %s120
      %p332 = scmp.eq.s32.totalorder %s331, 0
      %s334 = sadd.s32 %s333, 1
      %s335 = scalar_select %p332, %s333, %s334
      %p338 = pneg %p332
      %p339 = scmp.eq.s32.totalorder %s113, 1
      %p340 = por %p338, %p339
      %p341 = scmp.ne.s32.totalorder %s333, %s336
      %p342 = scmp.eq.s32.totalorder %s113, 0
      %p343 = por %p341, %p342
      %p344 = scmp.ne.s32.totalorder %s333, %s336
      %p345 = scmp.eq.s32.totalorder %s118, 1
      %p346 = por %p344, %p345
      %p347 = scmp.ne.s32.totalorder %s336, %s337
      %p348 = scmp.eq.s32.totalorder %s118, 0
      %p349 = por %p347, %p348
      %p350 = scmp.ne.s32.totalorder %s336, %s337
      %p351 = scmp.eq.s32.totalorder %s119, 1
      %p352 = por %p350, %p351
      %p354 = scmp.ne.s32.totalorder %s337, %s353
      %p355 = scmp.eq.s32.totalorder %s119, 0
      %p356 = por %p354, %p355
      %s357 = ssub.s32 %s113, %s120
      %p358 = scmp.eq.s32.totalorder %s357, 0
      %s360 = sadd.s32 %s359, 1
      %s361 = scalar_select %p358, %s359, %s360
      %p364 = pneg %p358
      %p365 = scmp.eq.s32.totalorder %s113, 1
      %p366 = por %p364, %p365
      %p367 = scmp.ne.s32.totalorder %s359, %s362
      %p368 = scmp.eq.s32.totalorder %s113, 0
      %p369 = por %p367, %p368
      %p370 = scmp.ne.s32.totalorder %s359, %s362
      %p371 = scmp.eq.s32.totalorder %s118, 1
      %p372 = por %p370, %p371
      %p373 = scmp.ne.s32.totalorder %s362, %s363
      %p374 = scmp.eq.s32.totalorder %s118, 0
      %p375 = por %p373, %p374
      %p376 = scmp.ne.s32.totalorder %s362, %s363
      %p377 = scmp.eq.s32.totalorder %s119, 1
      %p378 = por %p376, %p377
      %p380 = scmp.ne.s32.totalorder %s363, %s379
      %p381 = scmp.eq.s32.totalorder %s119, 0
      %p382 = por %p380, %p381
      %s383 = ssub.s32 %s113, %s120
      %p384 = scmp.eq.s32.totalorder %s383, 0
      %s386 = sadd.s32 %s385, 1
      %s387 = scalar_select %p384, %s385, %s386
      %p390 = pneg %p384
      %p391 = scmp.eq.s32.totalorder %s113, 1
      %p392 = por %p390, %p391
      %p393 = scmp.ne.s32.totalorder %s385, %s388
      %p394 = scmp.eq.s32.totalorder %s113, 0
      %p395 = por %p393, %p394
      %p396 = scmp.ne.s32.totalorder %s385, %s388
      %p397 = scmp.eq.s32.totalorder %s118, 1
      %p398 = por %p396, %p397
      %p399 = scmp.ne.s32.totalorder %s388, %s389
      %p400 = scmp.eq.s32.totalorder %s118, 0
      %p401 = por %p399, %p400
      %p402 = scmp.ne.s32.totalorder %s388, %s389
      %p403 = scmp.eq.s32.totalorder %s119, 1
      %p404 = por %p402, %p403
      %p406 = scmp.ne.s32.totalorder %s389, %s405
      %p407 = scmp.eq.s32.totalorder %s119, 0
      %p408 = por %p406, %p407
      %s409 = ssub.s32 %s113, %s120
      %p410 = scmp.eq.s32.totalorder %s409, 0
      %s412 = sadd.s32 %s411, 1
      %s413 = scalar_select %p410, %s411, %s412
      %p416 = pneg %p410
      %p417 = scmp.eq.s32.totalorder %s113, 1
      %p418 = por %p416, %p417
      %p419 = scmp.ne.s32.totalorder %s411, %s414
      %p420 = scmp.eq.s32.totalorder %s113, 0
      %p421 = por %p419, %p420
      %p422 = scmp.ne.s32.totalorder %s411, %s414
      %p423 = scmp.eq.s32.totalorder %s118, 1
      %p424 = por %p422, %p423
      %p425 = scmp.ne.s32.totalorder %s414, %s415
      %p426 = scmp.eq.s32.totalorder %s118, 0
      %p427 = por %p425, %p426
      %p428 = scmp.ne.s32.totalorder %s414, %s415
      %p429 = scmp.eq.s32.totalorder %s119, 1
      %p430 = por %p428, %p429
      %p432 = scmp.ne.s32.totalorder %s415, %s431
      %p433 = scmp.eq.s32.totalorder %s119, 0
      %p434 = por %p432, %p433
      %s435 = ssub.s32 %s113, %s120
      %p436 = scmp.eq.s32.totalorder %s435, 0
      %s438 = sadd.s32 %s437, 1
      %s439 = scalar_select %p436, %s437, %s438
      %p442 = pneg %p436
      %p443 = scmp.eq.s32.totalorder %s113, 1
      %p444 = por %p442, %p443
      %p445 = scmp.ne.s32.totalorder %s437, %s440
      %p446 = scmp.eq.s32.totalorder %s113, 0
      %p447 = por %p445, %p446
      %p448 = scmp.ne.s32.totalorder %s437, %s440
      %p449 = scmp.eq.s32.totalorder %s118, 1
      %p450 = por %p448, %p449
      %p451 = scmp.ne.s32.totalorder %s440, %s441
      %p452 = scmp.eq.s32.totalorder %s118, 0
      %p453 = por %p451, %p452
      %p454 = scmp.ne.s32.totalorder %s440, %s441
      %p455 = scmp.eq.s32.totalorder %s119, 1
      %p456 = por %p454, %p455
      %p458 = scmp.ne.s32.totalorder %s441, %s457
      %p459 = scmp.eq.s32.totalorder %s119, 0
      %p460 = por %p458, %p459
      %s461 = ssub.s32 %s113, %s120
      %p462 = scmp.eq.s32.totalorder %s461, 0
      %s464 = sadd.s32 %s463, 1
      %s465 = scalar_select %p462, %s463, %s464
      %p468 = pneg %p462
      %p469 = scmp.eq.s32.totalorder %s113, 1
      %p470 = por %p468, %p469
      %p471 = scmp.ne.s32.totalorder %s463, %s466
      %p472 = scmp.eq.s32.totalorder %s113, 0
      %p473 = por %p471, %p472
      %p474 = scmp.ne.s32.totalorder %s463, %s466
      %p475 = scmp.eq.s32.totalorder %s118, 1
      %p476 = por %p474, %p475
      %p477 = scmp.ne.s32.totalorder %s466, %s467
      %p478 = scmp.eq.s32.totalorder %s118, 0
      %p479 = por %p477, %p478
      %p480 = scmp.ne.s32.totalorder %s466, %s467
      %p481 = scmp.eq.s32.totalorder %s119, 1
      %p482 = por %p480, %p481
      %p484 = scmp.ne.s32.totalorder %s467, %s483
      %p485 = scmp.eq.s32.totalorder %s119, 0
      %p486 = por %p484, %p485
      %s487 = ssub.s32 %s113, %s120
      %p488 = scmp.eq.s32.totalorder %s487, 0
      %s490 = sadd.s32 %s489, 1
      %s491 = scalar_select %p488, %s489, %s490
      %p494 = pneg %p488
      %p495 = scmp.eq.s32.totalorder %s113, 1
      %p496 = por %p494, %p495
      %p497 = scmp.ne.s32.totalorder %s489, %s492
      %p498 = scmp.eq.s32.totalorder %s113, 0
      %p499 = por %p497, %p498
      %p500 = scmp.ne.s32.totalorder %s489, %s492
      %p501 = scmp.eq.s32.totalorder %s118, 1
      %p502 = por %p500, %p501
      %p503 = scmp.ne.s32.totalorder %s492, %s493
      %p504 = scmp.eq.s32.totalorder %s118, 0
      %p505 = por %p503, %p504
      %p506 = scmp.ne.s32.totalorder %s492, %s493
      %p507 = scmp.eq.s32.totalorder %s119, 1
      %p508 = por %p506, %p507
      %p510 = scmp.ne.s32.totalorder %s493, %s509
      %p511 = scmp.eq.s32.totalorder %s119, 0
      %p512 = por %p510, %p511
      %s513 = ssub.s32 %s113, %s120
      %p514 = scmp.eq.s32.totalorder %s513, 0
      %s516 = sadd.s32 %s515, 1
      %s517 = scalar_select %p514, %s515, %s516
      %p520 = pneg %p514
      %p521 = scmp.eq.s32.totalorder %s113, 1
      %p522 = por %p520, %p521
      %p523 = scmp.ne.s32.totalorder %s515, %s518
      %p524 = scmp.eq.s32.totalorder %s113, 0
      %p525 = por %p523, %p524
      %p526 = scmp.ne.s32.totalorder %s515, %s518
      %p527 = scmp.eq.s32.totalorder %s118, 1
      %p528 = por %p526, %p527
      %p529 = scmp.ne.s32.totalorder %s518, %s519
      %p530 = scmp.eq.s32.totalorder %s118, 0
      %p531 = por %p529, %p530
      %p532 = scmp.ne.s32.totalorder %s518, %s519
      %p533 = scmp.eq.s32.totalorder %s119, 1
      %p534 = por %p532, %p533
      %p536 = scmp.ne.s32.totalorder %s519, %s535
      %p537 = scmp.eq.s32.totalorder %s119, 0
      %p538 = por %p536, %p537
      %s539 = ssub.s32 %s113, %s120
      %p540 = scmp.eq.s32.totalorder %s539, 0
      %s542 = sadd.s32 %s541, 1
      %s543 = scalar_select %p540, %s541, %s542
      %p546 = pneg %p540
      %p547 = scmp.eq.s32.totalorder %s113, 1
      %p548 = por %p546, %p547
      %p549 = scmp.ne.s32.totalorder %s541, %s544
      %p550 = scmp.eq.s32.totalorder %s113, 0
      %p551 = por %p549, %p550
      %p552 = scmp.ne.s32.totalorder %s541, %s544
      %p553 = scmp.eq.s32.totalorder %s118, 1
      %p554 = por %p552, %p553
      %p555 = scmp.ne.s32.totalorder %s544, %s545
      %p556 = scmp.eq.s32.totalorder %s118, 0
      %p557 = por %p555, %p556
      %p558 = scmp.ne.s32.totalorder %s544, %s545
      %p559 = scmp.eq.s32.totalorder %s119, 1
      %p560 = por %p558, %p559
      %p562 = scmp.ne.s32.totalorder %s545, %s561
      %p563 = scmp.eq.s32.totalorder %s119, 0
      %p564 = por %p562, %p563
      %s565 = ssub.s32 %s113, %s120
      %p566 = scmp.eq.s32.totalorder %s565, 0
      %s568 = sadd.s32 %s567, 1
      %s569 = scalar_select %p566, %s567, %s568
      %p572 = pneg %p566
      %p573 = scmp.eq.s32.totalorder %s113, 1
      %p574 = por %p572, %p573
      %p575 = scmp.ne.s32.totalorder %s567, %s570
      %p576 = scmp.eq.s32.totalorder %s113, 0
      %p577 = por %p575, %p576
      %p578 = scmp.ne.s32.totalorder %s567, %s570
      %p579 = scmp.eq.s32.totalorder %s118, 1
      %p580 = por %p578, %p579
      %p581 = scmp.ne.s32.totalorder %s570, %s571
      %p582 = scmp.eq.s32.totalorder %s118, 0
      %p583 = por %p581, %p582
      %p584 = scmp.ne.s32.totalorder %s570, %s571
      %p585 = scmp.eq.s32.totalorder %s119, 1
      %p586 = por %p584, %p585
      %p588 = scmp.ne.s32.totalorder %s571, %s587
      %p589 = scmp.eq.s32.totalorder %s119, 0
      %p590 = por %p588, %p589
      %s591 = ssub.s32 %s113, %s120
      %p592 = scmp.eq.s32.totalorder %s591, 0
      %s594 = sadd.s32 %s593, 1
      %s595 = scalar_select %p592, %s593, %s594
      %p598 = pneg %p592
      %p599 = scmp.eq.s32.totalorder %s113, 1
      %p600 = por %p598, %p599
      %p601 = scmp.ne.s32.totalorder %s593, %s596
      %p602 = scmp.eq.s32.totalorder %s113, 0
      %p603 = por %p601, %p602
      %p604 = scmp.ne.s32.totalorder %s593, %s596
      %p605 = scmp.eq.s32.totalorder %s118, 1
      %p606 = por %p604, %p605
      %p607 = scmp.ne.s32.totalorder %s596, %s597
      %p608 = scmp.eq.s32.totalorder %s118, 0
      %p609 = por %p607, %p608
      %p610 = scmp.ne.s32.totalorder %s596, %s597
      %p611 = scmp.eq.s32.totalorder %s119, 1
      %p612 = por %p610, %p611
      %p614 = scmp.ne.s32.totalorder %s597, %s613
      %p615 = scmp.eq.s32.totalorder %s119, 0
      %p616 = por %p614, %p615
      %s617 = ssub.s32 %s113, %s120
      %p618 = scmp.eq.s32.totalorder %s617, 0
      %s620 = sadd.s32 %s619, 1
      %s621 = scalar_select %p618, %s619, %s620
      %p624 = pneg %p618
      %p625 = scmp.eq.s32.totalorder %s113, 1
      %p626 = por %p624, %p625
      %p627 = scmp.ne.s32.totalorder %s619, %s622
      %p628 = scmp.eq.s32.totalorder %s113, 0
      %p629 = por %p627, %p628
      %p630 = scmp.ne.s32.totalorder %s619, %s622
      %p631 = scmp.eq.s32.totalorder %s118, 1
      %p632 = por %p630, %p631
      %p633 = scmp.ne.s32.totalorder %s622, %s623
      %p634 = scmp.eq.s32.totalorder %s118, 0
      %p635 = por %p633, %p634
      %p636 = scmp.ne.s32.totalorder %s622, %s623
      %p637 = scmp.eq.s32.totalorder %s119, 1
      %p638 = por %p636, %p637
      %p640 = scmp.ne.s32.totalorder %s623, %s639
      %p641 = scmp.eq.s32.totalorder %s119, 0
      %p642 = por %p640, %p641
      %s643 = ssub.s32 %s113, %s120
      %p644 = scmp.eq.s32.totalorder %s643, 0
      %s646 = sadd.s32 %s645, 1
      %s647 = scalar_select %p644, %s645, %s646
      %p650 = pneg %p644
      %p651 = scmp.eq.s32.totalorder %s113, 1
      %p652 = por %p650, %p651
      %p653 = scmp.ne.s32.totalorder %s645, %s648
      %p654 = scmp.eq.s32.totalorder %s113, 0
      %p655 = por %p653, %p654
      %p656 = scmp.ne.s32.totalorder %s645, %s648
      %p657 = scmp.eq.s32.totalorder %s118, 1
      %p658 = por %p656, %p657
      %p659 = scmp.ne.s32.totalorder %s648, %s649
      %p660 = scmp.eq.s32.totalorder %s118, 0
      %p661 = por %p659, %p660
      %p662 = scmp.ne.s32.totalorder %s648, %s649
      %p663 = scmp.eq.s32.totalorder %s119, 1
      %p664 = por %p662, %p663
      %p666 = scmp.ne.s32.totalorder %s649, %s665
      %p667 = scmp.eq.s32.totalorder %s119, 0
      %p668 = por %p666, %p667
      %s669 = ssub.s32 %s113, %s120
      %p670 = scmp.eq.s32.totalorder %s669, 0
      %s672 = sadd.s32 %s671, 1
      %s673 = scalar_select %p670, %s671, %s672
      %p676 = pneg %p670
      %p677 = scmp.eq.s32.totalorder %s113, 1
      %p678 = por %p676, %p677
      %p679 = scmp.ne.s32.totalorder %s671, %s674
      %p680 = scmp.eq.s32.totalorder %s113, 0
      %p681 = por %p679, %p680
      %p682 = scmp.ne.s32.totalorder %s671, %s674
      %p683 = scmp.eq.s32.totalorder %s118, 1
      %p684 = por %p682, %p683
      %p685 = scmp.ne.s32.totalorder %s674, %s675
      %p686 = scmp.eq.s32.totalorder %s118, 0
      %p687 = por %p685, %p686
      %p688 = scmp.ne.s32.totalorder %s674, %s675
      %p689 = scmp.eq.s32.totalorder %s119, 1
      %p690 = por %p688, %p689
      %p692 = scmp.ne.s32.totalorder %s675, %s691
      %p693 = scmp.eq.s32.totalorder %s119, 0
      %p694 = por %p692, %p693
      %s695 = ssub.s32 %s113, %s120
      %p696 = scmp.eq.s32.totalorder %s695, 0
      %s698 = sadd.s32 %s697, 1
      %s699 = scalar_select %p696, %s697, %s698
      %p702 = pneg %p696
      %p703 = scmp.eq.s32.totalorder %s113, 1
      %p704 = por %p702, %p703
      %p705 = scmp.ne.s32.totalorder %s697, %s700
      %p706 = scmp.eq.s32.totalorder %s113, 0
      %p707 = por %p705, %p706
      %p708 = scmp.ne.s32.totalorder %s697, %s700
      %p709 = scmp.eq.s32.totalorder %s118, 1
      %p710 = por %p708, %p709
      %p711 = scmp.ne.s32.totalorder %s700, %s701
      %p712 = scmp.eq.s32.totalorder %s118, 0
      %p713 = por %p711, %p712
      %p714 = scmp.ne.s32.totalorder %s700, %s701
      %p715 = scmp.eq.s32.totalorder %s119, 1
      %p716 = por %p714, %p715
      %p718 = scmp.ne.s32.totalorder %s701, %s717
      %p719 = scmp.eq.s32.totalorder %s119, 0
      %p720 = por %p718, %p719
      %s721 = ssub.s32 %s113, %s120
      %p722 = scmp.eq.s32.totalorder %s721, 0
      %s724 = sadd.s32 %s723, 1
      %s725 = scalar_select %p722, %s723, %s724
      %p728 = pneg %p722
      %p729 = scmp.eq.s32.totalorder %s113, 1
      %p730 = por %p728, %p729
      %p731 = scmp.ne.s32.totalorder %s723, %s726
      %p732 = scmp.eq.s32.totalorder %s113, 0
      %p733 = por %p731, %p732
      %p734 = scmp.ne.s32.totalorder %s723, %s726
      %p735 = scmp.eq.s32.totalorder %s118, 1
      %p736 = por %p734, %p735
      %p737 = scmp.ne.s32.totalorder %s726, %s727
      %p738 = scmp.eq.s32.totalorder %s118, 0
      %p739 = por %p737, %p738
      %p740 = scmp.ne.s32.totalorder %s726, %s727
      %p741 = scmp.eq.s32.totalorder %s119, 1
      %p742 = por %p740, %p741
      %p744 = scmp.ne.s32.totalorder %s727, %s743
      %p745 = scmp.eq.s32.totalorder %s119, 0
      %p746 = por %p744, %p745
      %s747 = ssub.s32 %s113, %s120
      %p748 = scmp.eq.s32.totalorder %s747, 0
      %s750 = sadd.s32 %s749, 1
      %s751 = scalar_select %p748, %s749, %s750
      %p754 = pneg %p748
      %p755 = scmp.eq.s32.totalorder %s113, 1
      %p756 = por %p754, %p755
      %p757 = scmp.ne.s32.totalorder %s749, %s752
      %p758 = scmp.eq.s32.totalorder %s113, 0
      %p759 = por %p757, %p758
      %p760 = scmp.ne.s32.totalorder %s749, %s752
      %p761 = scmp.eq.s32.totalorder %s118, 1
      %p762 = por %p760, %p761
      %p763 = scmp.ne.s32.totalorder %s752, %s753
      %p764 = scmp.eq.s32.totalorder %s118, 0
      %p765 = por %p763, %p764
      %p766 = scmp.ne.s32.totalorder %s752, %s753
      %p767 = scmp.eq.s32.totalorder %s119, 1
      %p768 = por %p766, %p767
      %p770 = scmp.ne.s32.totalorder %s753, %s769
      %p771 = scmp.eq.s32.totalorder %s119, 0
      %p772 = por %p770, %p771
      %s773 = ssub.s32 %s113, %s120
      %p774 = scmp.eq.s32.totalorder %s773, 0
      %s776 = sadd.s32 %s775, 1
      %s777 = scalar_select %p774, %s775, %s776
      %p780 = pneg %p774
      %p781 = scmp.eq.s32.totalorder %s113, 1
      %p782 = por %p780, %p781
      %p783 = scmp.ne.s32.totalorder %s775, %s778
      %p784 = scmp.eq.s32.totalorder %s113, 0
      %p785 = por %p783, %p784
      %p786 = scmp.ne.s32.totalorder %s775, %s778
      %p787 = scmp.eq.s32.totalorder %s118, 1
      %p788 = por %p786, %p787
      %p789 = scmp.ne.s32.totalorder %s778, %s779
      %p790 = scmp.eq.s32.totalorder %s118, 0
      %p791 = por %p789, %p790
      %p792 = scmp.ne.s32.totalorder %s778, %s779
      %p793 = scmp.eq.s32.totalorder %s119, 1
      %p794 = por %p792, %p793
      %p796 = scmp.ne.s32.totalorder %s779, %s795
      %p797 = scmp.eq.s32.totalorder %s119, 0
      %p798 = por %p796, %p797
      %s799 = ssub.s32 %s113, %s120
      %p800 = scmp.eq.s32.totalorder %s799, 0
      %s802 = sadd.s32 %s801, 1
      %s803 = scalar_select %p800, %s801, %s802
      %p806 = pneg %p800
      %p807 = scmp.eq.s32.totalorder %s113, 1
      %p808 = por %p806, %p807
      %p809 = scmp.ne.s32.totalorder %s801, %s804
      %p810 = scmp.eq.s32.totalorder %s113, 0
      %p811 = por %p809, %p810
      %p812 = scmp.ne.s32.totalorder %s801, %s804
      %p813 = scmp.eq.s32.totalorder %s118, 1
      %p814 = por %p812, %p813
      %p815 = scmp.ne.s32.totalorder %s804, %s805
      %p816 = scmp.eq.s32.totalorder %s118, 0
      %p817 = por %p815, %p816
      %p818 = scmp.ne.s32.totalorder %s804, %s805
      %p819 = scmp.eq.s32.totalorder %s119, 1
      %p820 = por %p818, %p819
      %p822 = scmp.ne.s32.totalorder %s805, %s821
      %p823 = scmp.eq.s32.totalorder %s119, 0
      %p824 = por %p822, %p823
      %s825 = ssub.s32 %s113, %s120
      %p826 = scmp.eq.s32.totalorder %s825, 0
      %s828 = sadd.s32 %s827, 1
      %s829 = scalar_select %p826, %s827, %s828
      %p832 = pneg %p826
      %p833 = scmp.eq.s32.totalorder %s113, 1
      %p834 = por %p832, %p833
      %p835 = scmp.ne.s32.totalorder %s827, %s830
      %p836 = scmp.eq.s32.totalorder %s113, 0
      %p837 = por %p835, %p836
      %p838 = scmp.ne.s32.totalorder %s827, %s830
      %p839 = scmp.eq.s32.totalorder %s118, 1
      %p840 = por %p838, %p839
      %p841 = scmp.ne.s32.totalorder %s830, %s831
      %p842 = scmp.eq.s32.totalorder %s118, 0
      %p843 = por %p841, %p842
      %p844 = scmp.ne.s32.totalorder %s830, %s831
      %p845 = scmp.eq.s32.totalorder %s119, 1
      %p846 = por %p844, %p845
      %p848 = scmp.ne.s32.totalorder %s831, %s847
      %p849 = scmp.eq.s32.totalorder %s119, 0
      %p850 = por %p848, %p849
      %s851 = ssub.s32 %s113, %s120
      %p852 = scmp.eq.s32.totalorder %s851, 0
      %s854 = sadd.s32 %s853, 1
      %s855 = scalar_select %p852, %s853, %s854
      %p858 = pneg %p852
      %p859 = scmp.eq.s32.totalorder %s113, 1
      %p860 = por %p858, %p859
      %p861 = scmp.ne.s32.totalorder %s853, %s856
      %p862 = scmp.eq.s32.totalorder %s113, 0
      %p863 = por %p861, %p862
      %p864 = scmp.ne.s32.totalorder %s853, %s856
      %p865 = scmp.eq.s32.totalorder %s118, 1
      %p866 = por %p864, %p865
      %p867 = scmp.ne.s32.totalorder %s856, %s857
      %p868 = scmp.eq.s32.totalorder %s118, 0
      %p869 = por %p867, %p868
      %p870 = scmp.ne.s32.totalorder %s856, %s857
      %p871 = scmp.eq.s32.totalorder %s119, 1
      %p872 = por %p870, %p871
      %p874 = scmp.ne.s32.totalorder %s857, %s873
      %p875 = scmp.eq.s32.totalorder %s119, 0
      %p876 = por %p874, %p875
      %s877 = ssub.s32 %s113, %s120
      %p878 = scmp.eq.s32.totalorder %s877, 0
      %s880 = sadd.s32 %s879, 1
      %s881 = scalar_select %p878, %s879, %s880
      %p884 = pneg %p878
      %p885 = scmp.eq.s32.totalorder %s113, 1
      %p886 = por %p884, %p885
      %p887 = scmp.ne.s32.totalorder %s879, %s882
      %p888 = scmp.eq.s32.totalorder %s113, 0
      %p889 = por %p887, %p888
      %p890 = scmp.ne.s32.totalorder %s879, %s882
      %p891 = scmp.eq.s32.totalorder %s118, 1
      %p892 = por %p890, %p891
      %p893 = scmp.ne.s32.totalorder %s882, %s883
      %p894 = scmp.eq.s32.totalorder %s118, 0
      %p895 = por %p893, %p894
      %p896 = scmp.ne.s32.totalorder %s882, %s883
      %p897 = scmp.eq.s32.totalorder %s119, 1
      %p898 = por %p896, %p897
      %p900 = scmp.ne.s32.totalorder %s883, %s899
      %p901 = scmp.eq.s32.totalorder %s119, 0
      %p902 = por %p900, %p901
      %s903 = ssub.s32 %s113, %s120
      %p904 = scmp.eq.s32.totalorder %s903, 0
      %s906 = sadd.s32 %s905, 1
      %s907 = scalar_select %p904, %s905, %s906
      %p910 = pneg %p904
      %p911 = scmp.eq.s32.totalorder %s113, 1
      %p912 = por %p910, %p911
      %p913 = scmp.ne.s32.totalorder %s905, %s908
      %p914 = scmp.eq.s32.totalorder %s113, 0
      %p915 = por %p913, %p914
      %p916 = scmp.ne.s32.totalorder %s905, %s908
      %p917 = scmp.eq.s32.totalorder %s118, 1
      %p918 = por %p916, %p917
      %p919 = scmp.ne.s32.totalorder %s908, %s909
      %p920 = scmp.eq.s32.totalorder %s118, 0
      %p921 = por %p919, %p920
      %p922 = scmp.ne.s32.totalorder %s908, %s909
      %p923 = scmp.eq.s32.totalorder %s119, 1
      %p924 = por %p922, %p923
      %p926 = scmp.ne.s32.totalorder %s909, %s925
      %p927 = scmp.eq.s32.totalorder %s119, 0
      %p928 = por %p926, %p927
      %s929 = ssub.s32 %s113, %s120
      %p930 = scmp.eq.s32.totalorder %s929, 0
      %s932 = sadd.s32 %s931, 1
      %s933 = scalar_select %p930, %s931, %s932
      %p936 = pneg %p930
      %p937 = scmp.eq.s32.totalorder %s113, 1
      %p938 = por %p936, %p937
      %p939 = scmp.ne.s32.totalorder %s931, %s934
      %p940 = scmp.eq.s32.totalorder %s113, 0
      %p941 = por %p939, %p940
      %p942 = scmp.ne.s32.totalorder %s931, %s934
      %p943 = scmp.eq.s32.totalorder %s118, 1
      %p944 = por %p942, %p943
      %p945 = scmp.ne.s32.totalorder %s934, %s935
      %p946 = scmp.eq.s32.totalorder %s118, 0
      %p947 = por %p945, %p946
      %p948 = scmp.ne.s32.totalorder %s934, %s935
      %p949 = scmp.eq.s32.totalorder %s119, 1
      %p950 = por %p948, %p949
      %p952 = scmp.ne.s32.totalorder %s935, %s951
      %p953 = scmp.eq.s32.totalorder %s119, 0
      %p954 = por %p952, %p953
      %s955 = ssub.s32 %s113, %s120
      %p956 = scmp.eq.s32.totalorder %s955, 0
      %s958 = sadd.s32 %s957, 1
      %s959 = scalar_select %p956, %s957, %s958
      %p962 = pneg %p956
      %p963 = scmp.eq.s32.totalorder %s113, 1
      %p964 = por %p962, %p963
      %p965 = scmp.ne.s32.totalorder %s957, %s960
      %p966 = scmp.eq.s32.totalorder %s113, 0
      %p967 = por %p965, %p966
      %p968 = scmp.ne.s32.totalorder %s957, %s960
      %p969 = scmp.eq.s32.totalorder %s118, 1
      %p970 = por %p968, %p969
      %p971 = scmp.ne.s32.totalorder %s960, %s961
      %p972 = scmp.eq.s32.totalorder %s118, 0
      %p973 = por %p971, %p972
      %p974 = scmp.ne.s32.totalorder %s960, %s961
      %p975 = scmp.eq.s32.totalorder %s119, 1
      %p976 = por %p974, %p975
      %p978 = scmp.ne.s32.totalorder %s961, %s977
      %p979 = scmp.eq.s32.totalorder %s119, 0
      %p980 = por %p978, %p979
      %s981 = ssub.s32 %s113, %s120
      %p982 = scmp.eq.s32.totalorder %s981, 0
      %s984 = sadd.s32 %s983, 1
      %s985 = scalar_select %p982, %s983, %s984
      %p988 = pneg %p982
      %p989 = scmp.eq.s32.totalorder %s113, 1
      %p990 = por %p988, %p989
      %p991 = scmp.ne.s32.totalorder %s983, %s986
      %p992 = scmp.eq.s32.totalorder %s113, 0
      %p993 = por %p991, %p992
      %p994 = scmp.ne.s32.totalorder %s983, %s986
      %p995 = scmp.eq.s32.totalorder %s118, 1
      %p996 = por %p994, %p995
      %p997 = scmp.ne.s32.totalorder %s986, %s987
      %p998 = scmp.eq.s32.totalorder %s118, 0
      %p999 = por %p997, %p998
      %p1000 = scmp.ne.s32.totalorder %s986, %s987
      %p1001 = scmp.eq.s32.totalorder %s119, 1
      %p1002 = por %p1000, %p1001
      %p1004 = scmp.ne.s32.totalorder %s987, %s1003
      %p1005 = scmp.eq.s32.totalorder %s119, 0
      %p1006 = por %p1004, %p1005
      %s1007 = ssub.s32 %s113, %s120
      %p1008 = scmp.eq.s32.totalorder %s1007, 0
      %s1010 = sadd.s32 %s1009, 1
      %s1011 = scalar_select %p1008, %s1009, %s1010
      %p1014 = pneg %p1008
      %p1015 = scmp.eq.s32.totalorder %s113, 1
      %p1016 = por %p1014, %p1015
      %p1017 = scmp.ne.s32.totalorder %s1009, %s1012
      %p1018 = scmp.eq.s32.totalorder %s113, 0
      %p1019 = por %p1017, %p1018
      %p1020 = scmp.ne.s32.totalorder %s1009, %s1012
      %p1021 = scmp.eq.s32.totalorder %s118, 1
      %p1022 = por %p1020, %p1021
      %p1023 = scmp.ne.s32.totalorder %s1012, %s1013
      %p1024 = scmp.eq.s32.totalorder %s118, 0
      %p1025 = por %p1023, %p1024
      %p1026 = scmp.ne.s32.totalorder %s1012, %s1013
      %p1027 = scmp.eq.s32.totalorder %s119, 1
      %p1028 = por %p1026, %p1027
      %p1030 = scmp.ne.s32.totalorder %s1013, %s1029
      %p1031 = scmp.eq.s32.totalorder %s119, 0
      %p1032 = por %p1030, %p1031
      %s1033 = ssub.s32 %s113, %s120
      %p1034 = scmp.eq.s32.totalorder %s1033, 0
      %s1036 = sadd.s32 %s1035, 1
      %s1037 = scalar_select %p1034, %s1035, %s1036
      %p1040 = pneg %p1034
      %p1041 = scmp.eq.s32.totalorder %s113, 1
      %p1042 = por %p1040, %p1041
      %p1043 = scmp.ne.s32.totalorder %s1035, %s1038
      %p1044 = scmp.eq.s32.totalorder %s113, 0
      %p1045 = por %p1043, %p1044
      %p1046 = scmp.ne.s32.totalorder %s1035, %s1038
      %p1047 = scmp.eq.s32.totalorder %s118, 1
      %p1048 = por %p1046, %p1047
      %p1049 = scmp.ne.s32.totalorder %s1038, %s1039
      %p1050 = scmp.eq.s32.totalorder %s118, 0
      %p1051 = por %p1049, %p1050
      %p1052 = scmp.ne.s32.totalorder %s1038, %s1039
      %p1053 = scmp.eq.s32.totalorder %s119, 1
      %p1054 = por %p1052, %p1053
      %p1056 = scmp.ne.s32.totalorder %s1039, %s1055
      %p1057 = scmp.eq.s32.totalorder %s119, 0
      %p1058 = por %p1056, %p1057
      %s1059 = ssub.s32 %s113, %s120
      %p1060 = scmp.eq.s32.totalorder %s1059, 0
      %s1062 = sadd.s32 %s1061, 1
      %s1063 = scalar_select %p1060, %s1061, %s1062
      %p1066 = pneg %p1060
      %p1067 = scmp.eq.s32.totalorder %s113, 1
      %p1068 = por %p1066, %p1067
      %p1069 = scmp.ne.s32.totalorder %s1061, %s1064
      %p1070 = scmp.eq.s32.totalorder %s113, 0
      %p1071 = por %p1069, %p1070
      %p1072 = scmp.ne.s32.totalorder %s1061, %s1064
      %p1073 = scmp.eq.s32.totalorder %s118, 1
      %p1074 = por %p1072, %p1073
      %p1075 = scmp.ne.s32.totalorder %s1064, %s1065
      %p1076 = scmp.eq.s32.totalorder %s118, 0
      %p1077 = por %p1075, %p1076
      %p1078 = scmp.ne.s32.totalorder %s1064, %s1065
      %p1079 = scmp.eq.s32.totalorder %s119, 1
      %p1080 = por %p1078, %p1079
      %p1082 = scmp.ne.s32.totalorder %s1065, %s1081
      %p1083 = scmp.eq.s32.totalorder %s119, 0
      %p1084 = por %p1082, %p1083
      %s1085 = ssub.s32 %s113, %s120
      %p1086 = scmp.eq.s32.totalorder %s1085, 0
      %s1088 = sadd.s32 %s1087, 1
      %s1089 = scalar_select %p1086, %s1087, %s1088
      %p1092 = pneg %p1086
      %p1093 = scmp.eq.s32.totalorder %s113, 1
      %p1094 = por %p1092, %p1093
      %p1095 = scmp.ne.s32.totalorder %s1087, %s1090
      %p1096 = scmp.eq.s32.totalorder %s113, 0
      %p1097 = por %p1095, %p1096
      %p1098 = scmp.ne.s32.totalorder %s1087, %s1090
      %p1099 = scmp.eq.s32.totalorder %s118, 1
      %p1100 = por %p1098, %p1099
      %p1101 = scmp.ne.s32.totalorder %s1090, %s1091
      %p1102 = scmp.eq.s32.totalorder %s118, 0
      %p1103 = por %p1101, %p1102
      %p1104 = scmp.ne.s32.totalorder %s1090, %s1091
      %p1105 = scmp.eq.s32.totalorder %s119, 1
      %p1106 = por %p1104, %p1105
      %p1108 = scmp.ne.s32.totalorder %s1091, %s1107
      %p1109 = scmp.eq.s32.totalorder %s119, 0
      %p1110 = por %p1108, %p1109
      %s1111 = ssub.s32 %s113, %s120
      %p1112 = scmp.eq.s32.totalorder %s1111, 0
      %s1114 = sadd.s32 %s1113, 1
      %s1115 = scalar_select %p1112, %s1113, %s1114
      %p1118 = pneg %p1112
      %p1119 = scmp.eq.s32.totalorder %s113, 1
      %p1120 = por %p1118, %p1119
      %p1121 = scmp.ne.s32.totalorder %s1113, %s1116
      %p1122 = scmp.eq.s32.totalorder %s113, 0
      %p1123 = por %p1121, %p1122
      %p1124 = scmp.ne.s32.totalorder %s1113, %s1116
      %p1125 = scmp.eq.s32.totalorder %s118, 1
      %p1126 = por %p1124, %p1125
      %p1127 = scmp.ne.s32.totalorder %s1116, %s1117
      %p1128 = scmp.eq.s32.totalorder %s118, 0
      %p1129 = por %p1127, %p1128
      %p1130 = scmp.ne.s32.totalorder %s1116, %s1117
      %p1131 = scmp.eq.s32.totalorder %s119, 1
      %p1132 = por %p1130, %p1131
      %p1134 = scmp.ne.s32.totalorder %s1117, %s1133
      %p1135 = scmp.eq.s32.totalorder %s119, 0
      %p1136 = por %p1134, %p1135
      %s1137 = ssub.s32 %s113, %s120
      %p1138 = scmp.eq.s32.totalorder %s1137, 0
      %s1140 = sadd.s32 %s1139, 1
      %s1141 = scalar_select %p1138, %s1139, %s1140
      %p1144 = pneg %p1138
      %p1145 = scmp.eq.s32.totalorder %s113, 1
      %p1146 = por %p1144, %p1145
      %p1147 = scmp.ne.s32.totalorder %s1139, %s1142
      %p1148 = scmp.eq.s32.totalorder %s113, 0
      %p1149 = por %p1147, %p1148
      %p1150 = scmp.ne.s32.totalorder %s1139, %s1142
      %p1151 = scmp.eq.s32.totalorder %s118, 1
      %p1152 = por %p1150, %p1151
      %p1153 = scmp.ne.s32.totalorder %s1142, %s1143
      %p1154 = scmp.eq.s32.totalorder %s118, 0
      %p1155 = por %p1153, %p1154
      %p1156 = scmp.ne.s32.totalorder %s1142, %s1143
      %p1157 = scmp.eq.s32.totalorder %s119, 1
      %p1158 = por %p1156, %p1157
      %p1160 = scmp.ne.s32.totalorder %s1143, %s1159
      %p1161 = scmp.eq.s32.totalorder %s119, 0
      %p1162 = por %p1160, %p1161
      %s1163 = ssub.s32 %s113, %s120
      %p1164 = scmp.eq.s32.totalorder %s1163, 0
      %s1166 = sadd.s32 %s1165, 1
      %s1167 = scalar_select %p1164, %s1165, %s1166
      %p1170 = pneg %p1164
      %p1171 = scmp.eq.s32.totalorder %s113, 1
      %p1172 = por %p1170, %p1171
      %p1173 = scmp.ne.s32.totalorder %s1165, %s1168
      %p1174 = scmp.eq.s32.totalorder %s113, 0
      %p1175 = por %p1173, %p1174
      %p1176 = scmp.ne.s32.totalorder %s1165, %s1168
      %p1177 = scmp.eq.s32.totalorder %s118, 1
      %p1178 = por %p1176, %p1177
      %p1179 = scmp.ne.s32.totalorder %s1168, %s1169
      %p1180 = scmp.eq.s32.totalorder %s118, 0
      %p1181 = por %p1179, %p1180
      %p1182 = scmp.ne.s32.totalorder %s1168, %s1169
      %p1183 = scmp.eq.s32.totalorder %s119, 1
      %p1184 = por %p1182, %p1183
      %p1186 = scmp.ne.s32.totalorder %s1169, %s1185
      %p1187 = scmp.eq.s32.totalorder %s119, 0
      %p1188 = por %p1186, %p1187
      %s1189 = ssub.s32 %s113, %s120
      %p1190 = scmp.eq.s32.totalorder %s1189, 0
      %s1192 = sadd.s32 %s1191, 1
      %s1193 = scalar_select %p1190, %s1191, %s1192
      %p1196 = pneg %p1190
      %p1197 = scmp.eq.s32.totalorder %s113, 1
      %p1198 = por %p1196, %p1197
      %p1199 = scmp.ne.s32.totalorder %s1191, %s1194
      %p1200 = scmp.eq.s32.totalorder %s113, 0
      %p1201 = por %p1199, %p1200
      %p1202 = scmp.ne.s32.totalorder %s1191, %s1194
      %p1203 = scmp.eq.s32.totalorder %s118, 1
      %p1204 = por %p1202, %p1203
      %p1205 = scmp.ne.s32.totalorder %s1194, %s1195
      %p1206 = scmp.eq.s32.totalorder %s118, 0
      %p1207 = por %p1205, %p1206
      %p1208 = scmp.ne.s32.totalorder %s1194, %s1195
      %p1209 = scmp.eq.s32.totalorder %s119, 1
      %p1210 = por %p1208, %p1209
      %p1212 = scmp.ne.s32.totalorder %s1195, %s1211
      %p1213 = scmp.eq.s32.totalorder %s119, 0
      %p1214 = por %p1212, %p1213
      %s1215 = ssub.s32 %s113, %s120
      %p1216 = scmp.eq.s32.totalorder %s1215, 0
      %s1218 = sadd.s32 %s1217, 1
      %s1219 = scalar_select %p1216, %s1217, %s1218
      %p1222 = pneg %p1216
      %p1223 = scmp.eq.s32.totalorder %s113, 1
      %p1224 = por %p1222, %p1223
      %p1225 = scmp.ne.s32.totalorder %s1217, %s1220
      %p1226 = scmp.eq.s32.totalorder %s113, 0
      %p1227 = por %p1225, %p1226
      %p1228 = scmp.ne.s32.totalorder %s1217, %s1220
      %p1229 = scmp.eq.s32.totalorder %s118, 1
      %p1230 = por %p1228, %p1229
      %p1231 = scmp.ne.s32.totalorder %s1220, %s1221
      %p1232 = scmp.eq.s32.totalorder %s118, 0
      %p1233 = por %p1231, %p1232
      %p1234 = scmp.ne.s32.totalorder %s1220, %s1221
      %p1235 = scmp.eq.s32.totalorder %s119, 1
      %p1236 = por %p1234, %p1235
      %p1238 = scmp.ne.s32.totalorder %s1221, %s1237
      %p1239 = scmp.eq.s32.totalorder %s119, 0
      %p1240 = por %p1238, %p1239
      %s1241 = ssub.s32 %s113, %s120
      %p1242 = scmp.eq.s32.totalorder %s1241, 0
      %s1244 = sadd.s32 %s1243, 1
      %s1245 = scalar_select %p1242, %s1243, %s1244
      %p1248 = pneg %p1242
      %p1249 = scmp.eq.s32.totalorder %s113, 1
      %p1250 = por %p1248, %p1249
      %p1251 = scmp.ne.s32.totalorder %s1243, %s1246
      %p1252 = scmp.eq.s32.totalorder %s113, 0
      %p1253 = por %p1251, %p1252
      %p1254 = scmp.ne.s32.totalorder %s1243, %s1246
      %p1255 = scmp.eq.s32.totalorder %s118, 1
      %p1256 = por %p1254, %p1255
      %p1257 = scmp.ne.s32.totalorder %s1246, %s1247
      %p1258 = scmp.eq.s32.totalorder %s118, 0
      %p1259 = por %p1257, %p1258
      %p1260 = scmp.ne.s32.totalorder %s1246, %s1247
      %p1261 = scmp.eq.s32.totalorder %s119, 1
      %p1262 = por %p1260, %p1261
      %p1264 = scmp.ne.s32.totalorder %s1247, %s1263
      %p1265 = scmp.eq.s32.totalorder %s119, 0
      %p1266 = por %p1264, %p1265
      %s1267 = ssub.s32 %s113, %s120
      %p1268 = scmp.eq.s32.totalorder %s1267, 0
      %s1270 = sadd.s32 %s1269, 1
      %s1271 = scalar_select %p1268, %s1269, %s1270
      %p1274 = pneg %p1268
      %p1275 = scmp.eq.s32.totalorder %s113, 1
      %p1276 = por %p1274, %p1275
      %p1277 = scmp.ne.s32.totalorder %s1269, %s1272
      %p1278 = scmp.eq.s32.totalorder %s113, 0
      %p1279 = por %p1277, %p1278
      %p1280 = scmp.ne.s32.totalorder %s1269, %s1272
      %p1281 = scmp.eq.s32.totalorder %s118, 1
      %p1282 = por %p1280, %p1281
      %p1283 = scmp.ne.s32.totalorder %s1272, %s1273
      %p1284 = scmp.eq.s32.totalorder %s118, 0
      %p1285 = por %p1283, %p1284
      %p1286 = scmp.ne.s32.totalorder %s1272, %s1273
      %p1287 = scmp.eq.s32.totalorder %s119, 1
      %p1288 = por %p1286, %p1287
      %p1290 = scmp.ne.s32.totalorder %s1273, %s1289
      %p1291 = scmp.eq.s32.totalorder %s119, 0
      %p1292 = por %p1290, %p1291
      %s1293 = ssub.s32 %s113, %s120
      %p1294 = scmp.eq.s32.totalorder %s1293, 0
      %s1296 = sadd.s32 %s1295, 1
      %s1297 = scalar_select %p1294, %s1295, %s1296
      %p1300 = pneg %p1294
      %p1301 = scmp.eq.s32.totalorder %s113, 1
      %p1302 = por %p1300, %p1301
      %p1303 = scmp.ne.s32.totalorder %s1295, %s1298
      %p1304 = scmp.eq.s32.totalorder %s113, 0
      %p1305 = por %p1303, %p1304
      %p1306 = scmp.ne.s32.totalorder %s1295, %s1298
      %p1307 = scmp.eq.s32.totalorder %s118, 1
      %p1308 = por %p1306, %p1307
      %p1309 = scmp.ne.s32.totalorder %s1298, %s1299
      %p1310 = scmp.eq.s32.totalorder %s118, 0
      %p1311 = por %p1309, %p1310
      %p1312 = scmp.ne.s32.totalorder %s1298, %s1299
      %p1313 = scmp.eq.s32.totalorder %s119, 1
      %p1314 = por %p1312, %p1313
      %p1316 = scmp.ne.s32.totalorder %s1299, %s1315
      %p1317 = scmp.eq.s32.totalorder %s119, 0
      %p1318 = por %p1316, %p1317
      %p1319 = scmp.le.s32.totalorder 1, %s113
      %p1320 = scmp.lt.s32.totalorder %s113, 3
      %p1321 = pnand %p1319, %p1320
      %p1322 = pneg %p1321
      // Predicated region
      $region9: #{multi_agent_forward.1} parent=5 // pred_check
        _
      $region10: #{multi_agent_forward.1} parent=5 // pred_check_branch
        %1324 = sbr.rel (%p1321) target = $region12
      $region11: #{multi_agent_forward.1} parent=5 // pred_region
        %s1325 = ssub.s32 %s113, 1
        // Predicated region
        $region13: #{multi_agent_forward.1} parent=11 // pred_check
          %p1326 = pneg %p134
        $region14: #{multi_agent_forward.1} parent=11 // pred_check_branch
          %1328 = sbr.rel (%p1326) target = $region16
        $region15: #{multi_agent_forward.1} parent=11 // pred_region
          _
        $region16: #{multi_agent_forward.1} parent=11 // pred_fallthru
          _
        // Predicated region
        $region17: #{multi_agent_forward.1} parent=11 // pred_check
          %p1329 = pneg %p155
        $region18: #{multi_agent_forward.1} parent=11 // pred_check_branch
          %1331 = sbr.rel (%p1329) target = $region20
        $region19: #{multi_agent_forward.1} parent=11 // pred_region
          _
        $region20: #{multi_agent_forward.1} parent=11 // pred_fallthru
          _
        // Predicated region
        $region21: #{multi_agent_forward.1} parent=11 // pred_check
          %p1332 = pneg %p176
        $region22: #{multi_agent_forward.1} parent=11 // pred_check_branch
          %1334 = sbr.rel (%p1332) target = $region24
        $region23: #{multi_agent_forward.1} parent=11 // pred_region
          _
        $region24: #{multi_agent_forward.1} parent=11 // pred_fallthru
          _
        // Predicated region
        $region25: #{multi_agent_forward.1} parent=11 // pred_check
          %p1335 = pneg %p197
        $region26: #{multi_agent_forward.1} parent=11 // pred_check_branch
          %1337 = sbr.rel (%p1335) target = $region28
        $region27: #{multi_agent_forward.1} parent=11 // pred_region
          %s1339 = ssub.s32 32, 32
          %1340 = vsyncadd [#allocation5], %s1339
          %s1342 = sshll.u32 [#allocation4], 4
          %s1343 = int_to_ptr.vmem [resolvable:$true] %s1342
          %1345 = dma.hbm_to_vmem [thread:$0]  %s7, 32, %s1343, [#allocation5]
        $region28: #{multi_agent_forward.1} parent=11 // pred_fallthru
          _
        // Predicated region
        $region29: #{multi_agent_forward.1} parent=11 // pred_check
          %p1346 = pneg %p218
        $region30: #{multi_agent_forward.1} parent=11 // pred_check_branch
          %1348 = sbr.rel (%p1346) target = $region32
        $region31: #{multi_agent_forward.1} parent=11 // pred_region
          %s1350 = ssub.s32 32, 32
          %1351 = vsyncadd [#allocation8], %s1350
          %s1353 = sshll.u32 [#allocation7], 4
          %s1354 = int_to_ptr.vmem [resolvable:$true] %s1353
          %1356 = dma.hbm_to_vmem [thread:$0]  %s9, 32, %s1354, [#allocation8]
        $region32: #{multi_agent_forward.1} parent=11 // pred_fallthru
          _
        // Predicated region
        $region33: #{multi_agent_forward.1} parent=11 // pred_check
          %p1357 = pneg %p239
        $region34: #{multi_agent_forward.1} parent=11 // pred_check_branch
          %1359 = sbr.rel (%p1357) target = $region36
        $region35: #{multi_agent_forward.1} parent=11 // pred_region
          _
        $region36: #{multi_agent_forward.1} parent=11 // pred_fallthru
          _
        // Predicated region
        $region37: #{multi_agent_forward.1} parent=11 // pred_check
          %p1360 = pneg %p260
        $region38: #{multi_agent_forward.1} parent=11 // pred_check_branch
          %1362 = sbr.rel (%p1360) target = $region40
        $region39: #{multi_agent_forward.1} parent=11 // pred_region
          _
        $region40: #{multi_agent_forward.1} parent=11 // pred_fallthru
          _
        // Predicated region
        $region41: #{multi_agent_forward.1} parent=11 // pred_check
          %p1363 = pneg %p281
        $region42: #{multi_agent_forward.1} parent=11 // pred_check_branch
          %1365 = sbr.rel (%p1363) target = $region44
        $region43: #{multi_agent_forward.1} parent=11 // pred_region
          _
        $region44: #{multi_agent_forward.1} parent=11 // pred_fallthru
          _
        // Predicated region
        $region45: #{multi_agent_forward.1} parent=11 // pred_check
          %p1366 = pneg %p302
        $region46: #{multi_agent_forward.1} parent=11 // pred_check_branch
          %1368 = sbr.rel (%p1366) target = $region48
        $region47: #{multi_agent_forward.1} parent=11 // pred_region
          _
        $region48: #{multi_agent_forward.1} parent=11 // pred_fallthru
          _
        // Predicated region
        $region49: #{multi_agent_forward.1} parent=11 // pred_check
          %p1369 = pneg %p323
        $region50: #{multi_agent_forward.1} parent=11 // pred_check_branch
          %1371 = sbr.rel (%p1369) target = $region52
        $region51: #{multi_agent_forward.1} parent=11 // pred_region
          _
        $region52: #{multi_agent_forward.1} parent=11 // pred_fallthru
          _
      $region12: #{multi_agent_forward.1} parent=5 // pred_fallthru
        _
      %p1372 = scmp.lt.s32.totalorder %s113, 2
      // Predicated region
      $region53: #{multi_agent_forward.1} parent=5 // pred_check
        %p1373 = pneg %p1372
      $region54: #{multi_agent_forward.1} parent=5 // pred_check_branch
        %1375 = sbr.rel (%p1373) target = $region56
      $region55: #{multi_agent_forward.1} parent=5 // pred_region
        // Predicated region
        $region57: #{multi_agent_forward.1} parent=55 // pred_check
          %p1376 = pneg %p343
        $region58: #{multi_agent_forward.1} parent=55 // pred_check_branch
          %1378 = sbr.rel (%p1376) target = $region60
        $region59: #{multi_agent_forward.1} parent=55 // pred_region
          %p1379 = scmp.lt.s32.totalorder %s113, 1
          %s1380 = scalar_select %p1379, %s113, 1
          %s1381 = smul.addr %s1380, 2
          %s1382 = smul.addr %s1381, 8
          %s1383 = scalar_lea.vmem %s21, %s1382
        $region60: #{multi_agent_forward.1} parent=55 // pred_fallthru
          _
        // Predicated region
        $region61: #{multi_agent_forward.1} parent=55 // pred_check
          %p1384 = pneg %p369
        $region62: #{multi_agent_forward.1} parent=55 // pred_check_branch
          %1386 = sbr.rel (%p1384) target = $region64
        $region63: #{multi_agent_forward.1} parent=55 // pred_region
          %p1387 = scmp.lt.s32.totalorder %s113, 1
          %s1388 = scalar_select %p1387, %s113, 1
          %s1389 = smul.addr %s1388, 2
          %s1390 = smul.addr %s1389, 8
          %s1391 = scalar_lea.vmem %s23, %s1390
        $region64: #{multi_agent_forward.1} parent=55 // pred_fallthru
          _
        // Predicated region
        $region65: #{multi_agent_forward.1} parent=55 // pred_check
          %p1392 = pneg %p395
        $region66: #{multi_agent_forward.1} parent=55 // pred_check_branch
          %1394 = sbr.rel (%p1392) target = $region68
        $region67: #{multi_agent_forward.1} parent=55 // pred_region
          %p1395 = scmp.lt.s32.totalorder %s113, 1
          %s1396 = scalar_select %p1395, %s113, 1
          %s1397 = smul.addr %s1396, 2
          %s1398 = scalar_lea.vmem %s25, %s1397
        $region68: #{multi_agent_forward.1} parent=55 // pred_fallthru
          _
        // Predicated region
        $region69: #{multi_agent_forward.1} parent=55 // pred_check
          %p1399 = pneg %p421
        $region70: #{multi_agent_forward.1} parent=55 // pred_check_branch
          %1401 = sbr.rel (%p1399) target = $region72
        $region71: #{multi_agent_forward.1} parent=55 // pred_region
          %p1402 = scmp.lt.s32.totalorder %s113, 1
          %s1403 = scalar_select %p1402, %s113, 1
          %s1404 = smul.addr %s1403, 2
          %s1405 = scalar_lea.vmem %s27, %s1404
        $region72: #{multi_agent_forward.1} parent=55 // pred_fallthru
          _
        // Predicated region
        $region73: #{multi_agent_forward.1} parent=55 // pred_check
          %p1406 = pneg %p447
        $region74: #{multi_agent_forward.1} parent=55 // pred_check_branch
          %1408 = sbr.rel (%p1406) target = $region76
        $region75: #{multi_agent_forward.1} parent=55 // pred_region
          %p1409 = scmp.lt.s32.totalorder %s113, 1
          %s1410 = scalar_select %p1409, %s113, 1
          %s1411 = smul.addr %s1410, 2
          %s1412 = scalar_lea.vmem %s29, %s1411
        $region76: #{multi_agent_forward.1} parent=55 // pred_fallthru
          _
        // Predicated region
        $region77: #{multi_agent_forward.1} parent=55 // pred_check
          %p1413 = pneg %p473
        $region78: #{multi_agent_forward.1} parent=55 // pred_check_branch
          %1415 = sbr.rel (%p1413) target = $region80
        $region79: #{multi_agent_forward.1} parent=55 // pred_region
          %p1416 = scmp.lt.s32.totalorder %s113, 1
          %s1417 = scalar_select %p1416, %s113, 1
          %s1418 = smul.addr %s1417, 4
          %s1419 = scalar_lea.vmem %s31, %s1418
        $region80: #{multi_agent_forward.1} parent=55 // pred_fallthru
          _
        // Predicated region
        $region81: #{multi_agent_forward.1} parent=55 // pred_check
          %p1420 = pneg %p499
        $region82: #{multi_agent_forward.1} parent=55 // pred_check_branch
          %1422 = sbr.rel (%p1420) target = $region84
        $region83: #{multi_agent_forward.1} parent=55 // pred_region
          %p1423 = scmp.lt.s32.totalorder %s113, 1
          %s1424 = scalar_select %p1423, %s113, 1
          %s1425 = smul.addr %s1424, 2
          %s1426 = smul.addr %s1425, 8
          %s1427 = scalar_lea.vmem %s33, %s1426
        $region84: #{multi_agent_forward.1} parent=55 // pred_fallthru
          _
        // Predicated region
        $region85: #{multi_agent_forward.1} parent=55 // pred_check
          %p1428 = pneg %p525
        $region86: #{multi_agent_forward.1} parent=55 // pred_check_branch
          %1430 = sbr.rel (%p1428) target = $region88
        $region87: #{multi_agent_forward.1} parent=55 // pred_region
          %s1431 = sand.u32 %s113, 1
          %s1432 = scalar_lea.sflag [#allocation5], %s1431
          %s1433 = sand.u32 %s515, 1
          %s1434 = scalar_lea.vmem [#allocation9], %s1433
          %s1436 = ssub.s32 16, 16
          %1437 = vsyncadd %s1432, %s1436
          %s1438 = smul.addr %s113, 16
          %s1439 = scalar_lea.hbm %s35, %s1438
          %s1441 = sshll.u32 %s1434, 4
          %s1442 = int_to_ptr.vmem [resolvable:$true] %s1441
          %1444 = dma.hbm_to_vmem [thread:$0]  %s1439, 16, %s1442, %s1432
        $region88: #{multi_agent_forward.1} parent=55 // pred_fallthru
          _
        // Predicated region
        $region89: #{multi_agent_forward.1} parent=55 // pred_check
          %p1445 = pneg %p551
        $region90: #{multi_agent_forward.1} parent=55 // pred_check_branch
          %1447 = sbr.rel (%p1445) target = $region92
        $region91: #{multi_agent_forward.1} parent=55 // pred_region
          %p1448 = scmp.lt.s32.totalorder %s113, 1
          %s1449 = scalar_select %p1448, %s113, 1
          %s1450 = smul.addr %s1449, 4
          %s1451 = smul.addr %s1450, 8
          %s1452 = scalar_lea.vmem %s37, %s1451
        $region92: #{multi_agent_forward.1} parent=55 // pred_fallthru
          _
        // Predicated region
        $region93: #{multi_agent_forward.1} parent=55 // pred_check
          %p1453 = pneg %p577
        $region94: #{multi_agent_forward.1} parent=55 // pred_check_branch
          %1455 = sbr.rel (%p1453) target = $region96
        $region95: #{multi_agent_forward.1} parent=55 // pred_region
          %p1456 = scmp.lt.s32.totalorder %s113, 1
          %s1457 = scalar_select %p1456, %s113, 1
          %s1458 = scalar_lea.vmem %s39, %s1457
        $region96: #{multi_agent_forward.1} parent=55 // pred_fallthru
          _
        // Predicated region
        $region97: #{multi_agent_forward.1} parent=55 // pred_check
          %p1459 = pneg %p603
        $region98: #{multi_agent_forward.1} parent=55 // pred_check_branch
          %1461 = sbr.rel (%p1459) target = $region100
        $region99: #{multi_agent_forward.1} parent=55 // pred_region
          %p1462 = scmp.lt.s32.totalorder %s113, 1
          %s1463 = scalar_select %p1462, %s113, 1
          %s1464 = scalar_lea.vmem %s41, %s1463
        $region100: #{multi_agent_forward.1} parent=55 // pred_fallthru
          _
        // Predicated region
        $region101: #{multi_agent_forward.1} parent=55 // pred_check
          %p1465 = pneg %p629
        $region102: #{multi_agent_forward.1} parent=55 // pred_check_branch
          %1467 = sbr.rel (%p1465) target = $region104
        $region103: #{multi_agent_forward.1} parent=55 // pred_region
          %s1468 = sand.u32 %s113, 1
          %s1469 = scalar_lea.sflag [#allocation5], %s1468
          %s1470 = sand.u32 %s619, 1
          %s1471 = scalar_lea.vmem [#allocation10], %s1470
          %s1473 = ssub.s32 16, 16
          %1474 = vsyncadd %s1469, %s1473
          %s1475 = smul.addr %s113, 16
          %s1476 = scalar_lea.hbm %s43, %s1475
          %s1478 = sshll.u32 %s1471, 4
          %s1479 = int_to_ptr.vmem [resolvable:$true] %s1478
          %1481 = dma.hbm_to_vmem [thread:$0]  %s1476, 16, %s1479, %s1469
        $region104: #{multi_agent_forward.1} parent=55 // pred_fallthru
          _
        // Predicated region
        $region105: #{multi_agent_forward.1} parent=55 // pred_check
          %p1482 = pneg %p655
        $region106: #{multi_agent_forward.1} parent=55 // pred_check_branch
          %1484 = sbr.rel (%p1482) target = $region108
        $region107: #{multi_agent_forward.1} parent=55 // pred_region
          %p1485 = scmp.lt.s32.totalorder %s113, 1
          %s1486 = scalar_select %p1485, %s113, 1
          %s1487 = smul.addr %s1486, 4
          %s1488 = smul.addr %s1487, 8
          %s1489 = scalar_lea.vmem %s45, %s1488
        $region108: #{multi_agent_forward.1} parent=55 // pred_fallthru
          _
        // Predicated region
        $region109: #{multi_agent_forward.1} parent=55 // pred_check
          %p1490 = pneg %p681
        $region110: #{multi_agent_forward.1} parent=55 // pred_check_branch
          %1492 = sbr.rel (%p1490) target = $region112
        $region111: #{multi_agent_forward.1} parent=55 // pred_region
          %p1493 = scmp.lt.s32.totalorder %s113, 1
          %s1494 = scalar_select %p1493, %s113, 1
          %s1495 = scalar_lea.vmem %s47, %s1494
        $region112: #{multi_agent_forward.1} parent=55 // pred_fallthru
          _
        // Predicated region
        $region113: #{multi_agent_forward.1} parent=55 // pred_check
          %p1496 = pneg %p707
        $region114: #{multi_agent_forward.1} parent=55 // pred_check_branch
          %1498 = sbr.rel (%p1496) target = $region116
        $region115: #{multi_agent_forward.1} parent=55 // pred_region
          %p1499 = scmp.lt.s32.totalorder %s113, 1
          %s1500 = scalar_select %p1499, %s113, 1
          %s1501 = smul.addr %s1500, 4
          %s1502 = smul.addr %s1501, 8
          %s1503 = scalar_lea.vmem %s49, %s1502
        $region116: #{multi_agent_forward.1} parent=55 // pred_fallthru
          _
        // Predicated region
        $region117: #{multi_agent_forward.1} parent=55 // pred_check
          %p1504 = pneg %p733
        $region118: #{multi_agent_forward.1} parent=55 // pred_check_branch
          %1506 = sbr.rel (%p1504) target = $region120
        $region119: #{multi_agent_forward.1} parent=55 // pred_region
          %p1507 = scmp.lt.s32.totalorder %s113, 1
          %s1508 = scalar_select %p1507, %s113, 1
          %s1509 = scalar_lea.vmem %s51, %s1508
        $region120: #{multi_agent_forward.1} parent=55 // pred_fallthru
          _
        // Predicated region
        $region121: #{multi_agent_forward.1} parent=55 // pred_check
          %p1510 = pneg %p759
        $region122: #{multi_agent_forward.1} parent=55 // pred_check_branch
          %1512 = sbr.rel (%p1510) target = $region124
        $region123: #{multi_agent_forward.1} parent=55 // pred_region
          %p1513 = scmp.lt.s32.totalorder %s113, 1
          %s1514 = scalar_select %p1513, %s113, 1
          %s1515 = smul.addr %s1514, 4
          %s1516 = smul.addr %s1515, 8
          %s1517 = scalar_lea.vmem %s53, %s1516
        $region124: #{multi_agent_forward.1} parent=55 // pred_fallthru
          _
        // Predicated region
        $region125: #{multi_agent_forward.1} parent=55 // pred_check
          %p1518 = pneg %p785
        $region126: #{multi_agent_forward.1} parent=55 // pred_check_branch
          %1520 = sbr.rel (%p1518) target = $region128
        $region127: #{multi_agent_forward.1} parent=55 // pred_region
          %p1521 = scmp.lt.s32.totalorder %s113, 1
          %s1522 = scalar_select %p1521, %s113, 1
          %s1523 = scalar_lea.vmem %s55, %s1522
        $region128: #{multi_agent_forward.1} parent=55 // pred_fallthru
          _
        // Predicated region
        $region129: #{multi_agent_forward.1} parent=55 // pred_check
          %p1524 = pneg %p811
        $region130: #{multi_agent_forward.1} parent=55 // pred_check_branch
          %1526 = sbr.rel (%p1524) target = $region132
        $region131: #{multi_agent_forward.1} parent=55 // pred_region
          %p1527 = scmp.lt.s32.totalorder %s113, 1
          %s1528 = scalar_select %p1527, %s113, 1
          %s1529 = smul.addr %s1528, 4
          %s1530 = smul.addr %s1529, 8
          %s1531 = scalar_lea.vmem %s57, %s1530
        $region132: #{multi_agent_forward.1} parent=55 // pred_fallthru
          _
        // Predicated region
        $region133: #{multi_agent_forward.1} parent=55 // pred_check
          %p1532 = pneg %p837
        $region134: #{multi_agent_forward.1} parent=55 // pred_check_branch
          %1534 = sbr.rel (%p1532) target = $region136
        $region135: #{multi_agent_forward.1} parent=55 // pred_region
          %p1535 = scmp.lt.s32.totalorder %s113, 1
          %s1536 = scalar_select %p1535, %s113, 1
          %s1537 = scalar_lea.vmem %s59, %s1536
        $region136: #{multi_agent_forward.1} parent=55 // pred_fallthru
          _
        // Predicated region
        $region137: #{multi_agent_forward.1} parent=55 // pred_check
          %p1538 = pneg %p863
        $region138: #{multi_agent_forward.1} parent=55 // pred_check_branch
          %1540 = sbr.rel (%p1538) target = $region140
        $region139: #{multi_agent_forward.1} parent=55 // pred_region
          %p1541 = scmp.lt.s32.totalorder %s113, 1
          %s1542 = scalar_select %p1541, %s113, 1
          %s1543 = scalar_lea.vmem %s61, %s1542
        $region140: #{multi_agent_forward.1} parent=55 // pred_fallthru
          _
        // Predicated region
        $region141: #{multi_agent_forward.1} parent=55 // pred_check
          %p1544 = pneg %p889
        $region142: #{multi_agent_forward.1} parent=55 // pred_check_branch
          %1546 = sbr.rel (%p1544) target = $region144
        $region143: #{multi_agent_forward.1} parent=55 // pred_region
          %p1547 = scmp.lt.s32.totalorder %s113, 1
          %s1548 = scalar_select %p1547, %s113, 1
          %s1549 = scalar_lea.vmem %s63, %s1548
        $region144: #{multi_agent_forward.1} parent=55 // pred_fallthru
          _
        // Predicated region
        $region145: #{multi_agent_forward.1} parent=55 // pred_check
          %p1550 = pneg %p915
        $region146: #{multi_agent_forward.1} parent=55 // pred_check_branch
          %1552 = sbr.rel (%p1550) target = $region148
        $region147: #{multi_agent_forward.1} parent=55 // pred_region
          %p1553 = scmp.lt.s32.totalorder %s113, 1
          %s1554 = scalar_select %p1553, %s113, 1
          %s1555 = smul.addr %s1554, 8
          %s1556 = scalar_lea.vmem %s65, %s1555
        $region148: #{multi_agent_forward.1} parent=55 // pred_fallthru
          _
        // Predicated region
        $region149: #{multi_agent_forward.1} parent=55 // pred_check
          %p1557 = pneg %p941
        $region150: #{multi_agent_forward.1} parent=55 // pred_check_branch
          %1559 = sbr.rel (%p1557) target = $region152
        $region151: #{multi_agent_forward.1} parent=55 // pred_region
          %s1560 = sand.u32 %s113, 1
          %s1561 = scalar_lea.sflag [#allocation5], %s1560
          %s1562 = sand.u32 %s931, 1
          %s1563 = scalar_lea.vmem [#allocation11], %s1562
          %s1565 = ssub.s32 16, 16
          %1566 = vsyncadd %s1561, %s1565
          %s1567 = smul.addr %s113, 16
          %s1568 = scalar_lea.hbm %s67, %s1567
          %s1570 = sshll.u32 %s1563, 4
          %s1571 = int_to_ptr.vmem [resolvable:$true] %s1570
          %1573 = dma.hbm_to_vmem [thread:$0]  %s1568, 16, %s1571, %s1561
        $region152: #{multi_agent_forward.1} parent=55 // pred_fallthru
          _
        // Predicated region
        $region153: #{multi_agent_forward.1} parent=55 // pred_check
          %p1574 = pneg %p967
        $region154: #{multi_agent_forward.1} parent=55 // pred_check_branch
          %1576 = sbr.rel (%p1574) target = $region156
        $region155: #{multi_agent_forward.1} parent=55 // pred_region
          %p1577 = scmp.lt.s32.totalorder %s113, 1
          %s1578 = scalar_select %p1577, %s113, 1
          %s1579 = smul.addr %s1578, 8
          %s1580 = smul.addr %s1579, 8
          %s1581 = scalar_lea.vmem %s69, %s1580
        $region156: #{multi_agent_forward.1} parent=55 // pred_fallthru
          _
        // Predicated region
        $region157: #{multi_agent_forward.1} parent=55 // pred_check
          %p1582 = pneg %p993
        $region158: #{multi_agent_forward.1} parent=55 // pred_check_branch
          %1584 = sbr.rel (%p1582) target = $region160
        $region159: #{multi_agent_forward.1} parent=55 // pred_region
          %s1585 = sand.u32 %s113, 1
          %s1586 = scalar_lea.sflag [#allocation5], %s1585
          %s1587 = sand.u32 %s983, 1
          %s1588 = scalar_lea.vmem [#allocation12], %s1587
          %s1590 = ssub.s32 16, 16
          %1591 = vsyncadd %s1586, %s1590
          %s1592 = smul.addr %s113, 16
          %s1593 = scalar_lea.hbm %s71, %s1592
          %s1595 = sshll.u32 %s1588, 4
          %s1596 = int_to_ptr.vmem [resolvable:$true] %s1595
          %1598 = dma.hbm_to_vmem [thread:$0]  %s1593, 16, %s1596, %s1586
        $region160: #{multi_agent_forward.1} parent=55 // pred_fallthru
          _
        // Predicated region
        $region161: #{multi_agent_forward.1} parent=55 // pred_check
          %p1599 = pneg %p1019
        $region162: #{multi_agent_forward.1} parent=55 // pred_check_branch
          %1601 = sbr.rel (%p1599) target = $region164
        $region163: #{multi_agent_forward.1} parent=55 // pred_region
          %p1602 = scmp.lt.s32.totalorder %s113, 1
          %s1603 = scalar_select %p1602, %s113, 1
          %s1604 = smul.addr %s1603, 4
          %s1605 = smul.addr %s1604, 8
          %s1606 = scalar_lea.vmem %s73, %s1605
        $region164: #{multi_agent_forward.1} parent=55 // pred_fallthru
          _
        // Predicated region
        $region165: #{multi_agent_forward.1} parent=55 // pred_check
          %p1607 = pneg %p1045
        $region166: #{multi_agent_forward.1} parent=55 // pred_check_branch
          %1609 = sbr.rel (%p1607) target = $region168
        $region167: #{multi_agent_forward.1} parent=55 // pred_region
          %p1610 = scmp.lt.s32.totalorder %s113, 1
          %s1611 = scalar_select %p1610, %s113, 1
          %s1612 = smul.addr %s1611, 4
          %s1613 = smul.addr %s1612, 8
          %s1614 = scalar_lea.vmem %s75, %s1613
        $region168: #{multi_agent_forward.1} parent=55 // pred_fallthru
          _
        // Predicated region
        $region169: #{multi_agent_forward.1} parent=55 // pred_check
          %p1615 = pneg %p1071
        $region170: #{multi_agent_forward.1} parent=55 // pred_check_branch
          %1617 = sbr.rel (%p1615) target = $region172
        $region171: #{multi_agent_forward.1} parent=55 // pred_region
          %s1618 = sand.u32 %s113, 1
          %s1619 = scalar_lea.sflag [#allocation5], %s1618
          %s1620 = sand.u32 %s1061, 1
          %s1621 = scalar_lea.vmem [#allocation13], %s1620
          %s1623 = ssub.s32 16, 16
          %1624 = vsyncadd %s1619, %s1623
          %s1625 = smul.addr %s113, 16
          %s1626 = scalar_lea.hbm %s77, %s1625
          %s1628 = sshll.u32 %s1621, 4
          %s1629 = int_to_ptr.vmem [resolvable:$true] %s1628
          %1631 = dma.hbm_to_vmem [thread:$0]  %s1626, 16, %s1629, %s1619
        $region172: #{multi_agent_forward.1} parent=55 // pred_fallthru
          _
        // Predicated region
        $region173: #{multi_agent_forward.1} parent=55 // pred_check
          %p1632 = pneg %p1097
        $region174: #{multi_agent_forward.1} parent=55 // pred_check_branch
          %1634 = sbr.rel (%p1632) target = $region176
        $region175: #{multi_agent_forward.1} parent=55 // pred_region
          %p1635 = scmp.lt.s32.totalorder %s113, 1
          %s1636 = scalar_select %p1635, %s113, 1
          %s1637 = smul.addr %s1636, 4
          %s1638 = smul.addr %s1637, 8
          %s1639 = scalar_lea.vmem %s79, %s1638
        $region176: #{multi_agent_forward.1} parent=55 // pred_fallthru
          _
        // Predicated region
        $region177: #{multi_agent_forward.1} parent=55 // pred_check
          %p1640 = pneg %p1123
        $region178: #{multi_agent_forward.1} parent=55 // pred_check_branch
          %1642 = sbr.rel (%p1640) target = $region180
        $region179: #{multi_agent_forward.1} parent=55 // pred_region
          %s1643 = sand.u32 %s113, 1
          %s1644 = scalar_lea.sflag [#allocation5], %s1643
          %s1645 = sand.u32 %s1113, 1
          %s1646 = scalar_lea.vmem [#allocation14], %s1645
          %s1648 = ssub.s32 16, 16
          %1649 = vsyncadd %s1644, %s1648
          %s1650 = smul.addr %s113, 16
          %s1651 = scalar_lea.hbm %s81, %s1650
          %s1653 = sshll.u32 %s1646, 4
          %s1654 = int_to_ptr.vmem [resolvable:$true] %s1653
          %1656 = dma.hbm_to_vmem [thread:$0]  %s1651, 16, %s1654, %s1644
        $region180: #{multi_agent_forward.1} parent=55 // pred_fallthru
          _
        // Predicated region
        $region181: #{multi_agent_forward.1} parent=55 // pred_check
          %p1657 = pneg %p1149
        $region182: #{multi_agent_forward.1} parent=55 // pred_check_branch
          %1659 = sbr.rel (%p1657) target = $region184
        $region183: #{multi_agent_forward.1} parent=55 // pred_region
          %p1660 = scmp.lt.s32.totalorder %s113, 1
          %s1661 = scalar_select %p1660, %s113, 1
          %s1662 = smul.addr %s1661, 4
          %s1663 = smul.addr %s1662, 8
          %s1664 = scalar_lea.vmem %s83, %s1663
        $region184: #{multi_agent_forward.1} parent=55 // pred_fallthru
          _
        // Predicated region
        $region185: #{multi_agent_forward.1} parent=55 // pred_check
          %p1665 = pneg %p1175
        $region186: #{multi_agent_forward.1} parent=55 // pred_check_branch
          %1667 = sbr.rel (%p1665) target = $region188
        $region187: #{multi_agent_forward.1} parent=55 // pred_region
          %s1668 = sand.u32 %s113, 1
          %s1669 = scalar_lea.sflag [#allocation5], %s1668
          %s1670 = sand.u32 %s1165, 1
          %s1671 = scalar_lea.vmem [#allocation15], %s1670
          %s1673 = ssub.s32 16, 16
          %1674 = vsyncadd %s1669, %s1673
          %s1675 = smul.addr %s113, 16
          %s1676 = scalar_lea.hbm %s85, %s1675
          %s1678 = sshll.u32 %s1671, 4
          %s1679 = int_to_ptr.vmem [resolvable:$true] %s1678
          %1681 = dma.hbm_to_vmem [thread:$0]  %s1676, 16, %s1679, %s1669
        $region188: #{multi_agent_forward.1} parent=55 // pred_fallthru
          _
        // Predicated region
        $region189: #{multi_agent_forward.1} parent=55 // pred_check
          %p1682 = pneg %p1201
        $region190: #{multi_agent_forward.1} parent=55 // pred_check_branch
          %1684 = sbr.rel (%p1682) target = $region192
        $region191: #{multi_agent_forward.1} parent=55 // pred_region
          %s1685 = sand.u32 %s113, 1
          %s1686 = scalar_lea.sflag [#allocation5], %s1685
          %s1687 = sand.u32 %s1191, 1
          %s1688 = scalar_lea.vmem [#allocation16], %s1687
          %s1690 = ssub.s32 16, 16
          %1691 = vsyncadd %s1686, %s1690
          %s1692 = smul.addr %s113, 16
          %s1693 = scalar_lea.hbm %s87, %s1692
          %s1695 = sshll.u32 %s1688, 4
          %s1696 = int_to_ptr.vmem [resolvable:$true] %s1695
          %1698 = dma.hbm_to_vmem [thread:$0]  %s1693, 16, %s1696, %s1686
        $region192: #{multi_agent_forward.1} parent=55 // pred_fallthru
          _
      $region56: #{multi_agent_forward.1} parent=5 // pred_fallthru
        _
      %p1699 = scmp.le.s32.totalorder 1, %s113
      %p1700 = scmp.lt.s32.totalorder %s113, 3
      %p1701 = pnand %p1699, %p1700
      %p1702 = pneg %p1701
      // Predicated region
      $region193: #{multi_agent_forward.1} parent=5 // pred_check
        _
      $region194: #{multi_agent_forward.1} parent=5 // pred_check_branch
        %1704 = sbr.rel (%p1701) target = $region196
      $region195: #{multi_agent_forward.1} parent=5 // pred_region
        %s1705 = ssub.s32 %s113, 1
        // Predicated region
        $region197: #{multi_agent_forward.1} parent=195 // pred_check
          %p1706 = pneg %p197
        $region198: #{multi_agent_forward.1} parent=195 // pred_check_branch
          %1708 = sbr.rel (%p1706) target = $region200
        $region199: #{multi_agent_forward.1} parent=195 // pred_region
          %1709 = dma.done [#allocation5], 32
        $region200: #{multi_agent_forward.1} parent=195 // pred_fallthru
          _
        // Predicated region
        $region201: #{multi_agent_forward.1} parent=195 // pred_check
          %p1710 = pneg %p218
        $region202: #{multi_agent_forward.1} parent=195 // pred_check_branch
          %1712 = sbr.rel (%p1710) target = $region204
        $region203: #{multi_agent_forward.1} parent=195 // pred_region
          %1713 = dma.done [#allocation8], 32
        $region204: #{multi_agent_forward.1} parent=195 // pred_fallthru
          _
        %s1714 = sand.u32 %s118, 1
        %s1715 = scalar_lea.sflag [#allocation5], %s1714
        %s1716 = sand.u32 %s518, 1
        %s1717 = scalar_lea.vmem [#allocation9], %s1716
        // Predicated region
        $region205: #{multi_agent_forward.1} parent=195 // pred_check
          %p1718 = pneg %p531
        $region206: #{multi_agent_forward.1} parent=195 // pred_check_branch
          %1720 = sbr.rel (%p1718) target = $region208
        $region207: #{multi_agent_forward.1} parent=195 // pred_region
          %1721 = dma.done %s1715, 16
        $region208: #{multi_agent_forward.1} parent=195 // pred_fallthru
          _
        %s1722 = sand.u32 %s118, 1
        %s1723 = scalar_lea.sflag [#allocation5], %s1722
        %s1724 = sand.u32 %s622, 1
        %s1725 = scalar_lea.vmem [#allocation10], %s1724
        // Predicated region
        $region209: #{multi_agent_forward.1} parent=195 // pred_check
          %p1726 = pneg %p635
        $region210: #{multi_agent_forward.1} parent=195 // pred_check_branch
          %1728 = sbr.rel (%p1726) target = $region212
        $region211: #{multi_agent_forward.1} parent=195 // pred_region
          %1729 = dma.done %s1723, 16
        $region212: #{multi_agent_forward.1} parent=195 // pred_fallthru
          _
        %s1730 = sand.u32 %s118, 1
        %s1731 = scalar_lea.sflag [#allocation5], %s1730
        %s1732 = sand.u32 %s934, 1
        %s1733 = scalar_lea.vmem [#allocation11], %s1732
        // Predicated region
        $region213: #{multi_agent_forward.1} parent=195 // pred_check
          %p1734 = pneg %p947
        $region214: #{multi_agent_forward.1} parent=195 // pred_check_branch
          %1736 = sbr.rel (%p1734) target = $region216
        $region215: #{multi_agent_forward.1} parent=195 // pred_region
          %1737 = dma.done %s1731, 16
        $region216: #{multi_agent_forward.1} parent=195 // pred_fallthru
          _
        %s1738 = sand.u32 %s118, 1
        %s1739 = scalar_lea.sflag [#allocation5], %s1738
        %s1740 = sand.u32 %s986, 1
        %s1741 = scalar_lea.vmem [#allocation12], %s1740
        // Predicated region
        $region217: #{multi_agent_forward.1} parent=195 // pred_check
          %p1742 = pneg %p999
        $region218: #{multi_agent_forward.1} parent=195 // pred_check_branch
          %1744 = sbr.rel (%p1742) target = $region220
        $region219: #{multi_agent_forward.1} parent=195 // pred_region
          %1745 = dma.done %s1739, 16
        $region220: #{multi_agent_forward.1} parent=195 // pred_fallthru
          _
        %s1746 = sand.u32 %s118, 1
        %s1747 = scalar_lea.sflag [#allocation5], %s1746
        %s1748 = sand.u32 %s1064, 1
        %s1749 = scalar_lea.vmem [#allocation13], %s1748
        // Predicated region
        $region221: #{multi_agent_forward.1} parent=195 // pred_check
          %p1750 = pneg %p1077
        $region222: #{multi_agent_forward.1} parent=195 // pred_check_branch
          %1752 = sbr.rel (%p1750) target = $region224
        $region223: #{multi_agent_forward.1} parent=195 // pred_region
          %1753 = dma.done %s1747, 16
        $region224: #{multi_agent_forward.1} parent=195 // pred_fallthru
          _
        %s1754 = sand.u32 %s118, 1
        %s1755 = scalar_lea.sflag [#allocation5], %s1754
        %s1756 = sand.u32 %s1116, 1
        %s1757 = scalar_lea.vmem [#allocation14], %s1756
        // Predicated region
        $region225: #{multi_agent_forward.1} parent=195 // pred_check
          %p1758 = pneg %p1129
        $region226: #{multi_agent_forward.1} parent=195 // pred_check_branch
          %1760 = sbr.rel (%p1758) target = $region228
        $region227: #{multi_agent_forward.1} parent=195 // pred_region
          %1761 = dma.done %s1755, 16
        $region228: #{multi_agent_forward.1} parent=195 // pred_fallthru
          _
        %s1762 = sand.u32 %s118, 1
        %s1763 = scalar_lea.sflag [#allocation5], %s1762
        %s1764 = sand.u32 %s1168, 1
        %s1765 = scalar_lea.vmem [#allocation15], %s1764
        // Predicated region
        $region229: #{multi_agent_forward.1} parent=195 // pred_check
          %p1766 = pneg %p1181
        $region230: #{multi_agent_forward.1} parent=195 // pred_check_branch
          %1768 = sbr.rel (%p1766) target = $region232
        $region231: #{multi_agent_forward.1} parent=195 // pred_region
          %1769 = dma.done %s1763, 16
        $region232: #{multi_agent_forward.1} parent=195 // pred_fallthru
          _
        %s1770 = sand.u32 %s118, 1
        %s1771 = scalar_lea.sflag [#allocation5], %s1770
        %s1772 = sand.u32 %s1194, 1
        %s1773 = scalar_lea.vmem [#allocation16], %s1772
        // Predicated region
        $region233: #{multi_agent_forward.1} parent=195 // pred_check
          %p1774 = pneg %p1207
        $region234: #{multi_agent_forward.1} parent=195 // pred_check_branch
          %1776 = sbr.rel (%p1774) target = $region236
        $region235: #{multi_agent_forward.1} parent=195 // pred_region
          %1777 = dma.done %s1771, 16
        $region236: #{multi_agent_forward.1} parent=195 // pred_fallthru
          _
        %p1778 = pneg %p134
        %p1779 = pneg %p131
        %p1780 = pneg %p155
        %p1781 = pneg %p152
        %p1782 = pneg %p176
        %p1783 = pneg %p173
        %p1784 = pneg %p197
        %p1785 = pneg %p194
        %p1786 = pneg %p218
        %p1787 = pneg %p215
        %p1788 = pneg %p239
        %p1789 = pneg %p236
        %p1790 = pneg %p260
        %p1791 = pneg %p257
        %p1792 = pneg %p281
        %p1793 = pneg %p278
        %p1794 = pneg %p302
        %p1795 = pneg %p299
        %p1796 = pneg %p323
        %p1797 = pneg %p320
        %p1798 = scmp.lt.s32.totalorder %s118, 1
        %s1799 = scalar_select %p1798, %s118, 1
        %s1800 = smul.addr %s1799, 2
        %s1801 = smul.addr %s1800, 8
        %s1802 = scalar_lea.vmem %s21, %s1801
        %p1803 = pneg %p349
        %p1804 = pneg %p346
        %p1805 = scmp.lt.s32.totalorder %s118, 1
        %s1806 = scalar_select %p1805, %s118, 1
        %s1807 = smul.addr %s1806, 2
        %s1808 = smul.addr %s1807, 8
        %s1809 = scalar_lea.vmem %s23, %s1808
        %p1810 = pneg %p375
        %p1811 = pneg %p372
        %p1812 = scmp.lt.s32.totalorder %s118, 1
        %s1813 = scalar_select %p1812, %s118, 1
        %s1814 = smul.addr %s1813, 2
        %s1815 = scalar_lea.vmem %s25, %s1814
        %p1816 = pneg %p401
        %p1817 = pneg %p398
        %p1818 = scmp.lt.s32.totalorder %s118, 1
        %s1819 = scalar_select %p1818, %s118, 1
        %s1820 = smul.addr %s1819, 2
        %s1821 = scalar_lea.vmem %s27, %s1820
        %p1822 = pneg %p427
        %p1823 = pneg %p424
        %p1824 = scmp.lt.s32.totalorder %s118, 1
        %s1825 = scalar_select %p1824, %s118, 1
        %s1826 = smul.addr %s1825, 2
        %s1827 = scalar_lea.vmem %s29, %s1826
        %p1828 = pneg %p453
        %p1829 = pneg %p450
        %p1830 = scmp.lt.s32.totalorder %s118, 1
        %s1831 = scalar_select %p1830, %s118, 1
        %s1832 = smul.addr %s1831, 4
        %s1833 = scalar_lea.vmem %s31, %s1832
        %p1834 = pneg %p479
        %p1835 = pneg %p476
        %p1836 = scmp.lt.s32.totalorder %s118, 1
        %s1837 = scalar_select %p1836, %s118, 1
        %s1838 = smul.addr %s1837, 2
        %s1839 = smul.addr %s1838, 8
        %s1840 = scalar_lea.vmem %s33, %s1839
        %p1841 = pneg %p505
        %p1842 = pneg %p502
        %s1843 = sand.u32 %s118, 1
        %s1844 = scalar_lea.sflag [#allocation5], %s1843
        %s1845 = sand.u32 %s518, 1
        %s1846 = scalar_lea.vmem [#allocation9], %s1845
        %p1847 = pneg %p531
        %p1848 = pneg %p528
        %p1849 = scmp.lt.s32.totalorder %s118, 1
        %s1850 = scalar_select %p1849, %s118, 1
        %s1851 = smul.addr %s1850, 4
        %s1852 = smul.addr %s1851, 8
        %s1853 = scalar_lea.vmem %s37, %s1852
        %p1854 = pneg %p557
        %p1855 = pneg %p554
        %p1856 = scmp.lt.s32.totalorder %s118, 1
        %s1857 = scalar_select %p1856, %s118, 1
        %s1858 = scalar_lea.vmem %s39, %s1857
        %p1859 = pneg %p583
        %p1860 = pneg %p580
        %p1861 = scmp.lt.s32.totalorder %s118, 1
        %s1862 = scalar_select %p1861, %s118, 1
        %s1863 = scalar_lea.vmem %s41, %s1862
        %p1864 = pneg %p609
        %p1865 = pneg %p606
        %s1866 = sand.u32 %s118, 1
        %s1867 = scalar_lea.sflag [#allocation5], %s1866
        %s1868 = sand.u32 %s622, 1
        %s1869 = scalar_lea.vmem [#allocation10], %s1868
        %p1870 = pneg %p635
        %p1871 = pneg %p632
        %p1872 = scmp.lt.s32.totalorder %s118, 1
        %s1873 = scalar_select %p1872, %s118, 1
        %s1874 = smul.addr %s1873, 4
        %s1875 = smul.addr %s1874, 8
        %s1876 = scalar_lea.vmem %s45, %s1875
        %p1877 = pneg %p661
        %p1878 = pneg %p658
        %p1879 = scmp.lt.s32.totalorder %s118, 1
        %s1880 = scalar_select %p1879, %s118, 1
        %s1881 = scalar_lea.vmem %s47, %s1880
        %p1882 = pneg %p687
        %p1883 = pneg %p684
        %p1884 = scmp.lt.s32.totalorder %s118, 1
        %s1885 = scalar_select %p1884, %s118, 1
        %s1886 = smul.addr %s1885, 4
        %s1887 = smul.addr %s1886, 8
        %s1888 = scalar_lea.vmem %s49, %s1887
        %p1889 = pneg %p713
        %p1890 = pneg %p710
        %p1891 = scmp.lt.s32.totalorder %s118, 1
        %s1892 = scalar_select %p1891, %s118, 1
        %s1893 = scalar_lea.vmem %s51, %s1892
        %p1894 = pneg %p739
        %p1895 = pneg %p736
        %p1896 = scmp.lt.s32.totalorder %s118, 1
        %s1897 = scalar_select %p1896, %s118, 1
        %s1898 = smul.addr %s1897, 4
        %s1899 = smul.addr %s1898, 8
        %s1900 = scalar_lea.vmem %s53, %s1899
        %p1901 = pneg %p765
        %p1902 = pneg %p762
        %p1903 = scmp.lt.s32.totalorder %s118, 1
        %s1904 = scalar_select %p1903, %s118, 1
        %s1905 = scalar_lea.vmem %s55, %s1904
        %p1906 = pneg %p791
        %p1907 = pneg %p788
        %p1908 = scmp.lt.s32.totalorder %s118, 1
        %s1909 = scalar_select %p1908, %s118, 1
        %s1910 = smul.addr %s1909, 4
        %s1911 = smul.addr %s1910, 8
        %s1912 = scalar_lea.vmem %s57, %s1911
        %p1913 = pneg %p817
        %p1914 = pneg %p814
        %p1915 = scmp.lt.s32.totalorder %s118, 1
        %s1916 = scalar_select %p1915, %s118, 1
        %s1917 = scalar_lea.vmem %s59, %s1916
        %p1918 = pneg %p843
        %p1919 = pneg %p840
        %p1920 = scmp.lt.s32.totalorder %s118, 1
        %s1921 = scalar_select %p1920, %s118, 1
        %s1922 = scalar_lea.vmem %s61, %s1921
        %p1923 = pneg %p869
        %p1924 = pneg %p866
        %p1925 = scmp.lt.s32.totalorder %s118, 1
        %s1926 = scalar_select %p1925, %s118, 1
        %s1927 = scalar_lea.vmem %s63, %s1926
        %p1928 = pneg %p895
        %p1929 = pneg %p892
        %p1930 = scmp.lt.s32.totalorder %s118, 1
        %s1931 = scalar_select %p1930, %s118, 1
        %s1932 = smul.addr %s1931, 8
        %s1933 = scalar_lea.vmem %s65, %s1932
        %p1934 = pneg %p921
        %p1935 = pneg %p918
        %s1936 = sand.u32 %s118, 1
        %s1937 = scalar_lea.sflag [#allocation5], %s1936
        %s1938 = sand.u32 %s934, 1
        %s1939 = scalar_lea.vmem [#allocation11], %s1938
        %p1940 = pneg %p947
        %p1941 = pneg %p944
        %p1942 = scmp.lt.s32.totalorder %s118, 1
        %s1943 = scalar_select %p1942, %s118, 1
        %s1944 = smul.addr %s1943, 8
        %s1945 = smul.addr %s1944, 8
        %s1946 = scalar_lea.vmem %s69, %s1945
        %p1947 = pneg %p973
        %p1948 = pneg %p970
        %s1949 = sand.u32 %s118, 1
        %s1950 = scalar_lea.sflag [#allocation5], %s1949
        %s1951 = sand.u32 %s986, 1
        %s1952 = scalar_lea.vmem [#allocation12], %s1951
        %p1953 = pneg %p999
        %p1954 = pneg %p996
        %p1955 = scmp.lt.s32.totalorder %s118, 1
        %s1956 = scalar_select %p1955, %s118, 1
        %s1957 = smul.addr %s1956, 4
        %s1958 = smul.addr %s1957, 8
        %s1959 = scalar_lea.vmem %s73, %s1958
        %p1960 = pneg %p1025
        %p1961 = pneg %p1022
        %p1962 = scmp.lt.s32.totalorder %s118, 1
        %s1963 = scalar_select %p1962, %s118, 1
        %s1964 = smul.addr %s1963, 4
        %s1965 = smul.addr %s1964, 8
        %s1966 = scalar_lea.vmem %s75, %s1965
        %p1967 = pneg %p1051
        %p1968 = pneg %p1048
        %s1969 = sand.u32 %s118, 1
        %s1970 = scalar_lea.sflag [#allocation5], %s1969
        %s1971 = sand.u32 %s1064, 1
        %s1972 = scalar_lea.vmem [#allocation13], %s1971
        %p1973 = pneg %p1077
        %p1974 = pneg %p1074
        %p1975 = scmp.lt.s32.totalorder %s118, 1
        %s1976 = scalar_select %p1975, %s118, 1
        %s1977 = smul.addr %s1976, 4
        %s1978 = smul.addr %s1977, 8
        %s1979 = scalar_lea.vmem %s79, %s1978
        %p1980 = pneg %p1103
        %p1981 = pneg %p1100
        %s1982 = sand.u32 %s118, 1
        %s1983 = scalar_lea.sflag [#allocation5], %s1982
        %s1984 = sand.u32 %s1116, 1
        %s1985 = scalar_lea.vmem [#allocation14], %s1984
        %p1986 = pneg %p1129
        %p1987 = pneg %p1126
        %p1988 = scmp.lt.s32.totalorder %s118, 1
        %s1989 = scalar_select %p1988, %s118, 1
        %s1990 = smul.addr %s1989, 4
        %s1991 = smul.addr %s1990, 8
        %s1992 = scalar_lea.vmem %s83, %s1991
        %p1993 = pneg %p1155
        %p1994 = pneg %p1152
        %s1995 = sand.u32 %s118, 1
        %s1996 = scalar_lea.sflag [#allocation5], %s1995
        %s1997 = sand.u32 %s1168, 1
        %s1998 = scalar_lea.vmem [#allocation15], %s1997
        %p1999 = pneg %p1181
        %p2000 = pneg %p1178
        %s2001 = sand.u32 %s118, 1
        %s2002 = scalar_lea.sflag [#allocation5], %s2001
        %s2003 = sand.u32 %s1194, 1
        %s2004 = scalar_lea.vmem [#allocation16], %s2003
        %p2005 = pneg %p1207
        %p2006 = pneg %p1204
        %p2007 = pneg %p1233
        %p2008 = pneg %p1230
        %s2009 = sand.u32 %s1220, 1
        %s2010 = scalar_lea.sflag [#allocation6], %s2009
        %s2011 = sand.u32 %s1220, 1
        %s2012 = smul.addr %s2011, 16
        %s2013 = scalar_lea.vmem [#allocation17], %s2012
        %p2014 = pneg %p1259
        %p2015 = pneg %p1256
        %s2016 = sand.u32 %s118, 1
        %s2017 = scalar_lea.sflag [#allocation19], %s2016
        %s2018 = sand.u32 %s1246, 1
        %s2019 = smul.addr %s2018, 2
        %s2020 = scalar_lea.vmem [#allocation18], %s2019
        %p2021 = pneg %p1285
        %p2022 = pneg %p1282
        %s2023 = sand.u32 %s118, 1
        %s2024 = scalar_lea.sflag [#allocation19], %s2023
        %s2025 = sand.u32 %s1272, 1
        %s2026 = smul.addr %s2025, 2
        %s2027 = scalar_lea.vmem [#allocation20], %s2026
        %p2028 = pneg %p1311
        %p2029 = pneg %p1308
        %s2030 = sand.u32 %s1298, 1
        %s2031 = scalar_lea.sflag [#allocation22], %s2030
        %s2032 = sand.u32 %s1298, 1
        %s2033 = smul.addr %s2032, 2
        %s2034 = scalar_lea.vmem [#allocation21], %s2033
        %p2035 = scmp.lt.s32.totalorder %s118, 1
        %s2036 = scalar_select %p2035, %s118, 1
        %s2037 = smul.addr %s2036, 2
        %s2038 = smul.addr %s2037, 8
        %s2039 = scalar_lea.vmem %s21, %s2038
        %p2040 = scmp.lt.s32.totalorder %s118, 1
        %s2041 = scalar_select %p2040, %s118, 1
        %s2042 = smul.addr %s2041, 2
        %s2043 = smul.addr %s2042, 8
        %s2044 = scalar_lea.vmem %s23, %s2043
        %p2045 = scmp.lt.s32.totalorder %s118, 1
        %s2046 = scalar_select %p2045, %s118, 1
        %s2047 = smul.addr %s2046, 2
        %s2048 = scalar_lea.vmem %s25, %s2047
        %p2049 = scmp.lt.s32.totalorder %s118, 1
        %s2050 = scalar_select %p2049, %s118, 1
        %s2051 = smul.addr %s2050, 2
        %s2052 = scalar_lea.vmem %s27, %s2051
        %p2053 = scmp.lt.s32.totalorder %s118, 1
        %s2054 = scalar_select %p2053, %s118, 1
        %s2055 = smul.addr %s2054, 2
        %s2056 = scalar_lea.vmem %s29, %s2055
        %p2057 = scmp.lt.s32.totalorder %s118, 1
        %s2058 = scalar_select %p2057, %s118, 1
        %s2059 = smul.addr %s2058, 4
        %s2060 = scalar_lea.vmem %s31, %s2059
        %p2061 = scmp.lt.s32.totalorder %s118, 1
        %s2062 = scalar_select %p2061, %s118, 1
        %s2063 = smul.addr %s2062, 2
        %s2064 = smul.addr %s2063, 8
        %s2065 = scalar_lea.vmem %s33, %s2064
        %p2066 = scmp.lt.s32.totalorder %s118, 1
        %s2067 = scalar_select %p2066, %s118, 1
        %s2068 = smul.addr %s2067, 4
        %s2069 = smul.addr %s2068, 8
        %s2070 = scalar_lea.vmem %s37, %s2069
        %p2071 = scmp.lt.s32.totalorder %s118, 1
        %s2072 = scalar_select %p2071, %s118, 1
        %s2073 = scalar_lea.vmem %s39, %s2072
        %p2074 = scmp.lt.s32.totalorder %s118, 1
        %s2075 = scalar_select %p2074, %s118, 1
        %s2076 = scalar_lea.vmem %s41, %s2075
        %p2077 = scmp.lt.s32.totalorder %s118, 1
        %s2078 = scalar_select %p2077, %s118, 1
        %s2079 = smul.addr %s2078, 4
        %s2080 = smul.addr %s2079, 8
        %s2081 = scalar_lea.vmem %s45, %s2080
        %p2082 = scmp.lt.s32.totalorder %s118, 1
        %s2083 = scalar_select %p2082, %s118, 1
        %s2084 = scalar_lea.vmem %s47, %s2083
        %p2085 = scmp.lt.s32.totalorder %s118, 1
        %s2086 = scalar_select %p2085, %s118, 1
        %s2087 = smul.addr %s2086, 4
        %s2088 = smul.addr %s2087, 8
        %s2089 = scalar_lea.vmem %s49, %s2088
        %p2090 = scmp.lt.s32.totalorder %s118, 1
        %s2091 = scalar_select %p2090, %s118, 1
        %s2092 = scalar_lea.vmem %s51, %s2091
        %p2093 = scmp.lt.s32.totalorder %s118, 1
        %s2094 = scalar_select %p2093, %s118, 1
        %s2095 = smul.addr %s2094, 4
        %s2096 = smul.addr %s2095, 8
        %s2097 = scalar_lea.vmem %s53, %s2096
        %p2098 = scmp.lt.s32.totalorder %s118, 1
        %s2099 = scalar_select %p2098, %s118, 1
        %s2100 = scalar_lea.vmem %s55, %s2099
        %p2101 = scmp.lt.s32.totalorder %s118, 1
        %s2102 = scalar_select %p2101, %s118, 1
        %s2103 = smul.addr %s2102, 4
        %s2104 = smul.addr %s2103, 8
        %s2105 = scalar_lea.vmem %s57, %s2104
        %p2106 = scmp.lt.s32.totalorder %s118, 1
        %s2107 = scalar_select %p2106, %s118, 1
        %s2108 = scalar_lea.vmem %s59, %s2107
        %p2109 = scmp.lt.s32.totalorder %s118, 1
        %s2110 = scalar_select %p2109, %s118, 1
        %s2111 = scalar_lea.vmem %s61, %s2110
        %p2112 = scmp.lt.s32.totalorder %s118, 1
        %s2113 = scalar_select %p2112, %s118, 1
        %s2114 = scalar_lea.vmem %s63, %s2113
        %p2115 = scmp.lt.s32.totalorder %s118, 1
        %s2116 = scalar_select %p2115, %s118, 1
        %s2117 = smul.addr %s2116, 8
        %s2118 = scalar_lea.vmem %s65, %s2117
        %p2119 = scmp.lt.s32.totalorder %s118, 1
        %s2120 = scalar_select %p2119, %s118, 1
        %s2121 = smul.addr %s2120, 8
        %s2122 = smul.addr %s2121, 8
        %s2123 = scalar_lea.vmem %s69, %s2122
        %p2124 = scmp.lt.s32.totalorder %s118, 1
        %s2125 = scalar_select %p2124, %s118, 1
        %s2126 = smul.addr %s2125, 4
        %s2127 = smul.addr %s2126, 8
        %s2128 = scalar_lea.vmem %s73, %s2127
        %p2129 = scmp.lt.s32.totalorder %s118, 1
        %s2130 = scalar_select %p2129, %s118, 1
        %s2131 = smul.addr %s2130, 4
        %s2132 = smul.addr %s2131, 8
        %s2133 = scalar_lea.vmem %s75, %s2132
        %p2134 = scmp.lt.s32.totalorder %s118, 1
        %s2135 = scalar_select %p2134, %s118, 1
        %s2136 = smul.addr %s2135, 4
        %s2137 = smul.addr %s2136, 8
        %s2138 = scalar_lea.vmem %s79, %s2137
        %p2139 = scmp.lt.s32.totalorder %s118, 1
        %s2140 = scalar_select %p2139, %s118, 1
        %s2141 = smul.addr %s2140, 4
        %s2142 = smul.addr %s2141, 8
        %s2143 = scalar_lea.vmem %s83, %s2142
        %p2144 = scmp.eq.s32.totalorder %s118, 0
        // Predicated region
        $region237: #{multi_agent_forward.1} parent=195 // pred_check
          %p2145 = pneg %p2144
        $region238: #{multi_agent_forward.1} parent=195 // pred_check_branch
          %2147 = sbr.rel (%p2145) target = $region240
        $region239: #{multi_agent_forward.1} parent=195 // pred_region
          %v2148 = vld [vmem:[%s1] sm:$0xff]
          %v2149 = vld [vmem:[%s1 + $0x8] sm:$0xff]
          %v2150 = vld [vmem:[%s11] sm:$0xf]
          %v2151 = vld [vmem:[%s13] sm:$0x1]
          %v2153 = vlaneseq
          %v2154 = vshrl.u32 %v2153, 7
          %v2155 = vsub.s32 0, %v2154
          %v2156 = vrot.slane %v2151, %v2155
          %vm2158 = vcmask 31744
          %v2160 = vsel %vm2158, %v2148, 0
          %v2163 = vsel %vm2158, %v2149, 0
          %vm2165 = vcmask 1043456
          %v2167 = vsel %vm2165, %v2150, 0
          %2169 = vmatprep.subr.mxu0 0.0
          %2170 = vmatpush1.msra.mxu0 %v2167
          %2171 = vmatprep.subr.mxu0 0.0
          %2172 = vmatpush1.msra.mxu0 0.0
          %2173 = vmatprep.subr.mxu0 0.0
          %2174 = vmatpush1.msra.mxu0 0.0
          %2175 = vmatprep.subr.mxu0 0.0
          %2176 = vmatpush1.msra.mxu0 0.0
          %2177 = vmatprep.subr.mxu0 0.0
          %2178 = vmatpush1.msra.mxu0 0.0
          %2179 = vmatprep.subr.mxu0 0.0
          %2180 = vmatpush1.msra.mxu0 0.0
          %2181 = vmatprep.subr.mxu0 0.0
          %2182 = vmatpush1.msra.mxu0 0.0
          %2183 = vmatprep.subr.mxu0 0.0
          %2184 = vmatpush1.msra.mxu0 0.0
          %2185 = vmatprep.subr.mxu0 0.0
          %2186 = vmatpush1.msra.mxu0 0.0
          %2187 = vmatprep.subr.mxu0 0.0
          %2188 = vmatpush1.msra.mxu0 0.0
          %2189 = vmatprep.subr.mxu0 0.0
          %2190 = vmatpush1.msra.mxu0 0.0
          %2191 = vmatprep.subr.mxu0 0.0
          %2192 = vmatpush1.msra.mxu0 0.0
          %2193 = vmatprep.subr.mxu0 0.0
          %2194 = vmatpush1.msra.mxu0 0.0
          %2195 = vmatprep.subr.mxu0 0.0
          %2196 = vmatpush1.msra.mxu0 0.0
          %2197 = vmatprep.subr.mxu0 0.0
          %2198 = vmatpush1.msra.mxu0 0.0
          %2199 = vmatprep.subr.mxu0 0.0
          %2200 = vmatpush1.msra.mxu0 0.0
          %2201 = vmatprep.subr.mxu0 0.0
          %2202 = vmatpush1.msra.mxu0 0.0
          %2203 = vmatprep.subr.mxu0 0.0
          %2204 = vmatpush1.msra.mxu0 0.0
          %2205 = vmatprep.subr.mxu0 0.0
          %2206 = vmatpush1.msra.mxu0 0.0
          %2207 = vmatprep.subr.mxu0 0.0
          %2208 = vmatpush1.msra.mxu0 0.0
          %2209 = vmatprep.subr.mxu0 0.0
          %2210 = vmatpush1.msra.mxu0 0.0
          %2211 = vmatprep.subr.mxu0 0.0
          %2212 = vmatpush1.msra.mxu0 0.0
          %2213 = vmatprep.subr.mxu0 0.0
          %2214 = vmatpush1.msra.mxu0 0.0
          %2215 = vmatprep.subr.mxu0 0.0
          %2216 = vmatpush1.msra.mxu0 0.0
          %2217 = vmatprep.subr.mxu0 0.0
          %2218 = vmatpush1.msra.mxu0 0.0
          %2219 = vmatprep.subr.mxu0 0.0
          %2220 = vmatpush1.msra.mxu0 0.0
          %2221 = vmatprep.subr.mxu0 0.0
          %2222 = vmatpush1.msra.mxu0 0.0
          %2223 = vmatprep.subr.mxu0 0.0
          %2224 = vmatpush1.msra.mxu0 0.0
          %2225 = vmatprep.subr.mxu0 0.0
          %2226 = vmatpush1.msra.mxu0 0.0
          %2227 = vmatprep.subr.mxu0 0.0
          %2228 = vmatpush1.msra.mxu0 0.0
          %2229 = vmatprep.subr.mxu0 0.0
          %2230 = vmatpush1.msra.mxu0 0.0
          %2231 = vmatprep.subr.mxu0 0.0
          %2232 = vmatpush1.msra.mxu0 0.0
          %2233 = vmatprep.mubr.f32.mxu0 0.0
          %2234 = vmatmul.mubr.f32.gmra.mrb[0].mxu0 %v2160
          %v2235 = vpop.f32.mrb[0].mxu0
          %v2236 = vadd.f32 %v2156, %v2235
          %v2237 = vpop.f32.mrb[0].mxu0
          %2238 = vmatprep.mubr.f32.mxu0 0.0
          %2239 = vmatmul.mubr.f32.gmra.mrb[0].mxu0 %v2163
          %v2240 = vpop.f32.mrb[0].mxu0
          %v2241 = vadd.f32 %v2156, %v2240
          %v2242 = vpop.f32.mrb[0].mxu0
          %2243 = vdwg.mxu0
          %v2244 = vmax.f32 %v2236, 0.0
          %v2245 = vmax.f32 %v2241, 0.0
          %vm2246 = vcmask 130048
          %2247 = vst.msk [vmem:[#allocation2] sm:$0xff] %vm2246, %v2244
          %2248 = vst.msk [vmem:[#allocation2 + $0x8] sm:$0xff] %vm2246, %v2245
          %v2249 = vld [vmem:[%s3] sm:$0xff]
          %v2250 = vld [vmem:[%s3 + $0x8] sm:$0xff]
          %v2251 = vld [vmem:[%s5] sm:$0xff]
          %v2252 = vld [vmem:[%s5 + $0x8] sm:$0xff]
          %v2253 = vld [vmem:[%s15] sm:$0x7]
          %v2254 = vld [vmem:[%s17] sm:$0xff]
          %v2255 = vld [vmem:[%s17 + $0x8] sm:$0xff]
          %v2256 = vld [vmem:[%s19] sm:$0x1]
          %v2258 = vsel %vm2246, 0.0, 0
          %2260 = vmatprep.subr.mxu0 0.0
          %2261 = vmatpush1.msra.mxu0 %v2254
          %2262 = vmatprep.subr.mxu0 0.0
          %2263 = vmatpush1.msra.mxu0 %v2255
          %2264 = vmatprep.subr.mxu0 0.0
          %2265 = vmatpush1.msra.mxu0 0.0
          %2266 = vmatprep.subr.mxu0 0.0
          %2267 = vmatpush1.msra.mxu0 0.0
          %2268 = vmatprep.subr.mxu0 0.0
          %2269 = vmatpush1.msra.mxu0 0.0
          %2270 = vmatprep.subr.mxu0 0.0
          %2271 = vmatpush1.msra.mxu0 0.0
          %2272 = vmatprep.subr.mxu0 0.0
          %2273 = vmatpush1.msra.mxu0 0.0
          %2274 = vmatprep.subr.mxu0 0.0
          %2275 = vmatpush1.msra.mxu0 0.0
          %2276 = vmatprep.subr.mxu0 0.0
          %2277 = vmatpush1.msra.mxu0 0.0
          %2278 = vmatprep.subr.mxu0 0.0
          %2279 = vmatpush1.msra.mxu0 0.0
          %2280 = vmatprep.subr.mxu0 0.0
          %2281 = vmatpush1.msra.mxu0 0.0
          %2282 = vmatprep.subr.mxu0 0.0
          %2283 = vmatpush1.msra.mxu0 0.0
          %2284 = vmatprep.subr.mxu0 0.0
          %2285 = vmatpush1.msra.mxu0 0.0
          %2286 = vmatprep.subr.mxu0 0.0
          %2287 = vmatpush1.msra.mxu0 0.0
          %2288 = vmatprep.subr.mxu0 0.0
          %2289 = vmatpush1.msra.mxu0 0.0
          %2290 = vmatprep.subr.mxu0 0.0
          %2291 = vmatpush1.msra.mxu0 0.0
          %2292 = vmatprep.subr.mxu0 0.0
          %2293 = vmatpush1.msra.mxu0 0.0
          %2294 = vmatprep.subr.mxu0 0.0
          %2295 = vmatpush1.msra.mxu0 0.0
          %2296 = vmatprep.subr.mxu0 0.0
          %2297 = vmatpush1.msra.mxu0 0.0
          %2298 = vmatprep.subr.mxu0 0.0
          %2299 = vmatpush1.msra.mxu0 0.0
          %2300 = vmatprep.subr.mxu0 0.0
          %2301 = vmatpush1.msra.mxu0 0.0
          %2302 = vmatprep.subr.mxu0 0.0
          %2303 = vmatpush1.msra.mxu0 0.0
          %2304 = vmatprep.subr.mxu0 0.0
          %2305 = vmatpush1.msra.mxu0 0.0
          %2306 = vmatprep.subr.mxu0 0.0
          %2307 = vmatpush1.msra.mxu0 0.0
          %2308 = vmatprep.subr.mxu0 0.0
          %2309 = vmatpush1.msra.mxu0 0.0
          %2310 = vmatprep.subr.mxu0 0.0
          %2311 = vmatpush1.msra.mxu0 0.0
          %2312 = vmatprep.subr.mxu0 0.0
          %2313 = vmatpush1.msra.mxu0 0.0
          %2314 = vmatprep.subr.mxu0 0.0
          %2315 = vmatpush1.msra.mxu0 0.0
          %2316 = vmatprep.subr.mxu0 0.0
          %2317 = vmatpush1.msra.mxu0 0.0
          %2318 = vmatprep.subr.mxu0 0.0
          %2319 = vmatpush1.msra.mxu0 0.0
          %2320 = vmatprep.subr.mxu0 0.0
          %2321 = vmatpush1.msra.mxu0 0.0
          %2322 = vmatprep.subr.mxu0 0.0
          %2323 = vmatpush1.msra.mxu0 0.0
          %2324 = vmatprep.mubr.f32.mxu0 0.0
          %2325 = vmatmul.mubr.f32.gmra.mrb[0].mxu0 %v2258
          %v2326 = vpop.f32.mrb[0].mxu0
          %v2327 = vadd.f32 0.0, %v2326
          %v2328 = vpop.f32.mrb[0].mxu0
          %2329 = vmatprep.mubr.f32.mxu0 0.0
          %2330 = vmatmul.mubr.f32.gmra.mrb[0].mxu0 %v2258
          %v2331 = vpop.f32.mrb[0].mxu0
          %v2332 = vadd.f32 0.0, %v2331
          %v2333 = vpop.f32.mrb[0].mxu0
          %2334 = vdwg.mxu0
          %vm2335 = vcmask 23552
          %v2337 = vsel %vm2335, %v2249, 0
          %v2340 = vsel %vm2335, %v2250, 0
          %vm2342 = vcmask 1042432
          %v2344 = vsel %vm2342, %v2253, 0
          %2346 = vmatprep.subr.mxu0 0.0
          %2347 = vmatpush1.msra.mxu0 %v2344
          %2348 = vmatprep.subr.mxu0 0.0
          %2349 = vmatpush1.msra.mxu0 0.0
          %2350 = vmatprep.subr.mxu0 0.0
          %2351 = vmatpush1.msra.mxu0 0.0
          %2352 = vmatprep.subr.mxu0 0.0
          %2353 = vmatpush1.msra.mxu0 0.0
          %2354 = vmatprep.subr.mxu0 0.0
          %2355 = vmatpush1.msra.mxu0 0.0
          %2356 = vmatprep.subr.mxu0 0.0
          %2357 = vmatpush1.msra.mxu0 0.0
          %2358 = vmatprep.subr.mxu0 0.0
          %2359 = vmatpush1.msra.mxu0 0.0
          %2360 = vmatprep.subr.mxu0 0.0
          %2361 = vmatpush1.msra.mxu0 0.0
          %2362 = vmatprep.subr.mxu0 0.0
          %2363 = vmatpush1.msra.mxu0 0.0
          %2364 = vmatprep.subr.mxu0 0.0
          %2365 = vmatpush1.msra.mxu0 0.0
          %2366 = vmatprep.subr.mxu0 0.0
          %2367 = vmatpush1.msra.mxu0 0.0
          %2368 = vmatprep.subr.mxu0 0.0
          %2369 = vmatpush1.msra.mxu0 0.0
          %2370 = vmatprep.subr.mxu0 0.0
          %2371 = vmatpush1.msra.mxu0 0.0
          %2372 = vmatprep.subr.mxu0 0.0
          %2373 = vmatpush1.msra.mxu0 0.0
          %2374 = vmatprep.subr.mxu0 0.0
          %2375 = vmatpush1.msra.mxu0 0.0
          %2376 = vmatprep.subr.mxu0 0.0
          %2377 = vmatpush1.msra.mxu0 0.0
          %2378 = vmatprep.subr.mxu0 0.0
          %2379 = vmatpush1.msra.mxu0 0.0
          %2380 = vmatprep.subr.mxu0 0.0
          %2381 = vmatpush1.msra.mxu0 0.0
          %2382 = vmatprep.subr.mxu0 0.0
          %2383 = vmatpush1.msra.mxu0 0.0
          %2384 = vmatprep.subr.mxu0 0.0
          %2385 = vmatpush1.msra.mxu0 0.0
          %2386 = vmatprep.subr.mxu0 0.0
          %2387 = vmatpush1.msra.mxu0 0.0
          %2388 = vmatprep.subr.mxu0 0.0
          %2389 = vmatpush1.msra.mxu0 0.0
          %2390 = vmatprep.subr.mxu0 0.0
          %2391 = vmatpush1.msra.mxu0 0.0
          %2392 = vmatprep.subr.mxu0 0.0
          %2393 = vmatpush1.msra.mxu0 0.0
          %2394 = vmatprep.subr.mxu0 0.0
          %2395 = vmatpush1.msra.mxu0 0.0
          %2396 = vmatprep.subr.mxu0 0.0
          %2397 = vmatpush1.msra.mxu0 0.0
          %2398 = vmatprep.subr.mxu0 0.0
          %2399 = vmatpush1.msra.mxu0 0.0
          %2400 = vmatprep.subr.mxu0 0.0
          %2401 = vmatpush1.msra.mxu0 0.0
          %2402 = vmatprep.subr.mxu0 0.0
          %2403 = vmatpush1.msra.mxu0 0.0
          %2404 = vmatprep.subr.mxu0 0.0
          %2405 = vmatpush1.msra.mxu0 0.0
          %2406 = vmatprep.subr.mxu0 0.0
          %2407 = vmatpush1.msra.mxu0 0.0
          %2408 = vmatprep.subr.mxu0 0.0
          %2409 = vmatpush1.msra.mxu0 0.0
          %2410 = vmatprep.mubr.f32.mxu0 0.0
          %2411 = vmatmul.mubr.f32.gmra.mrb[0].mxu0 %v2337
          %v2412 = vpop.f32.mrb[0].mxu0
          %v2413 = vadd.f32 %v2327, %v2412
          %v2414 = vpop.f32.mrb[0].mxu0
          %2415 = vmatprep.mubr.f32.mxu0 0.0
          %2416 = vmatmul.mubr.f32.gmra.mrb[0].mxu0 %v2340
          %v2417 = vpop.f32.mrb[0].mxu0
          %v2418 = vadd.f32 %v2332, %v2417
          %v2419 = vpop.f32.mrb[0].mxu0
          %2420 = vdwg.mxu0
          %v2422 = vlaneseq
          %v2423 = vshrl.u32 %v2422, 7
          %v2424 = vsub.s32 0, %v2423
          %v2425 = vrot.slane %v2256, %v2424
          %v2427 = vadd.f32 %v2413, %v2425
          %v2428 = vadd.f32 %v2418, %v2425
          %v2429 = vxor.u32 %v2427, 2147483648
          %v2430 = vxor.u32 %v2428, 2147483648
          %v2431 = vmul.f32 %v2429, 1.442695
          %v2432 = vpow.pop %v2431
          %v2433 = vmul.f32 %v2430, 1.442695
          %v2434 = vpow.pop %v2433
          %v2435 = vadd.f32 %v2432, 1.0
          %v2436 = vadd.f32 %v2434, 1.0
          %v2437 = vrcp.pop %v2435
          %v2438 = vmul.f32 1.0, %v2437
          %v2439 = vrcp.pop %v2436
          %v2440 = vmul.f32 1.0, %v2439
          %v2441 = vtanh.pop %v2427
          %v2442 = vtanh.pop %v2428
          %v2443 = vmul.f32 %v2438, 0.0
          %v2444 = vmul.f32 %v2440, 0.0
          %2447 = vrot.lane.b32.xlu0 %v2441, 80
          %v2448 = vpop.permute.xlu0 %2447
          %2449 = vrot.lane.b32.xlu0 %v2442, 80
          %v2450 = vpop.permute.xlu0 %2449
          %v2453 = vmul.f32 %v2438, %v2448
          %v2454 = vmul.f32 %v2440, %v2450
          %2457 = vrot.lane.b32.xlu0 %v2453, 16
          %v2458 = vpop.permute.xlu0 %2457
          %2459 = vrot.lane.b32.xlu0 %v2454, 16
          %v2460 = vpop.permute.xlu0 %2459
          %v2463 = vadd.f32 %v2443, %v2458
          %v2464 = vadd.f32 %v2444, %v2460
          %v2465 = vtanh.pop %v2463
          %v2466 = vtanh.pop %v2464
          %2469 = vrot.lane.b32.xlu0 %v2465, 16
          %v2470 = vpop.permute.xlu0 %2469
          %2471 = vrot.lane.b32.xlu0 %v2466, 16
          %v2472 = vpop.permute.xlu0 %2471
          %v2475 = vmul.f32 %v2438, %v2470
          %v2476 = vmul.f32 %v2440, %v2472
          %vm2477 = vcmp.gt.s32.totalorder %v2251, 0
          %vm2478 = vcmp.gt.s32.totalorder %v2252, 0
          %v2479 = vsel %vm2477, 1, 0
          %v2480 = vsel %vm2478, 1, 0
          %2481 = vset.pattern.permute.xlu0 0
          %2482 = vperm.xlu0 %2481, %v2479
          %v2483 = vpop.permute.xlu0 %2482
          %2484 = vset.pattern.permute.xlu0 0
          %2485 = vperm.xlu0 %2484, %v2480
          %v2486 = vpop.permute.xlu0 %2485
          %vm2487 = vcmp.eq.s32.totalorder %v2483, 1
          %vm2488 = vcmp.eq.s32.totalorder %v2486, 1
          %v2489 = vsel %vm2487, %v2475, 0.0
          %v2490 = vsel %vm2488, %v2476, 0.0
          %v2491 = vsel %vm2487, %v2463, 0.0
          %v2492 = vsel %vm2488, %v2464, 0.0
          %2495 = vrot.lane.b32.xlu0 %v2489, 96
          %v2496 = vpop.permute.xlu0 %2495
          %2497 = vrot.lane.b32.xlu0 %v2490, 96
          %v2498 = vpop.permute.xlu0 %2497
          %v2499 = vsel %vm2246, %v2496, 0
          %v2501 = vsel %vm2246, %v2498, 0
          %2503 = vmatprep.subr.mxu0 0.0
          %2504 = vmatpush1.msra.mxu0 %v2254
          %2505 = vmatprep.subr.mxu0 0.0
          %2506 = vmatpush1.msra.mxu0 %v2255
          %2507 = vmatprep.subr.mxu0 0.0
          %2508 = vmatpush1.msra.mxu0 0.0
          %2509 = vmatprep.subr.mxu0 0.0
          %2510 = vmatpush1.msra.mxu0 0.0
          %2511 = vmatprep.subr.mxu0 0.0
          %2512 = vmatpush1.msra.mxu0 0.0
          %2513 = vmatprep.subr.mxu0 0.0
          %2514 = vmatpush1.msra.mxu0 0.0
          %2515 = vmatprep.subr.mxu0 0.0
          %2516 = vmatpush1.msra.mxu0 0.0
          %2517 = vmatprep.subr.mxu0 0.0
          %2518 = vmatpush1.msra.mxu0 0.0
          %2519 = vmatprep.subr.mxu0 0.0
          %2520 = vmatpush1.msra.mxu0 0.0
          %2521 = vmatprep.subr.mxu0 0.0
          %2522 = vmatpush1.msra.mxu0 0.0
          %2523 = vmatprep.subr.mxu0 0.0
          %2524 = vmatpush1.msra.mxu0 0.0
          %2525 = vmatprep.subr.mxu0 0.0
          %2526 = vmatpush1.msra.mxu0 0.0
          %2527 = vmatprep.subr.mxu0 0.0
          %2528 = vmatpush1.msra.mxu0 0.0
          %2529 = vmatprep.subr.mxu0 0.0
          %2530 = vmatpush1.msra.mxu0 0.0
          %2531 = vmatprep.subr.mxu0 0.0
          %2532 = vmatpush1.msra.mxu0 0.0
          %2533 = vmatprep.subr.mxu0 0.0
          %2534 = vmatpush1.msra.mxu0 0.0
          %2535 = vmatprep.subr.mxu0 0.0
          %2536 = vmatpush1.msra.mxu0 0.0
          %2537 = vmatprep.subr.mxu0 0.0
          %2538 = vmatpush1.msra.mxu0 0.0
          %2539 = vmatprep.subr.mxu0 0.0
          %2540 = vmatpush1.msra.mxu0 0.0
          %2541 = vmatprep.subr.mxu0 0.0
          %2542 = vmatpush1.msra.mxu0 0.0
          %2543 = vmatprep.subr.mxu0 0.0
          %2544 = vmatpush1.msra.mxu0 0.0
          %2545 = vmatprep.subr.mxu0 0.0
          %2546 = vmatpush1.msra.mxu0 0.0
          %2547 = vmatprep.subr.mxu0 0.0
          %2548 = vmatpush1.msra.mxu0 0.0
          %2549 = vmatprep.subr.mxu0 0.0
          %2550 = vmatpush1.msra.mxu0 0.0
          %2551 = vmatprep.subr.mxu0 0.0
          %2552 = vmatpush1.msra.mxu0 0.0
          %2553 = vmatprep.subr.mxu0 0.0
          %2554 = vmatpush1.msra.mxu0 0.0
          %2555 = vmatprep.subr.mxu0 0.0
          %2556 = vmatpush1.msra.mxu0 0.0
          %2557 = vmatprep.subr.mxu0 0.0
          %2558 = vmatpush1.msra.mxu0 0.0
          %2559 = vmatprep.subr.mxu0 0.0
          %2560 = vmatpush1.msra.mxu0 0.0
          %2561 = vmatprep.subr.mxu0 0.0
          %2562 = vmatpush1.msra.mxu0 0.0
          %2563 = vmatprep.subr.mxu0 0.0
          %2564 = vmatpush1.msra.mxu0 0.0
          %2565 = vmatprep.subr.mxu0 0.0
          %2566 = vmatpush1.msra.mxu0 0.0
          %2567 = vmatprep.mubr.f32.mxu0 0.0
          %2568 = vmatmul.mubr.f32.gmra.mrb[0].mxu0 %v2499
          %v2569 = vpop.f32.mrb[0].mxu0
          %v2570 = vadd.f32 0.0, %v2569
          %v2571 = vpop.f32.mrb[0].mxu0
          %2572 = vmatprep.mubr.f32.mxu0 0.0
          %2573 = vmatmul.mubr.f32.gmra.mrb[0].mxu0 %v2501
          %v2574 = vpop.f32.mrb[0].mxu0
          %v2575 = vadd.f32 0.0, %v2574
          %v2576 = vpop.f32.mrb[0].mxu0
          %2577 = vdwg.mxu0
          %2578 = vrot.lane.b32.xlu0 %v2249, 125
          %v2579 = vpop.permute.xlu0 %2578
          %2580 = vrot.lane.b32.xlu0 %v2250, 125
          %v2581 = vpop.permute.xlu0 %2580
          %v2582 = vsel %vm2335, %v2579, 0
          %v2584 = vsel %vm2335, %v2581, 0
          %2586 = vmatprep.subr.mxu0 0.0
          %2587 = vmatpush1.msra.mxu0 %v2344
          %2588 = vmatprep.subr.mxu0 0.0
          %2589 = vmatpush1.msra.mxu0 0.0
          %2590 = vmatprep.subr.mxu0 0.0
          %2591 = vmatpush1.msra.mxu0 0.0
          %2592 = vmatprep.subr.mxu0 0.0
          %2593 = vmatpush1.msra.mxu0 0.0
          %2594 = vmatprep.subr.mxu0 0.0
          %2595 = vmatpush1.msra.mxu0 0.0
          %2596 = vmatprep.subr.mxu0 0.0
          %2597 = vmatpush1.msra.mxu0 0.0
          %2598 = vmatprep.subr.mxu0 0.0
          %2599 = vmatpush1.msra.mxu0 0.0
          %2600 = vmatprep.subr.mxu0 0.0
          %2601 = vmatpush1.msra.mxu0 0.0
          %2602 = vmatprep.subr.mxu0 0.0
          %2603 = vmatpush1.msra.mxu0 0.0
          %2604 = vmatprep.subr.mxu0 0.0
          %2605 = vmatpush1.msra.mxu0 0.0
          %2606 = vmatprep.subr.mxu0 0.0
          %2607 = vmatpush1.msra.mxu0 0.0
          %2608 = vmatprep.subr.mxu0 0.0
          %2609 = vmatpush1.msra.mxu0 0.0
          %2610 = vmatprep.subr.mxu0 0.0
          %2611 = vmatpush1.msra.mxu0 0.0
          %2612 = vmatprep.subr.mxu0 0.0
          %2613 = vmatpush1.msra.mxu0 0.0
          %2614 = vmatprep.subr.mxu0 0.0
          %2615 = vmatpush1.msra.mxu0 0.0
          %2616 = vmatprep.subr.mxu0 0.0
          %2617 = vmatpush1.msra.mxu0 0.0
          %2618 = vmatprep.subr.mxu0 0.0
          %2619 = vmatpush1.msra.mxu0 0.0
          %2620 = vmatprep.subr.mxu0 0.0
          %2621 = vmatpush1.msra.mxu0 0.0
          %2622 = vmatprep.subr.mxu0 0.0
          %2623 = vmatpush1.msra.mxu0 0.0
          %2624 = vmatprep.subr.mxu0 0.0
          %2625 = vmatpush1.msra.mxu0 0.0
          %2626 = vmatprep.subr.mxu0 0.0
          %2627 = vmatpush1.msra.mxu0 0.0
          %2628 = vmatprep.subr.mxu0 0.0
          %2629 = vmatpush1.msra.mxu0 0.0
          %2630 = vmatprep.subr.mxu0 0.0
          %2631 = vmatpush1.msra.mxu0 0.0
          %2632 = vmatprep.subr.mxu0 0.0
          %2633 = vmatpush1.msra.mxu0 0.0
          %2634 = vmatprep.subr.mxu0 0.0
          %2635 = vmatpush1.msra.mxu0 0.0
          %2636 = vmatprep.subr.mxu0 0.0
          %2637 = vmatpush1.msra.mxu0 0.0
          %2638 = vmatprep.subr.mxu0 0.0
          %2639 = vmatpush1.msra.mxu0 0.0
          %2640 = vmatprep.subr.mxu0 0.0
          %2641 = vmatpush1.msra.mxu0 0.0
          %2642 = vmatprep.subr.mxu0 0.0
          %2643 = vmatpush1.msra.mxu0 0.0
          %2644 = vmatprep.subr.mxu0 0.0
          %2645 = vmatpush1.msra.mxu0 0.0
          %2646 = vmatprep.subr.mxu0 0.0
          %2647 = vmatpush1.msra.mxu0 0.0
          %2648 = vmatprep.subr.mxu0 0.0
          %2649 = vmatpush1.msra.mxu0 0.0
          %2650 = vmatprep.mubr.f32.mxu0 0.0
          %2651 = vmatmul.mubr.f32.gmra.mrb[0].mxu0 %v2582
          %v2652 = vpop.f32.mrb[0].mxu0
          %v2653 = vadd.f32 %v2570, %v2652
          %v2654 = vpop.f32.mrb[0].mxu0
          %2655 = vmatprep.mubr.f32.mxu0 0.0
          %2656 = vmatmul.mubr.f32.gmra.mrb[0].mxu0 %v2584
          %v2657 = vpop.f32.mrb[0].mxu0
          %v2658 = vadd.f32 %v2575, %v2657
          %v2659 = vpop.f32.mrb[0].mxu0
          %2660 = vdwg.mxu0
          %v2661 = vadd.f32 %v2653, %v2425
          %v2662 = vadd.f32 %v2658, %v2425
          %v2663 = vxor.u32 %v2661, 2147483648
          %v2664 = vxor.u32 %v2662, 2147483648
          %v2665 = vmul.f32 %v2663, 1.442695
          %v2666 = vpow.pop %v2665
          %v2667 = vmul.f32 %v2664, 1.442695
          %v2668 = vpow.pop %v2667
          %v2669 = vadd.f32 %v2666, 1.0
          %v2670 = vadd.f32 %v2668, 1.0
          %v2671 = vrcp.pop %v2669
          %v2672 = vmul.f32 1.0, %v2671
          %v2673 = vrcp.pop %v2670
          %v2674 = vmul.f32 1.0, %v2673
          %v2675 = vtanh.pop %v2661
          %v2676 = vtanh.pop %v2662
          %v2677 = vmul.f32 %v2672, %v2491
          %v2678 = vmul.f32 %v2674, %v2492
          %2681 = vrot.lane.b32.xlu0 %v2675, 80
          %v2682 = vpop.permute.xlu0 %2681
          %2683 = vrot.lane.b32.xlu0 %v2676, 80
          %v2684 = vpop.permute.xlu0 %2683
          %v2687 = vmul.f32 %v2672, %v2682
          %v2688 = vmul.f32 %v2674, %v2684
          %2691 = vrot.lane.b32.xlu0 %v2687, 16
          %v2692 = vpop.permute.xlu0 %2691
          %2693 = vrot.lane.b32.xlu0 %v2688, 16
          %v2694 = vpop.permute.xlu0 %2693
          %v2697 = vadd.f32 %v2677, %v2692
          %v2698 = vadd.f32 %v2678, %v2694
          %v2699 = vtanh.pop %v2697
          %v2700 = vtanh.pop %v2698
          %2703 = vrot.lane.b32.xlu0 %v2699, 16
          %v2704 = vpop.permute.xlu0 %2703
          %2705 = vrot.lane.b32.xlu0 %v2700, 16
          %v2706 = vpop.permute.xlu0 %2705
          %v2709 = vmul.f32 %v2672, %v2704
          %v2710 = vmul.f32 %v2674, %v2706
          %vm2711 = vcmp.gt.s32.totalorder %v2251, 1
          %vm2712 = vcmp.gt.s32.totalorder %v2252, 1
          %v2713 = vsel %vm2711, 1, 0
          %v2714 = vsel %vm2712, 1, 0
          %2715 = vset.pattern.permute.xlu0 0
          %2716 = vperm.xlu0 %2715, %v2713
          %v2717 = vpop.permute.xlu0 %2716
          %2718 = vset.pattern.permute.xlu0 0
          %2719 = vperm.xlu0 %2718, %v2714
          %v2720 = vpop.permute.xlu0 %2719
          %vm2721 = vcmp.eq.s32.totalorder %v2717, 1
          %vm2722 = vcmp.eq.s32.totalorder %v2720, 1
          %v2723 = vsel %vm2721, %v2709, %v2489
          %v2724 = vsel %vm2722, %v2710, %v2490
          %v2725 = vsel %vm2721, %v2697, %v2491
          %v2726 = vsel %vm2722, %v2698, %v2492
          %2729 = vrot.lane.b32.xlu0 %v2723, 96
          %v2730 = vpop.permute.xlu0 %2729
          %2731 = vrot.lane.b32.xlu0 %v2724, 96
          %v2732 = vpop.permute.xlu0 %2731
          %v2733 = vsel %vm2246, %v2730, 0
          %v2735 = vsel %vm2246, %v2732, 0
          %2737 = vmatprep.subr.mxu0 0.0
          %2738 = vmatpush1.msra.mxu0 %v2254
          %2739 = vmatprep.subr.mxu0 0.0
          %2740 = vmatpush1.msra.mxu0 %v2255
          %2741 = vmatprep.subr.mxu0 0.0
          %2742 = vmatpush1.msra.mxu0 0.0
          %2743 = vmatprep.subr.mxu0 0.0
          %2744 = vmatpush1.msra.mxu0 0.0
          %2745 = vmatprep.subr.mxu0 0.0
          %2746 = vmatpush1.msra.mxu0 0.0
          %2747 = vmatprep.subr.mxu0 0.0
          %2748 = vmatpush1.msra.mxu0 0.0
          %2749 = vmatprep.subr.mxu0 0.0
          %2750 = vmatpush1.msra.mxu0 0.0
          %2751 = vmatprep.subr.mxu0 0.0
          %2752 = vmatpush1.msra.mxu0 0.0
          %2753 = vmatprep.subr.mxu0 0.0
          %2754 = vmatpush1.msra.mxu0 0.0
          %2755 = vmatprep.subr.mxu0 0.0
          %2756 = vmatpush1.msra.mxu0 0.0
          %2757 = vmatprep.subr.mxu0 0.0
          %2758 = vmatpush1.msra.mxu0 0.0
          %2759 = vmatprep.subr.mxu0 0.0
          %2760 = vmatpush1.msra.mxu0 0.0
          %2761 = vmatprep.subr.mxu0 0.0
          %2762 = vmatpush1.msra.mxu0 0.0
          %2763 = vmatprep.subr.mxu0 0.0
          %2764 = vmatpush1.msra.mxu0 0.0
          %2765 = vmatprep.subr.mxu0 0.0
          %2766 = vmatpush1.msra.mxu0 0.0
          %2767 = vmatprep.subr.mxu0 0.0
          %2768 = vmatpush1.msra.mxu0 0.0
          %2769 = vmatprep.subr.mxu0 0.0
          %2770 = vmatpush1.msra.mxu0 0.0
          %2771 = vmatprep.subr.mxu0 0.0
          %2772 = vmatpush1.msra.mxu0 0.0
          %2773 = vmatprep.subr.mxu0 0.0
          %2774 = vmatpush1.msra.mxu0 0.0
          %2775 = vmatprep.subr.mxu0 0.0
          %2776 = vmatpush1.msra.mxu0 0.0
          %2777 = vmatprep.subr.mxu0 0.0
          %2778 = vmatpush1.msra.mxu0 0.0
          %2779 = vmatprep.subr.mxu0 0.0
          %2780 = vmatpush1.msra.mxu0 0.0
          %2781 = vmatprep.subr.mxu0 0.0
          %2782 = vmatpush1.msra.mxu0 0.0
          %2783 = vmatprep.subr.mxu0 0.0
          %2784 = vmatpush1.msra.mxu0 0.0
          %2785 = vmatprep.subr.mxu0 0.0
          %2786 = vmatpush1.msra.mxu0 0.0
          %2787 = vmatprep.subr.mxu0 0.0
          %2788 = vmatpush1.msra.mxu0 0.0
          %2789 = vmatprep.subr.mxu0 0.0
          %2790 = vmatpush1.msra.mxu0 0.0
          %2791 = vmatprep.subr.mxu0 0.0
          %2792 = vmatpush1.msra.mxu0 0.0
          %2793 = vmatprep.subr.mxu0 0.0
          %2794 = vmatpush1.msra.mxu0 0.0
          %2795 = vmatprep.subr.mxu0 0.0
          %2796 = vmatpush1.msra.mxu0 0.0
          %2797 = vmatprep.subr.mxu0 0.0
          %2798 = vmatpush1.msra.mxu0 0.0
          %2799 = vmatprep.subr.mxu0 0.0
          %2800 = vmatpush1.msra.mxu0 0.0
          %2801 = vmatprep.mubr.f32.mxu0 0.0
          %2802 = vmatmul.mubr.f32.gmra.mrb[0].mxu0 %v2733
          %v2803 = vpop.f32.mrb[0].mxu0
          %v2804 = vadd.f32 0.0, %v2803
          %v2805 = vpop.f32.mrb[0].mxu0
          %2806 = vmatprep.mubr.f32.mxu0 0.0
          %2807 = vmatmul.mubr.f32.gmra.mrb[0].mxu0 %v2735
          %v2808 = vpop.f32.mrb[0].mxu0
          %v2809 = vadd.f32 0.0, %v2808
          %v2810 = vpop.f32.mrb[0].mxu0
          %2811 = vdwg.mxu0
          %2812 = vrot.lane.b32.xlu0 %v2249, 122
          %v2813 = vpop.permute.xlu0 %2812
          %2814 = vrot.lane.b32.xlu0 %v2250, 122
          %v2815 = vpop.permute.xlu0 %2814
          %v2816 = vsel %vm2335, %v2813, 0
          %v2818 = vsel %vm2335, %v2815, 0
          %2820 = vmatprep.subr.mxu0 0.0
          %2821 = vmatpush1.msra.mxu0 %v2344
          %2822 = vmatprep.subr.mxu0 0.0
          %2823 = vmatpush1.msra.mxu0 0.0
          %2824 = vmatprep.subr.mxu0 0.0
          %2825 = vmatpush1.msra.mxu0 0.0
          %2826 = vmatprep.subr.mxu0 0.0
          %2827 = vmatpush1.msra.mxu0 0.0
          %2828 = vmatprep.subr.mxu0 0.0
          %2829 = vmatpush1.msra.mxu0 0.0
          %2830 = vmatprep.subr.mxu0 0.0
          %2831 = vmatpush1.msra.mxu0 0.0
          %2832 = vmatprep.subr.mxu0 0.0
          %2833 = vmatpush1.msra.mxu0 0.0
          %2834 = vmatprep.subr.mxu0 0.0
          %2835 = vmatpush1.msra.mxu0 0.0
          %2836 = vmatprep.subr.mxu0 0.0
          %2837 = vmatpush1.msra.mxu0 0.0
          %2838 = vmatprep.subr.mxu0 0.0
          %2839 = vmatpush1.msra.mxu0 0.0
          %2840 = vmatprep.subr.mxu0 0.0
          %2841 = vmatpush1.msra.mxu0 0.0
          %2842 = vmatprep.subr.mxu0 0.0
          %2843 = vmatpush1.msra.mxu0 0.0
          %2844 = vmatprep.subr.mxu0 0.0
          %2845 = vmatpush1.msra.mxu0 0.0
          %2846 = vmatprep.subr.mxu0 0.0
          %2847 = vmatpush1.msra.mxu0 0.0
          %2848 = vmatprep.subr.mxu0 0.0
          %2849 = vmatpush1.msra.mxu0 0.0
          %2850 = vmatprep.subr.mxu0 0.0
          %2851 = vmatpush1.msra.mxu0 0.0
          %2852 = vmatprep.subr.mxu0 0.0
          %2853 = vmatpush1.msra.mxu0 0.0
          %2854 = vmatprep.subr.mxu0 0.0
          %2855 = vmatpush1.msra.mxu0 0.0
          %2856 = vmatprep.subr.mxu0 0.0
          %2857 = vmatpush1.msra.mxu0 0.0
          %2858 = vmatprep.subr.mxu0 0.0
          %2859 = vmatpush1.msra.mxu0 0.0
          %2860 = vmatprep.subr.mxu0 0.0
          %2861 = vmatpush1.msra.mxu0 0.0
          %2862 = vmatprep.subr.mxu0 0.0
          %2863 = vmatpush1.msra.mxu0 0.0
          %2864 = vmatprep.subr.mxu0 0.0
          %2865 = vmatpush1.msra.mxu0 0.0
          %2866 = vmatprep.subr.mxu0 0.0
          %2867 = vmatpush1.msra.mxu0 0.0
          %2868 = vmatprep.subr.mxu0 0.0
          %2869 = vmatpush1.msra.mxu0 0.0
          %2870 = vmatprep.subr.mxu0 0.0
          %2871 = vmatpush1.msra.mxu0 0.0
          %2872 = vmatprep.subr.mxu0 0.0
          %2873 = vmatpush1.msra.mxu0 0.0
          %2874 = vmatprep.subr.mxu0 0.0
          %2875 = vmatpush1.msra.mxu0 0.0
          %2876 = vmatprep.subr.mxu0 0.0
          %2877 = vmatpush1.msra.mxu0 0.0
          %2878 = vmatprep.subr.mxu0 0.0
          %2879 = vmatpush1.msra.mxu0 0.0
          %2880 = vmatprep.subr.mxu0 0.0
          %2881 = vmatpush1.msra.mxu0 0.0
          %2882 = vmatprep.subr.mxu0 0.0
          %2883 = vmatpush1.msra.mxu0 0.0
          %2884 = vmatprep.mubr.f32.mxu0 0.0
          %2885 = vmatmul.mubr.f32.gmra.mrb[0].mxu0 %v2816
          %v2886 = vpop.f32.mrb[0].mxu0
          %v2887 = vadd.f32 %v2804, %v2886
          %v2888 = vpop.f32.mrb[0].mxu0
          %2889 = vmatprep.mubr.f32.mxu0 0.0
          %2890 = vmatmul.mubr.f32.gmra.mrb[0].mxu0 %v2818
          %v2891 = vpop.f32.mrb[0].mxu0
          %v2892 = vadd.f32 %v2809, %v2891
          %v2893 = vpop.f32.mrb[0].mxu0
          %2894 = vdwg.mxu0
          %v2895 = vadd.f32 %v2887, %v2425
          %v2896 = vadd.f32 %v2892, %v2425
          %v2897 = vxor.u32 %v2895, 2147483648
          %v2898 = vxor.u32 %v2896, 2147483648
          %v2899 = vmul.f32 %v2897, 1.442695
          %v2900 = vpow.pop %v2899
          %v2901 = vmul.f32 %v2898, 1.442695
          %v2902 = vpow.pop %v2901
          %v2903 = vadd.f32 %v2900, 1.0
          %v2904 = vadd.f32 %v2902, 1.0
          %v2905 = vrcp.pop %v2903
          %v2906 = vmul.f32 1.0, %v2905
          %v2907 = vrcp.pop %v2904
          %v2908 = vmul.f32 1.0, %v2907
          %v2909 = vtanh.pop %v2895
          %v2910 = vtanh.pop %v2896
          %v2911 = vmul.f32 %v2906, %v2725
          %v2912 = vmul.f32 %v2908, %v2726
          %2915 = vrot.lane.b32.xlu0 %v2909, 80
          %v2916 = vpop.permute.xlu0 %2915
          %2917 = vrot.lane.b32.xlu0 %v2910, 80
          %v2918 = vpop.permute.xlu0 %2917
          %v2921 = vmul.f32 %v2906, %v2916
          %v2922 = vmul.f32 %v2908, %v2918
          %2925 = vrot.lane.b32.xlu0 %v2921, 16
          %v2926 = vpop.permute.xlu0 %2925
          %2927 = vrot.lane.b32.xlu0 %v2922, 16
          %v2928 = vpop.permute.xlu0 %2927
          %v2931 = vadd.f32 %v2911, %v2926
          %v2932 = vadd.f32 %v2912, %v2928
          %v2933 = vtanh.pop %v2931
          %v2934 = vtanh.pop %v2932
          %2937 = vrot.lane.b32.xlu0 %v2933, 16
          %v2938 = vpop.permute.xlu0 %2937
          %2939 = vrot.lane.b32.xlu0 %v2934, 16
          %v2940 = vpop.permute.xlu0 %2939
          %v2943 = vmul.f32 %v2906, %v2938
          %v2944 = vmul.f32 %v2908, %v2940
          %vm2945 = vcmp.gt.s32.totalorder %v2251, 2
          %vm2946 = vcmp.gt.s32.totalorder %v2252, 2
          %v2947 = vsel %vm2945, 1, 0
          %v2948 = vsel %vm2946, 1, 0
          %2949 = vset.pattern.permute.xlu0 0
          %2950 = vperm.xlu0 %2949, %v2947
          %v2951 = vpop.permute.xlu0 %2950
          %2952 = vset.pattern.permute.xlu0 0
          %2953 = vperm.xlu0 %2952, %v2948
          %v2954 = vpop.permute.xlu0 %2953
          %vm2955 = vcmp.eq.s32.totalorder %v2951, 1
          %vm2956 = vcmp.eq.s32.totalorder %v2954, 1
          %v2957 = vsel %vm2955, %v2943, %v2723
          %v2958 = vsel %vm2956, %v2944, %v2724
          %v2959 = vsel %vm2955, %v2931, %v2725
          %v2960 = vsel %vm2956, %v2932, %v2726
          %2963 = vrot.lane.b32.xlu0 %v2957, 96
          %v2964 = vpop.permute.xlu0 %2963
          %2965 = vrot.lane.b32.xlu0 %v2958, 96
          %v2966 = vpop.permute.xlu0 %2965
          %v2967 = vsel %vm2246, %v2964, 0
          %v2969 = vsel %vm2246, %v2966, 0
          %2971 = vmatprep.subr.mxu0 0.0
          %2972 = vmatpush1.msra.mxu0 %v2254
          %2973 = vmatprep.subr.mxu0 0.0
          %2974 = vmatpush1.msra.mxu0 %v2255
          %2975 = vmatprep.subr.mxu0 0.0
          %2976 = vmatpush1.msra.mxu0 0.0
          %2977 = vmatprep.subr.mxu0 0.0
          %2978 = vmatpush1.msra.mxu0 0.0
          %2979 = vmatprep.subr.mxu0 0.0
          %2980 = vmatpush1.msra.mxu0 0.0
          %2981 = vmatprep.subr.mxu0 0.0
          %2982 = vmatpush1.msra.mxu0 0.0
          %2983 = vmatprep.subr.mxu0 0.0
          %2984 = vmatpush1.msra.mxu0 0.0
          %2985 = vmatprep.subr.mxu0 0.0
          %2986 = vmatpush1.msra.mxu0 0.0
          %2987 = vmatprep.subr.mxu0 0.0
          %2988 = vmatpush1.msra.mxu0 0.0
          %2989 = vmatprep.subr.mxu0 0.0
          %2990 = vmatpush1.msra.mxu0 0.0
          %2991 = vmatprep.subr.mxu0 0.0
          %2992 = vmatpush1.msra.mxu0 0.0
          %2993 = vmatprep.subr.mxu0 0.0
          %2994 = vmatpush1.msra.mxu0 0.0
          %2995 = vmatprep.subr.mxu0 0.0
          %2996 = vmatpush1.msra.mxu0 0.0
          %2997 = vmatprep.subr.mxu0 0.0
          %2998 = vmatpush1.msra.mxu0 0.0
          %2999 = vmatprep.subr.mxu0 0.0
          %3000 = vmatpush1.msra.mxu0 0.0
          %3001 = vmatprep.subr.mxu0 0.0
          %3002 = vmatpush1.msra.mxu0 0.0
          %3003 = vmatprep.subr.mxu0 0.0
          %3004 = vmatpush1.msra.mxu0 0.0
          %3005 = vmatprep.subr.mxu0 0.0
          %3006 = vmatpush1.msra.mxu0 0.0
          %3007 = vmatprep.subr.mxu0 0.0
          %3008 = vmatpush1.msra.mxu0 0.0
          %3009 = vmatprep.subr.mxu0 0.0
          %3010 = vmatpush1.msra.mxu0 0.0
          %3011 = vmatprep.subr.mxu0 0.0
          %3012 = vmatpush1.msra.mxu0 0.0
          %3013 = vmatprep.subr.mxu0 0.0
          %3014 = vmatpush1.msra.mxu0 0.0
          %3015 = vmatprep.subr.mxu0 0.0
          %3016 = vmatpush1.msra.mxu0 0.0
          %3017 = vmatprep.subr.mxu0 0.0
          %3018 = vmatpush1.msra.mxu0 0.0
          %3019 = vmatprep.subr.mxu0 0.0
          %3020 = vmatpush1.msra.mxu0 0.0
          %3021 = vmatprep.subr.mxu0 0.0
          %3022 = vmatpush1.msra.mxu0 0.0
          %3023 = vmatprep.subr.mxu0 0.0
          %3024 = vmatpush1.msra.mxu0 0.0
          %3025 = vmatprep.subr.mxu0 0.0
          %3026 = vmatpush1.msra.mxu0 0.0
          %3027 = vmatprep.subr.mxu0 0.0
          %3028 = vmatpush1.msra.mxu0 0.0
          %3029 = vmatprep.subr.mxu0 0.0
          %3030 = vmatpush1.msra.mxu0 0.0
          %3031 = vmatprep.subr.mxu0 0.0
          %3032 = vmatpush1.msra.mxu0 0.0
          %3033 = vmatprep.subr.mxu0 0.0
          %3034 = vmatpush1.msra.mxu0 0.0
          %3035 = vmatprep.mubr.f32.mxu0 0.0
          %3036 = vmatmul.mubr.f32.gmra.mrb[0].mxu0 %v2967
          %v3037 = vpop.f32.mrb[0].mxu0
          %v3038 = vadd.f32 0.0, %v3037
          %v3039 = vpop.f32.mrb[0].mxu0
          %3040 = vmatprep.mubr.f32.mxu0 0.0
          %3041 = vmatmul.mubr.f32.gmra.mrb[0].mxu0 %v2969
          %v3042 = vpop.f32.mrb[0].mxu0
          %v3043 = vadd.f32 0.0, %v3042
          %v3044 = vpop.f32.mrb[0].mxu0
          %3045 = vdwg.mxu0
          %3046 = vrot.lane.b32.xlu0 %v2249, 119
          %v3047 = vpop.permute.xlu0 %3046
          %3048 = vrot.lane.b32.xlu0 %v2250, 119
          %v3049 = vpop.permute.xlu0 %3048
          %v3050 = vsel %vm2335, %v3047, 0
          %v3052 = vsel %vm2335, %v3049, 0
          %3054 = vmatprep.subr.mxu0 0.0
          %3055 = vmatpush1.msra.mxu0 %v2344
          %3056 = vmatprep.subr.mxu0 0.0
          %3057 = vmatpush1.msra.mxu0 0.0
          %3058 = vmatprep.subr.mxu0 0.0
          %3059 = vmatpush1.msra.mxu0 0.0
          %3060 = vmatprep.subr.mxu0 0.0
          %3061 = vmatpush1.msra.mxu0 0.0
          %3062 = vmatprep.subr.mxu0 0.0
          %3063 = vmatpush1.msra.mxu0 0.0
          %3064 = vmatprep.subr.mxu0 0.0
          %3065 = vmatpush1.msra.mxu0 0.0
          %3066 = vmatprep.subr.mxu0 0.0
          %3067 = vmatpush1.msra.mxu0 0.0
          %3068 = vmatprep.subr.mxu0 0.0
          %3069 = vmatpush1.msra.mxu0 0.0
          %3070 = vmatprep.subr.mxu0 0.0
          %3071 = vmatpush1.msra.mxu0 0.0
          %3072 = vmatprep.subr.mxu0 0.0
          %3073 = vmatpush1.msra.mxu0 0.0
          %3074 = vmatprep.subr.mxu0 0.0
          %3075 = vmatpush1.msra.mxu0 0.0
          %3076 = vmatprep.subr.mxu0 0.0
          %3077 = vmatpush1.msra.mxu0 0.0
          %3078 = vmatprep.subr.mxu0 0.0
          %3079 = vmatpush1.msra.mxu0 0.0
          %3080 = vmatprep.subr.mxu0 0.0
          %3081 = vmatpush1.msra.mxu0 0.0
          %3082 = vmatprep.subr.mxu0 0.0
          %3083 = vmatpush1.msra.mxu0 0.0
          %3084 = vmatprep.subr.mxu0 0.0
          %3085 = vmatpush1.msra.mxu0 0.0
          %3086 = vmatprep.subr.mxu0 0.0
          %3087 = vmatpush1.msra.mxu0 0.0
          %3088 = vmatprep.subr.mxu0 0.0
          %3089 = vmatpush1.msra.mxu0 0.0
          %3090 = vmatprep.subr.mxu0 0.0
          %3091 = vmatpush1.msra.mxu0 0.0
          %3092 = vmatprep.subr.mxu0 0.0
          %3093 = vmatpush1.msra.mxu0 0.0
          %3094 = vmatprep.subr.mxu0 0.0
          %3095 = vmatpush1.msra.mxu0 0.0
          %3096 = vmatprep.subr.mxu0 0.0
          %3097 = vmatpush1.msra.mxu0 0.0
          %3098 = vmatprep.subr.mxu0 0.0
          %3099 = vmatpush1.msra.mxu0 0.0
          %3100 = vmatprep.subr.mxu0 0.0
          %3101 = vmatpush1.msra.mxu0 0.0
          %3102 = vmatprep.subr.mxu0 0.0
          %3103 = vmatpush1.msra.mxu0 0.0
          %3104 = vmatprep.subr.mxu0 0.0
          %3105 = vmatpush1.msra.mxu0 0.0
          %3106 = vmatprep.subr.mxu0 0.0
          %3107 = vmatpush1.msra.mxu0 0.0
          %3108 = vmatprep.subr.mxu0 0.0
          %3109 = vmatpush1.msra.mxu0 0.0
          %3110 = vmatprep.subr.mxu0 0.0
          %3111 = vmatpush1.msra.mxu0 0.0
          %3112 = vmatprep.subr.mxu0 0.0
          %3113 = vmatpush1.msra.mxu0 0.0
          %3114 = vmatprep.subr.mxu0 0.0
          %3115 = vmatpush1.msra.mxu0 0.0
          %3116 = vmatprep.subr.mxu0 0.0
          %3117 = vmatpush1.msra.mxu0 0.0
          %3118 = vmatprep.mubr.f32.mxu0 0.0
          %3119 = vmatmul.mubr.f32.gmra.mrb[0].mxu0 %v3050
          %v3120 = vpop.f32.mrb[0].mxu0
          %v3121 = vadd.f32 %v3038, %v3120
          %v3122 = vpop.f32.mrb[0].mxu0
          %3123 = vmatprep.mubr.f32.mxu0 0.0
          %3124 = vmatmul.mubr.f32.gmra.mrb[0].mxu0 %v3052
          %v3125 = vpop.f32.mrb[0].mxu0
          %v3126 = vadd.f32 %v3043, %v3125
          %v3127 = vpop.f32.mrb[0].mxu0
          %3128 = vdwg.mxu0
          %v3129 = vadd.f32 %v3121, %v2425
          %v3130 = vadd.f32 %v3126, %v2425
          %v3131 = vxor.u32 %v3129, 2147483648
          %v3132 = vxor.u32 %v3130, 2147483648
          %v3133 = vmul.f32 %v3131, 1.442695
          %v3134 = vpow.pop %v3133
          %v3135 = vmul.f32 %v3132, 1.442695
          %v3136 = vpow.pop %v3135
          %v3137 = vadd.f32 %v3134, 1.0
          %v3138 = vadd.f32 %v3136, 1.0
          %v3139 = vrcp.pop %v3137
          %v3140 = vmul.f32 1.0, %v3139
          %v3141 = vrcp.pop %v3138
          %v3142 = vmul.f32 1.0, %v3141
          %v3143 = vtanh.pop %v3129
          %v3144 = vtanh.pop %v3130
          %v3145 = vmul.f32 %v3140, %v2959
          %v3146 = vmul.f32 %v3142, %v2960
          %3149 = vrot.lane.b32.xlu0 %v3143, 80
          %v3150 = vpop.permute.xlu0 %3149
          %3151 = vrot.lane.b32.xlu0 %v3144, 80
          %v3152 = vpop.permute.xlu0 %3151
          %v3155 = vmul.f32 %v3140, %v3150
          %v3156 = vmul.f32 %v3142, %v3152
          %3159 = vrot.lane.b32.xlu0 %v3155, 16
          %v3160 = vpop.permute.xlu0 %3159
          %3161 = vrot.lane.b32.xlu0 %v3156, 16
          %v3162 = vpop.permute.xlu0 %3161
          %v3165 = vadd.f32 %v3145, %v3160
          %v3166 = vadd.f32 %v3146, %v3162
          %v3167 = vtanh.pop %v3165
          %v3168 = vtanh.pop %v3166
          %3171 = vrot.lane.b32.xlu0 %v3167, 16
          %v3172 = vpop.permute.xlu0 %3171
          %3173 = vrot.lane.b32.xlu0 %v3168, 16
          %v3174 = vpop.permute.xlu0 %3173
          %v3177 = vmul.f32 %v3140, %v3172
          %v3178 = vmul.f32 %v3142, %v3174
          %vm3179 = vcmp.gt.s32.totalorder %v2251, 3
          %vm3180 = vcmp.gt.s32.totalorder %v2252, 3
          %v3181 = vsel %vm3179, 1, 0
          %v3182 = vsel %vm3180, 1, 0
          %3183 = vset.pattern.permute.xlu0 0
          %3184 = vperm.xlu0 %3183, %v3181
          %v3185 = vpop.permute.xlu0 %3184
          %3186 = vset.pattern.permute.xlu0 0
          %3187 = vperm.xlu0 %3186, %v3182
          %v3188 = vpop.permute.xlu0 %3187
          %vm3189 = vcmp.eq.s32.totalorder %v3185, 1
          %vm3190 = vcmp.eq.s32.totalorder %v3188, 1
          %v3191 = vsel %vm3189, %v3177, %v2957
          %v3192 = vsel %vm3190, %v3178, %v2958
          %3195 = vrot.lane.b32.xlu0 %v3191, 96
          %v3196 = vpop.permute.xlu0 %3195
          %3197 = vrot.lane.b32.xlu0 %v3192, 96
          %v3198 = vpop.permute.xlu0 %3197
          %3201 = vst.msk [vmem:[#allocation3] sm:$0xff] %vm2246, %v3196
          %3202 = vst.msk [vmem:[#allocation3 + $0x8] sm:$0xff] %vm2246, %v3198
        $region240: #{multi_agent_forward.1} parent=195 // pred_fallthru
          _
        %v3203 = vld [vmem:[#allocation2] sm:$0xff]
        %v3204 = vld [vmem:[#allocation2 + $0x8] sm:$0xff]
        %v3205 = vld [vmem:[#allocation3] sm:$0xff]
        %v3206 = vld [vmem:[#allocation3 + $0x8] sm:$0xff]
        %v3207 = vld [vmem:[%s2039] sm:$0xff]
        %v3208 = vld [vmem:[%s2039 + $0x8] sm:$0xff]
        %v3209 = vld [vmem:[%s2044] sm:$0xff]
        %v3210 = vld [vmem:[%s2044 + $0x8] sm:$0xff]
        %v3211 = vld [vmem:[%s2060] sm:$0x7]
        %v3212 = vld [vmem:[%s2065] sm:$0xff]
        %v3213 = vld [vmem:[%s2065 + $0x8] sm:$0xff]
        %v3214 = vld [vmem:[%s1717] sm:$0x1]
        %vm3215 = vcmask 130048
        %v3217 = vsel %vm3215, 0.0, 0
        %3219 = vmatprep.subr.mxu0 0.0
        %3220 = vmatpush1.msra.mxu0 %v3212
        %3221 = vmatprep.subr.mxu0 0.0
        %3222 = vmatpush1.msra.mxu0 %v3213
        %3223 = vmatprep.subr.mxu0 0.0
        %3224 = vmatpush1.msra.mxu0 0.0
        %3225 = vmatprep.subr.mxu0 0.0
        %3226 = vmatpush1.msra.mxu0 0.0
        %3227 = vmatprep.subr.mxu0 0.0
        %3228 = vmatpush1.msra.mxu0 0.0
        %3229 = vmatprep.subr.mxu0 0.0
        %3230 = vmatpush1.msra.mxu0 0.0
        %3231 = vmatprep.subr.mxu0 0.0
        %3232 = vmatpush1.msra.mxu0 0.0
        %3233 = vmatprep.subr.mxu0 0.0
        %3234 = vmatpush1.msra.mxu0 0.0
        %3235 = vmatprep.subr.mxu0 0.0
        %3236 = vmatpush1.msra.mxu0 0.0
        %3237 = vmatprep.subr.mxu0 0.0
        %3238 = vmatpush1.msra.mxu0 0.0
        %3239 = vmatprep.subr.mxu0 0.0
        %3240 = vmatpush1.msra.mxu0 0.0
        %3241 = vmatprep.subr.mxu0 0.0
        %3242 = vmatpush1.msra.mxu0 0.0
        %3243 = vmatprep.subr.mxu0 0.0
        %3244 = vmatpush1.msra.mxu0 0.0
        %3245 = vmatprep.subr.mxu0 0.0
        %3246 = vmatpush1.msra.mxu0 0.0
        %3247 = vmatprep.subr.mxu0 0.0
        %3248 = vmatpush1.msra.mxu0 0.0
        %3249 = vmatprep.subr.mxu0 0.0
        %3250 = vmatpush1.msra.mxu0 0.0
        %3251 = vmatprep.subr.mxu0 0.0
        %3252 = vmatpush1.msra.mxu0 0.0
        %3253 = vmatprep.subr.mxu0 0.0
        %3254 = vmatpush1.msra.mxu0 0.0
        %3255 = vmatprep.subr.mxu0 0.0
        %3256 = vmatpush1.msra.mxu0 0.0
        %3257 = vmatprep.subr.mxu0 0.0
        %3258 = vmatpush1.msra.mxu0 0.0
        %3259 = vmatprep.subr.mxu0 0.0
        %3260 = vmatpush1.msra.mxu0 0.0
        %3261 = vmatprep.subr.mxu0 0.0
        %3262 = vmatpush1.msra.mxu0 0.0
        %3263 = vmatprep.subr.mxu0 0.0
        %3264 = vmatpush1.msra.mxu0 0.0
        %3265 = vmatprep.subr.mxu0 0.0
        %3266 = vmatpush1.msra.mxu0 0.0
        %3267 = vmatprep.subr.mxu0 0.0
        %3268 = vmatpush1.msra.mxu0 0.0
        %3269 = vmatprep.subr.mxu0 0.0
        %3270 = vmatpush1.msra.mxu0 0.0
        %3271 = vmatprep.subr.mxu0 0.0
        %3272 = vmatpush1.msra.mxu0 0.0
        %3273 = vmatprep.subr.mxu0 0.0
        %3274 = vmatpush1.msra.mxu0 0.0
        %3275 = vmatprep.subr.mxu0 0.0
        %3276 = vmatpush1.msra.mxu0 0.0
        %3277 = vmatprep.subr.mxu0 0.0
        %3278 = vmatpush1.msra.mxu0 0.0
        %3279 = vmatprep.subr.mxu0 0.0
        %3280 = vmatpush1.msra.mxu0 0.0
        %3281 = vmatprep.subr.mxu0 0.0
        %3282 = vmatpush1.msra.mxu0 0.0
        %3283 = vmatprep.mubr.f32.mxu0 0.0
        %3284 = vmatmul.mubr.f32.gmra.mrb[0].mxu0 %v3217
        %v3285 = vpop.f32.mrb[0].mxu0
        %v3286 = vadd.f32 0.0, %v3285
        %v3287 = vpop.f32.mrb[0].mxu0
        %3288 = vmatprep.mubr.f32.mxu0 0.0
        %3289 = vmatmul.mubr.f32.gmra.mrb[0].mxu0 %v3217
        %v3290 = vpop.f32.mrb[0].mxu0
        %v3291 = vadd.f32 0.0, %v3290
        %v3292 = vpop.f32.mrb[0].mxu0
        %3293 = vdwg.mxu0
        %vm3294 = vcmask 23552
        %v3296 = vsel %vm3294, %v3207, 0
        %v3299 = vsel %vm3294, %v3208, 0
        %vm3301 = vcmask 1042432
        %v3303 = vsel %vm3301, %v3211, 0
        %3305 = vmatprep.subr.mxu0 0.0
        %3306 = vmatpush1.msra.mxu0 %v3303
        %3307 = vmatprep.subr.mxu0 0.0
        %3308 = vmatpush1.msra.mxu0 0.0
        %3309 = vmatprep.subr.mxu0 0.0
        %3310 = vmatpush1.msra.mxu0 0.0
        %3311 = vmatprep.subr.mxu0 0.0
        %3312 = vmatpush1.msra.mxu0 0.0
        %3313 = vmatprep.subr.mxu0 0.0
        %3314 = vmatpush1.msra.mxu0 0.0
        %3315 = vmatprep.subr.mxu0 0.0
        %3316 = vmatpush1.msra.mxu0 0.0
        %3317 = vmatprep.subr.mxu0 0.0
        %3318 = vmatpush1.msra.mxu0 0.0
        %3319 = vmatprep.subr.mxu0 0.0
        %3320 = vmatpush1.msra.mxu0 0.0
        %3321 = vmatprep.subr.mxu0 0.0
        %3322 = vmatpush1.msra.mxu0 0.0
        %3323 = vmatprep.subr.mxu0 0.0
        %3324 = vmatpush1.msra.mxu0 0.0
        %3325 = vmatprep.subr.mxu0 0.0
        %3326 = vmatpush1.msra.mxu0 0.0
        %3327 = vmatprep.subr.mxu0 0.0
        %3328 = vmatpush1.msra.mxu0 0.0
        %3329 = vmatprep.subr.mxu0 0.0
        %3330 = vmatpush1.msra.mxu0 0.0
        %3331 = vmatprep.subr.mxu0 0.0
        %3332 = vmatpush1.msra.mxu0 0.0
        %3333 = vmatprep.subr.mxu0 0.0
        %3334 = vmatpush1.msra.mxu0 0.0
        %3335 = vmatprep.subr.mxu0 0.0
        %3336 = vmatpush1.msra.mxu0 0.0
        %3337 = vmatprep.subr.mxu0 0.0
        %3338 = vmatpush1.msra.mxu0 0.0
        %3339 = vmatprep.subr.mxu0 0.0
        %3340 = vmatpush1.msra.mxu0 0.0
        %3341 = vmatprep.subr.mxu0 0.0
        %3342 = vmatpush1.msra.mxu0 0.0
        %3343 = vmatprep.subr.mxu0 0.0
        %3344 = vmatpush1.msra.mxu0 0.0
        %3345 = vmatprep.subr.mxu0 0.0
        %3346 = vmatpush1.msra.mxu0 0.0
        %3347 = vmatprep.subr.mxu0 0.0
        %3348 = vmatpush1.msra.mxu0 0.0
        %3349 = vmatprep.subr.mxu0 0.0
        %3350 = vmatpush1.msra.mxu0 0.0
        %3351 = vmatprep.subr.mxu0 0.0
        %3352 = vmatpush1.msra.mxu0 0.0
        %3353 = vmatprep.subr.mxu0 0.0
        %3354 = vmatpush1.msra.mxu0 0.0
        %3355 = vmatprep.subr.mxu0 0.0
        %3356 = vmatpush1.msra.mxu0 0.0
        %3357 = vmatprep.subr.mxu0 0.0
        %3358 = vmatpush1.msra.mxu0 0.0
        %3359 = vmatprep.subr.mxu0 0.0
        %3360 = vmatpush1.msra.mxu0 0.0
        %3361 = vmatprep.subr.mxu0 0.0
        %3362 = vmatpush1.msra.mxu0 0.0
        %3363 = vmatprep.subr.mxu0 0.0
        %3364 = vmatpush1.msra.mxu0 0.0
        %3365 = vmatprep.subr.mxu0 0.0
        %3366 = vmatpush1.msra.mxu0 0.0
        %3367 = vmatprep.subr.mxu0 0.0
        %3368 = vmatpush1.msra.mxu0 0.0
        %3369 = vmatprep.mubr.f32.mxu0 0.0
        %3370 = vmatmul.mubr.f32.gmra.mrb[0].mxu0 %v3296
        %v3371 = vpop.f32.mrb[0].mxu0
        %v3372 = vadd.f32 %v3286, %v3371
        %v3373 = vpop.f32.mrb[0].mxu0
        %3374 = vmatprep.mubr.f32.mxu0 0.0
        %3375 = vmatmul.mubr.f32.gmra.mrb[0].mxu0 %v3299
        %v3376 = vpop.f32.mrb[0].mxu0
        %v3377 = vadd.f32 %v3291, %v3376
        %v3378 = vpop.f32.mrb[0].mxu0
        %3379 = vdwg.mxu0
        %v3381 = vlaneseq
        %v3382 = vshrl.u32 %v3381, 7
        %v3383 = vsub.s32 0, %v3382
        %v3384 = vrot.slane %v3214, %v3383
        %v3386 = vadd.f32 %v3372, %v3384
        %v3387 = vadd.f32 %v3377, %v3384
        %v3388 = vxor.u32 %v3386, 2147483648
        %v3389 = vxor.u32 %v3387, 2147483648
        %v3390 = vmul.f32 %v3388, 1.442695
        %v3391 = vpow.pop %v3390
        %v3392 = vmul.f32 %v3389, 1.442695
        %v3393 = vpow.pop %v3392
        %v3394 = vadd.f32 %v3391, 1.0
        %v3395 = vadd.f32 %v3393, 1.0
        %v3396 = vrcp.pop %v3394
        %v3397 = vmul.f32 1.0, %v3396
        %v3398 = vrcp.pop %v3395
        %v3399 = vmul.f32 1.0, %v3398
        %v3400 = vtanh.pop %v3386
        %v3401 = vtanh.pop %v3387
        %v3402 = vmul.f32 %v3397, 0.0
        %v3403 = vmul.f32 %v3399, 0.0
        %3406 = vrot.lane.b32.xlu0 %v3400, 80
        %v3407 = vpop.permute.xlu0 %3406
        %3408 = vrot.lane.b32.xlu0 %v3401, 80
        %v3409 = vpop.permute.xlu0 %3408
        %v3412 = vmul.f32 %v3397, %v3407
        %v3413 = vmul.f32 %v3399, %v3409
        %3416 = vrot.lane.b32.xlu0 %v3412, 16
        %v3417 = vpop.permute.xlu0 %3416
        %3418 = vrot.lane.b32.xlu0 %v3413, 16
        %v3419 = vpop.permute.xlu0 %3418
        %v3422 = vadd.f32 %v3402, %v3417
        %v3423 = vadd.f32 %v3403, %v3419
        %v3424 = vtanh.pop %v3422
        %v3425 = vtanh.pop %v3423
        %3428 = vrot.lane.b32.xlu0 %v3424, 16
        %v3429 = vpop.permute.xlu0 %3428
        %3430 = vrot.lane.b32.xlu0 %v3425, 16
        %v3431 = vpop.permute.xlu0 %3430
        %v3434 = vmul.f32 %v3397, %v3429
        %v3435 = vmul.f32 %v3399, %v3431
        %vm3436 = vcmp.gt.s32.totalorder %v3209, 0
        %vm3437 = vcmp.gt.s32.totalorder %v3210, 0
        %v3438 = vsel %vm3436, 1, 0
        %v3439 = vsel %vm3437, 1, 0
        %3440 = vset.pattern.permute.xlu0 0
        %3441 = vperm.xlu0 %3440, %v3438
        %v3442 = vpop.permute.xlu0 %3441
        %3443 = vset.pattern.permute.xlu0 0
        %3444 = vperm.xlu0 %3443, %v3439
        %v3445 = vpop.permute.xlu0 %3444
        %vm3446 = vcmp.eq.s32.totalorder %v3442, 1
        %vm3447 = vcmp.eq.s32.totalorder %v3445, 1
        %v3448 = vsel %vm3446, %v3434, 0.0
        %v3449 = vsel %vm3447, %v3435, 0.0
        %v3450 = vsel %vm3446, %v3422, 0.0
        %v3451 = vsel %vm3447, %v3423, 0.0
        %3454 = vrot.lane.b32.xlu0 %v3448, 96
        %v3455 = vpop.permute.xlu0 %3454
        %3456 = vrot.lane.b32.xlu0 %v3449, 96
        %v3457 = vpop.permute.xlu0 %3456
        %v3458 = vsel %vm3215, %v3455, 0
        %v3460 = vsel %vm3215, %v3457, 0
        %3462 = vmatprep.subr.mxu0 0.0
        %3463 = vmatpush1.msra.mxu0 %v3212
        %3464 = vmatprep.subr.mxu0 0.0
        %3465 = vmatpush1.msra.mxu0 %v3213
        %3466 = vmatprep.subr.mxu0 0.0
        %3467 = vmatpush1.msra.mxu0 0.0
        %3468 = vmatprep.subr.mxu0 0.0
        %3469 = vmatpush1.msra.mxu0 0.0
        %3470 = vmatprep.subr.mxu0 0.0
        %3471 = vmatpush1.msra.mxu0 0.0
        %3472 = vmatprep.subr.mxu0 0.0
        %3473 = vmatpush1.msra.mxu0 0.0
        %3474 = vmatprep.subr.mxu0 0.0
        %3475 = vmatpush1.msra.mxu0 0.0
        %3476 = vmatprep.subr.mxu0 0.0
        %3477 = vmatpush1.msra.mxu0 0.0
        %3478 = vmatprep.subr.mxu0 0.0
        %3479 = vmatpush1.msra.mxu0 0.0
        %3480 = vmatprep.subr.mxu0 0.0
        %3481 = vmatpush1.msra.mxu0 0.0
        %3482 = vmatprep.subr.mxu0 0.0
        %3483 = vmatpush1.msra.mxu0 0.0
        %3484 = vmatprep.subr.mxu0 0.0
        %3485 = vmatpush1.msra.mxu0 0.0
        %3486 = vmatprep.subr.mxu0 0.0
        %3487 = vmatpush1.msra.mxu0 0.0
        %3488 = vmatprep.subr.mxu0 0.0
        %3489 = vmatpush1.msra.mxu0 0.0
        %3490 = vmatprep.subr.mxu0 0.0
        %3491 = vmatpush1.msra.mxu0 0.0
        %3492 = vmatprep.subr.mxu0 0.0
        %3493 = vmatpush1.msra.mxu0 0.0
        %3494 = vmatprep.subr.mxu0 0.0
        %3495 = vmatpush1.msra.mxu0 0.0
        %3496 = vmatprep.subr.mxu0 0.0
        %3497 = vmatpush1.msra.mxu0 0.0
        %3498 = vmatprep.subr.mxu0 0.0
        %3499 = vmatpush1.msra.mxu0 0.0
        %3500 = vmatprep.subr.mxu0 0.0
        %3501 = vmatpush1.msra.mxu0 0.0
        %3502 = vmatprep.subr.mxu0 0.0
        %3503 = vmatpush1.msra.mxu0 0.0
        %3504 = vmatprep.subr.mxu0 0.0
        %3505 = vmatpush1.msra.mxu0 0.0
        %3506 = vmatprep.subr.mxu0 0.0
        %3507 = vmatpush1.msra.mxu0 0.0
        %3508 = vmatprep.subr.mxu0 0.0
        %3509 = vmatpush1.msra.mxu0 0.0
        %3510 = vmatprep.subr.mxu0 0.0
        %3511 = vmatpush1.msra.mxu0 0.0
        %3512 = vmatprep.subr.mxu0 0.0
        %3513 = vmatpush1.msra.mxu0 0.0
        %3514 = vmatprep.subr.mxu0 0.0
        %3515 = vmatpush1.msra.mxu0 0.0
        %3516 = vmatprep.subr.mxu0 0.0
        %3517 = vmatpush1.msra.mxu0 0.0
        %3518 = vmatprep.subr.mxu0 0.0
        %3519 = vmatpush1.msra.mxu0 0.0
        %3520 = vmatprep.subr.mxu0 0.0
        %3521 = vmatpush1.msra.mxu0 0.0
        %3522 = vmatprep.subr.mxu0 0.0
        %3523 = vmatpush1.msra.mxu0 0.0
        %3524 = vmatprep.subr.mxu0 0.0
        %3525 = vmatpush1.msra.mxu0 0.0
        %3526 = vmatprep.mubr.f32.mxu0 0.0
        %3527 = vmatmul.mubr.f32.gmra.mrb[0].mxu0 %v3458
        %v3528 = vpop.f32.mrb[0].mxu0
        %v3529 = vadd.f32 0.0, %v3528
        %v3530 = vpop.f32.mrb[0].mxu0
        %3531 = vmatprep.mubr.f32.mxu0 0.0
        %3532 = vmatmul.mubr.f32.gmra.mrb[0].mxu0 %v3460
        %v3533 = vpop.f32.mrb[0].mxu0
        %v3534 = vadd.f32 0.0, %v3533
        %v3535 = vpop.f32.mrb[0].mxu0
        %3536 = vdwg.mxu0
        %3537 = vrot.lane.b32.xlu0 %v3207, 125
        %v3538 = vpop.permute.xlu0 %3537
        %3539 = vrot.lane.b32.xlu0 %v3208, 125
        %v3540 = vpop.permute.xlu0 %3539
        %v3541 = vsel %vm3294, %v3538, 0
        %v3543 = vsel %vm3294, %v3540, 0
        %3545 = vmatprep.subr.mxu0 0.0
        %3546 = vmatpush1.msra.mxu0 %v3303
        %3547 = vmatprep.subr.mxu0 0.0
        %3548 = vmatpush1.msra.mxu0 0.0
        %3549 = vmatprep.subr.mxu0 0.0
        %3550 = vmatpush1.msra.mxu0 0.0
        %3551 = vmatprep.subr.mxu0 0.0
        %3552 = vmatpush1.msra.mxu0 0.0
        %3553 = vmatprep.subr.mxu0 0.0
        %3554 = vmatpush1.msra.mxu0 0.0
        %3555 = vmatprep.subr.mxu0 0.0
        %3556 = vmatpush1.msra.mxu0 0.0
        %3557 = vmatprep.subr.mxu0 0.0
        %3558 = vmatpush1.msra.mxu0 0.0
        %3559 = vmatprep.subr.mxu0 0.0
        %3560 = vmatpush1.msra.mxu0 0.0
        %3561 = vmatprep.subr.mxu0 0.0
        %3562 = vmatpush1.msra.mxu0 0.0
        %3563 = vmatprep.subr.mxu0 0.0
        %3564 = vmatpush1.msra.mxu0 0.0
        %3565 = vmatprep.subr.mxu0 0.0
        %3566 = vmatpush1.msra.mxu0 0.0
        %3567 = vmatprep.subr.mxu0 0.0
        %3568 = vmatpush1.msra.mxu0 0.0
        %3569 = vmatprep.subr.mxu0 0.0
        %3570 = vmatpush1.msra.mxu0 0.0
        %3571 = vmatprep.subr.mxu0 0.0
        %3572 = vmatpush1.msra.mxu0 0.0
        %3573 = vmatprep.subr.mxu0 0.0
        %3574 = vmatpush1.msra.mxu0 0.0
        %3575 = vmatprep.subr.mxu0 0.0
        %3576 = vmatpush1.msra.mxu0 0.0
        %3577 = vmatprep.subr.mxu0 0.0
        %3578 = vmatpush1.msra.mxu0 0.0
        %3579 = vmatprep.subr.mxu0 0.0
        %3580 = vmatpush1.msra.mxu0 0.0
        %3581 = vmatprep.subr.mxu0 0.0
        %3582 = vmatpush1.msra.mxu0 0.0
        %3583 = vmatprep.subr.mxu0 0.0
        %3584 = vmatpush1.msra.mxu0 0.0
        %3585 = vmatprep.subr.mxu0 0.0
        %3586 = vmatpush1.msra.mxu0 0.0
        %3587 = vmatprep.subr.mxu0 0.0
        %3588 = vmatpush1.msra.mxu0 0.0
        %3589 = vmatprep.subr.mxu0 0.0
        %3590 = vmatpush1.msra.mxu0 0.0
        %3591 = vmatprep.subr.mxu0 0.0
        %3592 = vmatpush1.msra.mxu0 0.0
        %3593 = vmatprep.subr.mxu0 0.0
        %3594 = vmatpush1.msra.mxu0 0.0
        %3595 = vmatprep.subr.mxu0 0.0
        %3596 = vmatpush1.msra.mxu0 0.0
        %3597 = vmatprep.subr.mxu0 0.0
        %3598 = vmatpush1.msra.mxu0 0.0
        %3599 = vmatprep.subr.mxu0 0.0
        %3600 = vmatpush1.msra.mxu0 0.0
        %3601 = vmatprep.subr.mxu0 0.0
        %3602 = vmatpush1.msra.mxu0 0.0
        %3603 = vmatprep.subr.mxu0 0.0
        %3604 = vmatpush1.msra.mxu0 0.0
        %3605 = vmatprep.subr.mxu0 0.0
        %3606 = vmatpush1.msra.mxu0 0.0
        %3607 = vmatprep.subr.mxu0 0.0
        %3608 = vmatpush1.msra.mxu0 0.0
        %3609 = vmatprep.mubr.f32.mxu0 0.0
        %3610 = vmatmul.mubr.f32.gmra.mrb[0].mxu0 %v3541
        %v3611 = vpop.f32.mrb[0].mxu0
        %v3612 = vadd.f32 %v3529, %v3611
        %v3613 = vpop.f32.mrb[0].mxu0
        %3614 = vmatprep.mubr.f32.mxu0 0.0
        %3615 = vmatmul.mubr.f32.gmra.mrb[0].mxu0 %v3543
        %v3616 = vpop.f32.mrb[0].mxu0
        %v3617 = vadd.f32 %v3534, %v3616
        %v3618 = vpop.f32.mrb[0].mxu0
        %3619 = vdwg.mxu0
        %v3620 = vadd.f32 %v3612, %v3384
        %v3621 = vadd.f32 %v3617, %v3384
        %v3622 = vxor.u32 %v3620, 2147483648
        %v3623 = vxor.u32 %v3621, 2147483648
        %v3624 = vmul.f32 %v3622, 1.442695
        %v3625 = vpow.pop %v3624
        %v3626 = vmul.f32 %v3623, 1.442695
        %v3627 = vpow.pop %v3626
        %v3628 = vadd.f32 %v3625, 1.0
        %v3629 = vadd.f32 %v3627, 1.0
        %v3630 = vrcp.pop %v3628
        %v3631 = vmul.f32 1.0, %v3630
        %v3632 = vrcp.pop %v3629
        %v3633 = vmul.f32 1.0, %v3632
        %v3634 = vtanh.pop %v3620
        %v3635 = vtanh.pop %v3621
        %v3636 = vmul.f32 %v3631, %v3450
        %v3637 = vmul.f32 %v3633, %v3451
        %3640 = vrot.lane.b32.xlu0 %v3634, 80
        %v3641 = vpop.permute.xlu0 %3640
        %3642 = vrot.lane.b32.xlu0 %v3635, 80
        %v3643 = vpop.permute.xlu0 %3642
        %v3646 = vmul.f32 %v3631, %v3641
        %v3647 = vmul.f32 %v3633, %v3643
        %3650 = vrot.lane.b32.xlu0 %v3646, 16
        %v3651 = vpop.permute.xlu0 %3650
        %3652 = vrot.lane.b32.xlu0 %v3647, 16
        %v3653 = vpop.permute.xlu0 %3652
        %v3656 = vadd.f32 %v3636, %v3651
        %v3657 = vadd.f32 %v3637, %v3653
        %v3658 = vtanh.pop %v3656
        %v3659 = vtanh.pop %v3657
        %3662 = vrot.lane.b32.xlu0 %v3658, 16
        %v3663 = vpop.permute.xlu0 %3662
        %3664 = vrot.lane.b32.xlu0 %v3659, 16
        %v3665 = vpop.permute.xlu0 %3664
        %v3668 = vmul.f32 %v3631, %v3663
        %v3669 = vmul.f32 %v3633, %v3665
        %vm3670 = vcmp.gt.s32.totalorder %v3209, 1
        %vm3671 = vcmp.gt.s32.totalorder %v3210, 1
        %v3672 = vsel %vm3670, 1, 0
        %v3673 = vsel %vm3671, 1, 0
        %3674 = vset.pattern.permute.xlu0 0
        %3675 = vperm.xlu0 %3674, %v3672
        %v3676 = vpop.permute.xlu0 %3675
        %3677 = vset.pattern.permute.xlu0 0
        %3678 = vperm.xlu0 %3677, %v3673
        %v3679 = vpop.permute.xlu0 %3678
        %vm3680 = vcmp.eq.s32.totalorder %v3676, 1
        %vm3681 = vcmp.eq.s32.totalorder %v3679, 1
        %v3682 = vsel %vm3680, %v3668, %v3448
        %v3683 = vsel %vm3681, %v3669, %v3449
        %v3684 = vsel %vm3680, %v3656, %v3450
        %v3685 = vsel %vm3681, %v3657, %v3451
        %3688 = vrot.lane.b32.xlu0 %v3682, 96
        %v3689 = vpop.permute.xlu0 %3688
        %3690 = vrot.lane.b32.xlu0 %v3683, 96
        %v3691 = vpop.permute.xlu0 %3690
        %v3692 = vsel %vm3215, %v3689, 0
        %v3694 = vsel %vm3215, %v3691, 0
        %3696 = vmatprep.subr.mxu0 0.0
        %3697 = vmatpush1.msra.mxu0 %v3212
        %3698 = vmatprep.subr.mxu0 0.0
        %3699 = vmatpush1.msra.mxu0 %v3213
        %3700 = vmatprep.subr.mxu0 0.0
        %3701 = vmatpush1.msra.mxu0 0.0
        %3702 = vmatprep.subr.mxu0 0.0
        %3703 = vmatpush1.msra.mxu0 0.0
        %3704 = vmatprep.subr.mxu0 0.0
        %3705 = vmatpush1.msra.mxu0 0.0
        %3706 = vmatprep.subr.mxu0 0.0
        %3707 = vmatpush1.msra.mxu0 0.0
        %3708 = vmatprep.subr.mxu0 0.0
        %3709 = vmatpush1.msra.mxu0 0.0
        %3710 = vmatprep.subr.mxu0 0.0
        %3711 = vmatpush1.msra.mxu0 0.0
        %3712 = vmatprep.subr.mxu0 0.0
        %3713 = vmatpush1.msra.mxu0 0.0
        %3714 = vmatprep.subr.mxu0 0.0
        %3715 = vmatpush1.msra.mxu0 0.0
        %3716 = vmatprep.subr.mxu0 0.0
        %3717 = vmatpush1.msra.mxu0 0.0
        %3718 = vmatprep.subr.mxu0 0.0
        %3719 = vmatpush1.msra.mxu0 0.0
        %3720 = vmatprep.subr.mxu0 0.0
        %3721 = vmatpush1.msra.mxu0 0.0
        %3722 = vmatprep.subr.mxu0 0.0
        %3723 = vmatpush1.msra.mxu0 0.0
        %3724 = vmatprep.subr.mxu0 0.0
        %3725 = vmatpush1.msra.mxu0 0.0
        %3726 = vmatprep.subr.mxu0 0.0
        %3727 = vmatpush1.msra.mxu0 0.0
        %3728 = vmatprep.subr.mxu0 0.0
        %3729 = vmatpush1.msra.mxu0 0.0
        %3730 = vmatprep.subr.mxu0 0.0
        %3731 = vmatpush1.msra.mxu0 0.0
        %3732 = vmatprep.subr.mxu0 0.0
        %3733 = vmatpush1.msra.mxu0 0.0
        %3734 = vmatprep.subr.mxu0 0.0
        %3735 = vmatpush1.msra.mxu0 0.0
        %3736 = vmatprep.subr.mxu0 0.0
        %3737 = vmatpush1.msra.mxu0 0.0
        %3738 = vmatprep.subr.mxu0 0.0
        %3739 = vmatpush1.msra.mxu0 0.0
        %3740 = vmatprep.subr.mxu0 0.0
        %3741 = vmatpush1.msra.mxu0 0.0
        %3742 = vmatprep.subr.mxu0 0.0
        %3743 = vmatpush1.msra.mxu0 0.0
        %3744 = vmatprep.subr.mxu0 0.0
        %3745 = vmatpush1.msra.mxu0 0.0
        %3746 = vmatprep.subr.mxu0 0.0
        %3747 = vmatpush1.msra.mxu0 0.0
        %3748 = vmatprep.subr.mxu0 0.0
        %3749 = vmatpush1.msra.mxu0 0.0
        %3750 = vmatprep.subr.mxu0 0.0
        %3751 = vmatpush1.msra.mxu0 0.0
        %3752 = vmatprep.subr.mxu0 0.0
        %3753 = vmatpush1.msra.mxu0 0.0
        %3754 = vmatprep.subr.mxu0 0.0
        %3755 = vmatpush1.msra.mxu0 0.0
        %3756 = vmatprep.subr.mxu0 0.0
        %3757 = vmatpush1.msra.mxu0 0.0
        %3758 = vmatprep.subr.mxu0 0.0
        %3759 = vmatpush1.msra.mxu0 0.0
        %3760 = vmatprep.mubr.f32.mxu0 0.0
        %3761 = vmatmul.mubr.f32.gmra.mrb[0].mxu0 %v3692
        %v3762 = vpop.f32.mrb[0].mxu0
        %v3763 = vadd.f32 0.0, %v3762
        %v3764 = vpop.f32.mrb[0].mxu0
        %3765 = vmatprep.mubr.f32.mxu0 0.0
        %3766 = vmatmul.mubr.f32.gmra.mrb[0].mxu0 %v3694
        %v3767 = vpop.f32.mrb[0].mxu0
        %v3768 = vadd.f32 0.0, %v3767
        %v3769 = vpop.f32.mrb[0].mxu0
        %3770 = vdwg.mxu0
        %3771 = vrot.lane.b32.xlu0 %v3207, 122
        %v3772 = vpop.permute.xlu0 %3771
        %3773 = vrot.lane.b32.xlu0 %v3208, 122
        %v3774 = vpop.permute.xlu0 %3773
        %v3775 = vsel %vm3294, %v3772, 0
        %v3777 = vsel %vm3294, %v3774, 0
        %3779 = vmatprep.subr.mxu0 0.0
        %3780 = vmatpush1.msra.mxu0 %v3303
        %3781 = vmatprep.subr.mxu0 0.0
        %3782 = vmatpush1.msra.mxu0 0.0
        %3783 = vmatprep.subr.mxu0 0.0
        %3784 = vmatpush1.msra.mxu0 0.0
        %3785 = vmatprep.subr.mxu0 0.0
        %3786 = vmatpush1.msra.mxu0 0.0
        %3787 = vmatprep.subr.mxu0 0.0
        %3788 = vmatpush1.msra.mxu0 0.0
        %3789 = vmatprep.subr.mxu0 0.0
        %3790 = vmatpush1.msra.mxu0 0.0
        %3791 = vmatprep.subr.mxu0 0.0
        %3792 = vmatpush1.msra.mxu0 0.0
        %3793 = vmatprep.subr.mxu0 0.0
        %3794 = vmatpush1.msra.mxu0 0.0
        %3795 = vmatprep.subr.mxu0 0.0
        %3796 = vmatpush1.msra.mxu0 0.0
        %3797 = vmatprep.subr.mxu0 0.0
        %3798 = vmatpush1.msra.mxu0 0.0
        %3799 = vmatprep.subr.mxu0 0.0
        %3800 = vmatpush1.msra.mxu0 0.0
        %3801 = vmatprep.subr.mxu0 0.0
        %3802 = vmatpush1.msra.mxu0 0.0
        %3803 = vmatprep.subr.mxu0 0.0
        %3804 = vmatpush1.msra.mxu0 0.0
        %3805 = vmatprep.subr.mxu0 0.0
        %3806 = vmatpush1.msra.mxu0 0.0
        %3807 = vmatprep.subr.mxu0 0.0
        %3808 = vmatpush1.msra.mxu0 0.0
        %3809 = vmatprep.subr.mxu0 0.0
        %3810 = vmatpush1.msra.mxu0 0.0
        %3811 = vmatprep.subr.mxu0 0.0
        %3812 = vmatpush1.msra.mxu0 0.0
        %3813 = vmatprep.subr.mxu0 0.0
        %3814 = vmatpush1.msra.mxu0 0.0
        %3815 = vmatprep.subr.mxu0 0.0
        %3816 = vmatpush1.msra.mxu0 0.0
        %3817 = vmatprep.subr.mxu0 0.0
        %3818 = vmatpush1.msra.mxu0 0.0
        %3819 = vmatprep.subr.mxu0 0.0
        %3820 = vmatpush1.msra.mxu0 0.0
        %3821 = vmatprep.subr.mxu0 0.0
        %3822 = vmatpush1.msra.mxu0 0.0
        %3823 = vmatprep.subr.mxu0 0.0
        %3824 = vmatpush1.msra.mxu0 0.0
        %3825 = vmatprep.subr.mxu0 0.0
        %3826 = vmatpush1.msra.mxu0 0.0
        %3827 = vmatprep.subr.mxu0 0.0
        %3828 = vmatpush1.msra.mxu0 0.0
        %3829 = vmatprep.subr.mxu0 0.0
        %3830 = vmatpush1.msra.mxu0 0.0
        %3831 = vmatprep.subr.mxu0 0.0
        %3832 = vmatpush1.msra.mxu0 0.0
        %3833 = vmatprep.subr.mxu0 0.0
        %3834 = vmatpush1.msra.mxu0 0.0
        %3835 = vmatprep.subr.mxu0 0.0
        %3836 = vmatpush1.msra.mxu0 0.0
        %3837 = vmatprep.subr.mxu0 0.0
        %3838 = vmatpush1.msra.mxu0 0.0
        %3839 = vmatprep.subr.mxu0 0.0
        %3840 = vmatpush1.msra.mxu0 0.0
        %3841 = vmatprep.subr.mxu0 0.0
        %3842 = vmatpush1.msra.mxu0 0.0
        %3843 = vmatprep.mubr.f32.mxu0 0.0
        %3844 = vmatmul.mubr.f32.gmra.mrb[0].mxu0 %v3775
        %v3845 = vpop.f32.mrb[0].mxu0
        %v3846 = vadd.f32 %v3763, %v3845
        %v3847 = vpop.f32.mrb[0].mxu0
        %3848 = vmatprep.mubr.f32.mxu0 0.0
        %3849 = vmatmul.mubr.f32.gmra.mrb[0].mxu0 %v3777
        %v3850 = vpop.f32.mrb[0].mxu0
        %v3851 = vadd.f32 %v3768, %v3850
        %v3852 = vpop.f32.mrb[0].mxu0
        %3853 = vdwg.mxu0
        %v3854 = vadd.f32 %v3846, %v3384
        %v3855 = vadd.f32 %v3851, %v3384
        %v3856 = vxor.u32 %v3854, 2147483648
        %v3857 = vxor.u32 %v3855, 2147483648
        %v3858 = vmul.f32 %v3856, 1.442695
        %v3859 = vpow.pop %v3858
        %v3860 = vmul.f32 %v3857, 1.442695
        %v3861 = vpow.pop %v3860
        %v3862 = vadd.f32 %v3859, 1.0
        %v3863 = vadd.f32 %v3861, 1.0
        %v3864 = vrcp.pop %v3862
        %v3865 = vmul.f32 1.0, %v3864
        %v3866 = vrcp.pop %v3863
        %v3867 = vmul.f32 1.0, %v3866
        %v3868 = vtanh.pop %v3854
        %v3869 = vtanh.pop %v3855
        %v3870 = vmul.f32 %v3865, %v3684
        %v3871 = vmul.f32 %v3867, %v3685
        %3874 = vrot.lane.b32.xlu0 %v3868, 80
        %v3875 = vpop.permute.xlu0 %3874
        %3876 = vrot.lane.b32.xlu0 %v3869, 80
        %v3877 = vpop.permute.xlu0 %3876
        %v3880 = vmul.f32 %v3865, %v3875
        %v3881 = vmul.f32 %v3867, %v3877
        %3884 = vrot.lane.b32.xlu0 %v3880, 16
        %v3885 = vpop.permute.xlu0 %3884
        %3886 = vrot.lane.b32.xlu0 %v3881, 16
        %v3887 = vpop.permute.xlu0 %3886
        %v3890 = vadd.f32 %v3870, %v3885
        %v3891 = vadd.f32 %v3871, %v3887
        %v3892 = vtanh.pop %v3890
        %v3893 = vtanh.pop %v3891
        %3896 = vrot.lane.b32.xlu0 %v3892, 16
        %v3897 = vpop.permute.xlu0 %3896
        %3898 = vrot.lane.b32.xlu0 %v3893, 16
        %v3899 = vpop.permute.xlu0 %3898
        %v3902 = vmul.f32 %v3865, %v3897
        %v3903 = vmul.f32 %v3867, %v3899
        %vm3904 = vcmp.gt.s32.totalorder %v3209, 2
        %vm3905 = vcmp.gt.s32.totalorder %v3210, 2
        %v3906 = vsel %vm3904, 1, 0
        %v3907 = vsel %vm3905, 1, 0
        %3908 = vset.pattern.permute.xlu0 0
        %3909 = vperm.xlu0 %3908, %v3906
        %v3910 = vpop.permute.xlu0 %3909
        %3911 = vset.pattern.permute.xlu0 0
        %3912 = vperm.xlu0 %3911, %v3907
        %v3913 = vpop.permute.xlu0 %3912
        %vm3914 = vcmp.eq.s32.totalorder %v3910, 1
        %vm3915 = vcmp.eq.s32.totalorder %v3913, 1
        %v3916 = vsel %vm3914, %v3902, %v3682
        %v3917 = vsel %vm3915, %v3903, %v3683
        %v3918 = vsel %vm3914, %v3890, %v3684
        %v3919 = vsel %vm3915, %v3891, %v3685
        %3922 = vrot.lane.b32.xlu0 %v3916, 96
        %v3923 = vpop.permute.xlu0 %3922
        %3924 = vrot.lane.b32.xlu0 %v3917, 96
        %v3925 = vpop.permute.xlu0 %3924
        %v3926 = vsel %vm3215, %v3923, 0
        %v3928 = vsel %vm3215, %v3925, 0
        %3930 = vmatprep.subr.mxu0 0.0
        %3931 = vmatpush1.msra.mxu0 %v3212
        %3932 = vmatprep.subr.mxu0 0.0
        %3933 = vmatpush1.msra.mxu0 %v3213
        %3934 = vmatprep.subr.mxu0 0.0
        %3935 = vmatpush1.msra.mxu0 0.0
        %3936 = vmatprep.subr.mxu0 0.0
        %3937 = vmatpush1.msra.mxu0 0.0
        %3938 = vmatprep.subr.mxu0 0.0
        %3939 = vmatpush1.msra.mxu0 0.0
        %3940 = vmatprep.subr.mxu0 0.0
        %3941 = vmatpush1.msra.mxu0 0.0
        %3942 = vmatprep.subr.mxu0 0.0
        %3943 = vmatpush1.msra.mxu0 0.0
        %3944 = vmatprep.subr.mxu0 0.0
        %3945 = vmatpush1.msra.mxu0 0.0
        %3946 = vmatprep.subr.mxu0 0.0
        %3947 = vmatpush1.msra.mxu0 0.0
        %3948 = vmatprep.subr.mxu0 0.0
        %3949 = vmatpush1.msra.mxu0 0.0
        %3950 = vmatprep.subr.mxu0 0.0
        %3951 = vmatpush1.msra.mxu0 0.0
        %3952 = vmatprep.subr.mxu0 0.0
        %3953 = vmatpush1.msra.mxu0 0.0
        %3954 = vmatprep.subr.mxu0 0.0
        %3955 = vmatpush1.msra.mxu0 0.0
        %3956 = vmatprep.subr.mxu0 0.0
        %3957 = vmatpush1.msra.mxu0 0.0
        %3958 = vmatprep.subr.mxu0 0.0
        %3959 = vmatpush1.msra.mxu0 0.0
        %3960 = vmatprep.subr.mxu0 0.0
        %3961 = vmatpush1.msra.mxu0 0.0
        %3962 = vmatprep.subr.mxu0 0.0
        %3963 = vmatpush1.msra.mxu0 0.0
        %3964 = vmatprep.subr.mxu0 0.0
        %3965 = vmatpush1.msra.mxu0 0.0
        %3966 = vmatprep.subr.mxu0 0.0
        %3967 = vmatpush1.msra.mxu0 0.0
        %3968 = vmatprep.subr.mxu0 0.0
        %3969 = vmatpush1.msra.mxu0 0.0
        %3970 = vmatprep.subr.mxu0 0.0
        %3971 = vmatpush1.msra.mxu0 0.0
        %3972 = vmatprep.subr.mxu0 0.0
        %3973 = vmatpush1.msra.mxu0 0.0
        %3974 = vmatprep.subr.mxu0 0.0
        %3975 = vmatpush1.msra.mxu0 0.0
        %3976 = vmatprep.subr.mxu0 0.0
        %3977 = vmatpush1.msra.mxu0 0.0
        %3978 = vmatprep.subr.mxu0 0.0
        %3979 = vmatpush1.msra.mxu0 0.0
        %3980 = vmatprep.subr.mxu0 0.0
        %3981 = vmatpush1.msra.mxu0 0.0
        %3982 = vmatprep.subr.mxu0 0.0
        %3983 = vmatpush1.msra.mxu0 0.0
        %3984 = vmatprep.subr.mxu0 0.0
        %3985 = vmatpush1.msra.mxu0 0.0
        %3986 = vmatprep.subr.mxu0 0.0
        %3987 = vmatpush1.msra.mxu0 0.0
        %3988 = vmatprep.subr.mxu0 0.0
        %3989 = vmatpush1.msra.mxu0 0.0
        %3990 = vmatprep.subr.mxu0 0.0
        %3991 = vmatpush1.msra.mxu0 0.0
        %3992 = vmatprep.subr.mxu0 0.0
        %3993 = vmatpush1.msra.mxu0 0.0
        %3994 = vmatprep.mubr.f32.mxu0 0.0
        %3995 = vmatmul.mubr.f32.gmra.mrb[0].mxu0 %v3926
        %v3996 = vpop.f32.mrb[0].mxu0
        %v3997 = vadd.f32 0.0, %v3996
        %v3998 = vpop.f32.mrb[0].mxu0
        %3999 = vmatprep.mubr.f32.mxu0 0.0
        %4000 = vmatmul.mubr.f32.gmra.mrb[0].mxu0 %v3928
        %v4001 = vpop.f32.mrb[0].mxu0
        %v4002 = vadd.f32 0.0, %v4001
        %v4003 = vpop.f32.mrb[0].mxu0
        %4004 = vdwg.mxu0
        %4005 = vrot.lane.b32.xlu0 %v3207, 119
        %v4006 = vpop.permute.xlu0 %4005
        %4007 = vrot.lane.b32.xlu0 %v3208, 119
        %v4008 = vpop.permute.xlu0 %4007
        %v4009 = vsel %vm3294, %v4006, 0
        %v4011 = vsel %vm3294, %v4008, 0
        %4013 = vmatprep.subr.mxu0 0.0
        %4014 = vmatpush1.msra.mxu0 %v3303
        %4015 = vmatprep.subr.mxu0 0.0
        %4016 = vmatpush1.msra.mxu0 0.0
        %4017 = vmatprep.subr.mxu0 0.0
        %4018 = vmatpush1.msra.mxu0 0.0
        %4019 = vmatprep.subr.mxu0 0.0
        %4020 = vmatpush1.msra.mxu0 0.0
        %4021 = vmatprep.subr.mxu0 0.0
        %4022 = vmatpush1.msra.mxu0 0.0
        %4023 = vmatprep.subr.mxu0 0.0
        %4024 = vmatpush1.msra.mxu0 0.0
        %4025 = vmatprep.subr.mxu0 0.0
        %4026 = vmatpush1.msra.mxu0 0.0
        %4027 = vmatprep.subr.mxu0 0.0
        %4028 = vmatpush1.msra.mxu0 0.0
        %4029 = vmatprep.subr.mxu0 0.0
        %4030 = vmatpush1.msra.mxu0 0.0
        %4031 = vmatprep.subr.mxu0 0.0
        %4032 = vmatpush1.msra.mxu0 0.0
        %4033 = vmatprep.subr.mxu0 0.0
        %4034 = vmatpush1.msra.mxu0 0.0
        %4035 = vmatprep.subr.mxu0 0.0
        %4036 = vmatpush1.msra.mxu0 0.0
        %4037 = vmatprep.subr.mxu0 0.0
        %4038 = vmatpush1.msra.mxu0 0.0
        %4039 = vmatprep.subr.mxu0 0.0
        %4040 = vmatpush1.msra.mxu0 0.0
        %4041 = vmatprep.subr.mxu0 0.0
        %4042 = vmatpush1.msra.mxu0 0.0
        %4043 = vmatprep.subr.mxu0 0.0
        %4044 = vmatpush1.msra.mxu0 0.0
        %4045 = vmatprep.subr.mxu0 0.0
        %4046 = vmatpush1.msra.mxu0 0.0
        %4047 = vmatprep.subr.mxu0 0.0
        %4048 = vmatpush1.msra.mxu0 0.0
        %4049 = vmatprep.subr.mxu0 0.0
        %4050 = vmatpush1.msra.mxu0 0.0
        %4051 = vmatprep.subr.mxu0 0.0
        %4052 = vmatpush1.msra.mxu0 0.0
        %4053 = vmatprep.subr.mxu0 0.0
        %4054 = vmatpush1.msra.mxu0 0.0
        %4055 = vmatprep.subr.mxu0 0.0
        %4056 = vmatpush1.msra.mxu0 0.0
        %4057 = vmatprep.subr.mxu0 0.0
        %4058 = vmatpush1.msra.mxu0 0.0
        %4059 = vmatprep.subr.mxu0 0.0
        %4060 = vmatpush1.msra.mxu0 0.0
        %4061 = vmatprep.subr.mxu0 0.0
        %4062 = vmatpush1.msra.mxu0 0.0
        %4063 = vmatprep.subr.mxu0 0.0
        %4064 = vmatpush1.msra.mxu0 0.0
        %4065 = vmatprep.subr.mxu0 0.0
        %4066 = vmatpush1.msra.mxu0 0.0
        %4067 = vmatprep.subr.mxu0 0.0
        %4068 = vmatpush1.msra.mxu0 0.0
        %4069 = vmatprep.subr.mxu0 0.0
        %4070 = vmatpush1.msra.mxu0 0.0
        %4071 = vmatprep.subr.mxu0 0.0
        %4072 = vmatpush1.msra.mxu0 0.0
        %4073 = vmatprep.subr.mxu0 0.0
        %4074 = vmatpush1.msra.mxu0 0.0
        %4075 = vmatprep.subr.mxu0 0.0
        %4076 = vmatpush1.msra.mxu0 0.0
        %4077 = vmatprep.mubr.f32.mxu0 0.0
        %4078 = vmatmul.mubr.f32.gmra.mrb[0].mxu0 %v4009
        %v4079 = vpop.f32.mrb[0].mxu0
        %v4080 = vadd.f32 %v3997, %v4079
        %v4081 = vpop.f32.mrb[0].mxu0
        %4082 = vmatprep.mubr.f32.mxu0 0.0
        %4083 = vmatmul.mubr.f32.gmra.mrb[0].mxu0 %v4011
        %v4084 = vpop.f32.mrb[0].mxu0
        %v4085 = vadd.f32 %v4002, %v4084
        %v4086 = vpop.f32.mrb[0].mxu0
        %4087 = vdwg.mxu0
        %v4088 = vadd.f32 %v4080, %v3384
        %v4089 = vadd.f32 %v4085, %v3384
        %v4090 = vxor.u32 %v4088, 2147483648
        %v4091 = vxor.u32 %v4089, 2147483648
        %v4092 = vmul.f32 %v4090, 1.442695
        %v4093 = vpow.pop %v4092
        %v4094 = vmul.f32 %v4091, 1.442695
        %v4095 = vpow.pop %v4094
        %v4096 = vadd.f32 %v4093, 1.0
        %v4097 = vadd.f32 %v4095, 1.0
        %v4098 = vrcp.pop %v4096
        %v4099 = vmul.f32 1.0, %v4098
        %v4100 = vrcp.pop %v4097
        %v4101 = vmul.f32 1.0, %v4100
        %v4102 = vtanh.pop %v4088
        %v4103 = vtanh.pop %v4089
        %v4104 = vmul.f32 %v4099, %v3918
        %v4105 = vmul.f32 %v4101, %v3919
        %4108 = vrot.lane.b32.xlu0 %v4102, 80
        %v4109 = vpop.permute.xlu0 %4108
        %4110 = vrot.lane.b32.xlu0 %v4103, 80
        %v4111 = vpop.permute.xlu0 %4110
        %v4114 = vmul.f32 %v4099, %v4109
        %v4115 = vmul.f32 %v4101, %v4111
        %4118 = vrot.lane.b32.xlu0 %v4114, 16
        %v4119 = vpop.permute.xlu0 %4118
        %4120 = vrot.lane.b32.xlu0 %v4115, 16
        %v4121 = vpop.permute.xlu0 %4120
        %v4124 = vadd.f32 %v4104, %v4119
        %v4125 = vadd.f32 %v4105, %v4121
        %v4126 = vtanh.pop %v4124
        %v4127 = vtanh.pop %v4125
        %4130 = vrot.lane.b32.xlu0 %v4126, 16
        %v4131 = vpop.permute.xlu0 %4130
        %4132 = vrot.lane.b32.xlu0 %v4127, 16
        %v4133 = vpop.permute.xlu0 %4132
        %v4136 = vmul.f32 %v4099, %v4131
        %v4137 = vmul.f32 %v4101, %v4133
        %vm4138 = vcmp.gt.s32.totalorder %v3209, 3
        %vm4139 = vcmp.gt.s32.totalorder %v3210, 3
        %v4140 = vsel %vm4138, 1, 0
        %v4141 = vsel %vm4139, 1, 0
        %4142 = vset.pattern.permute.xlu0 0
        %4143 = vperm.xlu0 %4142, %v4140
        %v4144 = vpop.permute.xlu0 %4143
        %4145 = vset.pattern.permute.xlu0 0
        %4146 = vperm.xlu0 %4145, %v4141
        %v4147 = vpop.permute.xlu0 %4146
        %vm4148 = vcmp.eq.s32.totalorder %v4144, 1
        %vm4149 = vcmp.eq.s32.totalorder %v4147, 1
        %v4150 = vsel %vm4148, %v4136, %v3916
        %v4151 = vsel %vm4149, %v4137, %v3917
        %4154 = vrot.lane.b32.xlu0 %v4150, 96
        %v4155 = vpop.permute.xlu0 %4154
        %4156 = vrot.lane.b32.xlu0 %v4151, 96
        %v4157 = vpop.permute.xlu0 %4156
        %v4160 = vadd.f32 %v3205, %v4155
        %v4161 = vadd.f32 %v3206, %v4157
        %4164 = vrot.lane.b32.xlu0 %v4160, 16
        %v4165 = vpop.permute.xlu0 %4164
        %4166 = vrot.lane.b32.xlu0 %v4161, 16
        %v4167 = vpop.permute.xlu0 %4166
        %v4170 = vsel %vm3215, %v3203, %v4165
        %v4171 = vsel %vm3215, %v3204, %v4167
        %v4172 = vld [vmem:[%s2070] sm:$0xff]
        %v4173 = vld [vmem:[%s2070 + $0x8] sm:$0xff]
        %v4174 = vld [vmem:[%s2070 + $0x10] sm:$0xff]
        %v4175 = vld [vmem:[%s2070 + $0x18] sm:$0xff]
        %v4176 = vld [vmem:[%s2073] sm:$0x1]
        %v4178 = vlaneseq
        %v4179 = vshrl.u32 %v4178, 7
        %v4180 = vsub.s32 0, %v4179
        %v4181 = vrot.slane %v4176, %v4180
        %vm4183 = vcmask 261120
        %v4185 = vsel %vm4183, %v4170, 0
        %v4188 = vsel %vm4183, %v4171, 0
        %4190 = vmatprep.subr.mxu0 0.0
        %4191 = vmatpush1.msra.mxu0 %v4172
        %4192 = vmatprep.subr.mxu0 0.0
        %4193 = vmatpush1.msra.mxu0 %v4173
        %4194 = vmatprep.subr.mxu0 0.0
        %4195 = vmatpush1.msra.mxu0 %v4174
        %4196 = vmatprep.subr.mxu0 0.0
        %4197 = vmatpush1.msra.mxu0 %v4175
        %4198 = vmatprep.subr.mxu0 0.0
        %4199 = vmatpush1.msra.mxu0 0.0
        %4200 = vmatprep.subr.mxu0 0.0
        %4201 = vmatpush1.msra.mxu0 0.0
        %4202 = vmatprep.subr.mxu0 0.0
        %4203 = vmatpush1.msra.mxu0 0.0
        %4204 = vmatprep.subr.mxu0 0.0
        %4205 = vmatpush1.msra.mxu0 0.0
        %4206 = vmatprep.subr.mxu0 0.0
        %4207 = vmatpush1.msra.mxu0 0.0
        %4208 = vmatprep.subr.mxu0 0.0
        %4209 = vmatpush1.msra.mxu0 0.0
        %4210 = vmatprep.subr.mxu0 0.0
        %4211 = vmatpush1.msra.mxu0 0.0
        %4212 = vmatprep.subr.mxu0 0.0
        %4213 = vmatpush1.msra.mxu0 0.0
        %4214 = vmatprep.subr.mxu0 0.0
        %4215 = vmatpush1.msra.mxu0 0.0
        %4216 = vmatprep.subr.mxu0 0.0
        %4217 = vmatpush1.msra.mxu0 0.0
        %4218 = vmatprep.subr.mxu0 0.0
        %4219 = vmatpush1.msra.mxu0 0.0
        %4220 = vmatprep.subr.mxu0 0.0
        %4221 = vmatpush1.msra.mxu0 0.0
        %4222 = vmatprep.subr.mxu0 0.0
        %4223 = vmatpush1.msra.mxu0 0.0
        %4224 = vmatprep.subr.mxu0 0.0
        %4225 = vmatpush1.msra.mxu0 0.0
        %4226 = vmatprep.subr.mxu0 0.0
        %4227 = vmatpush1.msra.mxu0 0.0
        %4228 = vmatprep.subr.mxu0 0.0
        %4229 = vmatpush1.msra.mxu0 0.0
        %4230 = vmatprep.subr.mxu0 0.0
        %4231 = vmatpush1.msra.mxu0 0.0
        %4232 = vmatprep.subr.mxu0 0.0
        %4233 = vmatpush1.msra.mxu0 0.0
        %4234 = vmatprep.subr.mxu0 0.0
        %4235 = vmatpush1.msra.mxu0 0.0
        %4236 = vmatprep.subr.mxu0 0.0
        %4237 = vmatpush1.msra.mxu0 0.0
        %4238 = vmatprep.subr.mxu0 0.0
        %4239 = vmatpush1.msra.mxu0 0.0
        %4240 = vmatprep.subr.mxu0 0.0
        %4241 = vmatpush1.msra.mxu0 0.0
        %4242 = vmatprep.subr.mxu0 0.0
        %4243 = vmatpush1.msra.mxu0 0.0
        %4244 = vmatprep.subr.mxu0 0.0
        %4245 = vmatpush1.msra.mxu0 0.0
        %4246 = vmatprep.subr.mxu0 0.0
        %4247 = vmatpush1.msra.mxu0 0.0
        %4248 = vmatprep.subr.mxu0 0.0
        %4249 = vmatpush1.msra.mxu0 0.0
        %4250 = vmatprep.subr.mxu0 0.0
        %4251 = vmatpush1.msra.mxu0 0.0
        %4252 = vmatprep.subr.mxu0 0.0
        %4253 = vmatpush1.msra.mxu0 0.0
        %4254 = vmatprep.mubr.f32.mxu0 0.0
        %4255 = vmatmul.mubr.f32.gmra.mrb[0].mxu0 %v4185
        %v4256 = vpop.f32.mrb[0].mxu0
        %v4257 = vadd.f32 %v4181, %v4256
        %v4258 = vpop.f32.mrb[0].mxu0
        %4259 = vmatprep.mubr.f32.mxu0 0.0
        %4260 = vmatmul.mubr.f32.gmra.mrb[0].mxu0 %v4188
        %v4261 = vpop.f32.mrb[0].mxu0
        %v4262 = vadd.f32 %v4181, %v4261
        %v4263 = vpop.f32.mrb[0].mxu0
        %4264 = vdwg.mxu0
        %v4265 = vld [vmem:[%s2076] sm:$0x1]
        %v4266 = vld [vmem:[%s1725] sm:$0x1]
        %v4267 = vsel %vm4183, %v4257, 0.0
        %4268 = vadd.xlane.f32.xlu0 %v4267
        %v4269 = vpop.xlane.xlu0 %4268
        %v4270 = vsel %vm4183, %v4262, 0.0
        %4271 = vadd.xlane.f32.xlu0 %v4270
        %v4272 = vpop.xlane.xlu0 %4271
        %v4273 = vrcp.pop 32.0
        %v4274 = vmul.f32 %v4269, %v4273
        %v4275 = vmul.f32 %v4272, %v4273
        %v4276 = vsub.f32 %v4257, %v4274
        %v4277 = vsub.f32 %v4262, %v4275
        %v4278 = vmul.f32 %v4276, %v4276
        %v4279 = vmul.f32 %v4277, %v4277
        %v4280 = vsel %vm4183, %v4278, 0.0
        %4281 = vadd.xlane.f32.xlu0 %v4280
        %v4282 = vpop.xlane.xlu0 %4281
        %v4283 = vsel %vm4183, %v4279, 0.0
        %4284 = vadd.xlane.f32.xlu0 %v4283
        %v4285 = vpop.xlane.xlu0 %4284
        %v4286 = vmul.f32 %v4282, %v4273
        %v4287 = vmul.f32 %v4285, %v4273
        %v4288 = vadd.f32 %v4286, 1e-05
        %v4289 = vadd.f32 %v4287, 1e-05
        %v4290 = vrsqrt.pop %v4288
        %v4291 = vrsqrt.pop %v4289
        %v4292 = vmul.f32 %v4276, %v4290
        %v4293 = vmul.f32 %v4277, %v4291
        %v4295 = vlaneseq
        %v4296 = vshrl.u32 %v4295, 7
        %v4297 = vsub.s32 0, %v4296
        %v4298 = vrot.slane %v4265, %v4297
        %v4300 = vmul.f32 %v4292, %v4298
        %v4301 = vmul.f32 %v4293, %v4298
        %v4303 = vlaneseq
        %v4304 = vshrl.u32 %v4303, 7
        %v4305 = vsub.s32 0, %v4304
        %v4306 = vrot.slane %v4266, %v4305
        %v4308 = vadd.f32 %v4300, %v4306
        %v4309 = vadd.f32 %v4301, %v4306
        %v4310 = vld [vmem:[%s2081] sm:$0xff]
        %v4311 = vld [vmem:[%s2081 + $0x8] sm:$0xff]
        %v4312 = vld [vmem:[%s2081 + $0x10] sm:$0xff]
        %v4313 = vld [vmem:[%s2081 + $0x18] sm:$0xff]
        %v4314 = vld [vmem:[%s2084] sm:$0x1]
        %v4315 = vld [vmem:[%s2089] sm:$0xff]
        %v4316 = vld [vmem:[%s2089 + $0x8] sm:$0xff]
        %v4317 = vld [vmem:[%s2089 + $0x10] sm:$0xff]
        %v4318 = vld [vmem:[%s2089 + $0x18] sm:$0xff]
        %v4319 = vld [vmem:[%s2092] sm:$0x1]
        %v4321 = vlaneseq
        %v4322 = vshrl.u32 %v4321, 7
        %v4323 = vsub.s32 0, %v4322
        %v4324 = vrot.slane %v4314, %v4323
        %v4327 = vsel %vm4183, %v4308, 0
        %v4330 = vsel %vm4183, %v4309, 0
        %4332 = vmatprep.subr.mxu0 0.0
        %4333 = vmatpush1.msra.mxu0 %v4310
        %4334 = vmatprep.subr.mxu0 0.0
        %4335 = vmatpush1.msra.mxu0 %v4311
        %4336 = vmatprep.subr.mxu0 0.0
        %4337 = vmatpush1.msra.mxu0 %v4312
        %4338 = vmatprep.subr.mxu0 0.0
        %4339 = vmatpush1.msra.mxu0 %v4313
        %4340 = vmatprep.subr.mxu0 0.0
        %4341 = vmatpush1.msra.mxu0 0.0
        %4342 = vmatprep.subr.mxu0 0.0
        %4343 = vmatpush1.msra.mxu0 0.0
        %4344 = vmatprep.subr.mxu0 0.0
        %4345 = vmatpush1.msra.mxu0 0.0
        %4346 = vmatprep.subr.mxu0 0.0
        %4347 = vmatpush1.msra.mxu0 0.0
        %4348 = vmatprep.subr.mxu0 0.0
        %4349 = vmatpush1.msra.mxu0 0.0
        %4350 = vmatprep.subr.mxu0 0.0
        %4351 = vmatpush1.msra.mxu0 0.0
        %4352 = vmatprep.subr.mxu0 0.0
        %4353 = vmatpush1.msra.mxu0 0.0
        %4354 = vmatprep.subr.mxu0 0.0
        %4355 = vmatpush1.msra.mxu0 0.0
        %4356 = vmatprep.subr.mxu0 0.0
        %4357 = vmatpush1.msra.mxu0 0.0
        %4358 = vmatprep.subr.mxu0 0.0
        %4359 = vmatpush1.msra.mxu0 0.0
        %4360 = vmatprep.subr.mxu0 0.0
        %4361 = vmatpush1.msra.mxu0 0.0
        %4362 = vmatprep.subr.mxu0 0.0
        %4363 = vmatpush1.msra.mxu0 0.0
        %4364 = vmatprep.subr.mxu0 0.0
        %4365 = vmatpush1.msra.mxu0 0.0
        %4366 = vmatprep.subr.mxu0 0.0
        %4367 = vmatpush1.msra.mxu0 0.0
        %4368 = vmatprep.subr.mxu0 0.0
        %4369 = vmatpush1.msra.mxu0 0.0
        %4370 = vmatprep.subr.mxu0 0.0
        %4371 = vmatpush1.msra.mxu0 0.0
        %4372 = vmatprep.subr.mxu0 0.0
        %4373 = vmatpush1.msra.mxu0 0.0
        %4374 = vmatprep.subr.mxu0 0.0
        %4375 = vmatpush1.msra.mxu0 0.0
        %4376 = vmatprep.subr.mxu0 0.0
        %4377 = vmatpush1.msra.mxu0 0.0
        %4378 = vmatprep.subr.mxu0 0.0
        %4379 = vmatpush1.msra.mxu0 0.0
        %4380 = vmatprep.subr.mxu0 0.0
        %4381 = vmatpush1.msra.mxu0 0.0
        %4382 = vmatprep.subr.mxu0 0.0
        %4383 = vmatpush1.msra.mxu0 0.0
        %4384 = vmatprep.subr.mxu0 0.0
        %4385 = vmatpush1.msra.mxu0 0.0
        %4386 = vmatprep.subr.mxu0 0.0
        %4387 = vmatpush1.msra.mxu0 0.0
        %4388 = vmatprep.subr.mxu0 0.0
        %4389 = vmatpush1.msra.mxu0 0.0
        %4390 = vmatprep.subr.mxu0 0.0
        %4391 = vmatpush1.msra.mxu0 0.0
        %4392 = vmatprep.subr.mxu0 0.0
        %4393 = vmatpush1.msra.mxu0 0.0
        %4394 = vmatprep.subr.mxu0 0.0
        %4395 = vmatpush1.msra.mxu0 0.0
        %4396 = vmatprep.mubr.f32.mxu0 0.0
        %4397 = vmatmul.mubr.f32.gmra.mrb[0].mxu0 %v4327
        %v4398 = vpop.f32.mrb[0].mxu0
        %v4399 = vadd.f32 %v4324, %v4398
        %v4400 = vpop.f32.mrb[0].mxu0
        %4401 = vmatprep.mubr.f32.mxu0 0.0
        %4402 = vmatmul.mubr.f32.gmra.mrb[0].mxu0 %v4330
        %v4403 = vpop.f32.mrb[0].mxu0
        %v4404 = vadd.f32 %v4324, %v4403
        %v4405 = vpop.f32.mrb[0].mxu0
        %4406 = vdwg.mxu0
        %v4407 = vmul.f32 %v4399, 0.35355338
        %v4408 = vmul.f32 %v4404, 0.35355338
        %4410 = vrot.lane.b32.xlu0 %v4399, 96
        %v4411 = vpop.permute.xlu0 %4410
        %vm4412 = vcmask 64512
        %v4414 = vsel %vm4412, %v4407, 0
        %v4416 = vsel %vm4412, %v4411, 0
        %4418 = vmatprep.subr.mxu0 0.0
        %4419 = vmatpush1.xpose.msra.mxu0 %v4416
        %4420 = vmatprep.subr.mxu0 0.0
        %4421 = vmatpush1.xpose.msra.mxu0 0.0
        %4422 = vmatprep.subr.mxu0 0.0
        %4423 = vmatpush1.xpose.msra.mxu0 0.0
        %4424 = vmatprep.subr.mxu0 0.0
        %4425 = vmatpush1.xpose.msra.mxu0 0.0
        %4426 = vmatprep.subr.mxu0 0.0
        %4427 = vmatpush1.xpose.msra.mxu0 0.0
        %4428 = vmatprep.subr.mxu0 0.0
        %4429 = vmatpush1.xpose.msra.mxu0 0.0
        %4430 = vmatprep.subr.mxu0 0.0
        %4431 = vmatpush1.xpose.msra.mxu0 0.0
        %4432 = vmatprep.subr.mxu0 0.0
        %4433 = vmatpush1.xpose.msra.mxu0 0.0
        %4434 = vmatprep.subr.mxu0 0.0
        %4435 = vmatpush1.xpose.msra.mxu0 0.0
        %4436 = vmatprep.subr.mxu0 0.0
        %4437 = vmatpush1.xpose.msra.mxu0 0.0
        %4438 = vmatprep.subr.mxu0 0.0
        %4439 = vmatpush1.xpose.msra.mxu0 0.0
        %4440 = vmatprep.subr.mxu0 0.0
        %4441 = vmatpush1.xpose.msra.mxu0 0.0
        %4442 = vmatprep.subr.mxu0 0.0
        %4443 = vmatpush1.xpose.msra.mxu0 0.0
        %4444 = vmatprep.subr.mxu0 0.0
        %4445 = vmatpush1.xpose.msra.mxu0 0.0
        %4446 = vmatprep.subr.mxu0 0.0
        %4447 = vmatpush1.xpose.msra.mxu0 0.0
        %4448 = vmatprep.subr.mxu0 0.0
        %4449 = vmatpush1.xpose.msra.mxu0 0.0
        %4450 = vmatprep.subr.mxu0 0.0
        %4451 = vmatpush1.xpose.msra.mxu0 0.0
        %4452 = vmatprep.subr.mxu0 0.0
        %4453 = vmatpush1.xpose.msra.mxu0 0.0
        %4454 = vmatprep.subr.mxu0 0.0
        %4455 = vmatpush1.xpose.msra.mxu0 0.0
        %4456 = vmatprep.subr.mxu0 0.0
        %4457 = vmatpush1.xpose.msra.mxu0 0.0
        %4458 = vmatprep.subr.mxu0 0.0
        %4459 = vmatpush1.xpose.msra.mxu0 0.0
        %4460 = vmatprep.subr.mxu0 0.0
        %4461 = vmatpush1.xpose.msra.mxu0 0.0
        %4462 = vmatprep.subr.mxu0 0.0
        %4463 = vmatpush1.xpose.msra.mxu0 0.0
        %4464 = vmatprep.subr.mxu0 0.0
        %4465 = vmatpush1.xpose.msra.mxu0 0.0
        %4466 = vmatprep.subr.mxu0 0.0
        %4467 = vmatpush1.xpose.msra.mxu0 0.0
        %4468 = vmatprep.subr.mxu0 0.0
        %4469 = vmatpush1.xpose.msra.mxu0 0.0
        %4470 = vmatprep.subr.mxu0 0.0
        %4471 = vmatpush1.xpose.msra.mxu0 0.0
        %4472 = vmatprep.subr.mxu0 0.0
        %4473 = vmatpush1.xpose.msra.mxu0 0.0
        %4474 = vmatprep.subr.mxu0 0.0
        %4475 = vmatpush1.xpose.msra.mxu0 0.0
        %4476 = vmatprep.subr.mxu0 0.0
        %4477 = vmatpush1.xpose.msra.mxu0 0.0
        %4478 = vmatprep.subr.mxu0 0.0
        %4479 = vmatpush1.xpose.msra.mxu0 0.0
        %4480 = vmatprep.subr.mxu0 0.0
        %4481 = vmatpush1.xpose.msra.mxu0 0.0
        %4482 = vmatprep.mubr.f32.mxu0 0.0
        %4483 = vmatmul.mubr.f32.gmra.mrb[0].mxu0 %v4414
        %v4484 = vpop.f32.mrb[0].mxu0
        %v4485 = vadd.f32 0.0, %v4484
        %v4486 = vpop.f32.mrb[0].mxu0
        %4487 = vdwg.mxu0
        %4489 = vrot.lane.b32.xlu0 %v4404, 96
        %v4490 = vpop.permute.xlu0 %4489
        %v4492 = vsel %vm4412, %v4408, 0
        %v4494 = vsel %vm4412, %v4490, 0
        %4496 = vmatprep.subr.mxu0 0.0
        %4497 = vmatpush1.xpose.msra.mxu0 %v4494
        %4498 = vmatprep.subr.mxu0 0.0
        %4499 = vmatpush1.xpose.msra.mxu0 0.0
        %4500 = vmatprep.subr.mxu0 0.0
        %4501 = vmatpush1.xpose.msra.mxu0 0.0
        %4502 = vmatprep.subr.mxu0 0.0
        %4503 = vmatpush1.xpose.msra.mxu0 0.0
        %4504 = vmatprep.subr.mxu0 0.0
        %4505 = vmatpush1.xpose.msra.mxu0 0.0
        %4506 = vmatprep.subr.mxu0 0.0
        %4507 = vmatpush1.xpose.msra.mxu0 0.0
        %4508 = vmatprep.subr.mxu0 0.0
        %4509 = vmatpush1.xpose.msra.mxu0 0.0
        %4510 = vmatprep.subr.mxu0 0.0
        %4511 = vmatpush1.xpose.msra.mxu0 0.0
        %4512 = vmatprep.subr.mxu0 0.0
        %4513 = vmatpush1.xpose.msra.mxu0 0.0
        %4514 = vmatprep.subr.mxu0 0.0
        %4515 = vmatpush1.xpose.msra.mxu0 0.0
        %4516 = vmatprep.subr.mxu0 0.0
        %4517 = vmatpush1.xpose.msra.mxu0 0.0
        %4518 = vmatprep.subr.mxu0 0.0
        %4519 = vmatpush1.xpose.msra.mxu0 0.0
        %4520 = vmatprep.subr.mxu0 0.0
        %4521 = vmatpush1.xpose.msra.mxu0 0.0
        %4522 = vmatprep.subr.mxu0 0.0
        %4523 = vmatpush1.xpose.msra.mxu0 0.0
        %4524 = vmatprep.subr.mxu0 0.0
        %4525 = vmatpush1.xpose.msra.mxu0 0.0
        %4526 = vmatprep.subr.mxu0 0.0
        %4527 = vmatpush1.xpose.msra.mxu0 0.0
        %4528 = vmatprep.subr.mxu0 0.0
        %4529 = vmatpush1.xpose.msra.mxu0 0.0
        %4530 = vmatprep.subr.mxu0 0.0
        %4531 = vmatpush1.xpose.msra.mxu0 0.0
        %4532 = vmatprep.subr.mxu0 0.0
        %4533 = vmatpush1.xpose.msra.mxu0 0.0
        %4534 = vmatprep.subr.mxu0 0.0
        %4535 = vmatpush1.xpose.msra.mxu0 0.0
        %4536 = vmatprep.subr.mxu0 0.0
        %4537 = vmatpush1.xpose.msra.mxu0 0.0
        %4538 = vmatprep.subr.mxu0 0.0
        %4539 = vmatpush1.xpose.msra.mxu0 0.0
        %4540 = vmatprep.subr.mxu0 0.0
        %4541 = vmatpush1.xpose.msra.mxu0 0.0
        %4542 = vmatprep.subr.mxu0 0.0
        %4543 = vmatpush1.xpose.msra.mxu0 0.0
        %4544 = vmatprep.subr.mxu0 0.0
        %4545 = vmatpush1.xpose.msra.mxu0 0.0
        %4546 = vmatprep.subr.mxu0 0.0
        %4547 = vmatpush1.xpose.msra.mxu0 0.0
        %4548 = vmatprep.subr.mxu0 0.0
        %4549 = vmatpush1.xpose.msra.mxu0 0.0
        %4550 = vmatprep.subr.mxu0 0.0
        %4551 = vmatpush1.xpose.msra.mxu0 0.0
        %4552 = vmatprep.subr.mxu0 0.0
        %4553 = vmatpush1.xpose.msra.mxu0 0.0
        %4554 = vmatprep.subr.mxu0 0.0
        %4555 = vmatpush1.xpose.msra.mxu0 0.0
        %4556 = vmatprep.subr.mxu0 0.0
        %4557 = vmatpush1.xpose.msra.mxu0 0.0
        %4558 = vmatprep.subr.mxu0 0.0
        %4559 = vmatpush1.xpose.msra.mxu0 0.0
        %4560 = vmatprep.mubr.f32.mxu0 0.0
        %4561 = vmatmul.mubr.f32.gmra.mrb[0].mxu0 %v4492
        %v4562 = vpop.f32.mrb[0].mxu0
        %v4563 = vadd.f32 0.0, %v4562
        %v4564 = vpop.f32.mrb[0].mxu0
        %4565 = vdwg.mxu0
        %v4566 = vsel %vm4412, %v4485, -inf
        %4567 = vmax.xlane.f32.xlu0 %v4566
        %v4568 = vpop.xlane.xlu0 %4567
        %v4569 = vsel %vm4412, %v4563, -inf
        %4570 = vmax.xlane.f32.xlu0 %v4569
        %v4571 = vpop.xlane.xlu0 %4570
        %v4572 = vsub.f32 %v4485, %v4568
        %v4573 = vsub.f32 %v4563, %v4571
        %v4574 = vmul.f32 %v4572, 1.442695
        %v4575 = vpow.pop %v4574
        %v4576 = vmul.f32 %v4573, 1.442695
        %v4577 = vpow.pop %v4576
        %v4578 = vsel %vm4412, %v4575, 0.0
        %4579 = vadd.xlane.f32.xlu0 %v4578
        %v4580 = vpop.xlane.xlu0 %4579
        %v4581 = vsel %vm4412, %v4577, 0.0
        %4582 = vadd.xlane.f32.xlu0 %v4581
        %v4583 = vpop.xlane.xlu0 %4582
        %v4584 = vrcp.pop %v4580
        %v4585 = vmul.f32 %v4575, %v4584
        %v4586 = vrcp.pop %v4583
        %v4587 = vmul.f32 %v4577, %v4586
        %4588 = vrot.lane.b32.xlu0 %v4399, 64
        %v4589 = vpop.permute.xlu0 %4588
        %v4592 = vsel %vm4412, %v4585, 0
        %4594 = vmatprep.subr.mxu0 0.0
        %4595 = vmatpush1.msra.mxu0 %v4589
        %4596 = vmatprep.subr.mxu0 0.0
        %4597 = vmatpush1.msra.mxu0 0.0
        %4598 = vmatprep.subr.mxu0 0.0
        %4599 = vmatpush1.msra.mxu0 0.0
        %4600 = vmatprep.subr.mxu0 0.0
        %4601 = vmatpush1.msra.mxu0 0.0
        %4602 = vmatprep.subr.mxu0 0.0
        %4603 = vmatpush1.msra.mxu0 0.0
        %4604 = vmatprep.subr.mxu0 0.0
        %4605 = vmatpush1.msra.mxu0 0.0
        %4606 = vmatprep.subr.mxu0 0.0
        %4607 = vmatpush1.msra.mxu0 0.0
        %4608 = vmatprep.subr.mxu0 0.0
        %4609 = vmatpush1.msra.mxu0 0.0
        %4610 = vmatprep.subr.mxu0 0.0
        %4611 = vmatpush1.msra.mxu0 0.0
        %4612 = vmatprep.subr.mxu0 0.0
        %4613 = vmatpush1.msra.mxu0 0.0
        %4614 = vmatprep.subr.mxu0 0.0
        %4615 = vmatpush1.msra.mxu0 0.0
        %4616 = vmatprep.subr.mxu0 0.0
        %4617 = vmatpush1.msra.mxu0 0.0
        %4618 = vmatprep.subr.mxu0 0.0
        %4619 = vmatpush1.msra.mxu0 0.0
        %4620 = vmatprep.subr.mxu0 0.0
        %4621 = vmatpush1.msra.mxu0 0.0
        %4622 = vmatprep.subr.mxu0 0.0
        %4623 = vmatpush1.msra.mxu0 0.0
        %4624 = vmatprep.subr.mxu0 0.0
        %4625 = vmatpush1.msra.mxu0 0.0
        %4626 = vmatprep.subr.mxu0 0.0
        %4627 = vmatpush1.msra.mxu0 0.0
        %4628 = vmatprep.subr.mxu0 0.0
        %4629 = vmatpush1.msra.mxu0 0.0
        %4630 = vmatprep.subr.mxu0 0.0
        %4631 = vmatpush1.msra.mxu0 0.0
        %4632 = vmatprep.subr.mxu0 0.0
        %4633 = vmatpush1.msra.mxu0 0.0
        %4634 = vmatprep.subr.mxu0 0.0
        %4635 = vmatpush1.msra.mxu0 0.0
        %4636 = vmatprep.subr.mxu0 0.0
        %4637 = vmatpush1.msra.mxu0 0.0
        %4638 = vmatprep.subr.mxu0 0.0
        %4639 = vmatpush1.msra.mxu0 0.0
        %4640 = vmatprep.subr.mxu0 0.0
        %4641 = vmatpush1.msra.mxu0 0.0
        %4642 = vmatprep.subr.mxu0 0.0
        %4643 = vmatpush1.msra.mxu0 0.0
        %4644 = vmatprep.subr.mxu0 0.0
        %4645 = vmatpush1.msra.mxu0 0.0
        %4646 = vmatprep.subr.mxu0 0.0
        %4647 = vmatpush1.msra.mxu0 0.0
        %4648 = vmatprep.subr.mxu0 0.0
        %4649 = vmatpush1.msra.mxu0 0.0
        %4650 = vmatprep.subr.mxu0 0.0
        %4651 = vmatpush1.msra.mxu0 0.0
        %4652 = vmatprep.subr.mxu0 0.0
        %4653 = vmatpush1.msra.mxu0 0.0
        %4654 = vmatprep.subr.mxu0 0.0
        %4655 = vmatpush1.msra.mxu0 0.0
        %4656 = vmatprep.subr.mxu0 0.0
        %4657 = vmatpush1.msra.mxu0 0.0
        %4658 = vmatprep.mubr.f32.mxu0 0.0
        %4659 = vmatmul.mubr.f32.gmra.mrb[0].mxu0 %v4592
        %v4660 = vpop.f32.mrb[0].mxu0
        %v4661 = vadd.f32 0.0, %v4660
        %v4662 = vpop.f32.mrb[0].mxu0
        %4663 = vdwg.mxu0
        %4664 = vrot.lane.b32.xlu0 %v4404, 64
        %v4665 = vpop.permute.xlu0 %4664
        %v4668 = vsel %vm4412, %v4587, 0
        %4670 = vmatprep.subr.mxu0 0.0
        %4671 = vmatpush1.msra.mxu0 %v4665
        %4672 = vmatprep.subr.mxu0 0.0
        %4673 = vmatpush1.msra.mxu0 0.0
        %4674 = vmatprep.subr.mxu0 0.0
        %4675 = vmatpush1.msra.mxu0 0.0
        %4676 = vmatprep.subr.mxu0 0.0
        %4677 = vmatpush1.msra.mxu0 0.0
        %4678 = vmatprep.subr.mxu0 0.0
        %4679 = vmatpush1.msra.mxu0 0.0
        %4680 = vmatprep.subr.mxu0 0.0
        %4681 = vmatpush1.msra.mxu0 0.0
        %4682 = vmatprep.subr.mxu0 0.0
        %4683 = vmatpush1.msra.mxu0 0.0
        %4684 = vmatprep.subr.mxu0 0.0
        %4685 = vmatpush1.msra.mxu0 0.0
        %4686 = vmatprep.subr.mxu0 0.0
        %4687 = vmatpush1.msra.mxu0 0.0
        %4688 = vmatprep.subr.mxu0 0.0
        %4689 = vmatpush1.msra.mxu0 0.0
        %4690 = vmatprep.subr.mxu0 0.0
        %4691 = vmatpush1.msra.mxu0 0.0
        %4692 = vmatprep.subr.mxu0 0.0
        %4693 = vmatpush1.msra.mxu0 0.0
        %4694 = vmatprep.subr.mxu0 0.0
        %4695 = vmatpush1.msra.mxu0 0.0
        %4696 = vmatprep.subr.mxu0 0.0
        %4697 = vmatpush1.msra.mxu0 0.0
        %4698 = vmatprep.subr.mxu0 0.0
        %4699 = vmatpush1.msra.mxu0 0.0
        %4700 = vmatprep.subr.mxu0 0.0
        %4701 = vmatpush1.msra.mxu0 0.0
        %4702 = vmatprep.subr.mxu0 0.0
        %4703 = vmatpush1.msra.mxu0 0.0
        %4704 = vmatprep.subr.mxu0 0.0
        %4705 = vmatpush1.msra.mxu0 0.0
        %4706 = vmatprep.subr.mxu0 0.0
        %4707 = vmatpush1.msra.mxu0 0.0
        %4708 = vmatprep.subr.mxu0 0.0
        %4709 = vmatpush1.msra.mxu0 0.0
        %4710 = vmatprep.subr.mxu0 0.0
        %4711 = vmatpush1.msra.mxu0 0.0
        %4712 = vmatprep.subr.mxu0 0.0
        %4713 = vmatpush1.msra.mxu0 0.0
        %4714 = vmatprep.subr.mxu0 0.0
        %4715 = vmatpush1.msra.mxu0 0.0
        %4716 = vmatprep.subr.mxu0 0.0
        %4717 = vmatpush1.msra.mxu0 0.0
        %4718 = vmatprep.subr.mxu0 0.0
        %4719 = vmatpush1.msra.mxu0 0.0
        %4720 = vmatprep.subr.mxu0 0.0
        %4721 = vmatpush1.msra.mxu0 0.0
        %4722 = vmatprep.subr.mxu0 0.0
        %4723 = vmatpush1.msra.mxu0 0.0
        %4724 = vmatprep.subr.mxu0 0.0
        %4725 = vmatpush1.msra.mxu0 0.0
        %4726 = vmatprep.subr.mxu0 0.0
        %4727 = vmatpush1.msra.mxu0 0.0
        %4728 = vmatprep.subr.mxu0 0.0
        %4729 = vmatpush1.msra.mxu0 0.0
        %4730 = vmatprep.subr.mxu0 0.0
        %4731 = vmatpush1.msra.mxu0 0.0
        %4732 = vmatprep.subr.mxu0 0.0
        %4733 = vmatpush1.msra.mxu0 0.0
        %4734 = vmatprep.mubr.f32.mxu0 0.0
        %4735 = vmatmul.mubr.f32.gmra.mrb[0].mxu0 %v4668
        %v4736 = vpop.f32.mrb[0].mxu0
        %v4737 = vadd.f32 0.0, %v4736
        %v4738 = vpop.f32.mrb[0].mxu0
        %4739 = vdwg.mxu0
        %4740 = vrot.lane.b32.xlu0 %v4407, 120
        %v4741 = vpop.permute.xlu0 %4740
        %4742 = vrot.lane.b32.xlu0 %v4399, 88
        %v4743 = vpop.permute.xlu0 %4742
        %v4744 = vsel %vm4412, %v4741, 0
        %v4746 = vsel %vm4412, %v4743, 0
        %4748 = vmatprep.subr.mxu0 0.0
        %4749 = vmatpush1.xpose.msra.mxu0 %v4746
        %4750 = vmatprep.subr.mxu0 0.0
        %4751 = vmatpush1.xpose.msra.mxu0 0.0
        %4752 = vmatprep.subr.mxu0 0.0
        %4753 = vmatpush1.xpose.msra.mxu0 0.0
        %4754 = vmatprep.subr.mxu0 0.0
        %4755 = vmatpush1.xpose.msra.mxu0 0.0
        %4756 = vmatprep.subr.mxu0 0.0
        %4757 = vmatpush1.xpose.msra.mxu0 0.0
        %4758 = vmatprep.subr.mxu0 0.0
        %4759 = vmatpush1.xpose.msra.mxu0 0.0
        %4760 = vmatprep.subr.mxu0 0.0
        %4761 = vmatpush1.xpose.msra.mxu0 0.0
        %4762 = vmatprep.subr.mxu0 0.0
        %4763 = vmatpush1.xpose.msra.mxu0 0.0
        %4764 = vmatprep.subr.mxu0 0.0
        %4765 = vmatpush1.xpose.msra.mxu0 0.0
        %4766 = vmatprep.subr.mxu0 0.0
        %4767 = vmatpush1.xpose.msra.mxu0 0.0
        %4768 = vmatprep.subr.mxu0 0.0
        %4769 = vmatpush1.xpose.msra.mxu0 0.0
        %4770 = vmatprep.subr.mxu0 0.0
        %4771 = vmatpush1.xpose.msra.mxu0 0.0
        %4772 = vmatprep.subr.mxu0 0.0
        %4773 = vmatpush1.xpose.msra.mxu0 0.0
        %4774 = vmatprep.subr.mxu0 0.0
        %4775 = vmatpush1.xpose.msra.mxu0 0.0
        %4776 = vmatprep.subr.mxu0 0.0
        %4777 = vmatpush1.xpose.msra.mxu0 0.0
        %4778 = vmatprep.subr.mxu0 0.0
        %4779 = vmatpush1.xpose.msra.mxu0 0.0
        %4780 = vmatprep.subr.mxu0 0.0
        %4781 = vmatpush1.xpose.msra.mxu0 0.0
        %4782 = vmatprep.subr.mxu0 0.0
        %4783 = vmatpush1.xpose.msra.mxu0 0.0
        %4784 = vmatprep.subr.mxu0 0.0
        %4785 = vmatpush1.xpose.msra.mxu0 0.0
        %4786 = vmatprep.subr.mxu0 0.0
        %4787 = vmatpush1.xpose.msra.mxu0 0.0
        %4788 = vmatprep.subr.mxu0 0.0
        %4789 = vmatpush1.xpose.msra.mxu0 0.0
        %4790 = vmatprep.subr.mxu0 0.0
        %4791 = vmatpush1.xpose.msra.mxu0 0.0
        %4792 = vmatprep.subr.mxu0 0.0
        %4793 = vmatpush1.xpose.msra.mxu0 0.0
        %4794 = vmatprep.subr.mxu0 0.0
        %4795 = vmatpush1.xpose.msra.mxu0 0.0
        %4796 = vmatprep.subr.mxu0 0.0
        %4797 = vmatpush1.xpose.msra.mxu0 0.0
        %4798 = vmatprep.subr.mxu0 0.0
        %4799 = vmatpush1.xpose.msra.mxu0 0.0
        %4800 = vmatprep.subr.mxu0 0.0
        %4801 = vmatpush1.xpose.msra.mxu0 0.0
        %4802 = vmatprep.subr.mxu0 0.0
        %4803 = vmatpush1.xpose.msra.mxu0 0.0
        %4804 = vmatprep.subr.mxu0 0.0
        %4805 = vmatpush1.xpose.msra.mxu0 0.0
        %4806 = vmatprep.subr.mxu0 0.0
        %4807 = vmatpush1.xpose.msra.mxu0 0.0
        %4808 = vmatprep.subr.mxu0 0.0
        %4809 = vmatpush1.xpose.msra.mxu0 0.0
        %4810 = vmatprep.subr.mxu0 0.0
        %4811 = vmatpush1.xpose.msra.mxu0 0.0
        %4812 = vmatprep.mubr.f32.mxu0 0.0
        %4813 = vmatmul.mubr.f32.gmra.mrb[0].mxu0 %v4744
        %v4814 = vpop.f32.mrb[0].mxu0
        %v4815 = vadd.f32 0.0, %v4814
        %v4816 = vpop.f32.mrb[0].mxu0
        %4817 = vdwg.mxu0
        %4818 = vrot.lane.b32.xlu0 %v4408, 120
        %v4819 = vpop.permute.xlu0 %4818
        %4820 = vrot.lane.b32.xlu0 %v4404, 88
        %v4821 = vpop.permute.xlu0 %4820
        %v4822 = vsel %vm4412, %v4819, 0
        %v4824 = vsel %vm4412, %v4821, 0
        %4826 = vmatprep.subr.mxu0 0.0
        %4827 = vmatpush1.xpose.msra.mxu0 %v4824
        %4828 = vmatprep.subr.mxu0 0.0
        %4829 = vmatpush1.xpose.msra.mxu0 0.0
        %4830 = vmatprep.subr.mxu0 0.0
        %4831 = vmatpush1.xpose.msra.mxu0 0.0
        %4832 = vmatprep.subr.mxu0 0.0
        %4833 = vmatpush1.xpose.msra.mxu0 0.0
        %4834 = vmatprep.subr.mxu0 0.0
        %4835 = vmatpush1.xpose.msra.mxu0 0.0
        %4836 = vmatprep.subr.mxu0 0.0
        %4837 = vmatpush1.xpose.msra.mxu0 0.0
        %4838 = vmatprep.subr.mxu0 0.0
        %4839 = vmatpush1.xpose.msra.mxu0 0.0
        %4840 = vmatprep.subr.mxu0 0.0
        %4841 = vmatpush1.xpose.msra.mxu0 0.0
        %4842 = vmatprep.subr.mxu0 0.0
        %4843 = vmatpush1.xpose.msra.mxu0 0.0
        %4844 = vmatprep.subr.mxu0 0.0
        %4845 = vmatpush1.xpose.msra.mxu0 0.0
        %4846 = vmatprep.subr.mxu0 0.0
        %4847 = vmatpush1.xpose.msra.mxu0 0.0
        %4848 = vmatprep.subr.mxu0 0.0
        %4849 = vmatpush1.xpose.msra.mxu0 0.0
        %4850 = vmatprep.subr.mxu0 0.0
        %4851 = vmatpush1.xpose.msra.mxu0 0.0
        %4852 = vmatprep.subr.mxu0 0.0
        %4853 = vmatpush1.xpose.msra.mxu0 0.0
        %4854 = vmatprep.subr.mxu0 0.0
        %4855 = vmatpush1.xpose.msra.mxu0 0.0
        %4856 = vmatprep.subr.mxu0 0.0
        %4857 = vmatpush1.xpose.msra.mxu0 0.0
        %4858 = vmatprep.subr.mxu0 0.0
        %4859 = vmatpush1.xpose.msra.mxu0 0.0
        %4860 = vmatprep.subr.mxu0 0.0
        %4861 = vmatpush1.xpose.msra.mxu0 0.0
        %4862 = vmatprep.subr.mxu0 0.0
        %4863 = vmatpush1.xpose.msra.mxu0 0.0
        %4864 = vmatprep.subr.mxu0 0.0
        %4865 = vmatpush1.xpose.msra.mxu0 0.0
        %4866 = vmatprep.subr.mxu0 0.0
        %4867 = vmatpush1.xpose.msra.mxu0 0.0
        %4868 = vmatprep.subr.mxu0 0.0
        %4869 = vmatpush1.xpose.msra.mxu0 0.0
        %4870 = vmatprep.subr.mxu0 0.0
        %4871 = vmatpush1.xpose.msra.mxu0 0.0
        %4872 = vmatprep.subr.mxu0 0.0
        %4873 = vmatpush1.xpose.msra.mxu0 0.0
        %4874 = vmatprep.subr.mxu0 0.0
        %4875 = vmatpush1.xpose.msra.mxu0 0.0
        %4876 = vmatprep.subr.mxu0 0.0
        %4877 = vmatpush1.xpose.msra.mxu0 0.0
        %4878 = vmatprep.subr.mxu0 0.0
        %4879 = vmatpush1.xpose.msra.mxu0 0.0
        %4880 = vmatprep.subr.mxu0 0.0
        %4881 = vmatpush1.xpose.msra.mxu0 0.0
        %4882 = vmatprep.subr.mxu0 0.0
        %4883 = vmatpush1.xpose.msra.mxu0 0.0
        %4884 = vmatprep.subr.mxu0 0.0
        %4885 = vmatpush1.xpose.msra.mxu0 0.0
        %4886 = vmatprep.subr.mxu0 0.0
        %4887 = vmatpush1.xpose.msra.mxu0 0.0
        %4888 = vmatprep.subr.mxu0 0.0
        %4889 = vmatpush1.xpose.msra.mxu0 0.0
        %4890 = vmatprep.mubr.f32.mxu0 0.0
        %4891 = vmatmul.mubr.f32.gmra.mrb[0].mxu0 %v4822
        %v4892 = vpop.f32.mrb[0].mxu0
        %v4893 = vadd.f32 0.0, %v4892
        %v4894 = vpop.f32.mrb[0].mxu0
        %4895 = vdwg.mxu0
        %v4896 = vsel %vm4412, %v4815, -inf
        %4897 = vmax.xlane.f32.xlu0 %v4896
        %v4898 = vpop.xlane.xlu0 %4897
        %v4899 = vsel %vm4412, %v4893, -inf
        %4900 = vmax.xlane.f32.xlu0 %v4899
        %v4901 = vpop.xlane.xlu0 %4900
        %v4902 = vsub.f32 %v4815, %v4898
        %v4903 = vsub.f32 %v4893, %v4901
        %v4904 = vmul.f32 %v4902, 1.442695
        %v4905 = vpow.pop %v4904
        %v4906 = vmul.f32 %v4903, 1.442695
        %v4907 = vpow.pop %v4906
        %v4908 = vsel %vm4412, %v4905, 0.0
        %4909 = vadd.xlane.f32.xlu0 %v4908
        %v4910 = vpop.xlane.xlu0 %4909
        %v4911 = vsel %vm4412, %v4907, 0.0
        %4912 = vadd.xlane.f32.xlu0 %v4911
        %v4913 = vpop.xlane.xlu0 %4912
        %v4914 = vrcp.pop %v4910
        %v4915 = vmul.f32 %v4905, %v4914
        %v4916 = vrcp.pop %v4913
        %v4917 = vmul.f32 %v4907, %v4916
        %4918 = vrot.lane.b32.xlu0 %v4399, 56
        %v4919 = vpop.permute.xlu0 %4918
        %v4922 = vsel %vm4412, %v4915, 0
        %4924 = vmatprep.subr.mxu0 0.0
        %4925 = vmatpush1.msra.mxu0 %v4919
        %4926 = vmatprep.subr.mxu0 0.0
        %4927 = vmatpush1.msra.mxu0 0.0
        %4928 = vmatprep.subr.mxu0 0.0
        %4929 = vmatpush1.msra.mxu0 0.0
        %4930 = vmatprep.subr.mxu0 0.0
        %4931 = vmatpush1.msra.mxu0 0.0
        %4932 = vmatprep.subr.mxu0 0.0
        %4933 = vmatpush1.msra.mxu0 0.0
        %4934 = vmatprep.subr.mxu0 0.0
        %4935 = vmatpush1.msra.mxu0 0.0
        %4936 = vmatprep.subr.mxu0 0.0
        %4937 = vmatpush1.msra.mxu0 0.0
        %4938 = vmatprep.subr.mxu0 0.0
        %4939 = vmatpush1.msra.mxu0 0.0
        %4940 = vmatprep.subr.mxu0 0.0
        %4941 = vmatpush1.msra.mxu0 0.0
        %4942 = vmatprep.subr.mxu0 0.0
        %4943 = vmatpush1.msra.mxu0 0.0
        %4944 = vmatprep.subr.mxu0 0.0
        %4945 = vmatpush1.msra.mxu0 0.0
        %4946 = vmatprep.subr.mxu0 0.0
        %4947 = vmatpush1.msra.mxu0 0.0
        %4948 = vmatprep.subr.mxu0 0.0
        %4949 = vmatpush1.msra.mxu0 0.0
        %4950 = vmatprep.subr.mxu0 0.0
        %4951 = vmatpush1.msra.mxu0 0.0
        %4952 = vmatprep.subr.mxu0 0.0
        %4953 = vmatpush1.msra.mxu0 0.0
        %4954 = vmatprep.subr.mxu0 0.0
        %4955 = vmatpush1.msra.mxu0 0.0
        %4956 = vmatprep.subr.mxu0 0.0
        %4957 = vmatpush1.msra.mxu0 0.0
        %4958 = vmatprep.subr.mxu0 0.0
        %4959 = vmatpush1.msra.mxu0 0.0
        %4960 = vmatprep.subr.mxu0 0.0
        %4961 = vmatpush1.msra.mxu0 0.0
        %4962 = vmatprep.subr.mxu0 0.0
        %4963 = vmatpush1.msra.mxu0 0.0
        %4964 = vmatprep.subr.mxu0 0.0
        %4965 = vmatpush1.msra.mxu0 0.0
        %4966 = vmatprep.subr.mxu0 0.0
        %4967 = vmatpush1.msra.mxu0 0.0
        %4968 = vmatprep.subr.mxu0 0.0
        %4969 = vmatpush1.msra.mxu0 0.0
        %4970 = vmatprep.subr.mxu0 0.0
        %4971 = vmatpush1.msra.mxu0 0.0
        %4972 = vmatprep.subr.mxu0 0.0
        %4973 = vmatpush1.msra.mxu0 0.0
        %4974 = vmatprep.subr.mxu0 0.0
        %4975 = vmatpush1.msra.mxu0 0.0
        %4976 = vmatprep.subr.mxu0 0.0
        %4977 = vmatpush1.msra.mxu0 0.0
        %4978 = vmatprep.subr.mxu0 0.0
        %4979 = vmatpush1.msra.mxu0 0.0
        %4980 = vmatprep.subr.mxu0 0.0
        %4981 = vmatpush1.msra.mxu0 0.0
        %4982 = vmatprep.subr.mxu0 0.0
        %4983 = vmatpush1.msra.mxu0 0.0
        %4984 = vmatprep.subr.mxu0 0.0
        %4985 = vmatpush1.msra.mxu0 0.0
        %4986 = vmatprep.subr.mxu0 0.0
        %4987 = vmatpush1.msra.mxu0 0.0
        %4988 = vmatprep.mubr.f32.mxu0 0.0
        %4989 = vmatmul.mubr.f32.gmra.mrb[0].mxu0 %v4922
        %v4990 = vpop.f32.mrb[0].mxu0
        %v4991 = vadd.f32 0.0, %v4990
        %v4992 = vpop.f32.mrb[0].mxu0
        %4993 = vdwg.mxu0
        %4994 = vrot.lane.b32.xlu0 %v4404, 56
        %v4995 = vpop.permute.xlu0 %4994
        %v4998 = vsel %vm4412, %v4917, 0
        %5000 = vmatprep.subr.mxu0 0.0
        %5001 = vmatpush1.msra.mxu0 %v4995
        %5002 = vmatprep.subr.mxu0 0.0
        %5003 = vmatpush1.msra.mxu0 0.0
        %5004 = vmatprep.subr.mxu0 0.0
        %5005 = vmatpush1.msra.mxu0 0.0
        %5006 = vmatprep.subr.mxu0 0.0
        %5007 = vmatpush1.msra.mxu0 0.0
        %5008 = vmatprep.subr.mxu0 0.0
        %5009 = vmatpush1.msra.mxu0 0.0
        %5010 = vmatprep.subr.mxu0 0.0
        %5011 = vmatpush1.msra.mxu0 0.0
        %5012 = vmatprep.subr.mxu0 0.0
        %5013 = vmatpush1.msra.mxu0 0.0
        %5014 = vmatprep.subr.mxu0 0.0
        %5015 = vmatpush1.msra.mxu0 0.0
        %5016 = vmatprep.subr.mxu0 0.0
        %5017 = vmatpush1.msra.mxu0 0.0
        %5018 = vmatprep.subr.mxu0 0.0
        %5019 = vmatpush1.msra.mxu0 0.0
        %5020 = vmatprep.subr.mxu0 0.0
        %5021 = vmatpush1.msra.mxu0 0.0
        %5022 = vmatprep.subr.mxu0 0.0
        %5023 = vmatpush1.msra.mxu0 0.0
        %5024 = vmatprep.subr.mxu0 0.0
        %5025 = vmatpush1.msra.mxu0 0.0
        %5026 = vmatprep.subr.mxu0 0.0
        %5027 = vmatpush1.msra.mxu0 0.0
        %5028 = vmatprep.subr.mxu0 0.0
        %5029 = vmatpush1.msra.mxu0 0.0
        %5030 = vmatprep.subr.mxu0 0.0
        %5031 = vmatpush1.msra.mxu0 0.0
        %5032 = vmatprep.subr.mxu0 0.0
        %5033 = vmatpush1.msra.mxu0 0.0
        %5034 = vmatprep.subr.mxu0 0.0
        %5035 = vmatpush1.msra.mxu0 0.0
        %5036 = vmatprep.subr.mxu0 0.0
        %5037 = vmatpush1.msra.mxu0 0.0
        %5038 = vmatprep.subr.mxu0 0.0
        %5039 = vmatpush1.msra.mxu0 0.0
        %5040 = vmatprep.subr.mxu0 0.0
        %5041 = vmatpush1.msra.mxu0 0.0
        %5042 = vmatprep.subr.mxu0 0.0
        %5043 = vmatpush1.msra.mxu0 0.0
        %5044 = vmatprep.subr.mxu0 0.0
        %5045 = vmatpush1.msra.mxu0 0.0
        %5046 = vmatprep.subr.mxu0 0.0
        %5047 = vmatpush1.msra.mxu0 0.0
        %5048 = vmatprep.subr.mxu0 0.0
        %5049 = vmatpush1.msra.mxu0 0.0
        %5050 = vmatprep.subr.mxu0 0.0
        %5051 = vmatpush1.msra.mxu0 0.0
        %5052 = vmatprep.subr.mxu0 0.0
        %5053 = vmatpush1.msra.mxu0 0.0
        %5054 = vmatprep.subr.mxu0 0.0
        %5055 = vmatpush1.msra.mxu0 0.0
        %5056 = vmatprep.subr.mxu0 0.0
        %5057 = vmatpush1.msra.mxu0 0.0
        %5058 = vmatprep.subr.mxu0 0.0
        %5059 = vmatpush1.msra.mxu0 0.0
        %5060 = vmatprep.subr.mxu0 0.0
        %5061 = vmatpush1.msra.mxu0 0.0
        %5062 = vmatprep.subr.mxu0 0.0
        %5063 = vmatpush1.msra.mxu0 0.0
        %5064 = vmatprep.mubr.f32.mxu0 0.0
        %5065 = vmatmul.mubr.f32.gmra.mrb[0].mxu0 %v4998
        %v5066 = vpop.f32.mrb[0].mxu0
        %v5067 = vadd.f32 0.0, %v5066
        %v5068 = vpop.f32.mrb[0].mxu0
        %5069 = vdwg.mxu0
        %v5071 = vsel %vm4412, %v4991, 0
        %v5074 = vsel %vm4412, %v5067, 0
        %5076 = vmatprep.subr.mxu0 0.0
        %5077 = vmatpush1.msra.mxu0 %v4316
        %5078 = vmatprep.subr.mxu0 0.0
        %5079 = vmatpush1.msra.mxu0 0.0
        %5080 = vmatprep.subr.mxu0 0.0
        %5081 = vmatpush1.msra.mxu0 0.0
        %5082 = vmatprep.subr.mxu0 0.0
        %5083 = vmatpush1.msra.mxu0 0.0
        %5084 = vmatprep.subr.mxu0 0.0
        %5085 = vmatpush1.msra.mxu0 0.0
        %5086 = vmatprep.subr.mxu0 0.0
        %5087 = vmatpush1.msra.mxu0 0.0
        %5088 = vmatprep.subr.mxu0 0.0
        %5089 = vmatpush1.msra.mxu0 0.0
        %5090 = vmatprep.subr.mxu0 0.0
        %5091 = vmatpush1.msra.mxu0 0.0
        %5092 = vmatprep.subr.mxu0 0.0
        %5093 = vmatpush1.msra.mxu0 0.0
        %5094 = vmatprep.subr.mxu0 0.0
        %5095 = vmatpush1.msra.mxu0 0.0
        %5096 = vmatprep.subr.mxu0 0.0
        %5097 = vmatpush1.msra.mxu0 0.0
        %5098 = vmatprep.subr.mxu0 0.0
        %5099 = vmatpush1.msra.mxu0 0.0
        %5100 = vmatprep.subr.mxu0 0.0
        %5101 = vmatpush1.msra.mxu0 0.0
        %5102 = vmatprep.subr.mxu0 0.0
        %5103 = vmatpush1.msra.mxu0 0.0
        %5104 = vmatprep.subr.mxu0 0.0
        %5105 = vmatpush1.msra.mxu0 0.0
        %5106 = vmatprep.subr.mxu0 0.0
        %5107 = vmatpush1.msra.mxu0 0.0
        %5108 = vmatprep.subr.mxu0 0.0
        %5109 = vmatpush1.msra.mxu0 0.0
        %5110 = vmatprep.subr.mxu0 0.0
        %5111 = vmatpush1.msra.mxu0 0.0
        %5112 = vmatprep.subr.mxu0 0.0
        %5113 = vmatpush1.msra.mxu0 0.0
        %5114 = vmatprep.subr.mxu0 0.0
        %5115 = vmatpush1.msra.mxu0 0.0
        %5116 = vmatprep.subr.mxu0 0.0
        %5117 = vmatpush1.msra.mxu0 0.0
        %5118 = vmatprep.subr.mxu0 0.0
        %5119 = vmatpush1.msra.mxu0 0.0
        %5120 = vmatprep.subr.mxu0 0.0
        %5121 = vmatpush1.msra.mxu0 0.0
        %5122 = vmatprep.subr.mxu0 0.0
        %5123 = vmatpush1.msra.mxu0 0.0
        %5124 = vmatprep.subr.mxu0 0.0
        %5125 = vmatpush1.msra.mxu0 0.0
        %5126 = vmatprep.subr.mxu0 0.0
        %5127 = vmatpush1.msra.mxu0 0.0
        %5128 = vmatprep.subr.mxu0 0.0
        %5129 = vmatpush1.msra.mxu0 0.0
        %5130 = vmatprep.subr.mxu0 0.0
        %5131 = vmatpush1.msra.mxu0 0.0
        %5132 = vmatprep.subr.mxu0 0.0
        %5133 = vmatpush1.msra.mxu0 0.0
        %5134 = vmatprep.subr.mxu0 0.0
        %5135 = vmatpush1.msra.mxu0 0.0
        %5136 = vmatprep.subr.mxu0 0.0
        %5137 = vmatpush1.msra.mxu0 0.0
        %5138 = vmatprep.subr.mxu0 0.0
        %5139 = vmatpush1.msra.mxu0 0.0
        %5140 = vmatprep.mubr.f32.mxu0 0.0
        %5141 = vmatmul.mubr.f32.gmra.mrb[0].mxu0 %v5071
        %v5142 = vpop.f32.mrb[0].mxu0
        %v5143 = vadd.f32 0.0, %v5142
        %v5144 = vpop.f32.mrb[0].mxu0
        %5145 = vmatprep.mubr.f32.mxu0 0.0
        %5146 = vmatmul.mubr.f32.gmra.mrb[0].mxu0 %v5074
        %v5147 = vpop.f32.mrb[0].mxu0
        %v5148 = vadd.f32 0.0, %v5147
        %v5149 = vpop.f32.mrb[0].mxu0
        %5150 = vdwg.mxu0
        %v5152 = vsel %vm4412, %v4661, 0
        %v5155 = vsel %vm4412, %v4737, 0
        %5157 = vmatprep.subr.mxu0 0.0
        %5158 = vmatpush1.msra.mxu0 %v4315
        %5159 = vmatprep.subr.mxu0 0.0
        %5160 = vmatpush1.msra.mxu0 0.0
        %5161 = vmatprep.subr.mxu0 0.0
        %5162 = vmatpush1.msra.mxu0 0.0
        %5163 = vmatprep.subr.mxu0 0.0
        %5164 = vmatpush1.msra.mxu0 0.0
        %5165 = vmatprep.subr.mxu0 0.0
        %5166 = vmatpush1.msra.mxu0 0.0
        %5167 = vmatprep.subr.mxu0 0.0
        %5168 = vmatpush1.msra.mxu0 0.0
        %5169 = vmatprep.subr.mxu0 0.0
        %5170 = vmatpush1.msra.mxu0 0.0
        %5171 = vmatprep.subr.mxu0 0.0
        %5172 = vmatpush1.msra.mxu0 0.0
        %5173 = vmatprep.subr.mxu0 0.0
        %5174 = vmatpush1.msra.mxu0 0.0
        %5175 = vmatprep.subr.mxu0 0.0
        %5176 = vmatpush1.msra.mxu0 0.0
        %5177 = vmatprep.subr.mxu0 0.0
        %5178 = vmatpush1.msra.mxu0 0.0
        %5179 = vmatprep.subr.mxu0 0.0
        %5180 = vmatpush1.msra.mxu0 0.0
        %5181 = vmatprep.subr.mxu0 0.0
        %5182 = vmatpush1.msra.mxu0 0.0
        %5183 = vmatprep.subr.mxu0 0.0
        %5184 = vmatpush1.msra.mxu0 0.0
        %5185 = vmatprep.subr.mxu0 0.0
        %5186 = vmatpush1.msra.mxu0 0.0
        %5187 = vmatprep.subr.mxu0 0.0
        %5188 = vmatpush1.msra.mxu0 0.0
        %5189 = vmatprep.subr.mxu0 0.0
        %5190 = vmatpush1.msra.mxu0 0.0
        %5191 = vmatprep.subr.mxu0 0.0
        %5192 = vmatpush1.msra.mxu0 0.0
        %5193 = vmatprep.subr.mxu0 0.0
        %5194 = vmatpush1.msra.mxu0 0.0
        %5195 = vmatprep.subr.mxu0 0.0
        %5196 = vmatpush1.msra.mxu0 0.0
        %5197 = vmatprep.subr.mxu0 0.0
        %5198 = vmatpush1.msra.mxu0 0.0
        %5199 = vmatprep.subr.mxu0 0.0
        %5200 = vmatpush1.msra.mxu0 0.0
        %5201 = vmatprep.subr.mxu0 0.0
        %5202 = vmatpush1.msra.mxu0 0.0
        %5203 = vmatprep.subr.mxu0 0.0
        %5204 = vmatpush1.msra.mxu0 0.0
        %5205 = vmatprep.subr.mxu0 0.0
        %5206 = vmatpush1.msra.mxu0 0.0
        %5207 = vmatprep.subr.mxu0 0.0
        %5208 = vmatpush1.msra.mxu0 0.0
        %5209 = vmatprep.subr.mxu0 0.0
        %5210 = vmatpush1.msra.mxu0 0.0
        %5211 = vmatprep.subr.mxu0 0.0
        %5212 = vmatpush1.msra.mxu0 0.0
        %5213 = vmatprep.subr.mxu0 0.0
        %5214 = vmatpush1.msra.mxu0 0.0
        %5215 = vmatprep.subr.mxu0 0.0
        %5216 = vmatpush1.msra.mxu0 0.0
        %5217 = vmatprep.subr.mxu0 0.0
        %5218 = vmatpush1.msra.mxu0 0.0
        %5219 = vmatprep.subr.mxu0 0.0
        %5220 = vmatpush1.msra.mxu0 0.0
        %5221 = vmatprep.mubr.f32.mxu0 0.0
        %5222 = vmatmul.mubr.f32.gmra.mrb[0].mxu0 %v5152
        %v5223 = vpop.f32.mrb[0].mxu0
        %v5224 = vadd.f32 %v5143, %v5223
        %v5225 = vpop.f32.mrb[0].mxu0
        %5226 = vmatprep.mubr.f32.mxu0 0.0
        %5227 = vmatmul.mubr.f32.gmra.mrb[0].mxu0 %v5155
        %v5228 = vpop.f32.mrb[0].mxu0
        %v5229 = vadd.f32 %v5148, %v5228
        %v5230 = vpop.f32.mrb[0].mxu0
        %5231 = vdwg.mxu0
        %5232 = vrot.lane.b32.xlu0 %v4407, 112
        %v5233 = vpop.permute.xlu0 %5232
        %5234 = vrot.lane.b32.xlu0 %v4399, 80
        %v5235 = vpop.permute.xlu0 %5234
        %v5236 = vsel %vm4412, %v5233, 0
        %v5238 = vsel %vm4412, %v5235, 0
        %5240 = vmatprep.subr.mxu0 0.0
        %5241 = vmatpush1.xpose.msra.mxu0 %v5238
        %5242 = vmatprep.subr.mxu0 0.0
        %5243 = vmatpush1.xpose.msra.mxu0 0.0
        %5244 = vmatprep.subr.mxu0 0.0
        %5245 = vmatpush1.xpose.msra.mxu0 0.0
        %5246 = vmatprep.subr.mxu0 0.0
        %5247 = vmatpush1.xpose.msra.mxu0 0.0
        %5248 = vmatprep.subr.mxu0 0.0
        %5249 = vmatpush1.xpose.msra.mxu0 0.0
        %5250 = vmatprep.subr.mxu0 0.0
        %5251 = vmatpush1.xpose.msra.mxu0 0.0
        %5252 = vmatprep.subr.mxu0 0.0
        %5253 = vmatpush1.xpose.msra.mxu0 0.0
        %5254 = vmatprep.subr.mxu0 0.0
        %5255 = vmatpush1.xpose.msra.mxu0 0.0
        %5256 = vmatprep.subr.mxu0 0.0
        %5257 = vmatpush1.xpose.msra.mxu0 0.0
        %5258 = vmatprep.subr.mxu0 0.0
        %5259 = vmatpush1.xpose.msra.mxu0 0.0
        %5260 = vmatprep.subr.mxu0 0.0
        %5261 = vmatpush1.xpose.msra.mxu0 0.0
        %5262 = vmatprep.subr.mxu0 0.0
        %5263 = vmatpush1.xpose.msra.mxu0 0.0
        %5264 = vmatprep.subr.mxu0 0.0
        %5265 = vmatpush1.xpose.msra.mxu0 0.0
        %5266 = vmatprep.subr.mxu0 0.0
        %5267 = vmatpush1.xpose.msra.mxu0 0.0
        %5268 = vmatprep.subr.mxu0 0.0
        %5269 = vmatpush1.xpose.msra.mxu0 0.0
        %5270 = vmatprep.subr.mxu0 0.0
        %5271 = vmatpush1.xpose.msra.mxu0 0.0
        %5272 = vmatprep.subr.mxu0 0.0
        %5273 = vmatpush1.xpose.msra.mxu0 0.0
        %5274 = vmatprep.subr.mxu0 0.0
        %5275 = vmatpush1.xpose.msra.mxu0 0.0
        %5276 = vmatprep.subr.mxu0 0.0
        %5277 = vmatpush1.xpose.msra.mxu0 0.0
        %5278 = vmatprep.subr.mxu0 0.0
        %5279 = vmatpush1.xpose.msra.mxu0 0.0
        %5280 = vmatprep.subr.mxu0 0.0
        %5281 = vmatpush1.xpose.msra.mxu0 0.0
        %5282 = vmatprep.subr.mxu0 0.0
        %5283 = vmatpush1.xpose.msra.mxu0 0.0
        %5284 = vmatprep.subr.mxu0 0.0
        %5285 = vmatpush1.xpose.msra.mxu0 0.0
        %5286 = vmatprep.subr.mxu0 0.0
        %5287 = vmatpush1.xpose.msra.mxu0 0.0
        %5288 = vmatprep.subr.mxu0 0.0
        %5289 = vmatpush1.xpose.msra.mxu0 0.0
        %5290 = vmatprep.subr.mxu0 0.0
        %5291 = vmatpush1.xpose.msra.mxu0 0.0
        %5292 = vmatprep.subr.mxu0 0.0
        %5293 = vmatpush1.xpose.msra.mxu0 0.0
        %5294 = vmatprep.subr.mxu0 0.0
        %5295 = vmatpush1.xpose.msra.mxu0 0.0
        %5296 = vmatprep.subr.mxu0 0.0
        %5297 = vmatpush1.xpose.msra.mxu0 0.0
        %5298 = vmatprep.subr.mxu0 0.0
        %5299 = vmatpush1.xpose.msra.mxu0 0.0
        %5300 = vmatprep.subr.mxu0 0.0
        %5301 = vmatpush1.xpose.msra.mxu0 0.0
        %5302 = vmatprep.subr.mxu0 0.0
        %5303 = vmatpush1.xpose.msra.mxu0 0.0
        %5304 = vmatprep.mubr.f32.mxu0 0.0
        %5305 = vmatmul.mubr.f32.gmra.mrb[0].mxu0 %v5236
        %v5306 = vpop.f32.mrb[0].mxu0
        %v5307 = vadd.f32 0.0, %v5306
        %v5308 = vpop.f32.mrb[0].mxu0
        %5309 = vdwg.mxu0
        %5310 = vrot.lane.b32.xlu0 %v4408, 112
        %v5311 = vpop.permute.xlu0 %5310
        %5312 = vrot.lane.b32.xlu0 %v4404, 80
        %v5313 = vpop.permute.xlu0 %5312
        %v5314 = vsel %vm4412, %v5311, 0
        %v5316 = vsel %vm4412, %v5313, 0
        %5318 = vmatprep.subr.mxu0 0.0
        %5319 = vmatpush1.xpose.msra.mxu0 %v5316
        %5320 = vmatprep.subr.mxu0 0.0
        %5321 = vmatpush1.xpose.msra.mxu0 0.0
        %5322 = vmatprep.subr.mxu0 0.0
        %5323 = vmatpush1.xpose.msra.mxu0 0.0
        %5324 = vmatprep.subr.mxu0 0.0
        %5325 = vmatpush1.xpose.msra.mxu0 0.0
        %5326 = vmatprep.subr.mxu0 0.0
        %5327 = vmatpush1.xpose.msra.mxu0 0.0
        %5328 = vmatprep.subr.mxu0 0.0
        %5329 = vmatpush1.xpose.msra.mxu0 0.0
        %5330 = vmatprep.subr.mxu0 0.0
        %5331 = vmatpush1.xpose.msra.mxu0 0.0
        %5332 = vmatprep.subr.mxu0 0.0
        %5333 = vmatpush1.xpose.msra.mxu0 0.0
        %5334 = vmatprep.subr.mxu0 0.0
        %5335 = vmatpush1.xpose.msra.mxu0 0.0
        %5336 = vmatprep.subr.mxu0 0.0
        %5337 = vmatpush1.xpose.msra.mxu0 0.0
        %5338 = vmatprep.subr.mxu0 0.0
        %5339 = vmatpush1.xpose.msra.mxu0 0.0
        %5340 = vmatprep.subr.mxu0 0.0
        %5341 = vmatpush1.xpose.msra.mxu0 0.0
        %5342 = vmatprep.subr.mxu0 0.0
        %5343 = vmatpush1.xpose.msra.mxu0 0.0
        %5344 = vmatprep.subr.mxu0 0.0
        %5345 = vmatpush1.xpose.msra.mxu0 0.0
        %5346 = vmatprep.subr.mxu0 0.0
        %5347 = vmatpush1.xpose.msra.mxu0 0.0
        %5348 = vmatprep.subr.mxu0 0.0
        %5349 = vmatpush1.xpose.msra.mxu0 0.0
        %5350 = vmatprep.subr.mxu0 0.0
        %5351 = vmatpush1.xpose.msra.mxu0 0.0
        %5352 = vmatprep.subr.mxu0 0.0
        %5353 = vmatpush1.xpose.msra.mxu0 0.0
        %5354 = vmatprep.subr.mxu0 0.0
        %5355 = vmatpush1.xpose.msra.mxu0 0.0
        %5356 = vmatprep.subr.mxu0 0.0
        %5357 = vmatpush1.xpose.msra.mxu0 0.0
        %5358 = vmatprep.subr.mxu0 0.0
        %5359 = vmatpush1.xpose.msra.mxu0 0.0
        %5360 = vmatprep.subr.mxu0 0.0
        %5361 = vmatpush1.xpose.msra.mxu0 0.0
        %5362 = vmatprep.subr.mxu0 0.0
        %5363 = vmatpush1.xpose.msra.mxu0 0.0
        %5364 = vmatprep.subr.mxu0 0.0
        %5365 = vmatpush1.xpose.msra.mxu0 0.0
        %5366 = vmatprep.subr.mxu0 0.0
        %5367 = vmatpush1.xpose.msra.mxu0 0.0
        %5368 = vmatprep.subr.mxu0 0.0
        %5369 = vmatpush1.xpose.msra.mxu0 0.0
        %5370 = vmatprep.subr.mxu0 0.0
        %5371 = vmatpush1.xpose.msra.mxu0 0.0
        %5372 = vmatprep.subr.mxu0 0.0
        %5373 = vmatpush1.xpose.msra.mxu0 0.0
        %5374 = vmatprep.subr.mxu0 0.0
        %5375 = vmatpush1.xpose.msra.mxu0 0.0
        %5376 = vmatprep.subr.mxu0 0.0
        %5377 = vmatpush1.xpose.msra.mxu0 0.0
        %5378 = vmatprep.subr.mxu0 0.0
        %5379 = vmatpush1.xpose.msra.mxu0 0.0
        %5380 = vmatprep.subr.mxu0 0.0
        %5381 = vmatpush1.xpose.msra.mxu0 0.0
        %5382 = vmatprep.mubr.f32.mxu0 0.0
        %5383 = vmatmul.mubr.f32.gmra.mrb[0].mxu0 %v5314
        %v5384 = vpop.f32.mrb[0].mxu0
        %v5385 = vadd.f32 0.0, %v5384
        %v5386 = vpop.f32.mrb[0].mxu0
        %5387 = vdwg.mxu0
        %v5388 = vsel %vm4412, %v5307, -inf
        %5389 = vmax.xlane.f32.xlu0 %v5388
        %v5390 = vpop.xlane.xlu0 %5389
        %v5391 = vsel %vm4412, %v5385, -inf
        %5392 = vmax.xlane.f32.xlu0 %v5391
        %v5393 = vpop.xlane.xlu0 %5392
        %v5394 = vsub.f32 %v5307, %v5390
        %v5395 = vsub.f32 %v5385, %v5393
        %v5396 = vmul.f32 %v5394, 1.442695
        %v5397 = vpow.pop %v5396
        %v5398 = vmul.f32 %v5395, 1.442695
        %v5399 = vpow.pop %v5398
        %v5400 = vsel %vm4412, %v5397, 0.0
        %5401 = vadd.xlane.f32.xlu0 %v5400
        %v5402 = vpop.xlane.xlu0 %5401
        %v5403 = vsel %vm4412, %v5399, 0.0
        %5404 = vadd.xlane.f32.xlu0 %v5403
        %v5405 = vpop.xlane.xlu0 %5404
        %v5406 = vrcp.pop %v5402
        %v5407 = vmul.f32 %v5397, %v5406
        %v5408 = vrcp.pop %v5405
        %v5409 = vmul.f32 %v5399, %v5408
        %5410 = vrot.lane.b32.xlu0 %v4399, 48
        %v5411 = vpop.permute.xlu0 %5410
        %v5414 = vsel %vm4412, %v5407, 0
        %5416 = vmatprep.subr.mxu0 0.0
        %5417 = vmatpush1.msra.mxu0 %v5411
        %5418 = vmatprep.subr.mxu0 0.0
        %5419 = vmatpush1.msra.mxu0 0.0
        %5420 = vmatprep.subr.mxu0 0.0
        %5421 = vmatpush1.msra.mxu0 0.0
        %5422 = vmatprep.subr.mxu0 0.0
        %5423 = vmatpush1.msra.mxu0 0.0
        %5424 = vmatprep.subr.mxu0 0.0
        %5425 = vmatpush1.msra.mxu0 0.0
        %5426 = vmatprep.subr.mxu0 0.0
        %5427 = vmatpush1.msra.mxu0 0.0
        %5428 = vmatprep.subr.mxu0 0.0
        %5429 = vmatpush1.msra.mxu0 0.0
        %5430 = vmatprep.subr.mxu0 0.0
        %5431 = vmatpush1.msra.mxu0 0.0
        %5432 = vmatprep.subr.mxu0 0.0
        %5433 = vmatpush1.msra.mxu0 0.0
        %5434 = vmatprep.subr.mxu0 0.0
        %5435 = vmatpush1.msra.mxu0 0.0
        %5436 = vmatprep.subr.mxu0 0.0
        %5437 = vmatpush1.msra.mxu0 0.0
        %5438 = vmatprep.subr.mxu0 0.0
        %5439 = vmatpush1.msra.mxu0 0.0
        %5440 = vmatprep.subr.mxu0 0.0
        %5441 = vmatpush1.msra.mxu0 0.0
        %5442 = vmatprep.subr.mxu0 0.0
        %5443 = vmatpush1.msra.mxu0 0.0
        %5444 = vmatprep.subr.mxu0 0.0
        %5445 = vmatpush1.msra.mxu0 0.0
        %5446 = vmatprep.subr.mxu0 0.0
        %5447 = vmatpush1.msra.mxu0 0.0
        %5448 = vmatprep.subr.mxu0 0.0
        %5449 = vmatpush1.msra.mxu0 0.0
        %5450 = vmatprep.subr.mxu0 0.0
        %5451 = vmatpush1.msra.mxu0 0.0
        %5452 = vmatprep.subr.mxu0 0.0
        %5453 = vmatpush1.msra.mxu0 0.0
        %5454 = vmatprep.subr.mxu0 0.0
        %5455 = vmatpush1.msra.mxu0 0.0
        %5456 = vmatprep.subr.mxu0 0.0
        %5457 = vmatpush1.msra.mxu0 0.0
        %5458 = vmatprep.subr.mxu0 0.0
        %5459 = vmatpush1.msra.mxu0 0.0
        %5460 = vmatprep.subr.mxu0 0.0
        %5461 = vmatpush1.msra.mxu0 0.0
        %5462 = vmatprep.subr.mxu0 0.0
        %5463 = vmatpush1.msra.mxu0 0.0
        %5464 = vmatprep.subr.mxu0 0.0
        %5465 = vmatpush1.msra.mxu0 0.0
        %5466 = vmatprep.subr.mxu0 0.0
        %5467 = vmatpush1.msra.mxu0 0.0
        %5468 = vmatprep.subr.mxu0 0.0
        %5469 = vmatpush1.msra.mxu0 0.0
        %5470 = vmatprep.subr.mxu0 0.0
        %5471 = vmatpush1.msra.mxu0 0.0
        %5472 = vmatprep.subr.mxu0 0.0
        %5473 = vmatpush1.msra.mxu0 0.0
        %5474 = vmatprep.subr.mxu0 0.0
        %5475 = vmatpush1.msra.mxu0 0.0
        %5476 = vmatprep.subr.mxu0 0.0
        %5477 = vmatpush1.msra.mxu0 0.0
        %5478 = vmatprep.subr.mxu0 0.0
        %5479 = vmatpush1.msra.mxu0 0.0
        %5480 = vmatprep.mubr.f32.mxu0 0.0
        %5481 = vmatmul.mubr.f32.gmra.mrb[0].mxu0 %v5414
        %v5482 = vpop.f32.mrb[0].mxu0
        %v5483 = vadd.f32 0.0, %v5482
        %v5484 = vpop.f32.mrb[0].mxu0
        %5485 = vdwg.mxu0
        %5486 = vrot.lane.b32.xlu0 %v4404, 48
        %v5487 = vpop.permute.xlu0 %5486
        %v5490 = vsel %vm4412, %v5409, 0
        %5492 = vmatprep.subr.mxu0 0.0
        %5493 = vmatpush1.msra.mxu0 %v5487
        %5494 = vmatprep.subr.mxu0 0.0
        %5495 = vmatpush1.msra.mxu0 0.0
        %5496 = vmatprep.subr.mxu0 0.0
        %5497 = vmatpush1.msra.mxu0 0.0
        %5498 = vmatprep.subr.mxu0 0.0
        %5499 = vmatpush1.msra.mxu0 0.0
        %5500 = vmatprep.subr.mxu0 0.0
        %5501 = vmatpush1.msra.mxu0 0.0
        %5502 = vmatprep.subr.mxu0 0.0
        %5503 = vmatpush1.msra.mxu0 0.0
        %5504 = vmatprep.subr.mxu0 0.0
        %5505 = vmatpush1.msra.mxu0 0.0
        %5506 = vmatprep.subr.mxu0 0.0
        %5507 = vmatpush1.msra.mxu0 0.0
        %5508 = vmatprep.subr.mxu0 0.0
        %5509 = vmatpush1.msra.mxu0 0.0
        %5510 = vmatprep.subr.mxu0 0.0
        %5511 = vmatpush1.msra.mxu0 0.0
        %5512 = vmatprep.subr.mxu0 0.0
        %5513 = vmatpush1.msra.mxu0 0.0
        %5514 = vmatprep.subr.mxu0 0.0
        %5515 = vmatpush1.msra.mxu0 0.0
        %5516 = vmatprep.subr.mxu0 0.0
        %5517 = vmatpush1.msra.mxu0 0.0
        %5518 = vmatprep.subr.mxu0 0.0
        %5519 = vmatpush1.msra.mxu0 0.0
        %5520 = vmatprep.subr.mxu0 0.0
        %5521 = vmatpush1.msra.mxu0 0.0
        %5522 = vmatprep.subr.mxu0 0.0
        %5523 = vmatpush1.msra.mxu0 0.0
        %5524 = vmatprep.subr.mxu0 0.0
        %5525 = vmatpush1.msra.mxu0 0.0
        %5526 = vmatprep.subr.mxu0 0.0
        %5527 = vmatpush1.msra.mxu0 0.0
        %5528 = vmatprep.subr.mxu0 0.0
        %5529 = vmatpush1.msra.mxu0 0.0
        %5530 = vmatprep.subr.mxu0 0.0
        %5531 = vmatpush1.msra.mxu0 0.0
        %5532 = vmatprep.subr.mxu0 0.0
        %5533 = vmatpush1.msra.mxu0 0.0
        %5534 = vmatprep.subr.mxu0 0.0
        %5535 = vmatpush1.msra.mxu0 0.0
        %5536 = vmatprep.subr.mxu0 0.0
        %5537 = vmatpush1.msra.mxu0 0.0
        %5538 = vmatprep.subr.mxu0 0.0
        %5539 = vmatpush1.msra.mxu0 0.0
        %5540 = vmatprep.subr.mxu0 0.0
        %5541 = vmatpush1.msra.mxu0 0.0
        %5542 = vmatprep.subr.mxu0 0.0
        %5543 = vmatpush1.msra.mxu0 0.0
        %5544 = vmatprep.subr.mxu0 0.0
        %5545 = vmatpush1.msra.mxu0 0.0
        %5546 = vmatprep.subr.mxu0 0.0
        %5547 = vmatpush1.msra.mxu0 0.0
        %5548 = vmatprep.subr.mxu0 0.0
        %5549 = vmatpush1.msra.mxu0 0.0
        %5550 = vmatprep.subr.mxu0 0.0
        %5551 = vmatpush1.msra.mxu0 0.0
        %5552 = vmatprep.subr.mxu0 0.0
        %5553 = vmatpush1.msra.mxu0 0.0
        %5554 = vmatprep.subr.mxu0 0.0
        %5555 = vmatpush1.msra.mxu0 0.0
        %5556 = vmatprep.mubr.f32.mxu0 0.0
        %5557 = vmatmul.mubr.f32.gmra.mrb[0].mxu0 %v5490
        %v5558 = vpop.f32.mrb[0].mxu0
        %v5559 = vadd.f32 0.0, %v5558
        %v5560 = vpop.f32.mrb[0].mxu0
        %5561 = vdwg.mxu0
        %v5563 = vsel %vm4412, %v5483, 0
        %v5566 = vsel %vm4412, %v5559, 0
        %5568 = vmatprep.subr.mxu0 0.0
        %5569 = vmatpush1.msra.mxu0 %v4317
        %5570 = vmatprep.subr.mxu0 0.0
        %5571 = vmatpush1.msra.mxu0 0.0
        %5572 = vmatprep.subr.mxu0 0.0
        %5573 = vmatpush1.msra.mxu0 0.0
        %5574 = vmatprep.subr.mxu0 0.0
        %5575 = vmatpush1.msra.mxu0 0.0
        %5576 = vmatprep.subr.mxu0 0.0
        %5577 = vmatpush1.msra.mxu0 0.0
        %5578 = vmatprep.subr.mxu0 0.0
        %5579 = vmatpush1.msra.mxu0 0.0
        %5580 = vmatprep.subr.mxu0 0.0
        %5581 = vmatpush1.msra.mxu0 0.0
        %5582 = vmatprep.subr.mxu0 0.0
        %5583 = vmatpush1.msra.mxu0 0.0
        %5584 = vmatprep.subr.mxu0 0.0
        %5585 = vmatpush1.msra.mxu0 0.0
        %5586 = vmatprep.subr.mxu0 0.0
        %5587 = vmatpush1.msra.mxu0 0.0
        %5588 = vmatprep.subr.mxu0 0.0
        %5589 = vmatpush1.msra.mxu0 0.0
        %5590 = vmatprep.subr.mxu0 0.0
        %5591 = vmatpush1.msra.mxu0 0.0
        %5592 = vmatprep.subr.mxu0 0.0
        %5593 = vmatpush1.msra.mxu0 0.0
        %5594 = vmatprep.subr.mxu0 0.0
        %5595 = vmatpush1.msra.mxu0 0.0
        %5596 = vmatprep.subr.mxu0 0.0
        %5597 = vmatpush1.msra.mxu0 0.0
        %5598 = vmatprep.subr.mxu0 0.0
        %5599 = vmatpush1.msra.mxu0 0.0
        %5600 = vmatprep.subr.mxu0 0.0
        %5601 = vmatpush1.msra.mxu0 0.0
        %5602 = vmatprep.subr.mxu0 0.0
        %5603 = vmatpush1.msra.mxu0 0.0
        %5604 = vmatprep.subr.mxu0 0.0
        %5605 = vmatpush1.msra.mxu0 0.0
        %5606 = vmatprep.subr.mxu0 0.0
        %5607 = vmatpush1.msra.mxu0 0.0
        %5608 = vmatprep.subr.mxu0 0.0
        %5609 = vmatpush1.msra.mxu0 0.0
        %5610 = vmatprep.subr.mxu0 0.0
        %5611 = vmatpush1.msra.mxu0 0.0
        %5612 = vmatprep.subr.mxu0 0.0
        %5613 = vmatpush1.msra.mxu0 0.0
        %5614 = vmatprep.subr.mxu0 0.0
        %5615 = vmatpush1.msra.mxu0 0.0
        %5616 = vmatprep.subr.mxu0 0.0
        %5617 = vmatpush1.msra.mxu0 0.0
        %5618 = vmatprep.subr.mxu0 0.0
        %5619 = vmatpush1.msra.mxu0 0.0
        %5620 = vmatprep.subr.mxu0 0.0
        %5621 = vmatpush1.msra.mxu0 0.0
        %5622 = vmatprep.subr.mxu0 0.0
        %5623 = vmatpush1.msra.mxu0 0.0
        %5624 = vmatprep.subr.mxu0 0.0
        %5625 = vmatpush1.msra.mxu0 0.0
        %5626 = vmatprep.subr.mxu0 0.0
        %5627 = vmatpush1.msra.mxu0 0.0
        %5628 = vmatprep.subr.mxu0 0.0
        %5629 = vmatpush1.msra.mxu0 0.0
        %5630 = vmatprep.subr.mxu0 0.0
        %5631 = vmatpush1.msra.mxu0 0.0
        %5632 = vmatprep.mubr.f32.mxu0 0.0
        %5633 = vmatmul.mubr.f32.gmra.mrb[0].mxu0 %v5563
        %v5634 = vpop.f32.mrb[0].mxu0
        %v5635 = vadd.f32 0.0, %v5634
        %v5636 = vpop.f32.mrb[0].mxu0
        %5637 = vmatprep.mubr.f32.mxu0 0.0
        %5638 = vmatmul.mubr.f32.gmra.mrb[0].mxu0 %v5566
        %v5639 = vpop.f32.mrb[0].mxu0
        %v5640 = vadd.f32 0.0, %v5639
        %v5641 = vpop.f32.mrb[0].mxu0
        %5642 = vdwg.mxu0
        %v5643 = vadd.f32 %v5224, %v5635
        %v5644 = vadd.f32 %v5229, %v5640
        %5645 = vrot.lane.b32.xlu0 %v4407, 104
        %v5646 = vpop.permute.xlu0 %5645
        %5647 = vrot.lane.b32.xlu0 %v4399, 72
        %v5648 = vpop.permute.xlu0 %5647
        %v5649 = vsel %vm4412, %v5646, 0
        %v5651 = vsel %vm4412, %v5648, 0
        %5653 = vmatprep.subr.mxu0 0.0
        %5654 = vmatpush1.xpose.msra.mxu0 %v5651
        %5655 = vmatprep.subr.mxu0 0.0
        %5656 = vmatpush1.xpose.msra.mxu0 0.0
        %5657 = vmatprep.subr.mxu0 0.0
        %5658 = vmatpush1.xpose.msra.mxu0 0.0
        %5659 = vmatprep.subr.mxu0 0.0
        %5660 = vmatpush1.xpose.msra.mxu0 0.0
        %5661 = vmatprep.subr.mxu0 0.0
        %5662 = vmatpush1.xpose.msra.mxu0 0.0
        %5663 = vmatprep.subr.mxu0 0.0
        %5664 = vmatpush1.xpose.msra.mxu0 0.0
        %5665 = vmatprep.subr.mxu0 0.0
        %5666 = vmatpush1.xpose.msra.mxu0 0.0
        %5667 = vmatprep.subr.mxu0 0.0
        %5668 = vmatpush1.xpose.msra.mxu0 0.0
        %5669 = vmatprep.subr.mxu0 0.0
        %5670 = vmatpush1.xpose.msra.mxu0 0.0
        %5671 = vmatprep.subr.mxu0 0.0
        %5672 = vmatpush1.xpose.msra.mxu0 0.0
        %5673 = vmatprep.subr.mxu0 0.0
        %5674 = vmatpush1.xpose.msra.mxu0 0.0
        %5675 = vmatprep.subr.mxu0 0.0
        %5676 = vmatpush1.xpose.msra.mxu0 0.0
        %5677 = vmatprep.subr.mxu0 0.0
        %5678 = vmatpush1.xpose.msra.mxu0 0.0
        %5679 = vmatprep.subr.mxu0 0.0
        %5680 = vmatpush1.xpose.msra.mxu0 0.0
        %5681 = vmatprep.subr.mxu0 0.0
        %5682 = vmatpush1.xpose.msra.mxu0 0.0
        %5683 = vmatprep.subr.mxu0 0.0
        %5684 = vmatpush1.xpose.msra.mxu0 0.0
        %5685 = vmatprep.subr.mxu0 0.0
        %5686 = vmatpush1.xpose.msra.mxu0 0.0
        %5687 = vmatprep.subr.mxu0 0.0
        %5688 = vmatpush1.xpose.msra.mxu0 0.0
        %5689 = vmatprep.subr.mxu0 0.0
        %5690 = vmatpush1.xpose.msra.mxu0 0.0
        %5691 = vmatprep.subr.mxu0 0.0
        %5692 = vmatpush1.xpose.msra.mxu0 0.0
        %5693 = vmatprep.subr.mxu0 0.0
        %5694 = vmatpush1.xpose.msra.mxu0 0.0
        %5695 = vmatprep.subr.mxu0 0.0
        %5696 = vmatpush1.xpose.msra.mxu0 0.0
        %5697 = vmatprep.subr.mxu0 0.0
        %5698 = vmatpush1.xpose.msra.mxu0 0.0
        %5699 = vmatprep.subr.mxu0 0.0
        %5700 = vmatpush1.xpose.msra.mxu0 0.0
        %5701 = vmatprep.subr.mxu0 0.0
        %5702 = vmatpush1.xpose.msra.mxu0 0.0
        %5703 = vmatprep.subr.mxu0 0.0
        %5704 = vmatpush1.xpose.msra.mxu0 0.0
        %5705 = vmatprep.subr.mxu0 0.0
        %5706 = vmatpush1.xpose.msra.mxu0 0.0
        %5707 = vmatprep.subr.mxu0 0.0
        %5708 = vmatpush1.xpose.msra.mxu0 0.0
        %5709 = vmatprep.subr.mxu0 0.0
        %5710 = vmatpush1.xpose.msra.mxu0 0.0
        %5711 = vmatprep.subr.mxu0 0.0
        %5712 = vmatpush1.xpose.msra.mxu0 0.0
        %5713 = vmatprep.subr.mxu0 0.0
        %5714 = vmatpush1.xpose.msra.mxu0 0.0
        %5715 = vmatprep.subr.mxu0 0.0
        %5716 = vmatpush1.xpose.msra.mxu0 0.0
        %5717 = vmatprep.mubr.f32.mxu0 0.0
        %5718 = vmatmul.mubr.f32.gmra.mrb[0].mxu0 %v5649
        %v5719 = vpop.f32.mrb[0].mxu0
        %v5720 = vadd.f32 0.0, %v5719
        %v5721 = vpop.f32.mrb[0].mxu0
        %5722 = vdwg.mxu0
        %5723 = vrot.lane.b32.xlu0 %v4408, 104
        %v5724 = vpop.permute.xlu0 %5723
        %5725 = vrot.lane.b32.xlu0 %v4404, 72
        %v5726 = vpop.permute.xlu0 %5725
        %v5727 = vsel %vm4412, %v5724, 0
        %v5729 = vsel %vm4412, %v5726, 0
        %5731 = vmatprep.subr.mxu0 0.0
        %5732 = vmatpush1.xpose.msra.mxu0 %v5729
        %5733 = vmatprep.subr.mxu0 0.0
        %5734 = vmatpush1.xpose.msra.mxu0 0.0
        %5735 = vmatprep.subr.mxu0 0.0
        %5736 = vmatpush1.xpose.msra.mxu0 0.0
        %5737 = vmatprep.subr.mxu0 0.0
        %5738 = vmatpush1.xpose.msra.mxu0 0.0
        %5739 = vmatprep.subr.mxu0 0.0
        %5740 = vmatpush1.xpose.msra.mxu0 0.0
        %5741 = vmatprep.subr.mxu0 0.0
        %5742 = vmatpush1.xpose.msra.mxu0 0.0
        %5743 = vmatprep.subr.mxu0 0.0
        %5744 = vmatpush1.xpose.msra.mxu0 0.0
        %5745 = vmatprep.subr.mxu0 0.0
        %5746 = vmatpush1.xpose.msra.mxu0 0.0
        %5747 = vmatprep.subr.mxu0 0.0
        %5748 = vmatpush1.xpose.msra.mxu0 0.0
        %5749 = vmatprep.subr.mxu0 0.0
        %5750 = vmatpush1.xpose.msra.mxu0 0.0
        %5751 = vmatprep.subr.mxu0 0.0
        %5752 = vmatpush1.xpose.msra.mxu0 0.0
        %5753 = vmatprep.subr.mxu0 0.0
        %5754 = vmatpush1.xpose.msra.mxu0 0.0
        %5755 = vmatprep.subr.mxu0 0.0
        %5756 = vmatpush1.xpose.msra.mxu0 0.0
        %5757 = vmatprep.subr.mxu0 0.0
        %5758 = vmatpush1.xpose.msra.mxu0 0.0
        %5759 = vmatprep.subr.mxu0 0.0
        %5760 = vmatpush1.xpose.msra.mxu0 0.0
        %5761 = vmatprep.subr.mxu0 0.0
        %5762 = vmatpush1.xpose.msra.mxu0 0.0
        %5763 = vmatprep.subr.mxu0 0.0
        %5764 = vmatpush1.xpose.msra.mxu0 0.0
        %5765 = vmatprep.subr.mxu0 0.0
        %5766 = vmatpush1.xpose.msra.mxu0 0.0
        %5767 = vmatprep.subr.mxu0 0.0
        %5768 = vmatpush1.xpose.msra.mxu0 0.0
        %5769 = vmatprep.subr.mxu0 0.0
        %5770 = vmatpush1.xpose.msra.mxu0 0.0
        %5771 = vmatprep.subr.mxu0 0.0
        %5772 = vmatpush1.xpose.msra.mxu0 0.0
        %5773 = vmatprep.subr.mxu0 0.0
        %5774 = vmatpush1.xpose.msra.mxu0 0.0
        %5775 = vmatprep.subr.mxu0 0.0
        %5776 = vmatpush1.xpose.msra.mxu0 0.0
        %5777 = vmatprep.subr.mxu0 0.0
        %5778 = vmatpush1.xpose.msra.mxu0 0.0
        %5779 = vmatprep.subr.mxu0 0.0
        %5780 = vmatpush1.xpose.msra.mxu0 0.0
        %5781 = vmatprep.subr.mxu0 0.0
        %5782 = vmatpush1.xpose.msra.mxu0 0.0
        %5783 = vmatprep.subr.mxu0 0.0
        %5784 = vmatpush1.xpose.msra.mxu0 0.0
        %5785 = vmatprep.subr.mxu0 0.0
        %5786 = vmatpush1.xpose.msra.mxu0 0.0
        %5787 = vmatprep.subr.mxu0 0.0
        %5788 = vmatpush1.xpose.msra.mxu0 0.0
        %5789 = vmatprep.subr.mxu0 0.0
        %5790 = vmatpush1.xpose.msra.mxu0 0.0
        %5791 = vmatprep.subr.mxu0 0.0
        %5792 = vmatpush1.xpose.msra.mxu0 0.0
        %5793 = vmatprep.subr.mxu0 0.0
        %5794 = vmatpush1.xpose.msra.mxu0 0.0
        %5795 = vmatprep.mubr.f32.mxu0 0.0
        %5796 = vmatmul.mubr.f32.gmra.mrb[0].mxu0 %v5727
        %v5797 = vpop.f32.mrb[0].mxu0
        %v5798 = vadd.f32 0.0, %v5797
        %v5799 = vpop.f32.mrb[0].mxu0
        %5800 = vdwg.mxu0
        %v5801 = vsel %vm4412, %v5720, -inf
        %5802 = vmax.xlane.f32.xlu0 %v5801
        %v5803 = vpop.xlane.xlu0 %5802
        %v5804 = vsel %vm4412, %v5798, -inf
        %5805 = vmax.xlane.f32.xlu0 %v5804
        %v5806 = vpop.xlane.xlu0 %5805
        %v5807 = vsub.f32 %v5720, %v5803
        %v5808 = vsub.f32 %v5798, %v5806
        %v5809 = vmul.f32 %v5807, 1.442695
        %v5810 = vpow.pop %v5809
        %v5811 = vmul.f32 %v5808, 1.442695
        %v5812 = vpow.pop %v5811
        %v5813 = vsel %vm4412, %v5810, 0.0
        %5814 = vadd.xlane.f32.xlu0 %v5813
        %v5815 = vpop.xlane.xlu0 %5814
        %v5816 = vsel %vm4412, %v5812, 0.0
        %5817 = vadd.xlane.f32.xlu0 %v5816
        %v5818 = vpop.xlane.xlu0 %5817
        %v5819 = vrcp.pop %v5815
        %v5820 = vmul.f32 %v5810, %v5819
        %v5821 = vrcp.pop %v5818
        %v5822 = vmul.f32 %v5812, %v5821
        %5823 = vrot.lane.b32.xlu0 %v4399, 40
        %v5824 = vpop.permute.xlu0 %5823
        %v5827 = vsel %vm4412, %v5820, 0
        %5829 = vmatprep.subr.mxu0 0.0
        %5830 = vmatpush1.msra.mxu0 %v5824
        %5831 = vmatprep.subr.mxu0 0.0
        %5832 = vmatpush1.msra.mxu0 0.0
        %5833 = vmatprep.subr.mxu0 0.0
        %5834 = vmatpush1.msra.mxu0 0.0
        %5835 = vmatprep.subr.mxu0 0.0
        %5836 = vmatpush1.msra.mxu0 0.0
        %5837 = vmatprep.subr.mxu0 0.0
        %5838 = vmatpush1.msra.mxu0 0.0
        %5839 = vmatprep.subr.mxu0 0.0
        %5840 = vmatpush1.msra.mxu0 0.0
        %5841 = vmatprep.subr.mxu0 0.0
        %5842 = vmatpush1.msra.mxu0 0.0
        %5843 = vmatprep.subr.mxu0 0.0
        %5844 = vmatpush1.msra.mxu0 0.0
        %5845 = vmatprep.subr.mxu0 0.0
        %5846 = vmatpush1.msra.mxu0 0.0
        %5847 = vmatprep.subr.mxu0 0.0
        %5848 = vmatpush1.msra.mxu0 0.0
        %5849 = vmatprep.subr.mxu0 0.0
        %5850 = vmatpush1.msra.mxu0 0.0
        %5851 = vmatprep.subr.mxu0 0.0
        %5852 = vmatpush1.msra.mxu0 0.0
        %5853 = vmatprep.subr.mxu0 0.0
        %5854 = vmatpush1.msra.mxu0 0.0
        %5855 = vmatprep.subr.mxu0 0.0
        %5856 = vmatpush1.msra.mxu0 0.0
        %5857 = vmatprep.subr.mxu0 0.0
        %5858 = vmatpush1.msra.mxu0 0.0
        %5859 = vmatprep.subr.mxu0 0.0
        %5860 = vmatpush1.msra.mxu0 0.0
        %5861 = vmatprep.subr.mxu0 0.0
        %5862 = vmatpush1.msra.mxu0 0.0
        %5863 = vmatprep.subr.mxu0 0.0
        %5864 = vmatpush1.msra.mxu0 0.0
        %5865 = vmatprep.subr.mxu0 0.0
        %5866 = vmatpush1.msra.mxu0 0.0
        %5867 = vmatprep.subr.mxu0 0.0
        %5868 = vmatpush1.msra.mxu0 0.0
        %5869 = vmatprep.subr.mxu0 0.0
        %5870 = vmatpush1.msra.mxu0 0.0
        %5871 = vmatprep.subr.mxu0 0.0
        %5872 = vmatpush1.msra.mxu0 0.0
        %5873 = vmatprep.subr.mxu0 0.0
        %5874 = vmatpush1.msra.mxu0 0.0
        %5875 = vmatprep.subr.mxu0 0.0
        %5876 = vmatpush1.msra.mxu0 0.0
        %5877 = vmatprep.subr.mxu0 0.0
        %5878 = vmatpush1.msra.mxu0 0.0
        %5879 = vmatprep.subr.mxu0 0.0
        %5880 = vmatpush1.msra.mxu0 0.0
        %5881 = vmatprep.subr.mxu0 0.0
        %5882 = vmatpush1.msra.mxu0 0.0
        %5883 = vmatprep.subr.mxu0 0.0
        %5884 = vmatpush1.msra.mxu0 0.0
        %5885 = vmatprep.subr.mxu0 0.0
        %5886 = vmatpush1.msra.mxu0 0.0
        %5887 = vmatprep.subr.mxu0 0.0
        %5888 = vmatpush1.msra.mxu0 0.0
        %5889 = vmatprep.subr.mxu0 0.0
        %5890 = vmatpush1.msra.mxu0 0.0
        %5891 = vmatprep.subr.mxu0 0.0
        %5892 = vmatpush1.msra.mxu0 0.0
        %5893 = vmatprep.mubr.f32.mxu0 0.0
        %5894 = vmatmul.mubr.f32.gmra.mrb[0].mxu0 %v5827
        %v5895 = vpop.f32.mrb[0].mxu0
        %v5896 = vadd.f32 0.0, %v5895
        %v5897 = vpop.f32.mrb[0].mxu0
        %5898 = vdwg.mxu0
        %5899 = vrot.lane.b32.xlu0 %v4404, 40
        %v5900 = vpop.permute.xlu0 %5899
        %v5903 = vsel %vm4412, %v5822, 0
        %5905 = vmatprep.subr.mxu0 0.0
        %5906 = vmatpush1.msra.mxu0 %v5900
        %5907 = vmatprep.subr.mxu0 0.0
        %5908 = vmatpush1.msra.mxu0 0.0
        %5909 = vmatprep.subr.mxu0 0.0
        %5910 = vmatpush1.msra.mxu0 0.0
        %5911 = vmatprep.subr.mxu0 0.0
        %5912 = vmatpush1.msra.mxu0 0.0
        %5913 = vmatprep.subr.mxu0 0.0
        %5914 = vmatpush1.msra.mxu0 0.0
        %5915 = vmatprep.subr.mxu0 0.0
        %5916 = vmatpush1.msra.mxu0 0.0
        %5917 = vmatprep.subr.mxu0 0.0
        %5918 = vmatpush1.msra.mxu0 0.0
        %5919 = vmatprep.subr.mxu0 0.0
        %5920 = vmatpush1.msra.mxu0 0.0
        %5921 = vmatprep.subr.mxu0 0.0
        %5922 = vmatpush1.msra.mxu0 0.0
        %5923 = vmatprep.subr.mxu0 0.0
        %5924 = vmatpush1.msra.mxu0 0.0
        %5925 = vmatprep.subr.mxu0 0.0
        %5926 = vmatpush1.msra.mxu0 0.0
        %5927 = vmatprep.subr.mxu0 0.0
        %5928 = vmatpush1.msra.mxu0 0.0
        %5929 = vmatprep.subr.mxu0 0.0
        %5930 = vmatpush1.msra.mxu0 0.0
        %5931 = vmatprep.subr.mxu0 0.0
        %5932 = vmatpush1.msra.mxu0 0.0
        %5933 = vmatprep.subr.mxu0 0.0
        %5934 = vmatpush1.msra.mxu0 0.0
        %5935 = vmatprep.subr.mxu0 0.0
        %5936 = vmatpush1.msra.mxu0 0.0
        %5937 = vmatprep.subr.mxu0 0.0
        %5938 = vmatpush1.msra.mxu0 0.0
        %5939 = vmatprep.subr.mxu0 0.0
        %5940 = vmatpush1.msra.mxu0 0.0
        %5941 = vmatprep.subr.mxu0 0.0
        %5942 = vmatpush1.msra.mxu0 0.0
        %5943 = vmatprep.subr.mxu0 0.0
        %5944 = vmatpush1.msra.mxu0 0.0
        %5945 = vmatprep.subr.mxu0 0.0
        %5946 = vmatpush1.msra.mxu0 0.0
        %5947 = vmatprep.subr.mxu0 0.0
        %5948 = vmatpush1.msra.mxu0 0.0
        %5949 = vmatprep.subr.mxu0 0.0
        %5950 = vmatpush1.msra.mxu0 0.0
        %5951 = vmatprep.subr.mxu0 0.0
        %5952 = vmatpush1.msra.mxu0 0.0
        %5953 = vmatprep.subr.mxu0 0.0
        %5954 = vmatpush1.msra.mxu0 0.0
        %5955 = vmatprep.subr.mxu0 0.0
        %5956 = vmatpush1.msra.mxu0 0.0
        %5957 = vmatprep.subr.mxu0 0.0
        %5958 = vmatpush1.msra.mxu0 0.0
        %5959 = vmatprep.subr.mxu0 0.0
        %5960 = vmatpush1.msra.mxu0 0.0
        %5961 = vmatprep.subr.mxu0 0.0
        %5962 = vmatpush1.msra.mxu0 0.0
        %5963 = vmatprep.subr.mxu0 0.0
        %5964 = vmatpush1.msra.mxu0 0.0
        %5965 = vmatprep.subr.mxu0 0.0
        %5966 = vmatpush1.msra.mxu0 0.0
        %5967 = vmatprep.subr.mxu0 0.0
        %5968 = vmatpush1.msra.mxu0 0.0
        %5969 = vmatprep.mubr.f32.mxu0 0.0
        %5970 = vmatmul.mubr.f32.gmra.mrb[0].mxu0 %v5903
        %v5971 = vpop.f32.mrb[0].mxu0
        %v5972 = vadd.f32 0.0, %v5971
        %v5973 = vpop.f32.mrb[0].mxu0
        %5974 = vdwg.mxu0
        %v5976 = vsel %vm4412, %v5896, 0
        %v5979 = vsel %vm4412, %v5972, 0
        %5981 = vmatprep.subr.mxu0 0.0
        %5982 = vmatpush1.msra.mxu0 %v4318
        %5983 = vmatprep.subr.mxu0 0.0
        %5984 = vmatpush1.msra.mxu0 0.0
        %5985 = vmatprep.subr.mxu0 0.0
        %5986 = vmatpush1.msra.mxu0 0.0
        %5987 = vmatprep.subr.mxu0 0.0
        %5988 = vmatpush1.msra.mxu0 0.0
        %5989 = vmatprep.subr.mxu0 0.0
        %5990 = vmatpush1.msra.mxu0 0.0
        %5991 = vmatprep.subr.mxu0 0.0
        %5992 = vmatpush1.msra.mxu0 0.0
        %5993 = vmatprep.subr.mxu0 0.0
        %5994 = vmatpush1.msra.mxu0 0.0
        %5995 = vmatprep.subr.mxu0 0.0
        %5996 = vmatpush1.msra.mxu0 0.0
        %5997 = vmatprep.subr.mxu0 0.0
        %5998 = vmatpush1.msra.mxu0 0.0
        %5999 = vmatprep.subr.mxu0 0.0
        %6000 = vmatpush1.msra.mxu0 0.0
        %6001 = vmatprep.subr.mxu0 0.0
        %6002 = vmatpush1.msra.mxu0 0.0
        %6003 = vmatprep.subr.mxu0 0.0
        %6004 = vmatpush1.msra.mxu0 0.0
        %6005 = vmatprep.subr.mxu0 0.0
        %6006 = vmatpush1.msra.mxu0 0.0
        %6007 = vmatprep.subr.mxu0 0.0
        %6008 = vmatpush1.msra.mxu0 0.0
        %6009 = vmatprep.subr.mxu0 0.0
        %6010 = vmatpush1.msra.mxu0 0.0
        %6011 = vmatprep.subr.mxu0 0.0
        %6012 = vmatpush1.msra.mxu0 0.0
        %6013 = vmatprep.subr.mxu0 0.0
        %6014 = vmatpush1.msra.mxu0 0.0
        %6015 = vmatprep.subr.mxu0 0.0
        %6016 = vmatpush1.msra.mxu0 0.0
        %6017 = vmatprep.subr.mxu0 0.0
        %6018 = vmatpush1.msra.mxu0 0.0
        %6019 = vmatprep.subr.mxu0 0.0
        %6020 = vmatpush1.msra.mxu0 0.0
        %6021 = vmatprep.subr.mxu0 0.0
        %6022 = vmatpush1.msra.mxu0 0.0
        %6023 = vmatprep.subr.mxu0 0.0
        %6024 = vmatpush1.msra.mxu0 0.0
        %6025 = vmatprep.subr.mxu0 0.0
        %6026 = vmatpush1.msra.mxu0 0.0
        %6027 = vmatprep.subr.mxu0 0.0
        %6028 = vmatpush1.msra.mxu0 0.0
        %6029 = vmatprep.subr.mxu0 0.0
        %6030 = vmatpush1.msra.mxu0 0.0
        %6031 = vmatprep.subr.mxu0 0.0
        %6032 = vmatpush1.msra.mxu0 0.0
        %6033 = vmatprep.subr.mxu0 0.0
        %6034 = vmatpush1.msra.mxu0 0.0
        %6035 = vmatprep.subr.mxu0 0.0
        %6036 = vmatpush1.msra.mxu0 0.0
        %6037 = vmatprep.subr.mxu0 0.0
        %6038 = vmatpush1.msra.mxu0 0.0
        %6039 = vmatprep.subr.mxu0 0.0
        %6040 = vmatpush1.msra.mxu0 0.0
        %6041 = vmatprep.subr.mxu0 0.0
        %6042 = vmatpush1.msra.mxu0 0.0
        %6043 = vmatprep.subr.mxu0 0.0
        %6044 = vmatpush1.msra.mxu0 0.0
        %6045 = vmatprep.mubr.f32.mxu0 0.0
        %6046 = vmatmul.mubr.f32.gmra.mrb[0].mxu0 %v5976
        %v6047 = vpop.f32.mrb[0].mxu0
        %v6048 = vadd.f32 0.0, %v6047
        %v6049 = vpop.f32.mrb[0].mxu0
        %6050 = vmatprep.mubr.f32.mxu0 0.0
        %6051 = vmatmul.mubr.f32.gmra.mrb[0].mxu0 %v5979
        %v6052 = vpop.f32.mrb[0].mxu0
        %v6053 = vadd.f32 0.0, %v6052
        %v6054 = vpop.f32.mrb[0].mxu0
        %6055 = vdwg.mxu0
        %v6056 = vadd.f32 %v5643, %v6048
        %v6057 = vadd.f32 %v5644, %v6053
        %v6059 = vlaneseq
        %v6060 = vshrl.u32 %v6059, 7
        %v6061 = vsub.s32 0, %v6060
        %v6062 = vrot.slane %v4319, %v6061
        %v6064 = vadd.f32 %v6056, %v6062
        %v6065 = vadd.f32 %v6057, %v6062
        %v6066 = vadd.f32 %v4308, %v6064
        %v6067 = vadd.f32 %v4309, %v6065
        %v6068 = vld [vmem:[%s2111] sm:$0x1]
        %v6069 = vld [vmem:[%s2114] sm:$0x1]
        %v6070 = vsel %vm4183, %v6066, 0.0
        %6071 = vadd.xlane.f32.xlu0 %v6070
        %v6072 = vpop.xlane.xlu0 %6071
        %v6073 = vsel %vm4183, %v6067, 0.0
        %6074 = vadd.xlane.f32.xlu0 %v6073
        %v6075 = vpop.xlane.xlu0 %6074
        %v6076 = vmul.f32 %v6072, %v4273
        %v6077 = vmul.f32 %v6075, %v4273
        %v6078 = vsub.f32 %v6066, %v6076
        %v6079 = vsub.f32 %v6067, %v6077
        %v6080 = vmul.f32 %v6078, %v6078
        %v6081 = vmul.f32 %v6079, %v6079
        %v6082 = vsel %vm4183, %v6080, 0.0
        %6083 = vadd.xlane.f32.xlu0 %v6082
        %v6084 = vpop.xlane.xlu0 %6083
        %v6085 = vsel %vm4183, %v6081, 0.0
        %6086 = vadd.xlane.f32.xlu0 %v6085
        %v6087 = vpop.xlane.xlu0 %6086
        %v6088 = vmul.f32 %v6084, %v4273
        %v6089 = vmul.f32 %v6087, %v4273
        %v6090 = vadd.f32 %v6088, 1e-05
        %v6091 = vadd.f32 %v6089, 1e-05
        %v6092 = vrsqrt.pop %v6090
        %v6093 = vrsqrt.pop %v6091
        %v6094 = vmul.f32 %v6078, %v6092
        %v6095 = vmul.f32 %v6079, %v6093
        %v6097 = vlaneseq
        %v6098 = vshrl.u32 %v6097, 7
        %v6099 = vsub.s32 0, %v6098
        %v6100 = vrot.slane %v6068, %v6099
        %v6102 = vmul.f32 %v6094, %v6100
        %v6103 = vmul.f32 %v6095, %v6100
        %v6105 = vlaneseq
        %v6106 = vshrl.u32 %v6105, 7
        %v6107 = vsub.s32 0, %v6106
        %v6108 = vrot.slane %v6069, %v6107
        %v6110 = vadd.f32 %v6102, %v6108
        %v6111 = vadd.f32 %v6103, %v6108
        %v6112 = vld [vmem:[%s2097] sm:$0xff]
        %v6113 = vld [vmem:[%s2097 + $0x8] sm:$0xff]
        %v6114 = vld [vmem:[%s2097 + $0x10] sm:$0xff]
        %v6115 = vld [vmem:[%s2097 + $0x18] sm:$0xff]
        %v6116 = vld [vmem:[%s2100] sm:$0x1]
        %v6118 = vlaneseq
        %v6119 = vshrl.u32 %v6118, 7
        %v6120 = vsub.s32 0, %v6119
        %v6121 = vrot.slane %v6116, %v6120
        %v6124 = vsel %vm4183, %v6110, 0
        %v6127 = vsel %vm4183, %v6111, 0
        %6129 = vmatprep.subr.mxu0 0.0
        %6130 = vmatpush1.msra.mxu0 %v6112
        %6131 = vmatprep.subr.mxu0 0.0
        %6132 = vmatpush1.msra.mxu0 %v6113
        %6133 = vmatprep.subr.mxu0 0.0
        %6134 = vmatpush1.msra.mxu0 %v6114
        %6135 = vmatprep.subr.mxu0 0.0
        %6136 = vmatpush1.msra.mxu0 %v6115
        %6137 = vmatprep.subr.mxu0 0.0
        %6138 = vmatpush1.msra.mxu0 0.0
        %6139 = vmatprep.subr.mxu0 0.0
        %6140 = vmatpush1.msra.mxu0 0.0
        %6141 = vmatprep.subr.mxu0 0.0
        %6142 = vmatpush1.msra.mxu0 0.0
        %6143 = vmatprep.subr.mxu0 0.0
        %6144 = vmatpush1.msra.mxu0 0.0
        %6145 = vmatprep.subr.mxu0 0.0
        %6146 = vmatpush1.msra.mxu0 0.0
        %6147 = vmatprep.subr.mxu0 0.0
        %6148 = vmatpush1.msra.mxu0 0.0
        %6149 = vmatprep.subr.mxu0 0.0
        %6150 = vmatpush1.msra.mxu0 0.0
        %6151 = vmatprep.subr.mxu0 0.0
        %6152 = vmatpush1.msra.mxu0 0.0
        %6153 = vmatprep.subr.mxu0 0.0
        %6154 = vmatpush1.msra.mxu0 0.0
        %6155 = vmatprep.subr.mxu0 0.0
        %6156 = vmatpush1.msra.mxu0 0.0
        %6157 = vmatprep.subr.mxu0 0.0
        %6158 = vmatpush1.msra.mxu0 0.0
        %6159 = vmatprep.subr.mxu0 0.0
        %6160 = vmatpush1.msra.mxu0 0.0
        %6161 = vmatprep.subr.mxu0 0.0
        %6162 = vmatpush1.msra.mxu0 0.0
        %6163 = vmatprep.subr.mxu0 0.0
        %6164 = vmatpush1.msra.mxu0 0.0
        %6165 = vmatprep.subr.mxu0 0.0
        %6166 = vmatpush1.msra.mxu0 0.0
        %6167 = vmatprep.subr.mxu0 0.0
        %6168 = vmatpush1.msra.mxu0 0.0
        %6169 = vmatprep.subr.mxu0 0.0
        %6170 = vmatpush1.msra.mxu0 0.0
        %6171 = vmatprep.subr.mxu0 0.0
        %6172 = vmatpush1.msra.mxu0 0.0
        %6173 = vmatprep.subr.mxu0 0.0
        %6174 = vmatpush1.msra.mxu0 0.0
        %6175 = vmatprep.subr.mxu0 0.0
        %6176 = vmatpush1.msra.mxu0 0.0
        %6177 = vmatprep.subr.mxu0 0.0
        %6178 = vmatpush1.msra.mxu0 0.0
        %6179 = vmatprep.subr.mxu0 0.0
        %6180 = vmatpush1.msra.mxu0 0.0
        %6181 = vmatprep.subr.mxu0 0.0
        %6182 = vmatpush1.msra.mxu0 0.0
        %6183 = vmatprep.subr.mxu0 0.0
        %6184 = vmatpush1.msra.mxu0 0.0
        %6185 = vmatprep.subr.mxu0 0.0
        %6186 = vmatpush1.msra.mxu0 0.0
        %6187 = vmatprep.subr.mxu0 0.0
        %6188 = vmatpush1.msra.mxu0 0.0
        %6189 = vmatprep.subr.mxu0 0.0
        %6190 = vmatpush1.msra.mxu0 0.0
        %6191 = vmatprep.subr.mxu0 0.0
        %6192 = vmatpush1.msra.mxu0 0.0
        %6193 = vmatprep.mubr.f32.mxu0 0.0
        %6194 = vmatmul.mubr.f32.gmra.mrb[0].mxu0 %v6124
        %v6195 = vpop.f32.mrb[0].mxu0
        %v6196 = vadd.f32 %v6121, %v6195
        %v6197 = vpop.f32.mrb[0].mxu0
        %6198 = vmatprep.mubr.f32.mxu0 0.0
        %6199 = vmatmul.mubr.f32.gmra.mrb[0].mxu0 %v6127
        %v6200 = vpop.f32.mrb[0].mxu0
        %v6201 = vadd.f32 %v6121, %v6200
        %v6202 = vpop.f32.mrb[0].mxu0
        %6203 = vdwg.mxu0
        %v6204 = vmax.f32 %v6196, 0.0
        %v6205 = vmax.f32 %v6201, 0.0
        %v6206 = vld [vmem:[%s2105] sm:$0xff]
        %v6207 = vld [vmem:[%s2105 + $0x8] sm:$0xff]
        %v6208 = vld [vmem:[%s2105 + $0x10] sm:$0xff]
        %v6209 = vld [vmem:[%s2105 + $0x18] sm:$0xff]
        %v6210 = vld [vmem:[%s2108] sm:$0x1]
        %v6212 = vlaneseq
        %v6213 = vshrl.u32 %v6212, 7
        %v6214 = vsub.s32 0, %v6213
        %v6215 = vrot.slane %v6210, %v6214
        %v6218 = vsel %vm4183, %v6204, 0
        %v6221 = vsel %vm4183, %v6205, 0
        %6223 = vmatprep.subr.mxu0 0.0
        %6224 = vmatpush1.msra.mxu0 %v6206
        %6225 = vmatprep.subr.mxu0 0.0
        %6226 = vmatpush1.msra.mxu0 %v6207
        %6227 = vmatprep.subr.mxu0 0.0
        %6228 = vmatpush1.msra.mxu0 %v6208
        %6229 = vmatprep.subr.mxu0 0.0
        %6230 = vmatpush1.msra.mxu0 %v6209
        %6231 = vmatprep.subr.mxu0 0.0
        %6232 = vmatpush1.msra.mxu0 0.0
        %6233 = vmatprep.subr.mxu0 0.0
        %6234 = vmatpush1.msra.mxu0 0.0
        %6235 = vmatprep.subr.mxu0 0.0
        %6236 = vmatpush1.msra.mxu0 0.0
        %6237 = vmatprep.subr.mxu0 0.0
        %6238 = vmatpush1.msra.mxu0 0.0
        %6239 = vmatprep.subr.mxu0 0.0
        %6240 = vmatpush1.msra.mxu0 0.0
        %6241 = vmatprep.subr.mxu0 0.0
        %6242 = vmatpush1.msra.mxu0 0.0
        %6243 = vmatprep.subr.mxu0 0.0
        %6244 = vmatpush1.msra.mxu0 0.0
        %6245 = vmatprep.subr.mxu0 0.0
        %6246 = vmatpush1.msra.mxu0 0.0
        %6247 = vmatprep.subr.mxu0 0.0
        %6248 = vmatpush1.msra.mxu0 0.0
        %6249 = vmatprep.subr.mxu0 0.0
        %6250 = vmatpush1.msra.mxu0 0.0
        %6251 = vmatprep.subr.mxu0 0.0
        %6252 = vmatpush1.msra.mxu0 0.0
        %6253 = vmatprep.subr.mxu0 0.0
        %6254 = vmatpush1.msra.mxu0 0.0
        %6255 = vmatprep.subr.mxu0 0.0
        %6256 = vmatpush1.msra.mxu0 0.0
        %6257 = vmatprep.subr.mxu0 0.0
        %6258 = vmatpush1.msra.mxu0 0.0
        %6259 = vmatprep.subr.mxu0 0.0
        %6260 = vmatpush1.msra.mxu0 0.0
        %6261 = vmatprep.subr.mxu0 0.0
        %6262 = vmatpush1.msra.mxu0 0.0
        %6263 = vmatprep.subr.mxu0 0.0
        %6264 = vmatpush1.msra.mxu0 0.0
        %6265 = vmatprep.subr.mxu0 0.0
        %6266 = vmatpush1.msra.mxu0 0.0
        %6267 = vmatprep.subr.mxu0 0.0
        %6268 = vmatpush1.msra.mxu0 0.0
        %6269 = vmatprep.subr.mxu0 0.0
        %6270 = vmatpush1.msra.mxu0 0.0
        %6271 = vmatprep.subr.mxu0 0.0
        %6272 = vmatpush1.msra.mxu0 0.0
        %6273 = vmatprep.subr.mxu0 0.0
        %6274 = vmatpush1.msra.mxu0 0.0
        %6275 = vmatprep.subr.mxu0 0.0
        %6276 = vmatpush1.msra.mxu0 0.0
        %6277 = vmatprep.subr.mxu0 0.0
        %6278 = vmatpush1.msra.mxu0 0.0
        %6279 = vmatprep.subr.mxu0 0.0
        %6280 = vmatpush1.msra.mxu0 0.0
        %6281 = vmatprep.subr.mxu0 0.0
        %6282 = vmatpush1.msra.mxu0 0.0
        %6283 = vmatprep.subr.mxu0 0.0
        %6284 = vmatpush1.msra.mxu0 0.0
        %6285 = vmatprep.subr.mxu0 0.0
        %6286 = vmatpush1.msra.mxu0 0.0
        %6287 = vmatprep.mubr.f32.mxu0 0.0
        %6288 = vmatmul.mubr.f32.gmra.mrb[0].mxu0 %v6218
        %v6289 = vpop.f32.mrb[0].mxu0
        %v6290 = vadd.f32 %v6215, %v6289
        %v6291 = vpop.f32.mrb[0].mxu0
        %6292 = vmatprep.mubr.f32.mxu0 0.0
        %6293 = vmatmul.mubr.f32.gmra.mrb[0].mxu0 %v6221
        %v6294 = vpop.f32.mrb[0].mxu0
        %v6295 = vadd.f32 %v6215, %v6294
        %v6296 = vpop.f32.mrb[0].mxu0
        %6297 = vdwg.mxu0
        %v6298 = vadd.f32 %v6110, %v6290
        %v6299 = vadd.f32 %v6111, %v6295
        %v6300 = vsel %vm4183, %v6298, 0.0
        %6301 = vadd.xlane.f32.xlu0 %v6300
        %v6302 = vpop.xlane.xlu0 %6301
        %v6303 = vsel %vm4183, %v6299, 0.0
        %6304 = vadd.xlane.f32.xlu0 %v6303
        %v6305 = vpop.xlane.xlu0 %6304
        %v6306 = vmul.f32 %v6302, %v4273
        %v6307 = vmul.f32 %v6305, %v4273
        %v6308 = vsub.f32 %v6298, %v6306
        %v6309 = vsub.f32 %v6299, %v6307
        %v6310 = vmul.f32 %v6308, %v6308
        %v6311 = vmul.f32 %v6309, %v6309
        %v6312 = vsel %vm4183, %v6310, 0.0
        %6313 = vadd.xlane.f32.xlu0 %v6312
        %v6314 = vpop.xlane.xlu0 %6313
        %v6315 = vsel %vm4183, %v6311, 0.0
        %6316 = vadd.xlane.f32.xlu0 %v6315
        %v6317 = vpop.xlane.xlu0 %6316
        %v6318 = vmul.f32 %v6314, %v4273
        %v6319 = vmul.f32 %v6317, %v4273
        %v6320 = vadd.f32 %v6318, 1e-05
        %v6321 = vadd.f32 %v6319, 1e-05
        %v6322 = vrsqrt.pop %v6320
        %v6323 = vrsqrt.pop %v6321
        %v6324 = vmul.f32 %v6308, %v6322
        %v6325 = vmul.f32 %v6309, %v6323
        %v6326 = vmul.f32 %v6324, %v6100
        %v6327 = vmul.f32 %v6325, %v6100
        %v6328 = vadd.f32 %v6326, %v6108
        %v6329 = vadd.f32 %v6327, %v6108
        %6330 = vst.msk [vmem:[%s2013] sm:$0xff] %vm4183, %v6328
        %6331 = vst.msk [vmem:[%s2013 + $0x8] sm:$0xff] %vm4183, %v6329
        %v6332 = vld [vmem:[#allocation4] sm:$0x3]
        %v6333 = vld [vmem:[%s2118] sm:$0x3f]
        %v6334 = vld [vmem:[%s1733] sm:$0x1]
        %v6336 = vlaneseq
        %v6337 = vshrl.u32 %v6336, 7
        %v6338 = vsub.s32 0, %v6337
        %v6339 = vrot.slane %v6334, %v6338
        %vm6341 = vcmask 48128
        %v6343 = vsel %vm6341, %v6332, 0
        %vm6345 = vcmask 1045504
        %v6347 = vsel %vm6345, %v6333, 0
        %6349 = vmatprep.subr.mxu0 0.0
        %6350 = vmatpush1.msra.mxu0 %v6347
        %6351 = vmatprep.subr.mxu0 0.0
        %6352 = vmatpush1.msra.mxu0 0.0
        %6353 = vmatprep.subr.mxu0 0.0
        %6354 = vmatpush1.msra.mxu0 0.0
        %6355 = vmatprep.subr.mxu0 0.0
        %6356 = vmatpush1.msra.mxu0 0.0
        %6357 = vmatprep.subr.mxu0 0.0
        %6358 = vmatpush1.msra.mxu0 0.0
        %6359 = vmatprep.subr.mxu0 0.0
        %6360 = vmatpush1.msra.mxu0 0.0
        %6361 = vmatprep.subr.mxu0 0.0
        %6362 = vmatpush1.msra.mxu0 0.0
        %6363 = vmatprep.subr.mxu0 0.0
        %6364 = vmatpush1.msra.mxu0 0.0
        %6365 = vmatprep.subr.mxu0 0.0
        %6366 = vmatpush1.msra.mxu0 0.0
        %6367 = vmatprep.subr.mxu0 0.0
        %6368 = vmatpush1.msra.mxu0 0.0
        %6369 = vmatprep.subr.mxu0 0.0
        %6370 = vmatpush1.msra.mxu0 0.0
        %6371 = vmatprep.subr.mxu0 0.0
        %6372 = vmatpush1.msra.mxu0 0.0
        %6373 = vmatprep.subr.mxu0 0.0
        %6374 = vmatpush1.msra.mxu0 0.0
        %6375 = vmatprep.subr.mxu0 0.0
        %6376 = vmatpush1.msra.mxu0 0.0
        %6377 = vmatprep.subr.mxu0 0.0
        %6378 = vmatpush1.msra.mxu0 0.0
        %6379 = vmatprep.subr.mxu0 0.0
        %6380 = vmatpush1.msra.mxu0 0.0
        %6381 = vmatprep.subr.mxu0 0.0
        %6382 = vmatpush1.msra.mxu0 0.0
        %6383 = vmatprep.subr.mxu0 0.0
        %6384 = vmatpush1.msra.mxu0 0.0
        %6385 = vmatprep.subr.mxu0 0.0
        %6386 = vmatpush1.msra.mxu0 0.0
        %6387 = vmatprep.subr.mxu0 0.0
        %6388 = vmatpush1.msra.mxu0 0.0
        %6389 = vmatprep.subr.mxu0 0.0
        %6390 = vmatpush1.msra.mxu0 0.0
        %6391 = vmatprep.subr.mxu0 0.0
        %6392 = vmatpush1.msra.mxu0 0.0
        %6393 = vmatprep.subr.mxu0 0.0
        %6394 = vmatpush1.msra.mxu0 0.0
        %6395 = vmatprep.subr.mxu0 0.0
        %6396 = vmatpush1.msra.mxu0 0.0
        %6397 = vmatprep.subr.mxu0 0.0
        %6398 = vmatpush1.msra.mxu0 0.0
        %6399 = vmatprep.subr.mxu0 0.0
        %6400 = vmatpush1.msra.mxu0 0.0
        %6401 = vmatprep.subr.mxu0 0.0
        %6402 = vmatpush1.msra.mxu0 0.0
        %6403 = vmatprep.subr.mxu0 0.0
        %6404 = vmatpush1.msra.mxu0 0.0
        %6405 = vmatprep.subr.mxu0 0.0
        %6406 = vmatpush1.msra.mxu0 0.0
        %6407 = vmatprep.subr.mxu0 0.0
        %6408 = vmatpush1.msra.mxu0 0.0
        %6409 = vmatprep.subr.mxu0 0.0
        %6410 = vmatpush1.msra.mxu0 0.0
        %6411 = vmatprep.subr.mxu0 0.0
        %6412 = vmatpush1.msra.mxu0 0.0
        %6413 = vmatprep.mubr.f32.mxu0 0.0
        %6414 = vmatmul.mubr.f32.gmra.mrb[0].mxu0 %v6343
        %v6415 = vpop.f32.mrb[0].mxu0
        %v6416 = vadd.f32 %v6339, %v6415
        %v6417 = vpop.f32.mrb[0].mxu0
        %6418 = vdwg.mxu0
        %v6419 = vld [vmem:[%s2048] sm:$0x3]
        %6421 = vrot.lane.b32.xlu0 %v6419, 32
        %v6422 = vpop.permute.xlu0 %6421
        %v6424 = vsel %vm4183, %v6416, %v6422
        %v6425 = vld [vmem:[%s2123] sm:$0xff]
        %v6426 = vld [vmem:[%s2123 + $0x8] sm:$0xff]
        %v6427 = vld [vmem:[%s2123 + $0x10] sm:$0xff]
        %v6428 = vld [vmem:[%s2123 + $0x18] sm:$0xff]
        %v6429 = vld [vmem:[%s2123 + $0x20] sm:$0xff]
        %v6430 = vld [vmem:[%s2123 + $0x28] sm:$0xff]
        %v6431 = vld [vmem:[%s2123 + $0x30] sm:$0xff]
        %v6432 = vld [vmem:[%s2123 + $0x38] sm:$0xff]
        %v6433 = vld [vmem:[%s1741] sm:$0x1]
        %v6435 = vlaneseq
        %v6436 = vshrl.u32 %v6435, 7
        %v6437 = vsub.s32 0, %v6436
        %v6438 = vrot.slane %v6433, %v6437
        %vm6440 = vcmask 523264
        %v6442 = vsel %vm6440, %v6424, 0
        %6444 = vmatprep.subr.mxu0 0.0
        %6445 = vmatpush1.msra.mxu0 %v6425
        %6446 = vmatprep.subr.mxu0 0.0
        %6447 = vmatpush1.msra.mxu0 %v6426
        %6448 = vmatprep.subr.mxu0 0.0
        %6449 = vmatpush1.msra.mxu0 %v6427
        %6450 = vmatprep.subr.mxu0 0.0
        %6451 = vmatpush1.msra.mxu0 %v6428
        %6452 = vmatprep.subr.mxu0 0.0
        %6453 = vmatpush1.msra.mxu0 %v6429
        %6454 = vmatprep.subr.mxu0 0.0
        %6455 = vmatpush1.msra.mxu0 %v6430
        %6456 = vmatprep.subr.mxu0 0.0
        %6457 = vmatpush1.msra.mxu0 %v6431
        %6458 = vmatprep.subr.mxu0 0.0
        %6459 = vmatpush1.msra.mxu0 %v6432
        %6460 = vmatprep.subr.mxu0 0.0
        %6461 = vmatpush1.msra.mxu0 0.0
        %6462 = vmatprep.subr.mxu0 0.0
        %6463 = vmatpush1.msra.mxu0 0.0
        %6464 = vmatprep.subr.mxu0 0.0
        %6465 = vmatpush1.msra.mxu0 0.0
        %6466 = vmatprep.subr.mxu0 0.0
        %6467 = vmatpush1.msra.mxu0 0.0
        %6468 = vmatprep.subr.mxu0 0.0
        %6469 = vmatpush1.msra.mxu0 0.0
        %6470 = vmatprep.subr.mxu0 0.0
        %6471 = vmatpush1.msra.mxu0 0.0
        %6472 = vmatprep.subr.mxu0 0.0
        %6473 = vmatpush1.msra.mxu0 0.0
        %6474 = vmatprep.subr.mxu0 0.0
        %6475 = vmatpush1.msra.mxu0 0.0
        %6476 = vmatprep.subr.mxu0 0.0
        %6477 = vmatpush1.msra.mxu0 0.0
        %6478 = vmatprep.subr.mxu0 0.0
        %6479 = vmatpush1.msra.mxu0 0.0
        %6480 = vmatprep.subr.mxu0 0.0
        %6481 = vmatpush1.msra.mxu0 0.0
        %6482 = vmatprep.subr.mxu0 0.0
        %6483 = vmatpush1.msra.mxu0 0.0
        %6484 = vmatprep.subr.mxu0 0.0
        %6485 = vmatpush1.msra.mxu0 0.0
        %6486 = vmatprep.subr.mxu0 0.0
        %6487 = vmatpush1.msra.mxu0 0.0
        %6488 = vmatprep.subr.mxu0 0.0
        %6489 = vmatpush1.msra.mxu0 0.0
        %6490 = vmatprep.subr.mxu0 0.0
        %6491 = vmatpush1.msra.mxu0 0.0
        %6492 = vmatprep.subr.mxu0 0.0
        %6493 = vmatpush1.msra.mxu0 0.0
        %6494 = vmatprep.subr.mxu0 0.0
        %6495 = vmatpush1.msra.mxu0 0.0
        %6496 = vmatprep.subr.mxu0 0.0
        %6497 = vmatpush1.msra.mxu0 0.0
        %6498 = vmatprep.subr.mxu0 0.0
        %6499 = vmatpush1.msra.mxu0 0.0
        %6500 = vmatprep.subr.mxu0 0.0
        %6501 = vmatpush1.msra.mxu0 0.0
        %6502 = vmatprep.subr.mxu0 0.0
        %6503 = vmatpush1.msra.mxu0 0.0
        %6504 = vmatprep.subr.mxu0 0.0
        %6505 = vmatpush1.msra.mxu0 0.0
        %6506 = vmatprep.subr.mxu0 0.0
        %6507 = vmatpush1.msra.mxu0 0.0
        %6508 = vmatprep.mubr.f32.mxu0 0.0
        %6509 = vmatmul.mubr.f32.gmra.mrb[0].mxu0 %v6442
        %v6510 = vpop.f32.mrb[0].mxu0
        %v6511 = vadd.f32 %v6438, %v6510
        %v6512 = vpop.f32.mrb[0].mxu0
        %6513 = vdwg.mxu0
        %v6514 = vmax.f32 %v6511, 0.0
        %v6515 = vld [vmem:[%s2128] sm:$0xff]
        %v6516 = vld [vmem:[%s2128 + $0x8] sm:$0xff]
        %v6517 = vld [vmem:[%s2128 + $0x10] sm:$0xff]
        %v6518 = vld [vmem:[%s2128 + $0x18] sm:$0xff]
        %v6519 = vld [vmem:[%s2052] sm:$0x3]
        %v6520 = vld [vmem:[%s2133] sm:$0xff]
        %v6521 = vld [vmem:[%s2133 + $0x8] sm:$0xff]
        %v6522 = vld [vmem:[%s2133 + $0x10] sm:$0xff]
        %v6523 = vld [vmem:[%s2133 + $0x18] sm:$0xff]
        %v6525 = vsel %vm4183, %v6519, 0
        %6527 = vmatprep.subr.mxu0 0.0
        %6528 = vmatpush1.msra.mxu0 %v6520
        %6529 = vmatprep.subr.mxu0 0.0
        %6530 = vmatpush1.msra.mxu0 %v6521
        %6531 = vmatprep.subr.mxu0 0.0
        %6532 = vmatpush1.msra.mxu0 %v6522
        %6533 = vmatprep.subr.mxu0 0.0
        %6534 = vmatpush1.msra.mxu0 %v6523
        %6535 = vmatprep.subr.mxu0 0.0
        %6536 = vmatpush1.msra.mxu0 0.0
        %6537 = vmatprep.subr.mxu0 0.0
        %6538 = vmatpush1.msra.mxu0 0.0
        %6539 = vmatprep.subr.mxu0 0.0
        %6540 = vmatpush1.msra.mxu0 0.0
        %6541 = vmatprep.subr.mxu0 0.0
        %6542 = vmatpush1.msra.mxu0 0.0
        %6543 = vmatprep.subr.mxu0 0.0
        %6544 = vmatpush1.msra.mxu0 0.0
        %6545 = vmatprep.subr.mxu0 0.0
        %6546 = vmatpush1.msra.mxu0 0.0
        %6547 = vmatprep.subr.mxu0 0.0
        %6548 = vmatpush1.msra.mxu0 0.0
        %6549 = vmatprep.subr.mxu0 0.0
        %6550 = vmatpush1.msra.mxu0 0.0
        %6551 = vmatprep.subr.mxu0 0.0
        %6552 = vmatpush1.msra.mxu0 0.0
        %6553 = vmatprep.subr.mxu0 0.0
        %6554 = vmatpush1.msra.mxu0 0.0
        %6555 = vmatprep.subr.mxu0 0.0
        %6556 = vmatpush1.msra.mxu0 0.0
        %6557 = vmatprep.subr.mxu0 0.0
        %6558 = vmatpush1.msra.mxu0 0.0
        %6559 = vmatprep.subr.mxu0 0.0
        %6560 = vmatpush1.msra.mxu0 0.0
        %6561 = vmatprep.subr.mxu0 0.0
        %6562 = vmatpush1.msra.mxu0 0.0
        %6563 = vmatprep.subr.mxu0 0.0
        %6564 = vmatpush1.msra.mxu0 0.0
        %6565 = vmatprep.subr.mxu0 0.0
        %6566 = vmatpush1.msra.mxu0 0.0
        %6567 = vmatprep.subr.mxu0 0.0
        %6568 = vmatpush1.msra.mxu0 0.0
        %6569 = vmatprep.subr.mxu0 0.0
        %6570 = vmatpush1.msra.mxu0 0.0
        %6571 = vmatprep.subr.mxu0 0.0
        %6572 = vmatpush1.msra.mxu0 0.0
        %6573 = vmatprep.subr.mxu0 0.0
        %6574 = vmatpush1.msra.mxu0 0.0
        %6575 = vmatprep.subr.mxu0 0.0
        %6576 = vmatpush1.msra.mxu0 0.0
        %6577 = vmatprep.subr.mxu0 0.0
        %6578 = vmatpush1.msra.mxu0 0.0
        %6579 = vmatprep.subr.mxu0 0.0
        %6580 = vmatpush1.msra.mxu0 0.0
        %6581 = vmatprep.subr.mxu0 0.0
        %6582 = vmatpush1.msra.mxu0 0.0
        %6583 = vmatprep.subr.mxu0 0.0
        %6584 = vmatpush1.msra.mxu0 0.0
        %6585 = vmatprep.subr.mxu0 0.0
        %6586 = vmatpush1.msra.mxu0 0.0
        %6587 = vmatprep.subr.mxu0 0.0
        %6588 = vmatpush1.msra.mxu0 0.0
        %6589 = vmatprep.subr.mxu0 0.0
        %6590 = vmatpush1.msra.mxu0 0.0
        %6591 = vmatprep.mubr.f32.mxu0 0.0
        %6592 = vmatmul.mubr.f32.gmra.mrb[0].mxu0 %v6525
        %v6593 = vpop.f32.mrb[0].mxu0
        %v6594 = vadd.f32 0.0, %v6593
        %v6595 = vpop.f32.mrb[0].mxu0
        %6596 = vdwg.mxu0
        %v6598 = vsel %vm4183, %v6514, 0
        %6600 = vmatprep.subr.mxu0 0.0
        %6601 = vmatpush1.msra.mxu0 %v6515
        %6602 = vmatprep.subr.mxu0 0.0
        %6603 = vmatpush1.msra.mxu0 %v6516
        %6604 = vmatprep.subr.mxu0 0.0
        %6605 = vmatpush1.msra.mxu0 %v6517
        %6606 = vmatprep.subr.mxu0 0.0
        %6607 = vmatpush1.msra.mxu0 %v6518
        %6608 = vmatprep.subr.mxu0 0.0
        %6609 = vmatpush1.msra.mxu0 0.0
        %6610 = vmatprep.subr.mxu0 0.0
        %6611 = vmatpush1.msra.mxu0 0.0
        %6612 = vmatprep.subr.mxu0 0.0
        %6613 = vmatpush1.msra.mxu0 0.0
        %6614 = vmatprep.subr.mxu0 0.0
        %6615 = vmatpush1.msra.mxu0 0.0
        %6616 = vmatprep.subr.mxu0 0.0
        %6617 = vmatpush1.msra.mxu0 0.0
        %6618 = vmatprep.subr.mxu0 0.0
        %6619 = vmatpush1.msra.mxu0 0.0
        %6620 = vmatprep.subr.mxu0 0.0
        %6621 = vmatpush1.msra.mxu0 0.0
        %6622 = vmatprep.subr.mxu0 0.0
        %6623 = vmatpush1.msra.mxu0 0.0
        %6624 = vmatprep.subr.mxu0 0.0
        %6625 = vmatpush1.msra.mxu0 0.0
        %6626 = vmatprep.subr.mxu0 0.0
        %6627 = vmatpush1.msra.mxu0 0.0
        %6628 = vmatprep.subr.mxu0 0.0
        %6629 = vmatpush1.msra.mxu0 0.0
        %6630 = vmatprep.subr.mxu0 0.0
        %6631 = vmatpush1.msra.mxu0 0.0
        %6632 = vmatprep.subr.mxu0 0.0
        %6633 = vmatpush1.msra.mxu0 0.0
        %6634 = vmatprep.subr.mxu0 0.0
        %6635 = vmatpush1.msra.mxu0 0.0
        %6636 = vmatprep.subr.mxu0 0.0
        %6637 = vmatpush1.msra.mxu0 0.0
        %6638 = vmatprep.subr.mxu0 0.0
        %6639 = vmatpush1.msra.mxu0 0.0
        %6640 = vmatprep.subr.mxu0 0.0
        %6641 = vmatpush1.msra.mxu0 0.0
        %6642 = vmatprep.subr.mxu0 0.0
        %6643 = vmatpush1.msra.mxu0 0.0
        %6644 = vmatprep.subr.mxu0 0.0
        %6645 = vmatpush1.msra.mxu0 0.0
        %6646 = vmatprep.subr.mxu0 0.0
        %6647 = vmatpush1.msra.mxu0 0.0
        %6648 = vmatprep.subr.mxu0 0.0
        %6649 = vmatpush1.msra.mxu0 0.0
        %6650 = vmatprep.subr.mxu0 0.0
        %6651 = vmatpush1.msra.mxu0 0.0
        %6652 = vmatprep.subr.mxu0 0.0
        %6653 = vmatpush1.msra.mxu0 0.0
        %6654 = vmatprep.subr.mxu0 0.0
        %6655 = vmatpush1.msra.mxu0 0.0
        %6656 = vmatprep.subr.mxu0 0.0
        %6657 = vmatpush1.msra.mxu0 0.0
        %6658 = vmatprep.subr.mxu0 0.0
        %6659 = vmatpush1.msra.mxu0 0.0
        %6660 = vmatprep.subr.mxu0 0.0
        %6661 = vmatpush1.msra.mxu0 0.0
        %6662 = vmatprep.subr.mxu0 0.0
        %6663 = vmatpush1.msra.mxu0 0.0
        %6664 = vmatprep.mubr.f32.mxu0 0.0
        %6665 = vmatmul.mubr.f32.gmra.mrb[0].mxu0 %v6598
        %v6666 = vpop.f32.mrb[0].mxu0
        %v6667 = vadd.f32 %v6594, %v6666
        %v6668 = vpop.f32.mrb[0].mxu0
        %6669 = vdwg.mxu0
        %v6670 = vld [vmem:[%s1749] sm:$0x1]
        %v6672 = vlaneseq
        %v6673 = vshrl.u32 %v6672, 7
        %v6674 = vsub.s32 0, %v6673
        %v6675 = vrot.slane %v6670, %v6674
        %v6677 = vadd.f32 %v6667, %v6675
        %v6678 = vxor.u32 %v6677, 2147483648
        %v6679 = vmul.f32 %v6678, 1.442695
        %v6680 = vpow.pop %v6679
        %v6681 = vadd.f32 %v6680, 1.0
        %v6682 = vrcp.pop %v6681
        %v6683 = vmul.f32 1.0, %v6682
        %v6684 = vtanh.pop %v6677
        %v6685 = vld [vmem:[%s2056] sm:$0x3]
        %6687 = vrot.lane.b32.xlu0 %v6685, 32
        %v6688 = vpop.permute.xlu0 %6687
        %v6690 = vmul.f32 %v6683, %v6688
        %6692 = vrot.lane.b32.xlu0 %v6684, 32
        %v6693 = vpop.permute.xlu0 %6692
        %v6695 = vmul.f32 %v6683, %v6693
        %6697 = vrot.lane.b32.xlu0 %v6695, 32
        %v6698 = vpop.permute.xlu0 %6697
        %v6700 = vadd.f32 %v6690, %v6698
        %v6701 = vtanh.pop %v6700
        %6703 = vrot.lane.b32.xlu0 %v6701, 32
        %v6704 = vpop.permute.xlu0 %6703
        %v6706 = vmul.f32 %v6683, %v6704
        %6708 = vrot.lane.b32.xlu0 %v6706, 64
        %v6709 = vpop.permute.xlu0 %6708
        %vm6711 = vcmask 254976
        %6712 = vst.msk [vmem:[%s2027] sm:$0x3] %vm6711, %v6709
        %6714 = vrot.lane.b32.xlu0 %v6700, 96
        %v6715 = vpop.permute.xlu0 %6714
        %6717 = vst.msk [vmem:[%s2034] sm:$0x3] %vm6711, %v6715
        %v6718 = vld [vmem:[%s2138] sm:$0xff]
        %v6719 = vld [vmem:[%s2138 + $0x8] sm:$0xff]
        %v6720 = vld [vmem:[%s2138 + $0x10] sm:$0xff]
        %v6721 = vld [vmem:[%s2138 + $0x18] sm:$0xff]
        %v6722 = vld [vmem:[%s1757] sm:$0x1]
        %v6724 = vlaneseq
        %v6725 = vshrl.u32 %v6724, 7
        %v6726 = vsub.s32 0, %v6725
        %v6727 = vrot.slane %v6722, %v6726
        %v6729 = vsel %vm4183, %v6709, 0
        %6731 = vmatprep.subr.mxu0 0.0
        %6732 = vmatpush1.msra.mxu0 %v6718
        %6733 = vmatprep.subr.mxu0 0.0
        %6734 = vmatpush1.msra.mxu0 %v6719
        %6735 = vmatprep.subr.mxu0 0.0
        %6736 = vmatpush1.msra.mxu0 %v6720
        %6737 = vmatprep.subr.mxu0 0.0
        %6738 = vmatpush1.msra.mxu0 %v6721
        %6739 = vmatprep.subr.mxu0 0.0
        %6740 = vmatpush1.msra.mxu0 0.0
        %6741 = vmatprep.subr.mxu0 0.0
        %6742 = vmatpush1.msra.mxu0 0.0
        %6743 = vmatprep.subr.mxu0 0.0
        %6744 = vmatpush1.msra.mxu0 0.0
        %6745 = vmatprep.subr.mxu0 0.0
        %6746 = vmatpush1.msra.mxu0 0.0
        %6747 = vmatprep.subr.mxu0 0.0
        %6748 = vmatpush1.msra.mxu0 0.0
        %6749 = vmatprep.subr.mxu0 0.0
        %6750 = vmatpush1.msra.mxu0 0.0
        %6751 = vmatprep.subr.mxu0 0.0
        %6752 = vmatpush1.msra.mxu0 0.0
        %6753 = vmatprep.subr.mxu0 0.0
        %6754 = vmatpush1.msra.mxu0 0.0
        %6755 = vmatprep.subr.mxu0 0.0
        %6756 = vmatpush1.msra.mxu0 0.0
        %6757 = vmatprep.subr.mxu0 0.0
        %6758 = vmatpush1.msra.mxu0 0.0
        %6759 = vmatprep.subr.mxu0 0.0
        %6760 = vmatpush1.msra.mxu0 0.0
        %6761 = vmatprep.subr.mxu0 0.0
        %6762 = vmatpush1.msra.mxu0 0.0
        %6763 = vmatprep.subr.mxu0 0.0
        %6764 = vmatpush1.msra.mxu0 0.0
        %6765 = vmatprep.subr.mxu0 0.0
        %6766 = vmatpush1.msra.mxu0 0.0
        %6767 = vmatprep.subr.mxu0 0.0
        %6768 = vmatpush1.msra.mxu0 0.0
        %6769 = vmatprep.subr.mxu0 0.0
        %6770 = vmatpush1.msra.mxu0 0.0
        %6771 = vmatprep.subr.mxu0 0.0
        %6772 = vmatpush1.msra.mxu0 0.0
        %6773 = vmatprep.subr.mxu0 0.0
        %6774 = vmatpush1.msra.mxu0 0.0
        %6775 = vmatprep.subr.mxu0 0.0
        %6776 = vmatpush1.msra.mxu0 0.0
        %6777 = vmatprep.subr.mxu0 0.0
        %6778 = vmatpush1.msra.mxu0 0.0
        %6779 = vmatprep.subr.mxu0 0.0
        %6780 = vmatpush1.msra.mxu0 0.0
        %6781 = vmatprep.subr.mxu0 0.0
        %6782 = vmatpush1.msra.mxu0 0.0
        %6783 = vmatprep.subr.mxu0 0.0
        %6784 = vmatpush1.msra.mxu0 0.0
        %6785 = vmatprep.subr.mxu0 0.0
        %6786 = vmatpush1.msra.mxu0 0.0
        %6787 = vmatprep.subr.mxu0 0.0
        %6788 = vmatpush1.msra.mxu0 0.0
        %6789 = vmatprep.subr.mxu0 0.0
        %6790 = vmatpush1.msra.mxu0 0.0
        %6791 = vmatprep.subr.mxu0 0.0
        %6792 = vmatpush1.msra.mxu0 0.0
        %6793 = vmatprep.subr.mxu0 0.0
        %6794 = vmatpush1.msra.mxu0 0.0
        %6795 = vmatprep.mubr.f32.mxu0 0.0
        %6796 = vmatmul.mubr.f32.gmra.mrb[0].mxu0 %v6729
        %v6797 = vpop.f32.mrb[0].mxu0
        %v6798 = vadd.f32 %v6727, %v6797
        %v6799 = vpop.f32.mrb[0].mxu0
        %6800 = vdwg.mxu0
        %v6801 = vld [vmem:[%s2143] sm:$0xff]
        %v6802 = vld [vmem:[%s2143 + $0x8] sm:$0xff]
        %v6803 = vld [vmem:[%s2143 + $0x10] sm:$0xff]
        %v6804 = vld [vmem:[%s2143 + $0x18] sm:$0xff]
        %v6805 = vld [vmem:[%s1765] sm:$0x1]
        %v6807 = vlaneseq
        %v6808 = vshrl.u32 %v6807, 7
        %v6809 = vsub.s32 0, %v6808
        %v6810 = vrot.slane %v6805, %v6809
        %v6813 = vsel %vm4183, %v6328, 0
        %v6816 = vsel %vm4183, %v6329, 0
        %6818 = vmatprep.subr.mxu0 0.0
        %6819 = vmatpush1.msra.mxu0 %v6801
        %6820 = vmatprep.subr.mxu0 0.0
        %6821 = vmatpush1.msra.mxu0 %v6802
        %6822 = vmatprep.subr.mxu0 0.0
        %6823 = vmatpush1.msra.mxu0 %v6803
        %6824 = vmatprep.subr.mxu0 0.0
        %6825 = vmatpush1.msra.mxu0 %v6804
        %6826 = vmatprep.subr.mxu0 0.0
        %6827 = vmatpush1.msra.mxu0 0.0
        %6828 = vmatprep.subr.mxu0 0.0
        %6829 = vmatpush1.msra.mxu0 0.0
        %6830 = vmatprep.subr.mxu0 0.0
        %6831 = vmatpush1.msra.mxu0 0.0
        %6832 = vmatprep.subr.mxu0 0.0
        %6833 = vmatpush1.msra.mxu0 0.0
        %6834 = vmatprep.subr.mxu0 0.0
        %6835 = vmatpush1.msra.mxu0 0.0
        %6836 = vmatprep.subr.mxu0 0.0
        %6837 = vmatpush1.msra.mxu0 0.0
        %6838 = vmatprep.subr.mxu0 0.0
        %6839 = vmatpush1.msra.mxu0 0.0
        %6840 = vmatprep.subr.mxu0 0.0
        %6841 = vmatpush1.msra.mxu0 0.0
        %6842 = vmatprep.subr.mxu0 0.0
        %6843 = vmatpush1.msra.mxu0 0.0
        %6844 = vmatprep.subr.mxu0 0.0
        %6845 = vmatpush1.msra.mxu0 0.0
        %6846 = vmatprep.subr.mxu0 0.0
        %6847 = vmatpush1.msra.mxu0 0.0
        %6848 = vmatprep.subr.mxu0 0.0
        %6849 = vmatpush1.msra.mxu0 0.0
        %6850 = vmatprep.subr.mxu0 0.0
        %6851 = vmatpush1.msra.mxu0 0.0
        %6852 = vmatprep.subr.mxu0 0.0
        %6853 = vmatpush1.msra.mxu0 0.0
        %6854 = vmatprep.subr.mxu0 0.0
        %6855 = vmatpush1.msra.mxu0 0.0
        %6856 = vmatprep.subr.mxu0 0.0
        %6857 = vmatpush1.msra.mxu0 0.0
        %6858 = vmatprep.subr.mxu0 0.0
        %6859 = vmatpush1.msra.mxu0 0.0
        %6860 = vmatprep.subr.mxu0 0.0
        %6861 = vmatpush1.msra.mxu0 0.0
        %6862 = vmatprep.subr.mxu0 0.0
        %6863 = vmatpush1.msra.mxu0 0.0
        %6864 = vmatprep.subr.mxu0 0.0
        %6865 = vmatpush1.msra.mxu0 0.0
        %6866 = vmatprep.subr.mxu0 0.0
        %6867 = vmatpush1.msra.mxu0 0.0
        %6868 = vmatprep.subr.mxu0 0.0
        %6869 = vmatpush1.msra.mxu0 0.0
        %6870 = vmatprep.subr.mxu0 0.0
        %6871 = vmatpush1.msra.mxu0 0.0
        %6872 = vmatprep.subr.mxu0 0.0
        %6873 = vmatpush1.msra.mxu0 0.0
        %6874 = vmatprep.subr.mxu0 0.0
        %6875 = vmatpush1.msra.mxu0 0.0
        %6876 = vmatprep.subr.mxu0 0.0
        %6877 = vmatpush1.msra.mxu0 0.0
        %6878 = vmatprep.subr.mxu0 0.0
        %6879 = vmatpush1.msra.mxu0 0.0
        %6880 = vmatprep.subr.mxu0 0.0
        %6881 = vmatpush1.msra.mxu0 0.0
        %6882 = vmatprep.mubr.f32.mxu0 0.0
        %6883 = vmatmul.mubr.f32.gmra.mrb[0].mxu0 %v6813
        %v6884 = vpop.f32.mrb[0].mxu0
        %v6885 = vadd.f32 %v6810, %v6884
        %v6886 = vpop.f32.mrb[0].mxu0
        %6887 = vmatprep.mubr.f32.mxu0 0.0
        %6888 = vmatmul.mubr.f32.gmra.mrb[0].mxu0 %v6816
        %v6889 = vpop.f32.mrb[0].mxu0
        %v6890 = vadd.f32 %v6810, %v6889
        %v6891 = vpop.f32.mrb[0].mxu0
        %6892 = vdwg.mxu0
        %v6895 = vunpack.c.l.s4 1966171168
        %v6896 = vunpack.c.0.s8 %v6895
        %v6897 = vlaneseq
        %v6898 = vshrl.u32 %v6897, 7
        %v6899 = vsub.s32 %v6896, %v6898
        %v6900 = vrot.slane %v6798, %v6899
        %v6901 = vcombine.high %v6900, %v6900
        %v6903 = vunpack.c.l.s4 1966171168
        %v6904 = vunpack.c.0.s8 %v6903
        %v6905 = vlaneseq
        %v6906 = vshrl.u32 %v6905, 7
        %v6907 = vsub.s32 %v6904, %v6906
        %v6908 = vrot.slane %v6900, %v6907
        %v6910 = vunpack.c.l.s4 1966171168
        %v6911 = vunpack.c.0.s8 %v6910
        %v6912 = vlaneseq
        %v6913 = vshrl.u32 %v6912, 7
        %v6914 = vsub.s32 %v6911, %v6913
        %v6915 = vrot.slane %v6901, %v6914
        %v6916 = vlaneseq
        %v6917 = vshrl.u32 %v6916, 7
        %v6918 = vsub.s32 0, %v6917
        %v6919 = vrot.slane %v6908, %v6918
        %v6920 = vlaneseq
        %v6921 = vshrl.u32 %v6920, 7
        %v6922 = vsub.s32 0, %v6921
        %v6923 = vrot.slane %v6915, %v6922
        %v6926 = vadd.f32 %v6919, %v6885
        %v6927 = vadd.f32 %v6923, %v6890
        %v6928 = vtanh.pop %v6926
        %v6929 = vtanh.pop %v6927
        %v6930 = vld [vmem:[%s1773] sm:$0x1]
        %v6932 = vlaneseq
        %v6933 = vshrl.u32 %v6932, 7
        %v6934 = vsub.s32 0, %v6933
        %v6935 = vrot.slane %v6930, %v6934
        %v6937 = vmul.f32 %v6928, %v6935
        %v6938 = vmul.f32 %v6929, %v6935
        %v6939 = vsel %vm4183, %v6937, 0.0
        %6940 = vadd.xlane.f32.xlu0 %v6939
        %v6941 = vpop.xlane.xlu0 %6940
        %v6942 = vsel %vm4183, %v6938, 0.0
        %6943 = vadd.xlane.f32.xlu0 %v6942
        %v6944 = vpop.xlane.xlu0 %6943
        %v6945 = vld [vmem:[#allocation7] sm:$0x3]
        %vm6946 = vcmp.ne.s32.totalorder %v6945, 0
        %v6949 = vlaneseq
        %v6950 = vand.u32 %v6949, 127
        %v6951 = vlaneseq
        %v6952 = vshrl.u32 %v6951, 7
        %v6953 = vsub.s32 %v6950, %v6952
        %v6954 = vrot.slane %v6941, %v6953
        %v6955 = vlaneseq
        %v6956 = vshrl.u32 %v6955, 7
        %v6957 = vsub.s32 %v6950, %v6956
        %v6958 = vrot.slane %v6944, %v6957
        %vm6959 = vcmask 1041409
        %v6960 = vsel %vm6959, %v6958, %v6954
        %v6962 = vsel %vm6946, -1e+30, %v6960
        %vm6963 = vcmask 58368
        %v6964 = vsel %vm6963, %v6962, -inf
        %6965 = vmax.xlane.f32.xlu0 %v6964
        %v6966 = vpop.xlane.xlu0 %6965
        %v6967 = vsub.f32 %v6962, %v6966
        %v6968 = vmul.f32 %v6967, 1.442695
        %v6969 = vpow.pop %v6968
        %v6970 = vsel %vm6963, %v6969, 0.0
        %6971 = vadd.xlane.f32.xlu0 %v6970
        %v6972 = vpop.xlane.xlu0 %6971
        %v6973 = vrcp.pop %v6972
        %v6974 = vmul.f32 %v6969, %v6973
        %6975 = vst.msk [vmem:[%s2020] sm:$0x3] %vm6963, %v6974
        %s6976 = sand.u32 %s1220, 1
        %s6977 = scalar_lea.sflag [#allocation6], %s6976
        %s6978 = sand.u32 %s1220, 1
        %s6979 = smul.addr %s6978, 16
        %s6980 = scalar_lea.vmem [#allocation17], %s6979
        %s6981 = sand.u32 %s118, 1
        %s6982 = scalar_lea.sflag [#allocation19], %s6981
        %s6983 = sand.u32 %s1246, 1
        %s6984 = smul.addr %s6983, 2
        %s6985 = scalar_lea.vmem [#allocation18], %s6984
        %s6986 = sand.u32 %s118, 1
        %s6987 = scalar_lea.sflag [#allocation19], %s6986
        %s6988 = sand.u32 %s1272, 1
        %s6989 = smul.addr %s6988, 2
        %s6990 = scalar_lea.vmem [#allocation20], %s6989
        %s6991 = sand.u32 %s1298, 1
        %s6992 = scalar_lea.sflag [#allocation22], %s6991
        %s6993 = sand.u32 %s1298, 1
        %s6994 = smul.addr %s6993, 2
        %s6995 = scalar_lea.vmem [#allocation21], %s6994
        // Predicated region
        $region241: #{multi_agent_forward.1} parent=195 // pred_check
          %p6996 = pneg %p1230
        $region242: #{multi_agent_forward.1} parent=195 // pred_check_branch
          %6998 = sbr.rel (%p6996) target = $region244
        $region243: #{multi_agent_forward.1} parent=195 // pred_region
          %s7000 = ssub.s32 256, 256
          %7001 = vsyncadd %s6977, %s7000
          %s7002 = smul.addr %s118, 2
          %s7003 = smul.addr %s7002, 128
          %s7004 = scalar_lea.hbm %s89, %s7003
          %s7005 = sshll.u32 %s6980, 4
          %s7006 = int_to_ptr.vmem [resolvable:$true] %s7005
          %7011 = dma.vmem_to_hbm [thread:$0]  %s7006, 256, %s7004, %s6977, 128, 128, 8
        $region244: #{multi_agent_forward.1} parent=195 // pred_fallthru
          _
        // Predicated region
        $region245: #{multi_agent_forward.1} parent=195 // pred_check
          %p7012 = pneg %p1256
        $region246: #{multi_agent_forward.1} parent=195 // pred_check_branch
          %7014 = sbr.rel (%p7012) target = $region248
        $region247: #{multi_agent_forward.1} parent=195 // pred_region
          %s7016 = ssub.s32 32, 32
          %7017 = vsyncadd %s6982, %s7016
          %s7018 = smul.addr %s118, 32
          %s7019 = scalar_lea.hbm %s91, %s7018
          %s7021 = sshll.u32 %s6985, 4
          %s7022 = int_to_ptr.vmem [resolvable:$true] %s7021
          %7024 = dma.vmem_to_hbm [thread:$0]  %s7022, 32, %s7019, %s6982
        $region248: #{multi_agent_forward.1} parent=195 // pred_fallthru
          _
        // Predicated region
        $region249: #{multi_agent_forward.1} parent=195 // pred_check
          %p7025 = pneg %p1282
        $region250: #{multi_agent_forward.1} parent=195 // pred_check_branch
          %7027 = sbr.rel (%p7025) target = $region252
        $region251: #{multi_agent_forward.1} parent=195 // pred_region
          %s7029 = ssub.s32 32, 32
          %7030 = vsyncadd %s6987, %s7029
          %s7031 = smul.addr %s118, 32
          %s7032 = scalar_lea.hbm %s93, %s7031
          %s7034 = sshll.u32 %s6990, 4
          %s7035 = int_to_ptr.vmem [resolvable:$true] %s7034
          %7037 = dma.vmem_to_hbm [thread:$0]  %s7035, 32, %s7032, %s6987
        $region252: #{multi_agent_forward.1} parent=195 // pred_fallthru
          _
        // Predicated region
        $region253: #{multi_agent_forward.1} parent=195 // pred_check
          %p7038 = pneg %p1308
        $region254: #{multi_agent_forward.1} parent=195 // pred_check_branch
          %7040 = sbr.rel (%p7038) target = $region256
        $region255: #{multi_agent_forward.1} parent=195 // pred_region
          %s7042 = ssub.s32 32, 32
          %7043 = vsyncadd %s6992, %s7042
          %s7044 = smul.addr %s118, 32
          %s7045 = scalar_lea.hbm %s95, %s7044
          %s7047 = sshll.u32 %s6995, 4
          %s7048 = int_to_ptr.vmem [resolvable:$true] %s7047
          %7050 = dma.vmem_to_hbm [thread:$0]  %s7048, 32, %s7045, %s6992
        $region256: #{multi_agent_forward.1} parent=195 // pred_fallthru
          _
      $region196: #{multi_agent_forward.1} parent=5 // pred_fallthru
        _
      %p7051 = scmp.le.s32.totalorder 2, %s113
      // Predicated region
      $region257: #{multi_agent_forward.1} parent=5 // pred_check
        %p7052 = pneg %p7051
      $region258: #{multi_agent_forward.1} parent=5 // pred_check_branch
        %7054 = sbr.rel (%p7052) target = $region260
      $region259: #{multi_agent_forward.1} parent=5 // pred_region
        %s7055 = ssub.s32 %s113, 2
        // Predicated region
        $region261: #{multi_agent_forward.1} parent=259 // pred_check
          %p7056 = pneg %p1236
        $region262: #{multi_agent_forward.1} parent=259 // pred_check_branch
          %7058 = sbr.rel (%p7056) target = $region264
        $region263: #{multi_agent_forward.1} parent=259 // pred_region
          %s7059 = sand.u32 %s1221, 1
          %s7060 = scalar_lea.sflag [#allocation6], %s7059
          %s7061 = sand.u32 %s1221, 1
          %s7062 = smul.addr %s7061, 16
          %s7063 = scalar_lea.vmem [#allocation17], %s7062
          %7064 = dma.done %s7060, 256
        $region264: #{multi_agent_forward.1} parent=259 // pred_fallthru
          _
        // Predicated region
        $region265: #{multi_agent_forward.1} parent=259 // pred_check
          %p7065 = pneg %p1262
        $region266: #{multi_agent_forward.1} parent=259 // pred_check_branch
          %7067 = sbr.rel (%p7065) target = $region268
        $region267: #{multi_agent_forward.1} parent=259 // pred_region
          %s7068 = sand.u32 %s119, 1
          %s7069 = scalar_lea.sflag [#allocation19], %s7068
          %s7070 = sand.u32 %s1247, 1
          %s7071 = smul.addr %s7070, 2
          %s7072 = scalar_lea.vmem [#allocation18], %s7071
          %7073 = dma.done %s7069, 32
        $region268: #{multi_agent_forward.1} parent=259 // pred_fallthru
          _
        // Predicated region
        $region269: #{multi_agent_forward.1} parent=259 // pred_check
          %p7074 = pneg %p1288
        $region270: #{multi_agent_forward.1} parent=259 // pred_check_branch
          %7076 = sbr.rel (%p7074) target = $region272
        $region271: #{multi_agent_forward.1} parent=259 // pred_region
          %s7077 = sand.u32 %s119, 1
          %s7078 = scalar_lea.sflag [#allocation19], %s7077
          %s7079 = sand.u32 %s1273, 1
          %s7080 = smul.addr %s7079, 2
          %s7081 = scalar_lea.vmem [#allocation20], %s7080
          %7082 = dma.done %s7078, 32
        $region272: #{multi_agent_forward.1} parent=259 // pred_fallthru
          _
        // Predicated region
        $region273: #{multi_agent_forward.1} parent=259 // pred_check
          %p7083 = pneg %p1314
        $region274: #{multi_agent_forward.1} parent=259 // pred_check_branch
          %7085 = sbr.rel (%p7083) target = $region276
        $region275: #{multi_agent_forward.1} parent=259 // pred_region
          %s7086 = sand.u32 %s1299, 1
          %s7087 = scalar_lea.sflag [#allocation22], %s7086
          %s7088 = sand.u32 %s1299, 1
          %s7089 = smul.addr %s7088, 2
          %s7090 = scalar_lea.vmem [#allocation21], %s7089
          %7091 = dma.done %s7087, 32
        $region276: #{multi_agent_forward.1} parent=259 // pred_fallthru
          _
      $region260: #{multi_agent_forward.1} parent=5 // pred_fallthru
        _
    $region6: #{multi_agent_forward.1} parent=1 // loop_footer
      %s117 = sadd.s32 1, %s113
    $region7: #{multi_agent_forward.1} parent=1 // loop_footer_branch
      %112 = sbr.rel target = $region3
    $region8: #{multi_agent_forward.1} parent=1 // loop_exit
      _
    %7092 = vsyncpa [#allocation5], 1
    %s7093 = scalar_lea.sflag [#allocation5], 1
    %7094 = vsyncpa %s7093, 1
    %7095 = vsyncpa [#allocation8], 1
    %7096 = vsyncpa [#allocation6], 1
    %s7097 = scalar_lea.sflag [#allocation6], 1
    %7098 = vsyncpa %s7097, 1
    %7099 = vsyncpa [#allocation19], 1
    %s7100 = scalar_lea.sflag [#allocation19], 1
    %7101 = vsyncpa %s7100, 1
    %7102 = vsyncpa [#allocation22], 1
    %s7103 = scalar_lea.sflag [#allocation22], 1
    %7104 = vsyncpa %s7103, 1

</llo_original>
